<compile_context>
chip_gen: v5e
topology: v5e:2x2
jax: 0.10.0
libtpu: 0.0.40
codegen_flags: <defaults>
</compile_context>

<pallas_src>
import functools
import inspect

import jax
import jax.numpy as jnp
from jax.experimental import pallas as pl
from jax.experimental.pallas import tpu as pltpu


# Set to the triggering exception if pl.Buffered(1) had to be disabled.
PIPELINE_MODE_FALLBACK = None


# --------------------------- chip detection ---------------------------------

def _chip_info():
    """Best-effort TPU-generation lookup (per-TensorCore numbers)."""
    try:
        kind = jax.devices()[0].device_kind.lower()
    except Exception:
        kind = ""
    if "v5" in kind:    # v5e/v5p: 128-row MXU tiles, 1 TC visible, 128 MiB VMEM
        return dict(name="v5", mxu_rows=128, cores=1, vmem=128 << 20)
    if "v6" in kind:    # v6e: 2x256x256 MXU, 1 TC, 128 MiB VMEM
        return dict(name="v6e", mxu_rows=256, cores=1, vmem=128 << 20)
    if "v7" in kind or "7x" in kind:   # v7x: 2 TCs/chip, 64 MiB VMEM per TC
        return dict(name="v7x", mxu_rows=256, cores=2, vmem=64 << 20)
    # Unknown generation: assume the tightest (v7x-like) VMEM budget.
    return dict(name="unknown", mxu_rows=256, cores=1, vmem=64 << 20)


def _pipeline_mode_supported():
    if not hasattr(pl, "Buffered"):
        return False
    for target in (pl.BlockSpec, getattr(pl.BlockSpec, "__init__", None)):
        if target is None:
            continue
        try:
            if "pipeline_mode" in inspect.signature(target).parameters:
                return True
        except (TypeError, ValueError):
            continue
    return False


def _select_batch_tile(B, chip):
    cores = chip["cores"]
    # v7x: split the batch across the two TensorCores only when every core gets
    # at least one full 256-row MXU tile; otherwise the duplicated weight DMA
    # costs more than the split saves.
    if cores > 1 and B >= cores * 256:
        for t in (256, 128):
            if B % t == 0 and (B // t) >= cores:
                return t
    # Single core (v5e/v6e, or small-B v7x): minimize serial grid steps with
    # one big tile (a 128-row tile already fills the v5e MXU; fewer ~0.35us
    # grid steps is what actually matters at these sizes).
    if B <= 512:
        return B
    for t in (512, 256, 128):
        if B % t == 0:
            return t
    return B


# ----------------------------- kernels --------------------------------------

def mlp_resident_kernel(x_ref, w1_ref, b1_ref, wm_ref, bm_ref, wl_ref, bl_ref,
                        o_ref, *, n_layers):
    """Fused MLP forward for one batch tile; whole weight stack VMEM-resident.

    x_ref : (TB, state_dim) f32
    w1_ref: (state_dim, hidden) bf16     b1_ref: (1, hidden) f32
    wm_ref: (n_layers, hidden, hidden) bf16   bm_ref: (n_layers, 1, hidden) f32
    wl_ref: (hidden, n_pad) bf16         bl_ref: (1, n_pad) f32
    o_ref : (TB, n_pad) f32
    """
    cdt = w1_ref.dtype  # bf16 MXU operand dtype

    # first layer + ReLU; cast the carried activation to bf16 once, post-ReLU
    h = jnp.dot(x_ref[...].astype(cdt), w1_ref[...],
                preferred_element_type=jnp.float32) + b1_ref[...]
    h = jnp.maximum(h, 0.0).astype(cdt)

    # hidden layers + ReLU; static i -> cheap per-layer VMEM views, only one
    # (hidden, hidden) operand live at a time.
    for i in range(n_layers):
        h = jnp.dot(h, wm_ref[i], preferred_element_type=jnp.float32) + bm_ref[i]
        h = jnp.maximum(h, 0.0).astype(cdt)

    # last layer (no activation), lane-dense padded width
    o = jnp.dot(h, wl_ref[...], preferred_element_type=jnp.float32) + bl_ref[...]
    o_ref[...] = o.astype(o_ref.dtype)


def mlp_stream_kernel(x_ref, w1_ref, b1_ref, wm_ref, bm_ref, wl_ref, bl_ref,
                      o_ref, h_ref, *, n_layers):
    """Layer-streaming variant: grid = (batch_tiles, n_layers); the pipeline
    double-buffers one (1, hidden, hidden) weight block per step and `h` is
    carried across the layer axis in a VMEM scratch.
    """
    cdt = w1_ref.dtype
    l = pl.program_id(1)

    @pl.when(l == 0)
    def _first_layer():
        h = jnp.dot(x_ref[...].astype(cdt), w1_ref[...],
                    preferred_element_type=jnp.float32) + b1_ref[...]
        h_ref[...] = jnp.maximum(h, 0.0).astype(cdt)

    h = jnp.dot(h_ref[...], wm_ref[0],
                preferred_element_type=jnp.float32) + bm_ref[0]
    h_ref[...] = jnp.maximum(h, 0.0).astype(cdt)

    @pl.when(l == n_layers - 1)
    def _last_layer():
        o = jnp.dot(h_ref[...], wl_ref[...],
                    preferred_element_type=jnp.float32) + bl_ref[...]
        o_ref[...] = o.astype(o_ref.dtype)


# ----------------------------- wrapper ---------------------------------------

def network_forward(x, params, *, n_layers, batch_tile=None, layer_stream=None):
    """Run the fused MLP Pallas kernel.  x: (B, state_dim) float32."""
    global PIPELINE_MODE_FALLBACK

    w1, b1, wm, bm = params["w1"], params["b1"], params["wm"], params["bm"]
    wl, bl = params["wl"], params["bl"]

    B, state_dim = x.shape
    hidden = w1.shape[1]
    n_actions = wl.shape[1]
    assert n_layers >= 1 and wm.shape[0] == n_layers

    chip = _chip_info()
    wdt = wm.dtype
    wsz = jnp.dtype(wdt).itemsize

    # Lane-dense final projection: pad N up to a multiple of 128 (>= 128) so the
    # output stores are unmasked 128-wide vst; sliced back after the kernel.
    n_pad = max(128, pl.cdiv(n_actions, 128) * 128)
    wl_p = jnp.pad(wl, ((0, 0), (0, n_pad - n_actions)))
    bl_p = jnp.pad(bl, ((0, 0), (0, n_pad - n_actions)))

    tb = batch_tile or _select_batch_tile(B, chip)
    assert B % tb == 0, (B, tb)
    n_batch_tiles = B // tb
    steps_per_core = -(-n_batch_tiles // chip["cores"])

    # --- byte bookkeeping (drives layer_stream choice and vmem_limit_bytes) ---
    fixed_w_bytes = w1.nbytes + b1.nbytes + wl_p.nbytes + bl_p.nbytes
    stack_w_bytes = wm.nbytes + bm.nbytes
    x_tile_bytes = tb * state_dim * x.dtype.itemsize
    o_tile_bytes = tb * n_pad * x.dtype.itemsize
    act_bytes = tb * hidden * (4 + wsz)   # f32 dot result + bf16 carried h

    resident_estimate = (fixed_w_bytes + stack_w_bytes
                         + 2 * (x_tile_bytes + o_tile_bytes) + act_bytes)
    if layer_stream is None:
        # Stream per-layer weights when the fully resident plan would not fit
        # comfortably in the per-core VMEM of this generation (v7x: 64 MiB).
        layer_stream = resident_estimate > 0.7 * chip["vmem"]

    flops = 2 * B * (state_dim * hidden + n_layers * hidden * hidden
                     + hidden * n_pad)
    bytes_accessed = (x.nbytes + fixed_w_bytes + stack_w_bytes
                      + B * n_pad * x.dtype.itemsize)
    cost = pl.CostEstimate(flops=flops, transcendentals=0,
                           bytes_accessed=bytes_accessed)

    buffered_ok = _pipeline_mode_supported()

    def _build(use_buffered):
        def wspec(shape, index_map):
            # Grid-invariant weights: a single VMEM buffer is enough.
            if use_buffered:
                return pl.BlockSpec(shape, index_map,
                                    pipeline_mode=pl.Buffered(1))
            return pl.BlockSpec(shape, index_map)

        single_io = (use_buffered and not layer_stream
                     and n_batch_tiles <= chip["cores"])

        def iospec(shape, index_map):
            # x/out tiles: single-buffer when each core runs at most one batch
            # tile (the pipeline has nothing to overlap with).
            if single_io:
                return pl.BlockSpec(shape, index_map,
                                    pipeline_mode=pl.Buffered(1))
            return pl.BlockSpec(shape, index_map)

        wbuf = 1 if use_buffered else 2
        iobuf = 1 if single_io else 2

        if not layer_stream:
            vmem_need = ((fixed_w_bytes + stack_w_bytes) * wbuf
                         + (x_tile_bytes + o_tile_bytes) * iobuf + act_bytes)
            in_specs = [
                iospec((tb, state_dim), lambda i: (i, 0)),
                wspec((state_dim, hidden), lambda i: (0, 0)),
                wspec((1, hidden), lambda i: (0, 0)),
                wspec((n_layers, hidden, hidden), lambda i: (0, 0, 0)),
                wspec((n_layers, 1, hidden), lambda i: (0, 0, 0)),
                wspec((hidden, n_pad), lambda i: (0, 0)),
                wspec((1, n_pad), lambda i: (0, 0)),
            ]
            out_spec = iospec((tb, n_pad), lambda i: (i, 0))
            grid = (n_batch_tiles,)
            dims = ("parallel",)
            kernel = functools.partial(mlp_resident_kernel, n_layers=n_layers)
            scratch = []
        else:
            per_layer_bytes = 2 * (hidden * hidden * wsz + hidden * 4)  # 2 bufs
            vmem_need = (fixed_w_bytes * wbuf + per_layer_bytes
                         + 2 * (x_tile_bytes + o_tile_bytes)
                         + tb * hidden * wsz        # carried h scratch
                         + tb * hidden * 4)         # f32 dot result
            in_specs = [
                pl.BlockSpec((tb, state_dim), lambda i, l: (i, 0)),
                wspec((state_dim, hidden), lambda i, l: (0, 0)),
                wspec((1, hidden), lambda i, l: (0, 0)),
                pl.BlockSpec((1, hidden, hidden), lambda i, l: (l, 0, 0)),
                pl.BlockSpec((1, 1, hidden), lambda i, l: (l, 0, 0)),
                wspec((hidden, n_pad), lambda i, l: (0, 0)),
                wspec((1, n_pad), lambda i, l: (0, 0)),
            ]
            out_spec = pl.BlockSpec((tb, n_pad), lambda i, l: (i, 0))
            grid = (n_batch_tiles, n_layers)
            dims = ("parallel", "arbitrary")
            kernel = functools.partial(mlp_stream_kernel, n_layers=n_layers)
            scratch = [pltpu.VMEM((tb, hidden), wdt)]

        vmem_limit = min(max(int(vmem_need * 1.3) + (2 << 20), 32 << 20),
                         int(chip["vmem"] * 0.9))

        return pl.pallas_call(
            kernel,
            out_shape=jax.ShapeDtypeStruct((B, n_pad), x.dtype),
            grid=grid,
            in_specs=in_specs,
            out_specs=out_spec,
            scratch_shapes=scratch,
            compiler_params=pltpu.CompilerParams(
                dimension_semantics=dims,
                vmem_limit_bytes=vmem_limit),
            cost_estimate=cost,
        )(x, w1, b1, wm, bm, wl_p, bl_p)

    if buffered_ok:
        try:
            out_padded = _build(True)
        except Exception as err:  # pipeline_mode accepted by API but rejected by lowering
            try:
                out_padded = _build(False)
            except Exception:
                raise err  # genuine failure: surface the original error
            PIPELINE_MODE_FALLBACK = err  # recorded, not silently hidden
    else:
        out_padded = _build(False)

    # TODO(synk): for n_actions << 128 consider a bf16 padded output (halves the
    # HBM writeback) and let a jitted caller fuse this slice instead of paying a
    # separate copy.
    return out_padded[:, :n_actions]


# ----------------------------- params ----------------------------------------

def init_params(key, state_dim, n_actions, n_layers, hidden_dim,
                weight_dtype=jnp.bfloat16):
    """nn.Linear-style init U(-1/sqrt(fan_in), 1/sqrt(fan_in)).

    Weights stored pre-transposed as (in, out) in bf16 (MXU operand dtype);
    biases kept in f32 and added into the f32 MXU accumulator.
    """
    def linear(k, fan_in, fan_out):
        kw, kb = jax.random.split(k)
        bound = 1.0 / float(fan_in) ** 0.5
        w = jax.random.uniform(kw, (fan_in, fan_out), jnp.float32,
                               -bound, bound).astype(weight_dtype)
        b = jax.random.uniform(kb, (1, fan_out), jnp.float32, -bound, bound)
        return w, b

    keys = jax.random.split(key, n_layers + 2)
    w1, b1 = linear(keys[0], state_dim, hidden_dim)
    wm_list, bm_list = [], []
    for i in range(n_layers):
        w, b = linear(keys[1 + i], hidden_dim, hidden_dim)
        wm_list.append(w)
        bm_list.append(b)
    wl, bl = linear(keys[-1], hidden_dim, n_actions)
    return {
        "w1": w1, "b1": b1,
        "wm": jnp.stack(wm_list, axis=0),   # (n_layers, hidden, hidden) bf16
        "bm": jnp.stack(bm_list, axis=0),   # (n_layers, 1, hidden) f32
        "wl": wl, "bl": bl,
    }


def reference_forward(x, params, n_layers):
    """Pure-JAX reference with the same bf16-operand / f32-accumulate math."""
    cdt = params["w1"].dtype
    h = jnp.dot(x.astype(cdt), params["w1"],
                preferred_element_type=jnp.float32) + params["b1"]
    h = jnp.maximum(h, 0.0).astype(cdt)
    for i in range(n_layers):
        h = jnp.dot(h, params["wm"][i],
                    preferred_element_type=jnp.float32) + params["bm"][i]
        h = jnp.maximum(h, 0.0).astype(cdt)
    return jnp.dot(h, params["wl"],
                   preferred_element_type=jnp.float32) + params["bl"]


# ----------------------------- main ------------------------------------------

if __name__ == "__main__":
    state_dim = 16
    n_actions = 8
    n_layers = 4
    hidden_dim = 256
    batch = 256   # -> one full MXU-aligned tile, grid=(1,) on all generations

    key = jax.random.PRNGKey(0)
    kx, kp = jax.random.split(key)
    x = jax.random.normal(kx, (batch, state_dim), dtype=jnp.float32)
    params = init_params(kp, state_dim, n_actions, n_layers, hidden_dim)

    ref = reference_forward(x, params, n_layers)

    # Resident-weight path (the expected path at this config).
    out = jax.block_until_ready(network_forward(x, params, n_layers=n_layers))
    assert out.shape == (batch, n_actions)
    assert jnp.allclose(out, ref, atol=1e-2, rtol=1e-2), \
        "resident path mismatch vs JAX reference"

    # Layer-streaming path (auto-selected when the weight stack would not fit
    # per-core VMEM, e.g. large hidden/n_layers on v7x); exercised here at
    # small shapes to keep it correctness-checked.
    out_s = jax.block_until_ready(
        network_forward(x, params, n_layers=n_layers, layer_stream=True))
    assert jnp.allclose(out_s, ref, atol=1e-2, rtol=1e-2), \
        "layer-streaming path mismatch vs JAX reference"

    print("KERNEL_OK")
</pallas_src>

<mosaic_0001>
module attributes {stable_mosaic.version = 11 : i64} {
  func.func @mlp_resident_kernel(%arg0: i32, %arg1: memref<256x16xf32, #tpu.memory_space<vmem>>, %arg2: memref<16x256xbf16, #tpu.memory_space<vmem>>, %arg3: memref<1x256xf32, #tpu.memory_space<vmem>>, %arg4: memref<4x256x256xbf16, #tpu.memory_space<vmem>>, %arg5: memref<4x1x256xf32, #tpu.memory_space<vmem>>, %arg6: memref<256x128xbf16, #tpu.memory_space<vmem>>, %arg7: memref<1x128xf32, #tpu.memory_space<vmem>>, %arg8: memref<256x128xf32, #tpu.memory_space<vmem>>) attributes {dimension_semantics = [#tpu.dimension_semantics<parallel>], iteration_bounds = array<i64: 1>, scalar_prefetch = 0 : i64, scratch_operands = 0 : i64, tpu.core_type = #tpu.core_type<tc>, window_params = [{pipeline_mode = #tpu.pipeline_mode<synchronous>, transform_indices = @transform_0, window_bounds = array<i64: 256, 16>}, {pipeline_mode = #tpu.pipeline_mode<synchronous>, transform_indices = @transform_1, window_bounds = array<i64: 16, 256>}, {pipeline_mode = #tpu.pipeline_mode<synchronous>, transform_indices = @transform_2, window_bounds = array<i64: 1, 256>}, {pipeline_mode = #tpu.pipeline_mode<synchronous>, transform_indices = @transform_3, window_bounds = array<i64: 4, 256, 256>}, {pipeline_mode = #tpu.pipeline_mode<synchronous>, transform_indices = @transform_4, window_bounds = array<i64: 4, 1, 256>}, {pipeline_mode = #tpu.pipeline_mode<synchronous>, transform_indices = @transform_5, window_bounds = array<i64: 256, 128>}, {pipeline_mode = #tpu.pipeline_mode<synchronous>, transform_indices = @transform_6, window_bounds = array<i64: 1, 128>}, {pipeline_mode = #tpu.pipeline_mode<synchronous>, transform_indices = @transform_7, window_bounds = array<i64: 256, 128>}]} {
    %c0 = arith.constant 0 : index
    %c0_0 = arith.constant 0 : index
    %0 = vector.load %arg1[%c0, %c0_0] : memref<256x16xf32, #tpu.memory_space<vmem>>, vector<256x16xf32>
    %1 = arith.truncf %0 : vector<256x16xf32> to vector<256x16xbf16>
    %c0_1 = arith.constant 0 : index
    %c0_2 = arith.constant 0 : index
    %2 = vector.load %arg2[%c0_1, %c0_2] : memref<16x256xbf16, #tpu.memory_space<vmem>>, vector<16x256xbf16>
    %cst = arith.constant dense<0.000000e+00> : vector<256x256xf32>
    %3 = tpu.matmul %1, %2, %cst {dimension_numbers = #tpu.dot_dimension_numbers<[1], [0], [0], [1], [0, 0, 1, 1], [], []>} : vector<256x16xbf16>, vector<16x256xbf16>, vector<256x256xf32> -> vector<256x256xf32>
    %c0_3 = arith.constant 0 : index
    %c0_4 = arith.constant 0 : index
    %4 = vector.load %arg3[%c0_3, %c0_4] : memref<1x256xf32, #tpu.memory_space<vmem>>, vector<1x256xf32>
    %5 = vector.broadcast %4 : vector<1x256xf32> to vector<256x256xf32>
    %6 = arith.addf %3, %5 : vector<256x256xf32>
    %cst_5 = arith.constant 0.000000e+00 : f32
    %7 = vector.broadcast %cst_5 : f32 to vector<256x256xf32>
    %8 = arith.maximumf %6, %7 : vector<256x256xf32>
    %9 = arith.truncf %8 : vector<256x256xf32> to vector<256x256xbf16>
    %c0_6 = arith.constant 0 : index
    %c0_7 = arith.constant 0 : index
    %c0_8 = arith.constant 0 : index
    %10 = vector.load %arg4[%c0_6, %c0_7, %c0_8] : memref<4x256x256xbf16, #tpu.memory_space<vmem>>, vector<1x256x256xbf16>
    %11 = vector.shape_cast %10 : vector<1x256x256xbf16> to vector<256x256xbf16>
    %cst_9 = arith.constant dense<0.000000e+00> : vector<256x256xf32>
    %12 = tpu.matmul %9, %11, %cst_9 {dimension_numbers = #tpu.dot_dimension_numbers<[1], [0], [0], [1], [0, 0, 1, 1], [], []>} : vector<256x256xbf16>, vector<256x256xbf16>, vector<256x256xf32> -> vector<256x256xf32>
    %c0_10 = arith.constant 0 : index
    %c0_11 = arith.constant 0 : index
    %c0_12 = arith.constant 0 : index
    %13 = vector.load %arg5[%c0_10, %c0_11, %c0_12] : memref<4x1x256xf32, #tpu.memory_space<vmem>>, vector<1x1x256xf32>
    %14 = vector.shape_cast %13 : vector<1x1x256xf32> to vector<1x256xf32>
    %15 = vector.broadcast %14 : vector<1x256xf32> to vector<256x256xf32>
    %16 = arith.addf %12, %15 : vector<256x256xf32>
    %cst_13 = arith.constant 0.000000e+00 : f32
    %17 = vector.broadcast %cst_13 : f32 to vector<256x256xf32>
    %18 = arith.maximumf %16, %17 : vector<256x256xf32>
    %19 = arith.truncf %18 : vector<256x256xf32> to vector<256x256xbf16>
    %c1 = arith.constant 1 : index
    %c0_14 = arith.constant 0 : index
    %c0_15 = arith.constant 0 : index
    %20 = vector.load %arg4[%c1, %c0_14, %c0_15] : memref<4x256x256xbf16, #tpu.memory_space<vmem>>, vector<1x256x256xbf16>
    %21 = vector.shape_cast %20 : vector<1x256x256xbf16> to vector<256x256xbf16>
    %cst_16 = arith.constant dense<0.000000e+00> : vector<256x256xf32>
    %22 = tpu.matmul %19, %21, %cst_16 {dimension_numbers = #tpu.dot_dimension_numbers<[1], [0], [0], [1], [0, 0, 1, 1], [], []>} : vector<256x256xbf16>, vector<256x256xbf16>, vector<256x256xf32> -> vector<256x256xf32>
    %c1_17 = arith.constant 1 : index
    %c0_18 = arith.constant 0 : index
    %c0_19 = arith.constant 0 : index
    %23 = vector.load %arg5[%c1_17, %c0_18, %c0_19] : memref<4x1x256xf32, #tpu.memory_space<vmem>>, vector<1x1x256xf32>
    %24 = vector.shape_cast %23 : vector<1x1x256xf32> to vector<1x256xf32>
    %25 = vector.broadcast %24 : vector<1x256xf32> to vector<256x256xf32>
    %26 = arith.addf %22, %25 : vector<256x256xf32>
    %cst_20 = arith.constant 0.000000e+00 : f32
    %27 = vector.broadcast %cst_20 : f32 to vector<256x256xf32>
    %28 = arith.maximumf %26, %27 : vector<256x256xf32>
    %29 = arith.truncf %28 : vector<256x256xf32> to vector<256x256xbf16>
    %c2 = arith.constant 2 : index
    %c0_21 = arith.constant 0 : index
    %c0_22 = arith.constant 0 : index
    %30 = vector.load %arg4[%c2, %c0_21, %c0_22] : memref<4x256x256xbf16, #tpu.memory_space<vmem>>, vector<1x256x256xbf16>
    %31 = vector.shape_cast %30 : vector<1x256x256xbf16> to vector<256x256xbf16>
    %cst_23 = arith.constant dense<0.000000e+00> : vector<256x256xf32>
    %32 = tpu.matmul %29, %31, %cst_23 {dimension_numbers = #tpu.dot_dimension_numbers<[1], [0], [0], [1], [0, 0, 1, 1], [], []>} : vector<256x256xbf16>, vector<256x256xbf16>, vector<256x256xf32> -> vector<256x256xf32>
    %c2_24 = arith.constant 2 : index
    %c0_25 = arith.constant 0 : index
    %c0_26 = arith.constant 0 : index
    %33 = vector.load %arg5[%c2_24, %c0_25, %c0_26] : memref<4x1x256xf32, #tpu.memory_space<vmem>>, vector<1x1x256xf32>
    %34 = vector.shape_cast %33 : vector<1x1x256xf32> to vector<1x256xf32>
    %35 = vector.broadcast %34 : vector<1x256xf32> to vector<256x256xf32>
    %36 = arith.addf %32, %35 : vector<256x256xf32>
    %cst_27 = arith.constant 0.000000e+00 : f32
    %37 = vector.broadcast %cst_27 : f32 to vector<256x256xf32>
    %38 = arith.maximumf %36, %37 : vector<256x256xf32>
    %39 = arith.truncf %38 : vector<256x256xf32> to vector<256x256xbf16>
    %c3 = arith.constant 3 : index
    %c0_28 = arith.constant 0 : index
    %c0_29 = arith.constant 0 : index
    %40 = vector.load %arg4[%c3, %c0_28, %c0_29] : memref<4x256x256xbf16, #tpu.memory_space<vmem>>, vector<1x256x256xbf16>
    %41 = vector.shape_cast %40 : vector<1x256x256xbf16> to vector<256x256xbf16>
    %cst_30 = arith.constant dense<0.000000e+00> : vector<256x256xf32>
    %42 = tpu.matmul %39, %41, %cst_30 {dimension_numbers = #tpu.dot_dimension_numbers<[1], [0], [0], [1], [0, 0, 1, 1], [], []>} : vector<256x256xbf16>, vector<256x256xbf16>, vector<256x256xf32> -> vector<256x256xf32>
    %c3_31 = arith.constant 3 : index
    %c0_32 = arith.constant 0 : index
    %c0_33 = arith.constant 0 : index
    %43 = vector.load %arg5[%c3_31, %c0_32, %c0_33] : memref<4x1x256xf32, #tpu.memory_space<vmem>>, vector<1x1x256xf32>
    %44 = vector.shape_cast %43 : vector<1x1x256xf32> to vector<1x256xf32>
    %45 = vector.broadcast %44 : vector<1x256xf32> to vector<256x256xf32>
    %46 = arith.addf %42, %45 : vector<256x256xf32>
    %cst_34 = arith.constant 0.000000e+00 : f32
    %47 = vector.broadcast %cst_34 : f32 to vector<256x256xf32>
    %48 = arith.maximumf %46, %47 : vector<256x256xf32>
    %49 = arith.truncf %48 : vector<256x256xf32> to vector<256x256xbf16>
    %c0_35 = arith.constant 0 : index
    %c0_36 = arith.constant 0 : index
    %50 = vector.load %arg6[%c0_35, %c0_36] : memref<256x128xbf16, #tpu.memory_space<vmem>>, vector<256x128xbf16>
    %cst_37 = arith.constant dense<0.000000e+00> : vector<256x128xf32>
    %51 = tpu.matmul %49, %50, %cst_37 {dimension_numbers = #tpu.dot_dimension_numbers<[1], [0], [0], [1], [0, 0, 1, 1], [], []>} : vector<256x256xbf16>, vector<256x128xbf16>, vector<256x128xf32> -> vector<256x128xf32>
    %c0_38 = arith.constant 0 : index
    %c0_39 = arith.constant 0 : index
    %52 = vector.load %arg7[%c0_38, %c0_39] : memref<1x128xf32, #tpu.memory_space<vmem>>, vector<1x128xf32>
    %53 = vector.broadcast %52 : vector<1x128xf32> to vector<256x128xf32>
    %54 = arith.addf %51, %53 : vector<256x128xf32>
    %c0_40 = arith.constant 0 : index
    %c0_41 = arith.constant 0 : index
    %55 = vector.load %arg8[%c0_40, %c0_41] : memref<256x128xf32, #tpu.memory_space<vmem>>, vector<256x128xf32>
    tpu.vector_store %arg8[%c0_40, %c0_41], %54 {strides = array<i32>} : memref<256x128xf32, #tpu.memory_space<vmem>>, vector<256x128xf32>,
    return
  }
  func.func @transform_0(%arg0: i32) -> (i32, i32) {
    %c0_i32 = arith.constant 0 : i32
    %c0_i32_0 = arith.constant 0 : i32
    return %arg0, %c0_i32 : i32, i32
  }
  func.func @transform_1(%arg0: i32) -> (i32, i32) {
    %c0_i32 = arith.constant 0 : i32
    %c0_i32_0 = arith.constant 0 : i32
    %c0_i32_1 = arith.constant 0 : i32
    return %c0_i32, %c0_i32_0 : i32, i32
  }
  func.func @transform_2(%arg0: i32) -> (i32, i32) {
    %c0_i32 = arith.constant 0 : i32
    %c0_i32_0 = arith.constant 0 : i32
    %c0_i32_1 = arith.constant 0 : i32
    return %c0_i32, %c0_i32_0 : i32, i32
  }
  func.func @transform_3(%arg0: i32) -> (i32, i32, i32) {
    %c0_i32 = arith.constant 0 : i32
    %c0_i32_0 = arith.constant 0 : i32
    %c0_i32_1 = arith.constant 0 : i32
    %c0_i32_2 = arith.constant 0 : i32
    return %c0_i32, %c0_i32_0, %c0_i32_1 : i32, i32, i32
  }
  func.func @transform_4(%arg0: i32) -> (i32, i32, i32) {
    %c0_i32 = arith.constant 0 : i32
    %c0_i32_0 = arith.constant 0 : i32
    %c0_i32_1 = arith.constant 0 : i32
    %c0_i32_2 = arith.constant 0 : i32
    return %c0_i32, %c0_i32_0, %c0_i32_1 : i32, i32, i32
  }
  func.func @transform_5(%arg0: i32) -> (i32, i32) {
    %c0_i32 = arith.constant 0 : i32
    %c0_i32_0 = arith.constant 0 : i32
    %c0_i32_1 = arith.constant 0 : i32
    return %c0_i32, %c0_i32_0 : i32, i32
  }
  func.func @transform_6(%arg0: i32) -> (i32, i32) {
    %c0_i32 = arith.constant 0 : i32
    %c0_i32_0 = arith.constant 0 : i32
    %c0_i32_1 = arith.constant 0 : i32
    return %c0_i32, %c0_i32_0 : i32, i32
  }
  func.func @transform_7(%arg0: i32) -> (i32, i32) {
    %c0_i32 = arith.constant 0 : i32
    %c0_i32_0 = arith.constant 0 : i32
    return %arg0, %c0_i32 : i32, i32
  }
}

module attributes {stable_mosaic.version = 11 : i64} {
  func.func @mlp_resident_kernel(%arg0: i32, %arg1: memref<256x16xf32, #tpu.memory_space<vmem>>, %arg2: memref<16x256xbf16, #tpu.memory_space<vmem>>, %arg3: memref<1x256xf32, #tpu.memory_space<vmem>>, %arg4: memref<4x256x256xbf16, #tpu.memory_space<vmem>>, %arg5: memref<4x1x256xf32, #tpu.memory_space<vmem>>, %arg6: memref<256x128xbf16, #tpu.memory_space<vmem>>, %arg7: memref<1x128xf32, #tpu.memory_space<vmem>>, %arg8: memref<256x128xf32, #tpu.memory_space<vmem>>) attributes {dimension_semantics = [#tpu.dimension_semantics<parallel>], iteration_bounds = array<i64: 1>, scalar_prefetch = 0 : i64, scratch_operands = 0 : i64, tpu.core_type = #tpu.core_type<tc>, window_params = [{transform_indices = @transform_0, window_bounds = array<i64: 256, 16>}, {pipeline_mode = #tpu.pipeline_mode<synchronous>, transform_indices = @transform_1, window_bounds = array<i64: 16, 256>}, {pipeline_mode = #tpu.pipeline_mode<synchronous>, transform_indices = @transform_2, window_bounds = array<i64: 1, 256>}, {pipeline_mode = #tpu.pipeline_mode<synchronous>, transform_indices = @transform_3, window_bounds = array<i64: 4, 256, 256>}, {pipeline_mode = #tpu.pipeline_mode<synchronous>, transform_indices = @transform_4, window_bounds = array<i64: 4, 1, 256>}, {pipeline_mode = #tpu.pipeline_mode<synchronous>, transform_indices = @transform_5, window_bounds = array<i64: 256, 128>}, {pipeline_mode = #tpu.pipeline_mode<synchronous>, transform_indices = @transform_6, window_bounds = array<i64: 1, 128>}, {transform_indices = @transform_7, window_bounds = array<i64: 256, 128>}]} {
    %c0 = arith.constant 0 : index
    %c0_0 = arith.constant 0 : index
    %0 = vector.load %arg1[%c0, %c0_0] : memref<256x16xf32, #tpu.memory_space<vmem>>, vector<256x16xf32>
    %1 = arith.truncf %0 : vector<256x16xf32> to vector<256x16xbf16>
    %c0_1 = arith.constant 0 : index
    %c0_2 = arith.constant 0 : index
    %2 = vector.load %arg2[%c0_1, %c0_2] : memref<16x256xbf16, #tpu.memory_space<vmem>>, vector<16x256xbf16>
    %cst = arith.constant dense<0.000000e+00> : vector<256x256xf32>
    %3 = tpu.matmul %1, %2, %cst {dimension_numbers = #tpu.dot_dimension_numbers<[1], [0], [0], [1], [0, 0, 1, 1], [], []>} : vector<256x16xbf16>, vector<16x256xbf16>, vector<256x256xf32> -> vector<256x256xf32>
    %c0_3 = arith.constant 0 : index
    %c0_4 = arith.constant 0 : index
    %4 = vector.load %arg3[%c0_3, %c0_4] : memref<1x256xf32, #tpu.memory_space<vmem>>, vector<1x256xf32>
    %5 = vector.broadcast %4 : vector<1x256xf32> to vector<256x256xf32>
    %6 = arith.addf %3, %5 : vector<256x256xf32>
    %cst_5 = arith.constant 0.000000e+00 : f32
    %7 = vector.broadcast %cst_5 : f32 to vector<256x256xf32>
    %8 = arith.maximumf %6, %7 : vector<256x256xf32>
    %9 = arith.truncf %8 : vector<256x256xf32> to vector<256x256xbf16>
    %c0_6 = arith.constant 0 : index
    %c0_7 = arith.constant 0 : index
    %c0_8 = arith.constant 0 : index
    %10 = vector.load %arg4[%c0_6, %c0_7, %c0_8] : memref<4x256x256xbf16, #tpu.memory_space<vmem>>, vector<1x256x256xbf16>
    %11 = vector.shape_cast %10 : vector<1x256x256xbf16> to vector<256x256xbf16>
    %cst_9 = arith.constant dense<0.000000e+00> : vector<256x256xf32>
    %12 = tpu.matmul %9, %11, %cst_9 {dimension_numbers = #tpu.dot_dimension_numbers<[1], [0], [0], [1], [0, 0, 1, 1], [], []>} : vector<256x256xbf16>, vector<256x256xbf16>, vector<256x256xf32> -> vector<256x256xf32>
    %c0_10 = arith.constant 0 : index
    %c0_11 = arith.constant 0 : index
    %c0_12 = arith.constant 0 : index
    %13 = vector.load %arg5[%c0_10, %c0_11, %c0_12] : memref<4x1x256xf32, #tpu.memory_space<vmem>>, vector<1x1x256xf32>
    %14 = vector.shape_cast %13 : vector<1x1x256xf32> to vector<1x256xf32>
    %15 = vector.broadcast %14 : vector<1x256xf32> to vector<256x256xf32>
    %16 = arith.addf %12, %15 : vector<256x256xf32>
    %cst_13 = arith.constant 0.000000e+00 : f32
    %17 = vector.broadcast %cst_13 : f32 to vector<256x256xf32>
    %18 = arith.maximumf %16, %17 : vector<256x256xf32>
    %19 = arith.truncf %18 : vector<256x256xf32> to vector<256x256xbf16>
    %c1 = arith.constant 1 : index
    %c0_14 = arith.constant 0 : index
    %c0_15 = arith.constant 0 : index
    %20 = vector.load %arg4[%c1, %c0_14, %c0_15] : memref<4x256x256xbf16, #tpu.memory_space<vmem>>, vector<1x256x256xbf16>
    %21 = vector.shape_cast %20 : vector<1x256x256xbf16> to vector<256x256xbf16>
    %cst_16 = arith.constant dense<0.000000e+00> : vector<256x256xf32>
    %22 = tpu.matmul %19, %21, %cst_16 {dimension_numbers = #tpu.dot_dimension_numbers<[1], [0], [0], [1], [0, 0, 1, 1], [], []>} : vector<256x256xbf16>, vector<256x256xbf16>, vector<256x256xf32> -> vector<256x256xf32>
    %c1_17 = arith.constant 1 : index
    %c0_18 = arith.constant 0 : index
    %c0_19 = arith.constant 0 : index
    %23 = vector.load %arg5[%c1_17, %c0_18, %c0_19] : memref<4x1x256xf32, #tpu.memory_space<vmem>>, vector<1x1x256xf32>
    %24 = vector.shape_cast %23 : vector<1x1x256xf32> to vector<1x256xf32>
    %25 = vector.broadcast %24 : vector<1x256xf32> to vector<256x256xf32>
    %26 = arith.addf %22, %25 : vector<256x256xf32>
    %cst_20 = arith.constant 0.000000e+00 : f32
    %27 = vector.broadcast %cst_20 : f32 to vector<256x256xf32>
    %28 = arith.maximumf %26, %27 : vector<256x256xf32>
    %29 = arith.truncf %28 : vector<256x256xf32> to vector<256x256xbf16>
    %c2 = arith.constant 2 : index
    %c0_21 = arith.constant 0 : index
    %c0_22 = arith.constant 0 : index
    %30 = vector.load %arg4[%c2, %c0_21, %c0_22] : memref<4x256x256xbf16, #tpu.memory_space<vmem>>, vector<1x256x256xbf16>
    %31 = vector.shape_cast %30 : vector<1x256x256xbf16> to vector<256x256xbf16>
    %cst_23 = arith.constant dense<0.000000e+00> : vector<256x256xf32>
    %32 = tpu.matmul %29, %31, %cst_23 {dimension_numbers = #tpu.dot_dimension_numbers<[1], [0], [0], [1], [0, 0, 1, 1], [], []>} : vector<256x256xbf16>, vector<256x256xbf16>, vector<256x256xf32> -> vector<256x256xf32>
    %c2_24 = arith.constant 2 : index
    %c0_25 = arith.constant 0 : index
    %c0_26 = arith.constant 0 : index
    %33 = vector.load %arg5[%c2_24, %c0_25, %c0_26] : memref<4x1x256xf32, #tpu.memory_space<vmem>>, vector<1x1x256xf32>
    %34 = vector.shape_cast %33 : vector<1x1x256xf32> to vector<1x256xf32>
    %35 = vector.broadcast %34 : vector<1x256xf32> to vector<256x256xf32>
    %36 = arith.addf %32, %35 : vector<256x256xf32>
    %cst_27 = arith.constant 0.000000e+00 : f32
    %37 = vector.broadcast %cst_27 : f32 to vector<256x256xf32>
    %38 = arith.maximumf %36, %37 : vector<256x256xf32>
    %39 = arith.truncf %38 : vector<256x256xf32> to vector<256x256xbf16>
    %c3 = arith.constant 3 : index
    %c0_28 = arith.constant 0 : index
    %c0_29 = arith.constant 0 : index
    %40 = vector.load %arg4[%c3, %c0_28, %c0_29] : memref<4x256x256xbf16, #tpu.memory_space<vmem>>, vector<1x256x256xbf16>
    %41 = vector.shape_cast %40 : vector<1x256x256xbf16> to vector<256x256xbf16>
    %cst_30 = arith.constant dense<0.000000e+00> : vector<256x256xf32>
    %42 = tpu.matmul %39, %41, %cst_30 {dimension_numbers = #tpu.dot_dimension_numbers<[1], [0], [0], [1], [0, 0, 1, 1], [], []>} : vector<256x256xbf16>, vector<256x256xbf16>, vector<256x256xf32> -> vector<256x256xf32>
    %c3_31 = arith.constant 3 : index
    %c0_32 = arith.constant 0 : index
    %c0_33 = arith.constant 0 : index
    %43 = vector.load %arg5[%c3_31, %c0_32, %c0_33] : memref<4x1x256xf32, #tpu.memory_space<vmem>>, vector<1x1x256xf32>
    %44 = vector.shape_cast %43 : vector<1x1x256xf32> to vector<1x256xf32>
    %45 = vector.broadcast %44 : vector<1x256xf32> to vector<256x256xf32>
    %46 = arith.addf %42, %45 : vector<256x256xf32>
    %cst_34 = arith.constant 0.000000e+00 : f32
    %47 = vector.broadcast %cst_34 : f32 to vector<256x256xf32>
    %48 = arith.maximumf %46, %47 : vector<256x256xf32>
    %49 = arith.truncf %48 : vector<256x256xf32> to vector<256x256xbf16>
    %c0_35 = arith.constant 0 : index
    %c0_36 = arith.constant 0 : index
    %50 = vector.load %arg6[%c0_35, %c0_36] : memref<256x128xbf16, #tpu.memory_space<vmem>>, vector<256x128xbf16>
    %cst_37 = arith.constant dense<0.000000e+00> : vector<256x128xf32>
    %51 = tpu.matmul %49, %50, %cst_37 {dimension_numbers = #tpu.dot_dimension_numbers<[1], [0], [0], [1], [0, 0, 1, 1], [], []>} : vector<256x256xbf16>, vector<256x128xbf16>, vector<256x128xf32> -> vector<256x128xf32>
    %c0_38 = arith.constant 0 : index
    %c0_39 = arith.constant 0 : index
    %52 = vector.load %arg7[%c0_38, %c0_39] : memref<1x128xf32, #tpu.memory_space<vmem>>, vector<1x128xf32>
    %53 = vector.broadcast %52 : vector<1x128xf32> to vector<256x128xf32>
    %54 = arith.addf %51, %53 : vector<256x128xf32>
    %c0_40 = arith.constant 0 : index
    %c0_41 = arith.constant 0 : index
    %55 = vector.load %arg8[%c0_40, %c0_41] : memref<256x128xf32, #tpu.memory_space<vmem>>, vector<256x128xf32>
    tpu.vector_store %arg8[%c0_40, %c0_41], %54 {strides = array<i32>} : memref<256x128xf32, #tpu.memory_space<vmem>>, vector<256x128xf32>,
    return
  }
  func.func @transform_0(%arg0: i32) -> (i32, i32) {
    %c0_i32 = arith.constant 0 : i32
    %c0_i32_0 = arith.constant 0 : i32
    return %arg0, %c0_i32 : i32, i32
  }
  func.func @transform_1(%arg0: i32) -> (i32, i32) {
    %c0_i32 = arith.constant 0 : i32
    %c0_i32_0 = arith.constant 0 : i32
    %c0_i32_1 = arith.constant 0 : i32
    return %c0_i32, %c0_i32_0 : i32, i32
  }
  func.func @transform_2(%arg0: i32) -> (i32, i32) {
    %c0_i32 = arith.constant 0 : i32
    %c0_i32_0 = arith.constant 0 : i32
    %c0_i32_1 = arith.constant 0 : i32
    return %c0_i32, %c0_i32_0 : i32, i32
  }
  func.func @transform_3(%arg0: i32) -> (i32, i32, i32) {
    %c0_i32 = arith.constant 0 : i32
    %c0_i32_0 = arith.constant 0 : i32
    %c0_i32_1 = arith.constant 0 : i32
    %c0_i32_2 = arith.constant 0 : i32
    return %c0_i32, %c0_i32_0, %c0_i32_1 : i32, i32, i32
  }
  func.func @transform_4(%arg0: i32) -> (i32, i32, i32) {
    %c0_i32 = arith.constant 0 : i32
    %c0_i32_0 = arith.constant 0 : i32
    %c0_i32_1 = arith.constant 0 : i32
    %c0_i32_2 = arith.constant 0 : i32
    return %c0_i32, %c0_i32_0, %c0_i32_1 : i32, i32, i32
  }
  func.func @transform_5(%arg0: i32) -> (i32, i32) {
    %c0_i32 = arith.constant 0 : i32
    %c0_i32_0 = arith.constant 0 : i32
    %c0_i32_1 = arith.constant 0 : i32
    return %c0_i32, %c0_i32_0 : i32, i32
  }
  func.func @transform_6(%arg0: i32) -> (i32, i32) {
    %c0_i32 = arith.constant 0 : i32
    %c0_i32_0 = arith.constant 0 : i32
    %c0_i32_1 = arith.constant 0 : i32
    return %c0_i32, %c0_i32_0 : i32, i32
  }
  func.func @transform_7(%arg0: i32) -> (i32, i32) {
    %c0_i32 = arith.constant 0 : i32
    %c0_i32_0 = arith.constant 0 : i32
    return %arg0, %c0_i32 : i32, i32
  }
}

</mosaic_0001>

<llo_original>
// kernel: tpu_custom_call.1
$region0: #{tpu_custom_call.1}
  #allocation0 [shape = 'u32[]', space=smem, size = 0x4, offset = 0x4, fixed_abs, tag = 'smem constant byte address 0x4 - core index']
  #allocation1 [shape = 'u32[72,128]{1,0:T(1,128)}', space=vmem, size = 0x9000, scoped, tag = 'internal scratch']
  %s0 = inlined_call_operand.vmem [shape: f32[256,16], index: 0, kind: input, shape index: {}]
  %s1 = inlined_call_operand.vmem [shape: bf16[16,256], index: 1, kind: input, shape index: {}]
  %s2 = inlined_call_operand.vmem [shape: f32[1,256], index: 2, kind: input, shape index: {}]
  %s3 = inlined_call_operand.hbm [shape: bf16[4,256,256], index: 3, kind: input, shape index: {}]
  %s4 = inlined_call_operand.vmem [shape: f32[4,1,256], index: 4, kind: input, shape index: {}]
  %s5 = inlined_call_operand.vmem [shape: bf16[256,128], index: 5, kind: input, shape index: {}]
  %s6 = inlined_call_operand.vmem [shape: f32[1,128], index: 6, kind: input, shape index: {}]
  %s7 = inlined_call_operand.hbm [shape: f32[256,128], index: 7, kind: output, shape index: {}]
  %s8 = sld [smem:[#allocation0]]
  $region42: #{tpu_custom_call.1} parent=0
    _
  %s10 = ssub.s32 1, %s8
  %s11 = scalar_select 0, %s10, %s8
  $region1: #{tpu_custom_call.1} parent=0
    #allocation2 [shape = 'u8[524288]{0}', space=vmem, size = 0x80000, scoped, tag = 'input window, operand 3, single buffered']
    #allocation3 [shape = 's32[1]{0}', space=sflag, size = 0x4, scoped, tag = 'scoped memory for tpu_custom_call.1']
    #allocation4 [shape = 's32[1]{0}', space=sflag, size = 0x4, scoped, tag = 'scoped memory for tpu_custom_call.1']
    #allocation5 [shape = 'u8[131072]{0}', space=vmem, size = 0x20000, scoped, tag = 'output window, operand 0, single buffered']
    %12 = vsyncpa [#allocation3], 0
    %13 = vsyncpa [#allocation4], 0
    // Predicated region
    $region2: #{tpu_custom_call.1} parent=1 // pred_check
      _
    $region3: #{tpu_custom_call.1} parent=1 // pred_check_branch
      %15 = sbr.rel (0) target = $region5
    $region4: #{tpu_custom_call.1} parent=1 // pred_region
      _
    $region5: #{tpu_custom_call.1} parent=1 // pred_fallthru
      _
    // Predicated region
    $region6: #{tpu_custom_call.1} parent=1 // pred_check
      _
    $region7: #{tpu_custom_call.1} parent=1 // pred_check_branch
      %17 = sbr.rel (0) target = $region9
    $region8: #{tpu_custom_call.1} parent=1 // pred_region
      _
    $region9: #{tpu_custom_call.1} parent=1 // pred_fallthru
      _
    // Predicated region
    $region10: #{tpu_custom_call.1} parent=1 // pred_check
      _
    $region11: #{tpu_custom_call.1} parent=1 // pred_check_branch
      %19 = sbr.rel (0) target = $region13
    $region12: #{tpu_custom_call.1} parent=1 // pred_region
      _
    $region13: #{tpu_custom_call.1} parent=1 // pred_fallthru
      _
    // Predicated region
    $region14: #{tpu_custom_call.1} parent=1 // pred_check
      _
    $region15: #{tpu_custom_call.1} parent=1 // pred_check_branch
      %21 = sbr.rel (0) target = $region17
    $region16: #{tpu_custom_call.1} parent=1 // pred_region
      %23 = vsyncadd [#allocation3], 0
      %s24 = sshll.u32 %s3, 4
      %s25 = int_to_ptr.hbm [resolvable:$true] %s24
      %s26 = sshll.u32 [#allocation2], 4
      %s27 = int_to_ptr.vmem [resolvable:$true] %s26
      %32 = dma.hbm_to_vmem [thread:$0]  %s25, 16384, %s27, [#allocation3], 128, 128, 8
    $region17: #{tpu_custom_call.1} parent=1 // pred_fallthru
      _
    // Predicated region
    $region18: #{tpu_custom_call.1} parent=1 // pred_check
      _
    $region19: #{tpu_custom_call.1} parent=1 // pred_check_branch
      %34 = sbr.rel (0) target = $region21
    $region20: #{tpu_custom_call.1} parent=1 // pred_region
      _
    $region21: #{tpu_custom_call.1} parent=1 // pred_fallthru
      _
    // Predicated region
    $region22: #{tpu_custom_call.1} parent=1 // pred_check
      _
    $region23: #{tpu_custom_call.1} parent=1 // pred_check_branch
      %36 = sbr.rel (0) target = $region25
    $region24: #{tpu_custom_call.1} parent=1 // pred_region
      _
    $region25: #{tpu_custom_call.1} parent=1 // pred_fallthru
      _
    // Predicated region
    $region26: #{tpu_custom_call.1} parent=1 // pred_check
      _
    $region27: #{tpu_custom_call.1} parent=1 // pred_check_branch
      %38 = sbr.rel (0) target = $region29
    $region28: #{tpu_custom_call.1} parent=1 // pred_region
      _
    $region29: #{tpu_custom_call.1} parent=1 // pred_fallthru
      _
    // Predicated region
    $region30: #{tpu_custom_call.1} parent=1 // pred_check
      _
    $region31: #{tpu_custom_call.1} parent=1 // pred_check_branch
      %40 = sbr.rel (0) target = $region33
    $region32: #{tpu_custom_call.1} parent=1 // pred_region
      %42 = dma.done [#allocation3], 16384
    $region33: #{tpu_custom_call.1} parent=1 // pred_fallthru
      _
    %v44 = vld [vmem:[%s0] sm:$0xff]
    %v45 = vld [vmem:[%s0 + $0x8] sm:$0xff]
    %v46 = vld [vmem:[%s0 + $0x10] sm:$0xff]
    %v47 = vld [vmem:[%s0 + $0x18] sm:$0xff]
    %v48 = vld [vmem:[%s0 + $0x20] sm:$0xff]
    %v49 = vld [vmem:[%s0 + $0x28] sm:$0xff]
    %v50 = vld [vmem:[%s0 + $0x30] sm:$0xff]
    %v51 = vld [vmem:[%s0 + $0x38] sm:$0xff]
    %v52 = vld [vmem:[%s0 + $0x40] sm:$0xff]
    %v53 = vld [vmem:[%s0 + $0x48] sm:$0xff]
    %v54 = vld [vmem:[%s0 + $0x50] sm:$0xff]
    %v55 = vld [vmem:[%s0 + $0x58] sm:$0xff]
    %v56 = vld [vmem:[%s0 + $0x60] sm:$0xff]
    %v57 = vld [vmem:[%s0 + $0x68] sm:$0xff]
    %v58 = vld [vmem:[%s0 + $0x70] sm:$0xff]
    %v59 = vld [vmem:[%s0 + $0x78] sm:$0xff]
    %v60 = vld [vmem:[%s0 + $0x80] sm:$0xff]
    %v61 = vld [vmem:[%s0 + $0x88] sm:$0xff]
    %v62 = vld [vmem:[%s0 + $0x90] sm:$0xff]
    %v63 = vld [vmem:[%s0 + $0x98] sm:$0xff]
    %v64 = vld [vmem:[%s0 + $0xa0] sm:$0xff]
    %v65 = vld [vmem:[%s0 + $0xa8] sm:$0xff]
    %v66 = vld [vmem:[%s0 + $0xb0] sm:$0xff]
    %v67 = vld [vmem:[%s0 + $0xb8] sm:$0xff]
    %v68 = vld [vmem:[%s0 + $0xc0] sm:$0xff]
    %v69 = vld [vmem:[%s0 + $0xc8] sm:$0xff]
    %v70 = vld [vmem:[%s0 + $0xd0] sm:$0xff]
    %v71 = vld [vmem:[%s0 + $0xd8] sm:$0xff]
    %v72 = vld [vmem:[%s0 + $0xe0] sm:$0xff]
    %v73 = vld [vmem:[%s0 + $0xe8] sm:$0xff]
    %v74 = vld [vmem:[%s0 + $0xf0] sm:$0xff]
    %v75 = vld [vmem:[%s0 + $0xf8] sm:$0xff]
    %v76 = vpack.c.bf16 %v45, %v44
    %v77 = vpack.c.bf16 %v47, %v46
    %v78 = vpack.c.bf16 %v49, %v48
    %v79 = vpack.c.bf16 %v51, %v50
    %v80 = vpack.c.bf16 %v53, %v52
    %v81 = vpack.c.bf16 %v55, %v54
    %v82 = vpack.c.bf16 %v57, %v56
    %v83 = vpack.c.bf16 %v59, %v58
    %v84 = vpack.c.bf16 %v61, %v60
    %v85 = vpack.c.bf16 %v63, %v62
    %v86 = vpack.c.bf16 %v65, %v64
    %v87 = vpack.c.bf16 %v67, %v66
    %v88 = vpack.c.bf16 %v69, %v68
    %v89 = vpack.c.bf16 %v71, %v70
    %v90 = vpack.c.bf16 %v73, %v72
    %v91 = vpack.c.bf16 %v75, %v74
    %v92 = vld [vmem:[%s1] sm:$0xff]
    %v93 = vld [vmem:[%s1 + $0x8] sm:$0xff]
    %v94 = vld [vmem:[%s2] sm:$0x3]
    %v96 = vperm.slane %v94, 0
    %v97 = vperm.slane %v94, 1
    %v102 = vunpack.c.l.b16 %v92
    %v103 = vunpack.c.h.b16 %v92
    %v104 = vunpack.c.l.b16 %v93
    %v105 = vunpack.c.h.b16 %v93
    %v106 = vpack.c.b16 %v104, %v102
    %v107 = vpack.c.b16 %v105, %v103
    %vm110 = vcmask 130048
    %v112 = vsel %vm110, %v76, 0
    %v115 = vsel %vm110, %v77, 0
    %v118 = vsel %vm110, %v78, 0
    %v121 = vsel %vm110, %v79, 0
    %v124 = vsel %vm110, %v80, 0
    %v127 = vsel %vm110, %v81, 0
    %v130 = vsel %vm110, %v82, 0
    %v133 = vsel %vm110, %v83, 0
    %v136 = vsel %vm110, %v84, 0
    %v139 = vsel %vm110, %v85, 0
    %v142 = vsel %vm110, %v86, 0
    %v145 = vsel %vm110, %v87, 0
    %v148 = vsel %vm110, %v88, 0
    %v151 = vsel %vm110, %v89, 0
    %v154 = vsel %vm110, %v90, 0
    %v157 = vsel %vm110, %v91, 0
    %159 = vmatpush.bf16.msra.mxu0 0
    %160 = vmatpush.bf16.msra.mxu0 0
    %161 = vmatpush.bf16.msra.mxu0 0
    %162 = vmatpush.bf16.msra.mxu0 0
    %163 = vmatpush.bf16.msra.mxu0 0
    %164 = vmatpush.bf16.msra.mxu0 0
    %165 = vmatpush.bf16.msra.mxu0 0
    %166 = vmatpush.bf16.msra.mxu0 %v106
    %167 = vmatmul.bf16.gmra.mxu0 %v112
    %v168 = vpop.f32.mrf.mxu0
    %v169 = vadd.f32 %v96, %v168
    %v170 = vpop.f32.mrf.mxu0
    %v171 = vadd.f32 %v96, %v170
    %172 = vmatmul.bf16.gmra.mxu0 %v115
    %v173 = vpop.f32.mrf.mxu0
    %v174 = vadd.f32 %v96, %v173
    %v175 = vpop.f32.mrf.mxu0
    %v176 = vadd.f32 %v96, %v175
    %177 = vmatmul.bf16.gmra.mxu0 %v118
    %v178 = vpop.f32.mrf.mxu0
    %v179 = vadd.f32 %v96, %v178
    %v180 = vpop.f32.mrf.mxu0
    %v181 = vadd.f32 %v96, %v180
    %182 = vmatmul.bf16.gmra.mxu0 %v121
    %v183 = vpop.f32.mrf.mxu0
    %v184 = vadd.f32 %v96, %v183
    %v185 = vpop.f32.mrf.mxu0
    %v186 = vadd.f32 %v96, %v185
    %187 = vmatmul.bf16.gmra.mxu0 %v124
    %v188 = vpop.f32.mrf.mxu0
    %v189 = vadd.f32 %v96, %v188
    %v190 = vpop.f32.mrf.mxu0
    %v191 = vadd.f32 %v96, %v190
    %192 = vmatmul.bf16.gmra.mxu0 %v127
    %v193 = vpop.f32.mrf.mxu0
    %v194 = vadd.f32 %v96, %v193
    %v195 = vpop.f32.mrf.mxu0
    %v196 = vadd.f32 %v96, %v195
    %197 = vmatmul.bf16.gmra.mxu0 %v130
    %v198 = vpop.f32.mrf.mxu0
    %v199 = vadd.f32 %v96, %v198
    %v200 = vpop.f32.mrf.mxu0
    %v201 = vadd.f32 %v96, %v200
    %202 = vmatmul.bf16.gmra.mxu0 %v133
    %v203 = vpop.f32.mrf.mxu0
    %v204 = vadd.f32 %v96, %v203
    %v205 = vpop.f32.mrf.mxu0
    %v206 = vadd.f32 %v96, %v205
    %207 = vmatmul.bf16.gmra.mxu0 %v136
    %v208 = vpop.f32.mrf.mxu0
    %v209 = vadd.f32 %v96, %v208
    %v210 = vpop.f32.mrf.mxu0
    %v211 = vadd.f32 %v96, %v210
    %212 = vmatmul.bf16.gmra.mxu0 %v139
    %v213 = vpop.f32.mrf.mxu0
    %v214 = vadd.f32 %v96, %v213
    %v215 = vpop.f32.mrf.mxu0
    %v216 = vadd.f32 %v96, %v215
    %217 = vmatmul.bf16.gmra.mxu0 %v142
    %v218 = vpop.f32.mrf.mxu0
    %v219 = vadd.f32 %v96, %v218
    %v220 = vpop.f32.mrf.mxu0
    %v221 = vadd.f32 %v96, %v220
    %222 = vmatmul.bf16.gmra.mxu0 %v145
    %v223 = vpop.f32.mrf.mxu0
    %v224 = vadd.f32 %v96, %v223
    %v225 = vpop.f32.mrf.mxu0
    %v226 = vadd.f32 %v96, %v225
    %227 = vmatmul.bf16.gmra.mxu0 %v148
    %v228 = vpop.f32.mrf.mxu0
    %v229 = vadd.f32 %v96, %v228
    %v230 = vpop.f32.mrf.mxu0
    %v231 = vadd.f32 %v96, %v230
    %232 = vmatmul.bf16.gmra.mxu0 %v151
    %v233 = vpop.f32.mrf.mxu0
    %v234 = vadd.f32 %v96, %v233
    %v235 = vpop.f32.mrf.mxu0
    %v236 = vadd.f32 %v96, %v235
    %237 = vmatmul.bf16.gmra.mxu0 %v154
    %v238 = vpop.f32.mrf.mxu0
    %v239 = vadd.f32 %v96, %v238
    %v240 = vpop.f32.mrf.mxu0
    %v241 = vadd.f32 %v96, %v240
    %242 = vmatmul.bf16.gmra.mxu0 %v157
    %v243 = vpop.f32.mrf.mxu0
    %v244 = vadd.f32 %v96, %v243
    %v245 = vpop.f32.mrf.mxu0
    %v246 = vadd.f32 %v96, %v245
    %247 = vdwg.mxu0
    %248 = vmatpush.bf16.msra.mxu0 0
    %249 = vmatpush.bf16.msra.mxu0 0
    %250 = vmatpush.bf16.msra.mxu0 0
    %251 = vmatpush.bf16.msra.mxu0 0
    %252 = vmatpush.bf16.msra.mxu0 0
    %253 = vmatpush.bf16.msra.mxu0 0
    %254 = vmatpush.bf16.msra.mxu0 0
    %255 = vmatpush.bf16.msra.mxu0 %v107
    %256 = vmatmul.bf16.gmra.mxu0 %v112
    %v257 = vpop.f32.mrf.mxu0
    %v258 = vadd.f32 %v97, %v257
    %v259 = vpop.f32.mrf.mxu0
    %v260 = vadd.f32 %v97, %v259
    %261 = vmatmul.bf16.gmra.mxu0 %v115
    %v262 = vpop.f32.mrf.mxu0
    %v263 = vadd.f32 %v97, %v262
    %v264 = vpop.f32.mrf.mxu0
    %v265 = vadd.f32 %v97, %v264
    %266 = vmatmul.bf16.gmra.mxu0 %v118
    %v267 = vpop.f32.mrf.mxu0
    %v268 = vadd.f32 %v97, %v267
    %v269 = vpop.f32.mrf.mxu0
    %v270 = vadd.f32 %v97, %v269
    %271 = vmatmul.bf16.gmra.mxu0 %v121
    %v272 = vpop.f32.mrf.mxu0
    %v273 = vadd.f32 %v97, %v272
    %v274 = vpop.f32.mrf.mxu0
    %v275 = vadd.f32 %v97, %v274
    %276 = vmatmul.bf16.gmra.mxu0 %v124
    %v277 = vpop.f32.mrf.mxu0
    %v278 = vadd.f32 %v97, %v277
    %v279 = vpop.f32.mrf.mxu0
    %v280 = vadd.f32 %v97, %v279
    %281 = vmatmul.bf16.gmra.mxu0 %v127
    %v282 = vpop.f32.mrf.mxu0
    %v283 = vadd.f32 %v97, %v282
    %v284 = vpop.f32.mrf.mxu0
    %v285 = vadd.f32 %v97, %v284
    %286 = vmatmul.bf16.gmra.mxu0 %v130
    %v287 = vpop.f32.mrf.mxu0
    %v288 = vadd.f32 %v97, %v287
    %v289 = vpop.f32.mrf.mxu0
    %v290 = vadd.f32 %v97, %v289
    %291 = vmatmul.bf16.gmra.mxu0 %v133
    %v292 = vpop.f32.mrf.mxu0
    %v293 = vadd.f32 %v97, %v292
    %v294 = vpop.f32.mrf.mxu0
    %v295 = vadd.f32 %v97, %v294
    %296 = vmatmul.bf16.gmra.mxu0 %v136
    %v297 = vpop.f32.mrf.mxu0
    %v298 = vadd.f32 %v97, %v297
    %v299 = vpop.f32.mrf.mxu0
    %v300 = vadd.f32 %v97, %v299
    %301 = vmatmul.bf16.gmra.mxu0 %v139
    %v302 = vpop.f32.mrf.mxu0
    %v303 = vadd.f32 %v97, %v302
    %v304 = vpop.f32.mrf.mxu0
    %v305 = vadd.f32 %v97, %v304
    %306 = vmatmul.bf16.gmra.mxu0 %v142
    %v307 = vpop.f32.mrf.mxu0
    %v308 = vadd.f32 %v97, %v307
    %v309 = vpop.f32.mrf.mxu0
    %v310 = vadd.f32 %v97, %v309
    %311 = vmatmul.bf16.gmra.mxu0 %v145
    %v312 = vpop.f32.mrf.mxu0
    %v313 = vadd.f32 %v97, %v312
    %v314 = vpop.f32.mrf.mxu0
    %v315 = vadd.f32 %v97, %v314
    %316 = vmatmul.bf16.gmra.mxu0 %v148
    %v317 = vpop.f32.mrf.mxu0
    %v318 = vadd.f32 %v97, %v317
    %v319 = vpop.f32.mrf.mxu0
    %v320 = vadd.f32 %v97, %v319
    %321 = vmatmul.bf16.gmra.mxu0 %v151
    %v322 = vpop.f32.mrf.mxu0
    %v323 = vadd.f32 %v97, %v322
    %v324 = vpop.f32.mrf.mxu0
    %v325 = vadd.f32 %v97, %v324
    %326 = vmatmul.bf16.gmra.mxu0 %v154
    %v327 = vpop.f32.mrf.mxu0
    %v328 = vadd.f32 %v97, %v327
    %v329 = vpop.f32.mrf.mxu0
    %v330 = vadd.f32 %v97, %v329
    %331 = vmatmul.bf16.gmra.mxu0 %v157
    %v332 = vpop.f32.mrf.mxu0
    %v333 = vadd.f32 %v97, %v332
    %v334 = vpop.f32.mrf.mxu0
    %v335 = vadd.f32 %v97, %v334
    %336 = vdwg.mxu0
    %v337 = vmax.f32 %v169, 0.0
    %v338 = vmax.f32 %v258, 0.0
    %v339 = vmax.f32 %v171, 0.0
    %v340 = vmax.f32 %v260, 0.0
    %v341 = vmax.f32 %v174, 0.0
    %v342 = vmax.f32 %v263, 0.0
    %v343 = vmax.f32 %v176, 0.0
    %v344 = vmax.f32 %v265, 0.0
    %v345 = vmax.f32 %v179, 0.0
    %v346 = vmax.f32 %v268, 0.0
    %v347 = vmax.f32 %v181, 0.0
    %v348 = vmax.f32 %v270, 0.0
    %v349 = vmax.f32 %v184, 0.0
    %v350 = vmax.f32 %v273, 0.0
    %v351 = vmax.f32 %v186, 0.0
    %v352 = vmax.f32 %v275, 0.0
    %v353 = vmax.f32 %v189, 0.0
    %v354 = vmax.f32 %v278, 0.0
    %v355 = vmax.f32 %v191, 0.0
    %v356 = vmax.f32 %v280, 0.0
    %v357 = vmax.f32 %v194, 0.0
    %v358 = vmax.f32 %v283, 0.0
    %v359 = vmax.f32 %v196, 0.0
    %v360 = vmax.f32 %v285, 0.0
    %v361 = vmax.f32 %v199, 0.0
    %v362 = vmax.f32 %v288, 0.0
    %v363 = vmax.f32 %v201, 0.0
    %v364 = vmax.f32 %v290, 0.0
    %v365 = vmax.f32 %v204, 0.0
    %v366 = vmax.f32 %v293, 0.0
    %v367 = vmax.f32 %v206, 0.0
    %v368 = vmax.f32 %v295, 0.0
    %v369 = vmax.f32 %v209, 0.0
    %v370 = vmax.f32 %v298, 0.0
    %v371 = vmax.f32 %v211, 0.0
    %v372 = vmax.f32 %v300, 0.0
    %v373 = vmax.f32 %v214, 0.0
    %v374 = vmax.f32 %v303, 0.0
    %v375 = vmax.f32 %v216, 0.0
    %v376 = vmax.f32 %v305, 0.0
    %v377 = vmax.f32 %v219, 0.0
    %v378 = vmax.f32 %v308, 0.0
    %v379 = vmax.f32 %v221, 0.0
    %v380 = vmax.f32 %v310, 0.0
    %v381 = vmax.f32 %v224, 0.0
    %v382 = vmax.f32 %v313, 0.0
    %v383 = vmax.f32 %v226, 0.0
    %v384 = vmax.f32 %v315, 0.0
    %v385 = vmax.f32 %v229, 0.0
    %v386 = vmax.f32 %v318, 0.0
    %v387 = vmax.f32 %v231, 0.0
    %v388 = vmax.f32 %v320, 0.0
    %v389 = vmax.f32 %v234, 0.0
    %v390 = vmax.f32 %v323, 0.0
    %v391 = vmax.f32 %v236, 0.0
    %v392 = vmax.f32 %v325, 0.0
    %v393 = vmax.f32 %v239, 0.0
    %v394 = vmax.f32 %v328, 0.0
    %v395 = vmax.f32 %v241, 0.0
    %v396 = vmax.f32 %v330, 0.0
    %v397 = vmax.f32 %v244, 0.0
    %v398 = vmax.f32 %v333, 0.0
    %v399 = vmax.f32 %v246, 0.0
    %v400 = vmax.f32 %v335, 0.0
    %v401 = vpack.c.bf16 %v339, %v337
    %v402 = vpack.c.bf16 %v340, %v338
    %v403 = vpack.c.bf16 %v343, %v341
    %v404 = vpack.c.bf16 %v344, %v342
    %v405 = vpack.c.bf16 %v347, %v345
    %v406 = vpack.c.bf16 %v348, %v346
    %v407 = vpack.c.bf16 %v351, %v349
    %v408 = vpack.c.bf16 %v352, %v350
    %v409 = vpack.c.bf16 %v355, %v353
    %v410 = vpack.c.bf16 %v356, %v354
    %v411 = vpack.c.bf16 %v359, %v357
    %v412 = vpack.c.bf16 %v360, %v358
    %v413 = vpack.c.bf16 %v363, %v361
    %v414 = vpack.c.bf16 %v364, %v362
    %v415 = vpack.c.bf16 %v367, %v365
    %v416 = vpack.c.bf16 %v368, %v366
    %v417 = vpack.c.bf16 %v371, %v369
    %v418 = vpack.c.bf16 %v372, %v370
    %v419 = vpack.c.bf16 %v375, %v373
    %v420 = vpack.c.bf16 %v376, %v374
    %v421 = vpack.c.bf16 %v379, %v377
    %v422 = vpack.c.bf16 %v380, %v378
    %v423 = vpack.c.bf16 %v383, %v381
    %v424 = vpack.c.bf16 %v384, %v382
    %v425 = vpack.c.bf16 %v387, %v385
    %v426 = vpack.c.bf16 %v388, %v386
    %v427 = vpack.c.bf16 %v391, %v389
    %v428 = vpack.c.bf16 %v392, %v390
    %v429 = vpack.c.bf16 %v395, %v393
    %v430 = vpack.c.bf16 %v396, %v394
    %v431 = vpack.c.bf16 %v399, %v397
    %v432 = vpack.c.bf16 %v400, %v398
    %v433 = vld [vmem:[#allocation2] sm:$0xff]
    %v434 = vld [vmem:[#allocation2 + $0x8] sm:$0xff]
    %v435 = vld [vmem:[#allocation2 + $0x10] sm:$0xff]
    %v436 = vld [vmem:[#allocation2 + $0x18] sm:$0xff]
    %v437 = vld [vmem:[#allocation2 + $0x20] sm:$0xff]
    %v438 = vld [vmem:[#allocation2 + $0x28] sm:$0xff]
    %v439 = vld [vmem:[#allocation2 + $0x30] sm:$0xff]
    %v440 = vld [vmem:[#allocation2 + $0x38] sm:$0xff]
    %v441 = vld [vmem:[#allocation2 + $0x40] sm:$0xff]
    %v442 = vld [vmem:[#allocation2 + $0x48] sm:$0xff]
    %v443 = vld [vmem:[#allocation2 + $0x50] sm:$0xff]
    %v444 = vld [vmem:[#allocation2 + $0x58] sm:$0xff]
    %v445 = vld [vmem:[#allocation2 + $0x60] sm:$0xff]
    %v446 = vld [vmem:[#allocation2 + $0x68] sm:$0xff]
    %v447 = vld [vmem:[#allocation2 + $0x70] sm:$0xff]
    %v448 = vld [vmem:[#allocation2 + $0x78] sm:$0xff]
    %v449 = vld [vmem:[#allocation2 + $0x80] sm:$0xff]
    %v450 = vld [vmem:[#allocation2 + $0x88] sm:$0xff]
    %v451 = vld [vmem:[#allocation2 + $0x90] sm:$0xff]
    %v452 = vld [vmem:[#allocation2 + $0x98] sm:$0xff]
    %v453 = vld [vmem:[#allocation2 + $0xa0] sm:$0xff]
    %v454 = vld [vmem:[#allocation2 + $0xa8] sm:$0xff]
    %v455 = vld [vmem:[#allocation2 + $0xb0] sm:$0xff]
    %v456 = vld [vmem:[#allocation2 + $0xb8] sm:$0xff]
    %v457 = vld [vmem:[#allocation2 + $0xc0] sm:$0xff]
    %v458 = vld [vmem:[#allocation2 + $0xc8] sm:$0xff]
    %v459 = vld [vmem:[#allocation2 + $0xd0] sm:$0xff]
    %v460 = vld [vmem:[#allocation2 + $0xd8] sm:$0xff]
    %v461 = vld [vmem:[#allocation2 + $0xe0] sm:$0xff]
    %v462 = vld [vmem:[#allocation2 + $0xe8] sm:$0xff]
    %v463 = vld [vmem:[#allocation2 + $0xf0] sm:$0xff]
    %v464 = vld [vmem:[#allocation2 + $0xf8] sm:$0xff]
    %v465 = vld [vmem:[%s4] sm:$0x3]
    %v467 = vperm.slane %v465, 0
    %v468 = vperm.slane %v465, 1
    %v503 = vunpack.c.l.b16 %v433
    %v504 = vunpack.c.h.b16 %v433
    %v505 = vunpack.c.l.b16 %v434
    %v506 = vunpack.c.h.b16 %v434
    %v507 = vunpack.c.l.b16 %v435
    %v508 = vunpack.c.h.b16 %v435
    %v509 = vunpack.c.l.b16 %v436
    %v510 = vunpack.c.h.b16 %v436
    %v511 = vunpack.c.l.b16 %v437
    %v512 = vunpack.c.h.b16 %v437
    %v513 = vunpack.c.l.b16 %v438
    %v514 = vunpack.c.h.b16 %v438
    %v515 = vunpack.c.l.b16 %v439
    %v516 = vunpack.c.h.b16 %v439
    %v517 = vunpack.c.l.b16 %v440
    %v518 = vunpack.c.h.b16 %v440
    %v519 = vunpack.c.l.b16 %v441
    %v520 = vunpack.c.h.b16 %v441
    %v521 = vunpack.c.l.b16 %v442
    %v522 = vunpack.c.h.b16 %v442
    %v523 = vunpack.c.l.b16 %v443
    %v524 = vunpack.c.h.b16 %v443
    %v525 = vunpack.c.l.b16 %v444
    %v526 = vunpack.c.h.b16 %v444
    %v527 = vunpack.c.l.b16 %v445
    %v528 = vunpack.c.h.b16 %v445
    %v529 = vunpack.c.l.b16 %v446
    %v530 = vunpack.c.h.b16 %v446
    %v531 = vunpack.c.l.b16 %v447
    %v532 = vunpack.c.h.b16 %v447
    %v533 = vunpack.c.l.b16 %v448
    %v534 = vunpack.c.h.b16 %v448
    %v535 = vunpack.c.l.b16 %v449
    %v536 = vunpack.c.h.b16 %v449
    %v537 = vunpack.c.l.b16 %v450
    %v538 = vunpack.c.h.b16 %v450
    %v539 = vunpack.c.l.b16 %v451
    %v540 = vunpack.c.h.b16 %v451
    %v541 = vunpack.c.l.b16 %v452
    %v542 = vunpack.c.h.b16 %v452
    %v543 = vunpack.c.l.b16 %v453
    %v544 = vunpack.c.h.b16 %v453
    %v545 = vunpack.c.l.b16 %v454
    %v546 = vunpack.c.h.b16 %v454
    %v547 = vunpack.c.l.b16 %v455
    %v548 = vunpack.c.h.b16 %v455
    %v549 = vunpack.c.l.b16 %v456
    %v550 = vunpack.c.h.b16 %v456
    %v551 = vunpack.c.l.b16 %v457
    %v552 = vunpack.c.h.b16 %v457
    %v553 = vunpack.c.l.b16 %v458
    %v554 = vunpack.c.h.b16 %v458
    %v555 = vunpack.c.l.b16 %v459
    %v556 = vunpack.c.h.b16 %v459
    %v557 = vunpack.c.l.b16 %v460
    %v558 = vunpack.c.h.b16 %v460
    %v559 = vunpack.c.l.b16 %v461
    %v560 = vunpack.c.h.b16 %v461
    %v561 = vunpack.c.l.b16 %v462
    %v562 = vunpack.c.h.b16 %v462
    %v563 = vunpack.c.l.b16 %v463
    %v564 = vunpack.c.h.b16 %v463
    %v565 = vunpack.c.l.b16 %v464
    %v566 = vunpack.c.h.b16 %v464
    %v567 = vpack.c.b16 %v505, %v503
    %v568 = vpack.c.b16 %v506, %v504
    %v569 = vpack.c.b16 %v509, %v507
    %v570 = vpack.c.b16 %v510, %v508
    %v571 = vpack.c.b16 %v513, %v511
    %v572 = vpack.c.b16 %v514, %v512
    %v573 = vpack.c.b16 %v517, %v515
    %v574 = vpack.c.b16 %v518, %v516
    %v575 = vpack.c.b16 %v521, %v519
    %v576 = vpack.c.b16 %v522, %v520
    %v577 = vpack.c.b16 %v525, %v523
    %v578 = vpack.c.b16 %v526, %v524
    %v579 = vpack.c.b16 %v529, %v527
    %v580 = vpack.c.b16 %v530, %v528
    %v581 = vpack.c.b16 %v533, %v531
    %v582 = vpack.c.b16 %v534, %v532
    %v583 = vpack.c.b16 %v537, %v535
    %v584 = vpack.c.b16 %v538, %v536
    %v585 = vpack.c.b16 %v541, %v539
    %v586 = vpack.c.b16 %v542, %v540
    %v587 = vpack.c.b16 %v545, %v543
    %v588 = vpack.c.b16 %v546, %v544
    %v589 = vpack.c.b16 %v549, %v547
    %v590 = vpack.c.b16 %v550, %v548
    %v591 = vpack.c.b16 %v553, %v551
    %v592 = vpack.c.b16 %v554, %v552
    %v593 = vpack.c.b16 %v557, %v555
    %v594 = vpack.c.b16 %v558, %v556
    %v595 = vpack.c.b16 %v561, %v559
    %v596 = vpack.c.b16 %v562, %v560
    %v597 = vpack.c.b16 %v565, %v563
    %v598 = vpack.c.b16 %v566, %v564
    %631 = vmatpush.bf16.msra.mxu0 %v581
    %632 = vmatpush.bf16.msra.mxu0 %v579
    %633 = vmatpush.bf16.msra.mxu0 %v577
    %634 = vmatpush.bf16.msra.mxu0 %v575
    %635 = vmatpush.bf16.msra.mxu0 %v573
    %636 = vmatpush.bf16.msra.mxu0 %v571
    %637 = vmatpush.bf16.msra.mxu0 %v569
    %638 = vmatpush.bf16.msra.mxu0 %v567
    %639 = vmatmul.bf16.gmra.mxu0 %v401
    %v640 = vpop.f32.mrf.mxu0
    %v641 = vadd.f32 %v467, %v640
    %v642 = vpop.f32.mrf.mxu0
    %v643 = vadd.f32 %v467, %v642
    %644 = vmatmul.bf16.gmra.mxu0 %v403
    %v645 = vpop.f32.mrf.mxu0
    %v646 = vadd.f32 %v467, %v645
    %v647 = vpop.f32.mrf.mxu0
    %v648 = vadd.f32 %v467, %v647
    %649 = vmatmul.bf16.gmra.mxu0 %v405
    %v650 = vpop.f32.mrf.mxu0
    %v651 = vadd.f32 %v467, %v650
    %v652 = vpop.f32.mrf.mxu0
    %v653 = vadd.f32 %v467, %v652
    %654 = vmatmul.bf16.gmra.mxu0 %v407
    %v655 = vpop.f32.mrf.mxu0
    %v656 = vadd.f32 %v467, %v655
    %v657 = vpop.f32.mrf.mxu0
    %v658 = vadd.f32 %v467, %v657
    %659 = vmatmul.bf16.gmra.mxu0 %v409
    %v660 = vpop.f32.mrf.mxu0
    %v661 = vadd.f32 %v467, %v660
    %v662 = vpop.f32.mrf.mxu0
    %v663 = vadd.f32 %v467, %v662
    %664 = vmatmul.bf16.gmra.mxu0 %v411
    %v665 = vpop.f32.mrf.mxu0
    %v666 = vadd.f32 %v467, %v665
    %v667 = vpop.f32.mrf.mxu0
    %v668 = vadd.f32 %v467, %v667
    %669 = vmatmul.bf16.gmra.mxu0 %v413
    %v670 = vpop.f32.mrf.mxu0
    %v671 = vadd.f32 %v467, %v670
    %v672 = vpop.f32.mrf.mxu0
    %v673 = vadd.f32 %v467, %v672
    %674 = vmatmul.bf16.gmra.mxu0 %v415
    %v675 = vpop.f32.mrf.mxu0
    %v676 = vadd.f32 %v467, %v675
    %v677 = vpop.f32.mrf.mxu0
    %v678 = vadd.f32 %v467, %v677
    %679 = vmatmul.bf16.gmra.mxu0 %v417
    %v680 = vpop.f32.mrf.mxu0
    %v681 = vadd.f32 %v467, %v680
    %v682 = vpop.f32.mrf.mxu0
    %v683 = vadd.f32 %v467, %v682
    %684 = vmatmul.bf16.gmra.mxu0 %v419
    %v685 = vpop.f32.mrf.mxu0
    %v686 = vadd.f32 %v467, %v685
    %v687 = vpop.f32.mrf.mxu0
    %v688 = vadd.f32 %v467, %v687
    %689 = vmatmul.bf16.gmra.mxu0 %v421
    %v690 = vpop.f32.mrf.mxu0
    %v691 = vadd.f32 %v467, %v690
    %v692 = vpop.f32.mrf.mxu0
    %v693 = vadd.f32 %v467, %v692
    %694 = vmatmul.bf16.gmra.mxu0 %v423
    %v695 = vpop.f32.mrf.mxu0
    %v696 = vadd.f32 %v467, %v695
    %v697 = vpop.f32.mrf.mxu0
    %v698 = vadd.f32 %v467, %v697
    %699 = vmatmul.bf16.gmra.mxu0 %v425
    %v700 = vpop.f32.mrf.mxu0
    %v701 = vadd.f32 %v467, %v700
    %v702 = vpop.f32.mrf.mxu0
    %v703 = vadd.f32 %v467, %v702
    %704 = vmatmul.bf16.gmra.mxu0 %v427
    %v705 = vpop.f32.mrf.mxu0
    %v706 = vadd.f32 %v467, %v705
    %v707 = vpop.f32.mrf.mxu0
    %v708 = vadd.f32 %v467, %v707
    %709 = vmatmul.bf16.gmra.mxu0 %v429
    %v710 = vpop.f32.mrf.mxu0
    %v711 = vadd.f32 %v467, %v710
    %v712 = vpop.f32.mrf.mxu0
    %v713 = vadd.f32 %v467, %v712
    %714 = vmatmul.bf16.gmra.mxu0 %v431
    %v715 = vpop.f32.mrf.mxu0
    %v716 = vadd.f32 %v467, %v715
    %v717 = vpop.f32.mrf.mxu0
    %v718 = vadd.f32 %v467, %v717
    %719 = vdwg.mxu0
    %720 = vmatpush.bf16.msra.mxu0 %v597
    %721 = vmatpush.bf16.msra.mxu0 %v595
    %722 = vmatpush.bf16.msra.mxu0 %v593
    %723 = vmatpush.bf16.msra.mxu0 %v591
    %724 = vmatpush.bf16.msra.mxu0 %v589
    %725 = vmatpush.bf16.msra.mxu0 %v587
    %726 = vmatpush.bf16.msra.mxu0 %v585
    %727 = vmatpush.bf16.msra.mxu0 %v583
    %728 = vmatmul.bf16.gmra.mxu0 %v402
    %v729 = vpop.f32.mrf.mxu0
    %v730 = vadd.f32 %v641, %v729
    %v731 = vpop.f32.mrf.mxu0
    %v732 = vadd.f32 %v643, %v731
    %733 = vmatmul.bf16.gmra.mxu0 %v404
    %v734 = vpop.f32.mrf.mxu0
    %v735 = vadd.f32 %v646, %v734
    %v736 = vpop.f32.mrf.mxu0
    %v737 = vadd.f32 %v648, %v736
    %738 = vmatmul.bf16.gmra.mxu0 %v406
    %v739 = vpop.f32.mrf.mxu0
    %v740 = vadd.f32 %v651, %v739
    %v741 = vpop.f32.mrf.mxu0
    %v742 = vadd.f32 %v653, %v741
    %743 = vmatmul.bf16.gmra.mxu0 %v408
    %v744 = vpop.f32.mrf.mxu0
    %v745 = vadd.f32 %v656, %v744
    %v746 = vpop.f32.mrf.mxu0
    %v747 = vadd.f32 %v658, %v746
    %748 = vmatmul.bf16.gmra.mxu0 %v410
    %v749 = vpop.f32.mrf.mxu0
    %v750 = vadd.f32 %v661, %v749
    %v751 = vpop.f32.mrf.mxu0
    %v752 = vadd.f32 %v663, %v751
    %753 = vmatmul.bf16.gmra.mxu0 %v412
    %v754 = vpop.f32.mrf.mxu0
    %v755 = vadd.f32 %v666, %v754
    %v756 = vpop.f32.mrf.mxu0
    %v757 = vadd.f32 %v668, %v756
    %758 = vmatmul.bf16.gmra.mxu0 %v414
    %v759 = vpop.f32.mrf.mxu0
    %v760 = vadd.f32 %v671, %v759
    %v761 = vpop.f32.mrf.mxu0
    %v762 = vadd.f32 %v673, %v761
    %763 = vmatmul.bf16.gmra.mxu0 %v416
    %v764 = vpop.f32.mrf.mxu0
    %v765 = vadd.f32 %v676, %v764
    %v766 = vpop.f32.mrf.mxu0
    %v767 = vadd.f32 %v678, %v766
    %768 = vmatmul.bf16.gmra.mxu0 %v418
    %v769 = vpop.f32.mrf.mxu0
    %v770 = vadd.f32 %v681, %v769
    %v771 = vpop.f32.mrf.mxu0
    %v772 = vadd.f32 %v683, %v771
    %773 = vmatmul.bf16.gmra.mxu0 %v420
    %v774 = vpop.f32.mrf.mxu0
    %v775 = vadd.f32 %v686, %v774
    %v776 = vpop.f32.mrf.mxu0
    %v777 = vadd.f32 %v688, %v776
    %778 = vmatmul.bf16.gmra.mxu0 %v422
    %v779 = vpop.f32.mrf.mxu0
    %v780 = vadd.f32 %v691, %v779
    %v781 = vpop.f32.mrf.mxu0
    %v782 = vadd.f32 %v693, %v781
    %783 = vmatmul.bf16.gmra.mxu0 %v424
    %v784 = vpop.f32.mrf.mxu0
    %v785 = vadd.f32 %v696, %v784
    %v786 = vpop.f32.mrf.mxu0
    %v787 = vadd.f32 %v698, %v786
    %788 = vmatmul.bf16.gmra.mxu0 %v426
    %v789 = vpop.f32.mrf.mxu0
    %v790 = vadd.f32 %v701, %v789
    %v791 = vpop.f32.mrf.mxu0
    %v792 = vadd.f32 %v703, %v791
    %793 = vmatmul.bf16.gmra.mxu0 %v428
    %v794 = vpop.f32.mrf.mxu0
    %v795 = vadd.f32 %v706, %v794
    %v796 = vpop.f32.mrf.mxu0
    %v797 = vadd.f32 %v708, %v796
    %798 = vmatmul.bf16.gmra.mxu0 %v430
    %v799 = vpop.f32.mrf.mxu0
    %v800 = vadd.f32 %v711, %v799
    %v801 = vpop.f32.mrf.mxu0
    %v802 = vadd.f32 %v713, %v801
    %803 = vmatmul.bf16.gmra.mxu0 %v432
    %v804 = vpop.f32.mrf.mxu0
    %v805 = vadd.f32 %v716, %v804
    %v806 = vpop.f32.mrf.mxu0
    %v807 = vadd.f32 %v718, %v806
    %808 = vdwg.mxu0
    %809 = vmatpush.bf16.msra.mxu0 %v582
    %810 = vmatpush.bf16.msra.mxu0 %v580
    %811 = vmatpush.bf16.msra.mxu0 %v578
    %812 = vmatpush.bf16.msra.mxu0 %v576
    %813 = vmatpush.bf16.msra.mxu0 %v574
    %814 = vmatpush.bf16.msra.mxu0 %v572
    %815 = vmatpush.bf16.msra.mxu0 %v570
    %816 = vmatpush.bf16.msra.mxu0 %v568
    %817 = vmatmul.bf16.gmra.mxu0 %v401
    %v818 = vpop.f32.mrf.mxu0
    %v819 = vadd.f32 %v468, %v818
    %v820 = vpop.f32.mrf.mxu0
    %v821 = vadd.f32 %v468, %v820
    %822 = vmatmul.bf16.gmra.mxu0 %v403
    %v823 = vpop.f32.mrf.mxu0
    %v824 = vadd.f32 %v468, %v823
    %v825 = vpop.f32.mrf.mxu0
    %v826 = vadd.f32 %v468, %v825
    %827 = vmatmul.bf16.gmra.mxu0 %v405
    %v828 = vpop.f32.mrf.mxu0
    %v829 = vadd.f32 %v468, %v828
    %v830 = vpop.f32.mrf.mxu0
    %v831 = vadd.f32 %v468, %v830
    %832 = vmatmul.bf16.gmra.mxu0 %v407
    %v833 = vpop.f32.mrf.mxu0
    %v834 = vadd.f32 %v468, %v833
    %v835 = vpop.f32.mrf.mxu0
    %v836 = vadd.f32 %v468, %v835
    %837 = vmatmul.bf16.gmra.mxu0 %v409
    %v838 = vpop.f32.mrf.mxu0
    %v839 = vadd.f32 %v468, %v838
    %v840 = vpop.f32.mrf.mxu0
    %v841 = vadd.f32 %v468, %v840
    %842 = vmatmul.bf16.gmra.mxu0 %v411
    %v843 = vpop.f32.mrf.mxu0
    %v844 = vadd.f32 %v468, %v843
    %v845 = vpop.f32.mrf.mxu0
    %v846 = vadd.f32 %v468, %v845
    %847 = vmatmul.bf16.gmra.mxu0 %v413
    %v848 = vpop.f32.mrf.mxu0
    %v849 = vadd.f32 %v468, %v848
    %v850 = vpop.f32.mrf.mxu0
    %v851 = vadd.f32 %v468, %v850
    %852 = vmatmul.bf16.gmra.mxu0 %v415
    %v853 = vpop.f32.mrf.mxu0
    %v854 = vadd.f32 %v468, %v853
    %v855 = vpop.f32.mrf.mxu0
    %v856 = vadd.f32 %v468, %v855
    %857 = vmatmul.bf16.gmra.mxu0 %v417
    %v858 = vpop.f32.mrf.mxu0
    %v859 = vadd.f32 %v468, %v858
    %v860 = vpop.f32.mrf.mxu0
    %v861 = vadd.f32 %v468, %v860
    %862 = vmatmul.bf16.gmra.mxu0 %v419
    %v863 = vpop.f32.mrf.mxu0
    %v864 = vadd.f32 %v468, %v863
    %v865 = vpop.f32.mrf.mxu0
    %v866 = vadd.f32 %v468, %v865
    %867 = vmatmul.bf16.gmra.mxu0 %v421
    %v868 = vpop.f32.mrf.mxu0
    %v869 = vadd.f32 %v468, %v868
    %v870 = vpop.f32.mrf.mxu0
    %v871 = vadd.f32 %v468, %v870
    %872 = vmatmul.bf16.gmra.mxu0 %v423
    %v873 = vpop.f32.mrf.mxu0
    %v874 = vadd.f32 %v468, %v873
    %v875 = vpop.f32.mrf.mxu0
    %v876 = vadd.f32 %v468, %v875
    %877 = vmatmul.bf16.gmra.mxu0 %v425
    %v878 = vpop.f32.mrf.mxu0
    %v879 = vadd.f32 %v468, %v878
    %v880 = vpop.f32.mrf.mxu0
    %v881 = vadd.f32 %v468, %v880
    %882 = vmatmul.bf16.gmra.mxu0 %v427
    %v883 = vpop.f32.mrf.mxu0
    %v884 = vadd.f32 %v468, %v883
    %v885 = vpop.f32.mrf.mxu0
    %v886 = vadd.f32 %v468, %v885
    %887 = vmatmul.bf16.gmra.mxu0 %v429
    %v888 = vpop.f32.mrf.mxu0
    %v889 = vadd.f32 %v468, %v888
    %v890 = vpop.f32.mrf.mxu0
    %v891 = vadd.f32 %v468, %v890
    %892 = vmatmul.bf16.gmra.mxu0 %v431
    %v893 = vpop.f32.mrf.mxu0
    %v894 = vadd.f32 %v468, %v893
    %v895 = vpop.f32.mrf.mxu0
    %v896 = vadd.f32 %v468, %v895
    %897 = vdwg.mxu0
    %898 = vmatpush.bf16.msra.mxu0 %v598
    %899 = vmatpush.bf16.msra.mxu0 %v596
    %900 = vmatpush.bf16.msra.mxu0 %v594
    %901 = vmatpush.bf16.msra.mxu0 %v592
    %902 = vmatpush.bf16.msra.mxu0 %v590
    %903 = vmatpush.bf16.msra.mxu0 %v588
    %904 = vmatpush.bf16.msra.mxu0 %v586
    %905 = vmatpush.bf16.msra.mxu0 %v584
    %906 = vmatmul.bf16.gmra.mxu0 %v402
    %v907 = vpop.f32.mrf.mxu0
    %v908 = vadd.f32 %v819, %v907
    %v909 = vpop.f32.mrf.mxu0
    %v910 = vadd.f32 %v821, %v909
    %911 = vmatmul.bf16.gmra.mxu0 %v404
    %v912 = vpop.f32.mrf.mxu0
    %v913 = vadd.f32 %v824, %v912
    %v914 = vpop.f32.mrf.mxu0
    %v915 = vadd.f32 %v826, %v914
    %916 = vmatmul.bf16.gmra.mxu0 %v406
    %v917 = vpop.f32.mrf.mxu0
    %v918 = vadd.f32 %v829, %v917
    %v919 = vpop.f32.mrf.mxu0
    %v920 = vadd.f32 %v831, %v919
    %921 = vmatmul.bf16.gmra.mxu0 %v408
    %v922 = vpop.f32.mrf.mxu0
    %v923 = vadd.f32 %v834, %v922
    %v924 = vpop.f32.mrf.mxu0
    %v925 = vadd.f32 %v836, %v924
    %926 = vmatmul.bf16.gmra.mxu0 %v410
    %v927 = vpop.f32.mrf.mxu0
    %v928 = vadd.f32 %v839, %v927
    %v929 = vpop.f32.mrf.mxu0
    %v930 = vadd.f32 %v841, %v929
    %931 = vmatmul.bf16.gmra.mxu0 %v412
    %v932 = vpop.f32.mrf.mxu0
    %v933 = vadd.f32 %v844, %v932
    %v934 = vpop.f32.mrf.mxu0
    %v935 = vadd.f32 %v846, %v934
    %936 = vmatmul.bf16.gmra.mxu0 %v414
    %v937 = vpop.f32.mrf.mxu0
    %v938 = vadd.f32 %v849, %v937
    %v939 = vpop.f32.mrf.mxu0
    %v940 = vadd.f32 %v851, %v939
    %941 = vmatmul.bf16.gmra.mxu0 %v416
    %v942 = vpop.f32.mrf.mxu0
    %v943 = vadd.f32 %v854, %v942
    %v944 = vpop.f32.mrf.mxu0
    %v945 = vadd.f32 %v856, %v944
    %946 = vmatmul.bf16.gmra.mxu0 %v418
    %v947 = vpop.f32.mrf.mxu0
    %v948 = vadd.f32 %v859, %v947
    %v949 = vpop.f32.mrf.mxu0
    %v950 = vadd.f32 %v861, %v949
    %951 = vmatmul.bf16.gmra.mxu0 %v420
    %v952 = vpop.f32.mrf.mxu0
    %v953 = vadd.f32 %v864, %v952
    %v954 = vpop.f32.mrf.mxu0
    %v955 = vadd.f32 %v866, %v954
    %956 = vmatmul.bf16.gmra.mxu0 %v422
    %v957 = vpop.f32.mrf.mxu0
    %v958 = vadd.f32 %v869, %v957
    %v959 = vpop.f32.mrf.mxu0
    %v960 = vadd.f32 %v871, %v959
    %961 = vmatmul.bf16.gmra.mxu0 %v424
    %v962 = vpop.f32.mrf.mxu0
    %v963 = vadd.f32 %v874, %v962
    %v964 = vpop.f32.mrf.mxu0
    %v965 = vadd.f32 %v876, %v964
    %966 = vmatmul.bf16.gmra.mxu0 %v426
    %v967 = vpop.f32.mrf.mxu0
    %v968 = vadd.f32 %v879, %v967
    %v969 = vpop.f32.mrf.mxu0
    %v970 = vadd.f32 %v881, %v969
    %971 = vmatmul.bf16.gmra.mxu0 %v428
    %v972 = vpop.f32.mrf.mxu0
    %v973 = vadd.f32 %v884, %v972
    %v974 = vpop.f32.mrf.mxu0
    %v975 = vadd.f32 %v886, %v974
    %976 = vmatmul.bf16.gmra.mxu0 %v430
    %v977 = vpop.f32.mrf.mxu0
    %v978 = vadd.f32 %v889, %v977
    %v979 = vpop.f32.mrf.mxu0
    %v980 = vadd.f32 %v891, %v979
    %981 = vmatmul.bf16.gmra.mxu0 %v432
    %v982 = vpop.f32.mrf.mxu0
    %v983 = vadd.f32 %v894, %v982
    %v984 = vpop.f32.mrf.mxu0
    %v985 = vadd.f32 %v896, %v984
    %986 = vdwg.mxu0
    %v987 = vmax.f32 %v730, 0.0
    %v988 = vmax.f32 %v908, 0.0
    %v989 = vmax.f32 %v732, 0.0
    %v990 = vmax.f32 %v910, 0.0
    %v991 = vmax.f32 %v735, 0.0
    %v992 = vmax.f32 %v913, 0.0
    %v993 = vmax.f32 %v737, 0.0
    %v994 = vmax.f32 %v915, 0.0
    %v995 = vmax.f32 %v740, 0.0
    %v996 = vmax.f32 %v918, 0.0
    %v997 = vmax.f32 %v742, 0.0
    %v998 = vmax.f32 %v920, 0.0
    %v999 = vmax.f32 %v745, 0.0
    %v1000 = vmax.f32 %v923, 0.0
    %v1001 = vmax.f32 %v747, 0.0
    %v1002 = vmax.f32 %v925, 0.0
    %v1003 = vmax.f32 %v750, 0.0
    %v1004 = vmax.f32 %v928, 0.0
    %v1005 = vmax.f32 %v752, 0.0
    %v1006 = vmax.f32 %v930, 0.0
    %v1007 = vmax.f32 %v755, 0.0
    %v1008 = vmax.f32 %v933, 0.0
    %v1009 = vmax.f32 %v757, 0.0
    %v1010 = vmax.f32 %v935, 0.0
    %v1011 = vmax.f32 %v760, 0.0
    %v1012 = vmax.f32 %v938, 0.0
    %v1013 = vmax.f32 %v762, 0.0
    %v1014 = vmax.f32 %v940, 0.0
    %v1015 = vmax.f32 %v765, 0.0
    %v1016 = vmax.f32 %v943, 0.0
    %v1017 = vmax.f32 %v767, 0.0
    %v1018 = vmax.f32 %v945, 0.0
    %v1019 = vmax.f32 %v770, 0.0
    %v1020 = vmax.f32 %v948, 0.0
    %v1021 = vmax.f32 %v772, 0.0
    %v1022 = vmax.f32 %v950, 0.0
    %v1023 = vmax.f32 %v775, 0.0
    %v1024 = vmax.f32 %v953, 0.0
    %v1025 = vmax.f32 %v777, 0.0
    %v1026 = vmax.f32 %v955, 0.0
    %v1027 = vmax.f32 %v780, 0.0
    %v1028 = vmax.f32 %v958, 0.0
    %v1029 = vmax.f32 %v782, 0.0
    %v1030 = vmax.f32 %v960, 0.0
    %v1031 = vmax.f32 %v785, 0.0
    %v1032 = vmax.f32 %v963, 0.0
    %v1033 = vmax.f32 %v787, 0.0
    %v1034 = vmax.f32 %v965, 0.0
    %v1035 = vmax.f32 %v790, 0.0
    %v1036 = vmax.f32 %v968, 0.0
    %v1037 = vmax.f32 %v792, 0.0
    %v1038 = vmax.f32 %v970, 0.0
    %v1039 = vmax.f32 %v795, 0.0
    %v1040 = vmax.f32 %v973, 0.0
    %v1041 = vmax.f32 %v797, 0.0
    %v1042 = vmax.f32 %v975, 0.0
    %v1043 = vmax.f32 %v800, 0.0
    %v1044 = vmax.f32 %v978, 0.0
    %v1045 = vmax.f32 %v802, 0.0
    %v1046 = vmax.f32 %v980, 0.0
    %v1047 = vmax.f32 %v805, 0.0
    %v1048 = vmax.f32 %v983, 0.0
    %v1049 = vmax.f32 %v807, 0.0
    %v1050 = vmax.f32 %v985, 0.0
    %v1051 = vpack.c.bf16 %v989, %v987
    %v1052 = vpack.c.bf16 %v990, %v988
    %v1053 = vpack.c.bf16 %v993, %v991
    %v1054 = vpack.c.bf16 %v994, %v992
    %v1055 = vpack.c.bf16 %v997, %v995
    %v1056 = vpack.c.bf16 %v998, %v996
    %v1057 = vpack.c.bf16 %v1001, %v999
    %v1058 = vpack.c.bf16 %v1002, %v1000
    %v1059 = vpack.c.bf16 %v1005, %v1003
    %v1060 = vpack.c.bf16 %v1006, %v1004
    %v1061 = vpack.c.bf16 %v1009, %v1007
    %v1062 = vpack.c.bf16 %v1010, %v1008
    %v1063 = vpack.c.bf16 %v1013, %v1011
    %v1064 = vpack.c.bf16 %v1014, %v1012
    %v1065 = vpack.c.bf16 %v1017, %v1015
    %v1066 = vpack.c.bf16 %v1018, %v1016
    %v1067 = vpack.c.bf16 %v1021, %v1019
    %v1068 = vpack.c.bf16 %v1022, %v1020
    %v1069 = vpack.c.bf16 %v1025, %v1023
    %v1070 = vpack.c.bf16 %v1026, %v1024
    %v1071 = vpack.c.bf16 %v1029, %v1027
    %v1072 = vpack.c.bf16 %v1030, %v1028
    %v1073 = vpack.c.bf16 %v1033, %v1031
    %v1074 = vpack.c.bf16 %v1034, %v1032
    %v1075 = vpack.c.bf16 %v1037, %v1035
    %v1076 = vpack.c.bf16 %v1038, %v1036
    %v1077 = vpack.c.bf16 %v1041, %v1039
    %v1078 = vpack.c.bf16 %v1042, %v1040
    %v1079 = vpack.c.bf16 %v1045, %v1043
    %v1080 = vpack.c.bf16 %v1046, %v1044
    %v1081 = vpack.c.bf16 %v1049, %v1047
    %v1082 = vpack.c.bf16 %v1050, %v1048
    %s1083 = scalar_lea.vmem [#allocation2], 256
    %v1084 = vld [vmem:[%s1083] sm:$0xff]
    %v1085 = vld [vmem:[%s1083 + $0x8] sm:$0xff]
    %v1086 = vld [vmem:[%s1083 + $0x10] sm:$0xff]
    %v1087 = vld [vmem:[%s1083 + $0x18] sm:$0xff]
    %v1088 = vld [vmem:[%s1083 + $0x20] sm:$0xff]
    %v1089 = vld [vmem:[%s1083 + $0x28] sm:$0xff]
    %v1090 = vld [vmem:[%s1083 + $0x30] sm:$0xff]
    %v1091 = vld [vmem:[%s1083 + $0x38] sm:$0xff]
    %v1092 = vld [vmem:[%s1083 + $0x40] sm:$0xff]
    %v1093 = vld [vmem:[%s1083 + $0x48] sm:$0xff]
    %v1094 = vld [vmem:[%s1083 + $0x50] sm:$0xff]
    %v1095 = vld [vmem:[%s1083 + $0x58] sm:$0xff]
    %v1096 = vld [vmem:[%s1083 + $0x60] sm:$0xff]
    %v1097 = vld [vmem:[%s1083 + $0x68] sm:$0xff]
    %v1098 = vld [vmem:[%s1083 + $0x70] sm:$0xff]
    %v1099 = vld [vmem:[%s1083 + $0x78] sm:$0xff]
    %v1100 = vld [vmem:[%s1083 + $0x80] sm:$0xff]
    %v1101 = vld [vmem:[%s1083 + $0x88] sm:$0xff]
    %v1102 = vld [vmem:[%s1083 + $0x90] sm:$0xff]
    %v1103 = vld [vmem:[%s1083 + $0x98] sm:$0xff]
    %v1104 = vld [vmem:[%s1083 + $0xa0] sm:$0xff]
    %v1105 = vld [vmem:[%s1083 + $0xa8] sm:$0xff]
    %v1106 = vld [vmem:[%s1083 + $0xb0] sm:$0xff]
    %v1107 = vld [vmem:[%s1083 + $0xb8] sm:$0xff]
    %v1108 = vld [vmem:[%s1083 + $0xc0] sm:$0xff]
    %v1109 = vld [vmem:[%s1083 + $0xc8] sm:$0xff]
    %v1110 = vld [vmem:[%s1083 + $0xd0] sm:$0xff]
    %v1111 = vld [vmem:[%s1083 + $0xd8] sm:$0xff]
    %v1112 = vld [vmem:[%s1083 + $0xe0] sm:$0xff]
    %v1113 = vld [vmem:[%s1083 + $0xe8] sm:$0xff]
    %v1114 = vld [vmem:[%s1083 + $0xf0] sm:$0xff]
    %v1115 = vld [vmem:[%s1083 + $0xf8] sm:$0xff]
    %s1116 = scalar_lea.vmem %s4, 2
    %v1117 = vld [vmem:[%s1116] sm:$0x3]
    %v1119 = vperm.slane %v1117, 0
    %v1120 = vperm.slane %v1117, 1
    %v1155 = vunpack.c.l.b16 %v1084
    %v1156 = vunpack.c.h.b16 %v1084
    %v1157 = vunpack.c.l.b16 %v1085
    %v1158 = vunpack.c.h.b16 %v1085
    %v1159 = vunpack.c.l.b16 %v1086
    %v1160 = vunpack.c.h.b16 %v1086
    %v1161 = vunpack.c.l.b16 %v1087
    %v1162 = vunpack.c.h.b16 %v1087
    %v1163 = vunpack.c.l.b16 %v1088
    %v1164 = vunpack.c.h.b16 %v1088
    %v1165 = vunpack.c.l.b16 %v1089
    %v1166 = vunpack.c.h.b16 %v1089
    %v1167 = vunpack.c.l.b16 %v1090
    %v1168 = vunpack.c.h.b16 %v1090
    %v1169 = vunpack.c.l.b16 %v1091
    %v1170 = vunpack.c.h.b16 %v1091
    %v1171 = vunpack.c.l.b16 %v1092
    %v1172 = vunpack.c.h.b16 %v1092
    %v1173 = vunpack.c.l.b16 %v1093
    %v1174 = vunpack.c.h.b16 %v1093
    %v1175 = vunpack.c.l.b16 %v1094
    %v1176 = vunpack.c.h.b16 %v1094
    %v1177 = vunpack.c.l.b16 %v1095
    %v1178 = vunpack.c.h.b16 %v1095
    %v1179 = vunpack.c.l.b16 %v1096
    %v1180 = vunpack.c.h.b16 %v1096
    %v1181 = vunpack.c.l.b16 %v1097
    %v1182 = vunpack.c.h.b16 %v1097
    %v1183 = vunpack.c.l.b16 %v1098
    %v1184 = vunpack.c.h.b16 %v1098
    %v1185 = vunpack.c.l.b16 %v1099
    %v1186 = vunpack.c.h.b16 %v1099
    %v1187 = vunpack.c.l.b16 %v1100
    %v1188 = vunpack.c.h.b16 %v1100
    %v1189 = vunpack.c.l.b16 %v1101
    %v1190 = vunpack.c.h.b16 %v1101
    %v1191 = vunpack.c.l.b16 %v1102
    %v1192 = vunpack.c.h.b16 %v1102
    %v1193 = vunpack.c.l.b16 %v1103
    %v1194 = vunpack.c.h.b16 %v1103
    %v1195 = vunpack.c.l.b16 %v1104
    %v1196 = vunpack.c.h.b16 %v1104
    %v1197 = vunpack.c.l.b16 %v1105
    %v1198 = vunpack.c.h.b16 %v1105
    %v1199 = vunpack.c.l.b16 %v1106
    %v1200 = vunpack.c.h.b16 %v1106
    %v1201 = vunpack.c.l.b16 %v1107
    %v1202 = vunpack.c.h.b16 %v1107
    %v1203 = vunpack.c.l.b16 %v1108
    %v1204 = vunpack.c.h.b16 %v1108
    %v1205 = vunpack.c.l.b16 %v1109
    %v1206 = vunpack.c.h.b16 %v1109
    %v1207 = vunpack.c.l.b16 %v1110
    %v1208 = vunpack.c.h.b16 %v1110
    %v1209 = vunpack.c.l.b16 %v1111
    %v1210 = vunpack.c.h.b16 %v1111
    %v1211 = vunpack.c.l.b16 %v1112
    %v1212 = vunpack.c.h.b16 %v1112
    %v1213 = vunpack.c.l.b16 %v1113
    %v1214 = vunpack.c.h.b16 %v1113
    %v1215 = vunpack.c.l.b16 %v1114
    %v1216 = vunpack.c.h.b16 %v1114
    %v1217 = vunpack.c.l.b16 %v1115
    %v1218 = vunpack.c.h.b16 %v1115
    %v1219 = vpack.c.b16 %v1157, %v1155
    %v1220 = vpack.c.b16 %v1158, %v1156
    %v1221 = vpack.c.b16 %v1161, %v1159
    %v1222 = vpack.c.b16 %v1162, %v1160
    %v1223 = vpack.c.b16 %v1165, %v1163
    %v1224 = vpack.c.b16 %v1166, %v1164
    %v1225 = vpack.c.b16 %v1169, %v1167
    %v1226 = vpack.c.b16 %v1170, %v1168
    %v1227 = vpack.c.b16 %v1173, %v1171
    %v1228 = vpack.c.b16 %v1174, %v1172
    %v1229 = vpack.c.b16 %v1177, %v1175
    %v1230 = vpack.c.b16 %v1178, %v1176
    %v1231 = vpack.c.b16 %v1181, %v1179
    %v1232 = vpack.c.b16 %v1182, %v1180
    %v1233 = vpack.c.b16 %v1185, %v1183
    %v1234 = vpack.c.b16 %v1186, %v1184
    %v1235 = vpack.c.b16 %v1189, %v1187
    %v1236 = vpack.c.b16 %v1190, %v1188
    %v1237 = vpack.c.b16 %v1193, %v1191
    %v1238 = vpack.c.b16 %v1194, %v1192
    %v1239 = vpack.c.b16 %v1197, %v1195
    %v1240 = vpack.c.b16 %v1198, %v1196
    %v1241 = vpack.c.b16 %v1201, %v1199
    %v1242 = vpack.c.b16 %v1202, %v1200
    %v1243 = vpack.c.b16 %v1205, %v1203
    %v1244 = vpack.c.b16 %v1206, %v1204
    %v1245 = vpack.c.b16 %v1209, %v1207
    %v1246 = vpack.c.b16 %v1210, %v1208
    %v1247 = vpack.c.b16 %v1213, %v1211
    %v1248 = vpack.c.b16 %v1214, %v1212
    %v1249 = vpack.c.b16 %v1217, %v1215
    %v1250 = vpack.c.b16 %v1218, %v1216
    %1283 = vmatpush.bf16.msra.mxu0 %v1233
    %1284 = vmatpush.bf16.msra.mxu0 %v1231
    %1285 = vmatpush.bf16.msra.mxu0 %v1229
    %1286 = vmatpush.bf16.msra.mxu0 %v1227
    %1287 = vmatpush.bf16.msra.mxu0 %v1225
    %1288 = vmatpush.bf16.msra.mxu0 %v1223
    %1289 = vmatpush.bf16.msra.mxu0 %v1221
    %1290 = vmatpush.bf16.msra.mxu0 %v1219
    %1291 = vmatmul.bf16.gmra.mxu0 %v1051
    %v1292 = vpop.f32.mrf.mxu0
    %v1293 = vadd.f32 %v1119, %v1292
    %v1294 = vpop.f32.mrf.mxu0
    %v1295 = vadd.f32 %v1119, %v1294
    %1296 = vmatmul.bf16.gmra.mxu0 %v1053
    %v1297 = vpop.f32.mrf.mxu0
    %v1298 = vadd.f32 %v1119, %v1297
    %v1299 = vpop.f32.mrf.mxu0
    %v1300 = vadd.f32 %v1119, %v1299
    %1301 = vmatmul.bf16.gmra.mxu0 %v1055
    %v1302 = vpop.f32.mrf.mxu0
    %v1303 = vadd.f32 %v1119, %v1302
    %v1304 = vpop.f32.mrf.mxu0
    %v1305 = vadd.f32 %v1119, %v1304
    %1306 = vmatmul.bf16.gmra.mxu0 %v1057
    %v1307 = vpop.f32.mrf.mxu0
    %v1308 = vadd.f32 %v1119, %v1307
    %v1309 = vpop.f32.mrf.mxu0
    %v1310 = vadd.f32 %v1119, %v1309
    %1311 = vmatmul.bf16.gmra.mxu0 %v1059
    %v1312 = vpop.f32.mrf.mxu0
    %v1313 = vadd.f32 %v1119, %v1312
    %v1314 = vpop.f32.mrf.mxu0
    %v1315 = vadd.f32 %v1119, %v1314
    %1316 = vmatmul.bf16.gmra.mxu0 %v1061
    %v1317 = vpop.f32.mrf.mxu0
    %v1318 = vadd.f32 %v1119, %v1317
    %v1319 = vpop.f32.mrf.mxu0
    %v1320 = vadd.f32 %v1119, %v1319
    %1321 = vmatmul.bf16.gmra.mxu0 %v1063
    %v1322 = vpop.f32.mrf.mxu0
    %v1323 = vadd.f32 %v1119, %v1322
    %v1324 = vpop.f32.mrf.mxu0
    %v1325 = vadd.f32 %v1119, %v1324
    %1326 = vmatmul.bf16.gmra.mxu0 %v1065
    %v1327 = vpop.f32.mrf.mxu0
    %v1328 = vadd.f32 %v1119, %v1327
    %v1329 = vpop.f32.mrf.mxu0
    %v1330 = vadd.f32 %v1119, %v1329
    %1331 = vmatmul.bf16.gmra.mxu0 %v1067
    %v1332 = vpop.f32.mrf.mxu0
    %v1333 = vadd.f32 %v1119, %v1332
    %v1334 = vpop.f32.mrf.mxu0
    %v1335 = vadd.f32 %v1119, %v1334
    %1336 = vmatmul.bf16.gmra.mxu0 %v1069
    %v1337 = vpop.f32.mrf.mxu0
    %v1338 = vadd.f32 %v1119, %v1337
    %v1339 = vpop.f32.mrf.mxu0
    %v1340 = vadd.f32 %v1119, %v1339
    %1341 = vmatmul.bf16.gmra.mxu0 %v1071
    %v1342 = vpop.f32.mrf.mxu0
    %v1343 = vadd.f32 %v1119, %v1342
    %v1344 = vpop.f32.mrf.mxu0
    %v1345 = vadd.f32 %v1119, %v1344
    %1346 = vmatmul.bf16.gmra.mxu0 %v1073
    %v1347 = vpop.f32.mrf.mxu0
    %v1348 = vadd.f32 %v1119, %v1347
    %v1349 = vpop.f32.mrf.mxu0
    %v1350 = vadd.f32 %v1119, %v1349
    %1351 = vmatmul.bf16.gmra.mxu0 %v1075
    %v1352 = vpop.f32.mrf.mxu0
    %v1353 = vadd.f32 %v1119, %v1352
    %v1354 = vpop.f32.mrf.mxu0
    %v1355 = vadd.f32 %v1119, %v1354
    %1356 = vmatmul.bf16.gmra.mxu0 %v1077
    %v1357 = vpop.f32.mrf.mxu0
    %v1358 = vadd.f32 %v1119, %v1357
    %v1359 = vpop.f32.mrf.mxu0
    %v1360 = vadd.f32 %v1119, %v1359
    %1361 = vmatmul.bf16.gmra.mxu0 %v1079
    %v1362 = vpop.f32.mrf.mxu0
    %v1363 = vadd.f32 %v1119, %v1362
    %v1364 = vpop.f32.mrf.mxu0
    %v1365 = vadd.f32 %v1119, %v1364
    %1366 = vmatmul.bf16.gmra.mxu0 %v1081
    %v1367 = vpop.f32.mrf.mxu0
    %v1368 = vadd.f32 %v1119, %v1367
    %v1369 = vpop.f32.mrf.mxu0
    %v1370 = vadd.f32 %v1119, %v1369
    %1371 = vdwg.mxu0
    %1372 = vmatpush.bf16.msra.mxu0 %v1249
    %1373 = vmatpush.bf16.msra.mxu0 %v1247
    %1374 = vmatpush.bf16.msra.mxu0 %v1245
    %1375 = vmatpush.bf16.msra.mxu0 %v1243
    %1376 = vmatpush.bf16.msra.mxu0 %v1241
    %1377 = vmatpush.bf16.msra.mxu0 %v1239
    %1378 = vmatpush.bf16.msra.mxu0 %v1237
    %1379 = vmatpush.bf16.msra.mxu0 %v1235
    %1380 = vmatmul.bf16.gmra.mxu0 %v1052
    %v1381 = vpop.f32.mrf.mxu0
    %v1382 = vadd.f32 %v1293, %v1381
    %v1383 = vpop.f32.mrf.mxu0
    %v1384 = vadd.f32 %v1295, %v1383
    %1385 = vmatmul.bf16.gmra.mxu0 %v1054
    %v1386 = vpop.f32.mrf.mxu0
    %v1387 = vadd.f32 %v1298, %v1386
    %v1388 = vpop.f32.mrf.mxu0
    %v1389 = vadd.f32 %v1300, %v1388
    %1390 = vmatmul.bf16.gmra.mxu0 %v1056
    %v1391 = vpop.f32.mrf.mxu0
    %v1392 = vadd.f32 %v1303, %v1391
    %v1393 = vpop.f32.mrf.mxu0
    %v1394 = vadd.f32 %v1305, %v1393
    %1395 = vmatmul.bf16.gmra.mxu0 %v1058
    %v1396 = vpop.f32.mrf.mxu0
    %v1397 = vadd.f32 %v1308, %v1396
    %v1398 = vpop.f32.mrf.mxu0
    %v1399 = vadd.f32 %v1310, %v1398
    %1400 = vmatmul.bf16.gmra.mxu0 %v1060
    %v1401 = vpop.f32.mrf.mxu0
    %v1402 = vadd.f32 %v1313, %v1401
    %v1403 = vpop.f32.mrf.mxu0
    %v1404 = vadd.f32 %v1315, %v1403
    %1405 = vmatmul.bf16.gmra.mxu0 %v1062
    %v1406 = vpop.f32.mrf.mxu0
    %v1407 = vadd.f32 %v1318, %v1406
    %v1408 = vpop.f32.mrf.mxu0
    %v1409 = vadd.f32 %v1320, %v1408
    %1410 = vmatmul.bf16.gmra.mxu0 %v1064
    %v1411 = vpop.f32.mrf.mxu0
    %v1412 = vadd.f32 %v1323, %v1411
    %v1413 = vpop.f32.mrf.mxu0
    %v1414 = vadd.f32 %v1325, %v1413
    %1415 = vmatmul.bf16.gmra.mxu0 %v1066
    %v1416 = vpop.f32.mrf.mxu0
    %v1417 = vadd.f32 %v1328, %v1416
    %v1418 = vpop.f32.mrf.mxu0
    %v1419 = vadd.f32 %v1330, %v1418
    %1420 = vmatmul.bf16.gmra.mxu0 %v1068
    %v1421 = vpop.f32.mrf.mxu0
    %v1422 = vadd.f32 %v1333, %v1421
    %v1423 = vpop.f32.mrf.mxu0
    %v1424 = vadd.f32 %v1335, %v1423
    %1425 = vmatmul.bf16.gmra.mxu0 %v1070
    %v1426 = vpop.f32.mrf.mxu0
    %v1427 = vadd.f32 %v1338, %v1426
    %v1428 = vpop.f32.mrf.mxu0
    %v1429 = vadd.f32 %v1340, %v1428
    %1430 = vmatmul.bf16.gmra.mxu0 %v1072
    %v1431 = vpop.f32.mrf.mxu0
    %v1432 = vadd.f32 %v1343, %v1431
    %v1433 = vpop.f32.mrf.mxu0
    %v1434 = vadd.f32 %v1345, %v1433
    %1435 = vmatmul.bf16.gmra.mxu0 %v1074
    %v1436 = vpop.f32.mrf.mxu0
    %v1437 = vadd.f32 %v1348, %v1436
    %v1438 = vpop.f32.mrf.mxu0
    %v1439 = vadd.f32 %v1350, %v1438
    %1440 = vmatmul.bf16.gmra.mxu0 %v1076
    %v1441 = vpop.f32.mrf.mxu0
    %v1442 = vadd.f32 %v1353, %v1441
    %v1443 = vpop.f32.mrf.mxu0
    %v1444 = vadd.f32 %v1355, %v1443
    %1445 = vmatmul.bf16.gmra.mxu0 %v1078
    %v1446 = vpop.f32.mrf.mxu0
    %v1447 = vadd.f32 %v1358, %v1446
    %v1448 = vpop.f32.mrf.mxu0
    %v1449 = vadd.f32 %v1360, %v1448
    %1450 = vmatmul.bf16.gmra.mxu0 %v1080
    %v1451 = vpop.f32.mrf.mxu0
    %v1452 = vadd.f32 %v1363, %v1451
    %v1453 = vpop.f32.mrf.mxu0
    %v1454 = vadd.f32 %v1365, %v1453
    %1455 = vmatmul.bf16.gmra.mxu0 %v1082
    %v1456 = vpop.f32.mrf.mxu0
    %v1457 = vadd.f32 %v1368, %v1456
    %v1458 = vpop.f32.mrf.mxu0
    %v1459 = vadd.f32 %v1370, %v1458
    %1460 = vdwg.mxu0
    %1461 = vmatpush.bf16.msra.mxu0 %v1234
    %1462 = vmatpush.bf16.msra.mxu0 %v1232
    %1463 = vmatpush.bf16.msra.mxu0 %v1230
    %1464 = vmatpush.bf16.msra.mxu0 %v1228
    %1465 = vmatpush.bf16.msra.mxu0 %v1226
    %1466 = vmatpush.bf16.msra.mxu0 %v1224
    %1467 = vmatpush.bf16.msra.mxu0 %v1222
    %1468 = vmatpush.bf16.msra.mxu0 %v1220
    %1469 = vmatmul.bf16.gmra.mxu0 %v1051
    %v1470 = vpop.f32.mrf.mxu0
    %v1471 = vadd.f32 %v1120, %v1470
    %v1472 = vpop.f32.mrf.mxu0
    %v1473 = vadd.f32 %v1120, %v1472
    %1474 = vmatmul.bf16.gmra.mxu0 %v1053
    %v1475 = vpop.f32.mrf.mxu0
    %v1476 = vadd.f32 %v1120, %v1475
    %v1477 = vpop.f32.mrf.mxu0
    %v1478 = vadd.f32 %v1120, %v1477
    %1479 = vmatmul.bf16.gmra.mxu0 %v1055
    %v1480 = vpop.f32.mrf.mxu0
    %v1481 = vadd.f32 %v1120, %v1480
    %v1482 = vpop.f32.mrf.mxu0
    %v1483 = vadd.f32 %v1120, %v1482
    %1484 = vmatmul.bf16.gmra.mxu0 %v1057
    %v1485 = vpop.f32.mrf.mxu0
    %v1486 = vadd.f32 %v1120, %v1485
    %v1487 = vpop.f32.mrf.mxu0
    %v1488 = vadd.f32 %v1120, %v1487
    %1489 = vmatmul.bf16.gmra.mxu0 %v1059
    %v1490 = vpop.f32.mrf.mxu0
    %v1491 = vadd.f32 %v1120, %v1490
    %v1492 = vpop.f32.mrf.mxu0
    %v1493 = vadd.f32 %v1120, %v1492
    %1494 = vmatmul.bf16.gmra.mxu0 %v1061
    %v1495 = vpop.f32.mrf.mxu0
    %v1496 = vadd.f32 %v1120, %v1495
    %v1497 = vpop.f32.mrf.mxu0
    %v1498 = vadd.f32 %v1120, %v1497
    %1499 = vmatmul.bf16.gmra.mxu0 %v1063
    %v1500 = vpop.f32.mrf.mxu0
    %v1501 = vadd.f32 %v1120, %v1500
    %v1502 = vpop.f32.mrf.mxu0
    %v1503 = vadd.f32 %v1120, %v1502
    %1504 = vmatmul.bf16.gmra.mxu0 %v1065
    %v1505 = vpop.f32.mrf.mxu0
    %v1506 = vadd.f32 %v1120, %v1505
    %v1507 = vpop.f32.mrf.mxu0
    %v1508 = vadd.f32 %v1120, %v1507
    %1509 = vmatmul.bf16.gmra.mxu0 %v1067
    %v1510 = vpop.f32.mrf.mxu0
    %v1511 = vadd.f32 %v1120, %v1510
    %v1512 = vpop.f32.mrf.mxu0
    %v1513 = vadd.f32 %v1120, %v1512
    %1514 = vmatmul.bf16.gmra.mxu0 %v1069
    %v1515 = vpop.f32.mrf.mxu0
    %v1516 = vadd.f32 %v1120, %v1515
    %v1517 = vpop.f32.mrf.mxu0
    %v1518 = vadd.f32 %v1120, %v1517
    %1519 = vmatmul.bf16.gmra.mxu0 %v1071
    %v1520 = vpop.f32.mrf.mxu0
    %v1521 = vadd.f32 %v1120, %v1520
    %v1522 = vpop.f32.mrf.mxu0
    %v1523 = vadd.f32 %v1120, %v1522
    %1524 = vmatmul.bf16.gmra.mxu0 %v1073
    %v1525 = vpop.f32.mrf.mxu0
    %v1526 = vadd.f32 %v1120, %v1525
    %v1527 = vpop.f32.mrf.mxu0
    %v1528 = vadd.f32 %v1120, %v1527
    %1529 = vmatmul.bf16.gmra.mxu0 %v1075
    %v1530 = vpop.f32.mrf.mxu0
    %v1531 = vadd.f32 %v1120, %v1530
    %v1532 = vpop.f32.mrf.mxu0
    %v1533 = vadd.f32 %v1120, %v1532
    %1534 = vmatmul.bf16.gmra.mxu0 %v1077
    %v1535 = vpop.f32.mrf.mxu0
    %v1536 = vadd.f32 %v1120, %v1535
    %v1537 = vpop.f32.mrf.mxu0
    %v1538 = vadd.f32 %v1120, %v1537
    %1539 = vmatmul.bf16.gmra.mxu0 %v1079
    %v1540 = vpop.f32.mrf.mxu0
    %v1541 = vadd.f32 %v1120, %v1540
    %v1542 = vpop.f32.mrf.mxu0
    %v1543 = vadd.f32 %v1120, %v1542
    %1544 = vmatmul.bf16.gmra.mxu0 %v1081
    %v1545 = vpop.f32.mrf.mxu0
    %v1546 = vadd.f32 %v1120, %v1545
    %v1547 = vpop.f32.mrf.mxu0
    %v1548 = vadd.f32 %v1120, %v1547
    %1549 = vdwg.mxu0
    %1550 = vmatpush.bf16.msra.mxu0 %v1250
    %1551 = vmatpush.bf16.msra.mxu0 %v1248
    %1552 = vmatpush.bf16.msra.mxu0 %v1246
    %1553 = vmatpush.bf16.msra.mxu0 %v1244
    %1554 = vmatpush.bf16.msra.mxu0 %v1242
    %1555 = vmatpush.bf16.msra.mxu0 %v1240
    %1556 = vmatpush.bf16.msra.mxu0 %v1238
    %1557 = vmatpush.bf16.msra.mxu0 %v1236
    %1558 = vmatmul.bf16.gmra.mxu0 %v1052
    %v1559 = vpop.f32.mrf.mxu0
    %v1560 = vadd.f32 %v1471, %v1559
    %v1561 = vpop.f32.mrf.mxu0
    %v1562 = vadd.f32 %v1473, %v1561
    %1563 = vmatmul.bf16.gmra.mxu0 %v1054
    %v1564 = vpop.f32.mrf.mxu0
    %v1565 = vadd.f32 %v1476, %v1564
    %v1566 = vpop.f32.mrf.mxu0
    %v1567 = vadd.f32 %v1478, %v1566
    %1568 = vmatmul.bf16.gmra.mxu0 %v1056
    %v1569 = vpop.f32.mrf.mxu0
    %v1570 = vadd.f32 %v1481, %v1569
    %v1571 = vpop.f32.mrf.mxu0
    %v1572 = vadd.f32 %v1483, %v1571
    %1573 = vmatmul.bf16.gmra.mxu0 %v1058
    %v1574 = vpop.f32.mrf.mxu0
    %v1575 = vadd.f32 %v1486, %v1574
    %v1576 = vpop.f32.mrf.mxu0
    %v1577 = vadd.f32 %v1488, %v1576
    %1578 = vmatmul.bf16.gmra.mxu0 %v1060
    %v1579 = vpop.f32.mrf.mxu0
    %v1580 = vadd.f32 %v1491, %v1579
    %v1581 = vpop.f32.mrf.mxu0
    %v1582 = vadd.f32 %v1493, %v1581
    %1583 = vmatmul.bf16.gmra.mxu0 %v1062
    %v1584 = vpop.f32.mrf.mxu0
    %v1585 = vadd.f32 %v1496, %v1584
    %v1586 = vpop.f32.mrf.mxu0
    %v1587 = vadd.f32 %v1498, %v1586
    %1588 = vmatmul.bf16.gmra.mxu0 %v1064
    %v1589 = vpop.f32.mrf.mxu0
    %v1590 = vadd.f32 %v1501, %v1589
    %v1591 = vpop.f32.mrf.mxu0
    %v1592 = vadd.f32 %v1503, %v1591
    %1593 = vmatmul.bf16.gmra.mxu0 %v1066
    %v1594 = vpop.f32.mrf.mxu0
    %v1595 = vadd.f32 %v1506, %v1594
    %v1596 = vpop.f32.mrf.mxu0
    %v1597 = vadd.f32 %v1508, %v1596
    %1598 = vmatmul.bf16.gmra.mxu0 %v1068
    %v1599 = vpop.f32.mrf.mxu0
    %v1600 = vadd.f32 %v1511, %v1599
    %v1601 = vpop.f32.mrf.mxu0
    %v1602 = vadd.f32 %v1513, %v1601
    %1603 = vmatmul.bf16.gmra.mxu0 %v1070
    %v1604 = vpop.f32.mrf.mxu0
    %v1605 = vadd.f32 %v1516, %v1604
    %v1606 = vpop.f32.mrf.mxu0
    %v1607 = vadd.f32 %v1518, %v1606
    %1608 = vmatmul.bf16.gmra.mxu0 %v1072
    %v1609 = vpop.f32.mrf.mxu0
    %v1610 = vadd.f32 %v1521, %v1609
    %v1611 = vpop.f32.mrf.mxu0
    %v1612 = vadd.f32 %v1523, %v1611
    %1613 = vmatmul.bf16.gmra.mxu0 %v1074
    %v1614 = vpop.f32.mrf.mxu0
    %v1615 = vadd.f32 %v1526, %v1614
    %v1616 = vpop.f32.mrf.mxu0
    %v1617 = vadd.f32 %v1528, %v1616
    %1618 = vmatmul.bf16.gmra.mxu0 %v1076
    %v1619 = vpop.f32.mrf.mxu0
    %v1620 = vadd.f32 %v1531, %v1619
    %v1621 = vpop.f32.mrf.mxu0
    %v1622 = vadd.f32 %v1533, %v1621
    %1623 = vmatmul.bf16.gmra.mxu0 %v1078
    %v1624 = vpop.f32.mrf.mxu0
    %v1625 = vadd.f32 %v1536, %v1624
    %v1626 = vpop.f32.mrf.mxu0
    %v1627 = vadd.f32 %v1538, %v1626
    %1628 = vmatmul.bf16.gmra.mxu0 %v1080
    %v1629 = vpop.f32.mrf.mxu0
    %v1630 = vadd.f32 %v1541, %v1629
    %v1631 = vpop.f32.mrf.mxu0
    %v1632 = vadd.f32 %v1543, %v1631
    %1633 = vmatmul.bf16.gmra.mxu0 %v1082
    %v1634 = vpop.f32.mrf.mxu0
    %v1635 = vadd.f32 %v1546, %v1634
    %v1636 = vpop.f32.mrf.mxu0
    %v1637 = vadd.f32 %v1548, %v1636
    %1638 = vdwg.mxu0
    %v1639 = vmax.f32 %v1382, 0.0
    %v1640 = vmax.f32 %v1560, 0.0
    %v1641 = vmax.f32 %v1384, 0.0
    %v1642 = vmax.f32 %v1562, 0.0
    %v1643 = vmax.f32 %v1387, 0.0
    %v1644 = vmax.f32 %v1565, 0.0
    %v1645 = vmax.f32 %v1389, 0.0
    %v1646 = vmax.f32 %v1567, 0.0
    %v1647 = vmax.f32 %v1392, 0.0
    %v1648 = vmax.f32 %v1570, 0.0
    %v1649 = vmax.f32 %v1394, 0.0
    %v1650 = vmax.f32 %v1572, 0.0
    %v1651 = vmax.f32 %v1397, 0.0
    %v1652 = vmax.f32 %v1575, 0.0
    %v1653 = vmax.f32 %v1399, 0.0
    %v1654 = vmax.f32 %v1577, 0.0
    %v1655 = vmax.f32 %v1402, 0.0
    %v1656 = vmax.f32 %v1580, 0.0
    %v1657 = vmax.f32 %v1404, 0.0
    %v1658 = vmax.f32 %v1582, 0.0
    %v1659 = vmax.f32 %v1407, 0.0
    %v1660 = vmax.f32 %v1585, 0.0
    %v1661 = vmax.f32 %v1409, 0.0
    %v1662 = vmax.f32 %v1587, 0.0
    %v1663 = vmax.f32 %v1412, 0.0
    %v1664 = vmax.f32 %v1590, 0.0
    %v1665 = vmax.f32 %v1414, 0.0
    %v1666 = vmax.f32 %v1592, 0.0
    %v1667 = vmax.f32 %v1417, 0.0
    %v1668 = vmax.f32 %v1595, 0.0
    %v1669 = vmax.f32 %v1419, 0.0
    %v1670 = vmax.f32 %v1597, 0.0
    %v1671 = vmax.f32 %v1422, 0.0
    %v1672 = vmax.f32 %v1600, 0.0
    %v1673 = vmax.f32 %v1424, 0.0
    %v1674 = vmax.f32 %v1602, 0.0
    %v1675 = vmax.f32 %v1427, 0.0
    %v1676 = vmax.f32 %v1605, 0.0
    %v1677 = vmax.f32 %v1429, 0.0
    %v1678 = vmax.f32 %v1607, 0.0
    %v1679 = vmax.f32 %v1432, 0.0
    %v1680 = vmax.f32 %v1610, 0.0
    %v1681 = vmax.f32 %v1434, 0.0
    %v1682 = vmax.f32 %v1612, 0.0
    %v1683 = vmax.f32 %v1437, 0.0
    %v1684 = vmax.f32 %v1615, 0.0
    %v1685 = vmax.f32 %v1439, 0.0
    %v1686 = vmax.f32 %v1617, 0.0
    %v1687 = vmax.f32 %v1442, 0.0
    %v1688 = vmax.f32 %v1620, 0.0
    %v1689 = vmax.f32 %v1444, 0.0
    %v1690 = vmax.f32 %v1622, 0.0
    %v1691 = vmax.f32 %v1447, 0.0
    %v1692 = vmax.f32 %v1625, 0.0
    %v1693 = vmax.f32 %v1449, 0.0
    %v1694 = vmax.f32 %v1627, 0.0
    %v1695 = vmax.f32 %v1452, 0.0
    %v1696 = vmax.f32 %v1630, 0.0
    %v1697 = vmax.f32 %v1454, 0.0
    %v1698 = vmax.f32 %v1632, 0.0
    %v1699 = vmax.f32 %v1457, 0.0
    %v1700 = vmax.f32 %v1635, 0.0
    %v1701 = vmax.f32 %v1459, 0.0
    %v1702 = vmax.f32 %v1637, 0.0
    %v1703 = vpack.c.bf16 %v1641, %v1639
    %v1704 = vpack.c.bf16 %v1642, %v1640
    %v1705 = vpack.c.bf16 %v1645, %v1643
    %v1706 = vpack.c.bf16 %v1646, %v1644
    %v1707 = vpack.c.bf16 %v1649, %v1647
    %v1708 = vpack.c.bf16 %v1650, %v1648
    %v1709 = vpack.c.bf16 %v1653, %v1651
    %v1710 = vpack.c.bf16 %v1654, %v1652
    %v1711 = vpack.c.bf16 %v1657, %v1655
    %v1712 = vpack.c.bf16 %v1658, %v1656
    %v1713 = vpack.c.bf16 %v1661, %v1659
    %v1714 = vpack.c.bf16 %v1662, %v1660
    %v1715 = vpack.c.bf16 %v1665, %v1663
    %v1716 = vpack.c.bf16 %v1666, %v1664
    %v1717 = vpack.c.bf16 %v1669, %v1667
    %v1718 = vpack.c.bf16 %v1670, %v1668
    %v1719 = vpack.c.bf16 %v1673, %v1671
    %v1720 = vpack.c.bf16 %v1674, %v1672
    %v1721 = vpack.c.bf16 %v1677, %v1675
    %v1722 = vpack.c.bf16 %v1678, %v1676
    %v1723 = vpack.c.bf16 %v1681, %v1679
    %v1724 = vpack.c.bf16 %v1682, %v1680
    %v1725 = vpack.c.bf16 %v1685, %v1683
    %v1726 = vpack.c.bf16 %v1686, %v1684
    %v1727 = vpack.c.bf16 %v1689, %v1687
    %v1728 = vpack.c.bf16 %v1690, %v1688
    %v1729 = vpack.c.bf16 %v1693, %v1691
    %v1730 = vpack.c.bf16 %v1694, %v1692
    %v1731 = vpack.c.bf16 %v1697, %v1695
    %v1732 = vpack.c.bf16 %v1698, %v1696
    %v1733 = vpack.c.bf16 %v1701, %v1699
    %v1734 = vpack.c.bf16 %v1702, %v1700
    %s1735 = scalar_lea.vmem [#allocation2], 512
    %v1736 = vld [vmem:[%s1735] sm:$0xff]
    %v1737 = vld [vmem:[%s1735 + $0x8] sm:$0xff]
    %v1738 = vld [vmem:[%s1735 + $0x10] sm:$0xff]
    %v1739 = vld [vmem:[%s1735 + $0x18] sm:$0xff]
    %v1740 = vld [vmem:[%s1735 + $0x20] sm:$0xff]
    %v1741 = vld [vmem:[%s1735 + $0x28] sm:$0xff]
    %v1742 = vld [vmem:[%s1735 + $0x30] sm:$0xff]
    %v1743 = vld [vmem:[%s1735 + $0x38] sm:$0xff]
    %v1744 = vld [vmem:[%s1735 + $0x40] sm:$0xff]
    %v1745 = vld [vmem:[%s1735 + $0x48] sm:$0xff]
    %v1746 = vld [vmem:[%s1735 + $0x50] sm:$0xff]
    %v1747 = vld [vmem:[%s1735 + $0x58] sm:$0xff]
    %v1748 = vld [vmem:[%s1735 + $0x60] sm:$0xff]
    %v1749 = vld [vmem:[%s1735 + $0x68] sm:$0xff]
    %v1750 = vld [vmem:[%s1735 + $0x70] sm:$0xff]
    %v1751 = vld [vmem:[%s1735 + $0x78] sm:$0xff]
    %v1752 = vld [vmem:[%s1735 + $0x80] sm:$0xff]
    %v1753 = vld [vmem:[%s1735 + $0x88] sm:$0xff]
    %v1754 = vld [vmem:[%s1735 + $0x90] sm:$0xff]
    %v1755 = vld [vmem:[%s1735 + $0x98] sm:$0xff]
    %v1756 = vld [vmem:[%s1735 + $0xa0] sm:$0xff]
    %v1757 = vld [vmem:[%s1735 + $0xa8] sm:$0xff]
    %v1758 = vld [vmem:[%s1735 + $0xb0] sm:$0xff]
    %v1759 = vld [vmem:[%s1735 + $0xb8] sm:$0xff]
    %v1760 = vld [vmem:[%s1735 + $0xc0] sm:$0xff]
    %v1761 = vld [vmem:[%s1735 + $0xc8] sm:$0xff]
    %v1762 = vld [vmem:[%s1735 + $0xd0] sm:$0xff]
    %v1763 = vld [vmem:[%s1735 + $0xd8] sm:$0xff]
    %v1764 = vld [vmem:[%s1735 + $0xe0] sm:$0xff]
    %v1765 = vld [vmem:[%s1735 + $0xe8] sm:$0xff]
    %v1766 = vld [vmem:[%s1735 + $0xf0] sm:$0xff]
    %v1767 = vld [vmem:[%s1735 + $0xf8] sm:$0xff]
    %s1768 = scalar_lea.vmem %s4, 4
    %v1769 = vld [vmem:[%s1768] sm:$0x3]
    %v1771 = vperm.slane %v1769, 0
    %v1772 = vperm.slane %v1769, 1
    %v1807 = vunpack.c.l.b16 %v1736
    %v1808 = vunpack.c.h.b16 %v1736
    %v1809 = vunpack.c.l.b16 %v1737
    %v1810 = vunpack.c.h.b16 %v1737
    %v1811 = vunpack.c.l.b16 %v1738
    %v1812 = vunpack.c.h.b16 %v1738
    %v1813 = vunpack.c.l.b16 %v1739
    %v1814 = vunpack.c.h.b16 %v1739
    %v1815 = vunpack.c.l.b16 %v1740
    %v1816 = vunpack.c.h.b16 %v1740
    %v1817 = vunpack.c.l.b16 %v1741
    %v1818 = vunpack.c.h.b16 %v1741
    %v1819 = vunpack.c.l.b16 %v1742
    %v1820 = vunpack.c.h.b16 %v1742
    %v1821 = vunpack.c.l.b16 %v1743
    %v1822 = vunpack.c.h.b16 %v1743
    %v1823 = vunpack.c.l.b16 %v1744
    %v1824 = vunpack.c.h.b16 %v1744
    %v1825 = vunpack.c.l.b16 %v1745
    %v1826 = vunpack.c.h.b16 %v1745
    %v1827 = vunpack.c.l.b16 %v1746
    %v1828 = vunpack.c.h.b16 %v1746
    %v1829 = vunpack.c.l.b16 %v1747
    %v1830 = vunpack.c.h.b16 %v1747
    %v1831 = vunpack.c.l.b16 %v1748
    %v1832 = vunpack.c.h.b16 %v1748
    %v1833 = vunpack.c.l.b16 %v1749
    %v1834 = vunpack.c.h.b16 %v1749
    %v1835 = vunpack.c.l.b16 %v1750
    %v1836 = vunpack.c.h.b16 %v1750
    %v1837 = vunpack.c.l.b16 %v1751
    %v1838 = vunpack.c.h.b16 %v1751
    %v1839 = vunpack.c.l.b16 %v1752
    %v1840 = vunpack.c.h.b16 %v1752
    %v1841 = vunpack.c.l.b16 %v1753
    %v1842 = vunpack.c.h.b16 %v1753
    %v1843 = vunpack.c.l.b16 %v1754
    %v1844 = vunpack.c.h.b16 %v1754
    %v1845 = vunpack.c.l.b16 %v1755
    %v1846 = vunpack.c.h.b16 %v1755
    %v1847 = vunpack.c.l.b16 %v1756
    %v1848 = vunpack.c.h.b16 %v1756
    %v1849 = vunpack.c.l.b16 %v1757
    %v1850 = vunpack.c.h.b16 %v1757
    %v1851 = vunpack.c.l.b16 %v1758
    %v1852 = vunpack.c.h.b16 %v1758
    %v1853 = vunpack.c.l.b16 %v1759
    %v1854 = vunpack.c.h.b16 %v1759
    %v1855 = vunpack.c.l.b16 %v1760
    %v1856 = vunpack.c.h.b16 %v1760
    %v1857 = vunpack.c.l.b16 %v1761
    %v1858 = vunpack.c.h.b16 %v1761
    %v1859 = vunpack.c.l.b16 %v1762
    %v1860 = vunpack.c.h.b16 %v1762
    %v1861 = vunpack.c.l.b16 %v1763
    %v1862 = vunpack.c.h.b16 %v1763
    %v1863 = vunpack.c.l.b16 %v1764
    %v1864 = vunpack.c.h.b16 %v1764
    %v1865 = vunpack.c.l.b16 %v1765
    %v1866 = vunpack.c.h.b16 %v1765
    %v1867 = vunpack.c.l.b16 %v1766
    %v1868 = vunpack.c.h.b16 %v1766
    %v1869 = vunpack.c.l.b16 %v1767
    %v1870 = vunpack.c.h.b16 %v1767
    %v1871 = vpack.c.b16 %v1809, %v1807
    %v1872 = vpack.c.b16 %v1810, %v1808
    %v1873 = vpack.c.b16 %v1813, %v1811
    %v1874 = vpack.c.b16 %v1814, %v1812
    %v1875 = vpack.c.b16 %v1817, %v1815
    %v1876 = vpack.c.b16 %v1818, %v1816
    %v1877 = vpack.c.b16 %v1821, %v1819
    %v1878 = vpack.c.b16 %v1822, %v1820
    %v1879 = vpack.c.b16 %v1825, %v1823
    %v1880 = vpack.c.b16 %v1826, %v1824
    %v1881 = vpack.c.b16 %v1829, %v1827
    %v1882 = vpack.c.b16 %v1830, %v1828
    %v1883 = vpack.c.b16 %v1833, %v1831
    %v1884 = vpack.c.b16 %v1834, %v1832
    %v1885 = vpack.c.b16 %v1837, %v1835
    %v1886 = vpack.c.b16 %v1838, %v1836
    %v1887 = vpack.c.b16 %v1841, %v1839
    %v1888 = vpack.c.b16 %v1842, %v1840
    %v1889 = vpack.c.b16 %v1845, %v1843
    %v1890 = vpack.c.b16 %v1846, %v1844
    %v1891 = vpack.c.b16 %v1849, %v1847
    %v1892 = vpack.c.b16 %v1850, %v1848
    %v1893 = vpack.c.b16 %v1853, %v1851
    %v1894 = vpack.c.b16 %v1854, %v1852
    %v1895 = vpack.c.b16 %v1857, %v1855
    %v1896 = vpack.c.b16 %v1858, %v1856
    %v1897 = vpack.c.b16 %v1861, %v1859
    %v1898 = vpack.c.b16 %v1862, %v1860
    %v1899 = vpack.c.b16 %v1865, %v1863
    %v1900 = vpack.c.b16 %v1866, %v1864
    %v1901 = vpack.c.b16 %v1869, %v1867
    %v1902 = vpack.c.b16 %v1870, %v1868
    %1935 = vmatpush.bf16.msra.mxu0 %v1885
    %1936 = vmatpush.bf16.msra.mxu0 %v1883
    %1937 = vmatpush.bf16.msra.mxu0 %v1881
    %1938 = vmatpush.bf16.msra.mxu0 %v1879
    %1939 = vmatpush.bf16.msra.mxu0 %v1877
    %1940 = vmatpush.bf16.msra.mxu0 %v1875
    %1941 = vmatpush.bf16.msra.mxu0 %v1873
    %1942 = vmatpush.bf16.msra.mxu0 %v1871
    %1943 = vmatmul.bf16.gmra.mxu0 %v1703
    %v1944 = vpop.f32.mrf.mxu0
    %v1945 = vadd.f32 %v1771, %v1944
    %v1946 = vpop.f32.mrf.mxu0
    %v1947 = vadd.f32 %v1771, %v1946
    %1948 = vmatmul.bf16.gmra.mxu0 %v1705
    %v1949 = vpop.f32.mrf.mxu0
    %v1950 = vadd.f32 %v1771, %v1949
    %v1951 = vpop.f32.mrf.mxu0
    %v1952 = vadd.f32 %v1771, %v1951
    %1953 = vmatmul.bf16.gmra.mxu0 %v1707
    %v1954 = vpop.f32.mrf.mxu0
    %v1955 = vadd.f32 %v1771, %v1954
    %v1956 = vpop.f32.mrf.mxu0
    %v1957 = vadd.f32 %v1771, %v1956
    %1958 = vmatmul.bf16.gmra.mxu0 %v1709
    %v1959 = vpop.f32.mrf.mxu0
    %v1960 = vadd.f32 %v1771, %v1959
    %v1961 = vpop.f32.mrf.mxu0
    %v1962 = vadd.f32 %v1771, %v1961
    %1963 = vmatmul.bf16.gmra.mxu0 %v1711
    %v1964 = vpop.f32.mrf.mxu0
    %v1965 = vadd.f32 %v1771, %v1964
    %v1966 = vpop.f32.mrf.mxu0
    %v1967 = vadd.f32 %v1771, %v1966
    %1968 = vmatmul.bf16.gmra.mxu0 %v1713
    %v1969 = vpop.f32.mrf.mxu0
    %v1970 = vadd.f32 %v1771, %v1969
    %v1971 = vpop.f32.mrf.mxu0
    %v1972 = vadd.f32 %v1771, %v1971
    %1973 = vmatmul.bf16.gmra.mxu0 %v1715
    %v1974 = vpop.f32.mrf.mxu0
    %v1975 = vadd.f32 %v1771, %v1974
    %v1976 = vpop.f32.mrf.mxu0
    %v1977 = vadd.f32 %v1771, %v1976
    %1978 = vmatmul.bf16.gmra.mxu0 %v1717
    %v1979 = vpop.f32.mrf.mxu0
    %v1980 = vadd.f32 %v1771, %v1979
    %v1981 = vpop.f32.mrf.mxu0
    %v1982 = vadd.f32 %v1771, %v1981
    %1983 = vmatmul.bf16.gmra.mxu0 %v1719
    %v1984 = vpop.f32.mrf.mxu0
    %v1985 = vadd.f32 %v1771, %v1984
    %v1986 = vpop.f32.mrf.mxu0
    %v1987 = vadd.f32 %v1771, %v1986
    %1988 = vmatmul.bf16.gmra.mxu0 %v1721
    %v1989 = vpop.f32.mrf.mxu0
    %v1990 = vadd.f32 %v1771, %v1989
    %v1991 = vpop.f32.mrf.mxu0
    %v1992 = vadd.f32 %v1771, %v1991
    %1993 = vmatmul.bf16.gmra.mxu0 %v1723
    %v1994 = vpop.f32.mrf.mxu0
    %v1995 = vadd.f32 %v1771, %v1994
    %v1996 = vpop.f32.mrf.mxu0
    %v1997 = vadd.f32 %v1771, %v1996
    %1998 = vmatmul.bf16.gmra.mxu0 %v1725
    %v1999 = vpop.f32.mrf.mxu0
    %v2000 = vadd.f32 %v1771, %v1999
    %v2001 = vpop.f32.mrf.mxu0
    %v2002 = vadd.f32 %v1771, %v2001
    %2003 = vmatmul.bf16.gmra.mxu0 %v1727
    %v2004 = vpop.f32.mrf.mxu0
    %v2005 = vadd.f32 %v1771, %v2004
    %v2006 = vpop.f32.mrf.mxu0
    %v2007 = vadd.f32 %v1771, %v2006
    %2008 = vmatmul.bf16.gmra.mxu0 %v1729
    %v2009 = vpop.f32.mrf.mxu0
    %v2010 = vadd.f32 %v1771, %v2009
    %v2011 = vpop.f32.mrf.mxu0
    %v2012 = vadd.f32 %v1771, %v2011
    %2013 = vmatmul.bf16.gmra.mxu0 %v1731
    %v2014 = vpop.f32.mrf.mxu0
    %v2015 = vadd.f32 %v1771, %v2014
    %v2016 = vpop.f32.mrf.mxu0
    %v2017 = vadd.f32 %v1771, %v2016
    %2018 = vmatmul.bf16.gmra.mxu0 %v1733
    %v2019 = vpop.f32.mrf.mxu0
    %v2020 = vadd.f32 %v1771, %v2019
    %v2021 = vpop.f32.mrf.mxu0
    %v2022 = vadd.f32 %v1771, %v2021
    %2023 = vdwg.mxu0
    %2024 = vmatpush.bf16.msra.mxu0 %v1901
    %2025 = vmatpush.bf16.msra.mxu0 %v1899
    %2026 = vmatpush.bf16.msra.mxu0 %v1897
    %2027 = vmatpush.bf16.msra.mxu0 %v1895
    %2028 = vmatpush.bf16.msra.mxu0 %v1893
    %2029 = vmatpush.bf16.msra.mxu0 %v1891
    %2030 = vmatpush.bf16.msra.mxu0 %v1889
    %2031 = vmatpush.bf16.msra.mxu0 %v1887
    %2032 = vmatmul.bf16.gmra.mxu0 %v1704
    %v2033 = vpop.f32.mrf.mxu0
    %v2034 = vadd.f32 %v1945, %v2033
    %v2035 = vpop.f32.mrf.mxu0
    %v2036 = vadd.f32 %v1947, %v2035
    %2037 = vmatmul.bf16.gmra.mxu0 %v1706
    %v2038 = vpop.f32.mrf.mxu0
    %v2039 = vadd.f32 %v1950, %v2038
    %v2040 = vpop.f32.mrf.mxu0
    %v2041 = vadd.f32 %v1952, %v2040
    %2042 = vmatmul.bf16.gmra.mxu0 %v1708
    %v2043 = vpop.f32.mrf.mxu0
    %v2044 = vadd.f32 %v1955, %v2043
    %v2045 = vpop.f32.mrf.mxu0
    %v2046 = vadd.f32 %v1957, %v2045
    %2047 = vmatmul.bf16.gmra.mxu0 %v1710
    %v2048 = vpop.f32.mrf.mxu0
    %v2049 = vadd.f32 %v1960, %v2048
    %v2050 = vpop.f32.mrf.mxu0
    %v2051 = vadd.f32 %v1962, %v2050
    %2052 = vmatmul.bf16.gmra.mxu0 %v1712
    %v2053 = vpop.f32.mrf.mxu0
    %v2054 = vadd.f32 %v1965, %v2053
    %v2055 = vpop.f32.mrf.mxu0
    %v2056 = vadd.f32 %v1967, %v2055
    %2057 = vmatmul.bf16.gmra.mxu0 %v1714
    %v2058 = vpop.f32.mrf.mxu0
    %v2059 = vadd.f32 %v1970, %v2058
    %v2060 = vpop.f32.mrf.mxu0
    %v2061 = vadd.f32 %v1972, %v2060
    %2062 = vmatmul.bf16.gmra.mxu0 %v1716
    %v2063 = vpop.f32.mrf.mxu0
    %v2064 = vadd.f32 %v1975, %v2063
    %v2065 = vpop.f32.mrf.mxu0
    %v2066 = vadd.f32 %v1977, %v2065
    %2067 = vmatmul.bf16.gmra.mxu0 %v1718
    %v2068 = vpop.f32.mrf.mxu0
    %v2069 = vadd.f32 %v1980, %v2068
    %v2070 = vpop.f32.mrf.mxu0
    %v2071 = vadd.f32 %v1982, %v2070
    %2072 = vmatmul.bf16.gmra.mxu0 %v1720
    %v2073 = vpop.f32.mrf.mxu0
    %v2074 = vadd.f32 %v1985, %v2073
    %v2075 = vpop.f32.mrf.mxu0
    %v2076 = vadd.f32 %v1987, %v2075
    %2077 = vmatmul.bf16.gmra.mxu0 %v1722
    %v2078 = vpop.f32.mrf.mxu0
    %v2079 = vadd.f32 %v1990, %v2078
    %v2080 = vpop.f32.mrf.mxu0
    %v2081 = vadd.f32 %v1992, %v2080
    %2082 = vmatmul.bf16.gmra.mxu0 %v1724
    %v2083 = vpop.f32.mrf.mxu0
    %v2084 = vadd.f32 %v1995, %v2083
    %v2085 = vpop.f32.mrf.mxu0
    %v2086 = vadd.f32 %v1997, %v2085
    %2087 = vmatmul.bf16.gmra.mxu0 %v1726
    %v2088 = vpop.f32.mrf.mxu0
    %v2089 = vadd.f32 %v2000, %v2088
    %v2090 = vpop.f32.mrf.mxu0
    %v2091 = vadd.f32 %v2002, %v2090
    %2092 = vmatmul.bf16.gmra.mxu0 %v1728
    %v2093 = vpop.f32.mrf.mxu0
    %v2094 = vadd.f32 %v2005, %v2093
    %v2095 = vpop.f32.mrf.mxu0
    %v2096 = vadd.f32 %v2007, %v2095
    %2097 = vmatmul.bf16.gmra.mxu0 %v1730
    %v2098 = vpop.f32.mrf.mxu0
    %v2099 = vadd.f32 %v2010, %v2098
    %v2100 = vpop.f32.mrf.mxu0
    %v2101 = vadd.f32 %v2012, %v2100
    %2102 = vmatmul.bf16.gmra.mxu0 %v1732
    %v2103 = vpop.f32.mrf.mxu0
    %v2104 = vadd.f32 %v2015, %v2103
    %v2105 = vpop.f32.mrf.mxu0
    %v2106 = vadd.f32 %v2017, %v2105
    %2107 = vmatmul.bf16.gmra.mxu0 %v1734
    %v2108 = vpop.f32.mrf.mxu0
    %v2109 = vadd.f32 %v2020, %v2108
    %v2110 = vpop.f32.mrf.mxu0
    %v2111 = vadd.f32 %v2022, %v2110
    %2112 = vdwg.mxu0
    %2113 = vmatpush.bf16.msra.mxu0 %v1886
    %2114 = vmatpush.bf16.msra.mxu0 %v1884
    %2115 = vmatpush.bf16.msra.mxu0 %v1882
    %2116 = vmatpush.bf16.msra.mxu0 %v1880
    %2117 = vmatpush.bf16.msra.mxu0 %v1878
    %2118 = vmatpush.bf16.msra.mxu0 %v1876
    %2119 = vmatpush.bf16.msra.mxu0 %v1874
    %2120 = vmatpush.bf16.msra.mxu0 %v1872
    %2121 = vmatmul.bf16.gmra.mxu0 %v1703
    %v2122 = vpop.f32.mrf.mxu0
    %v2123 = vadd.f32 %v1772, %v2122
    %v2124 = vpop.f32.mrf.mxu0
    %v2125 = vadd.f32 %v1772, %v2124
    %2126 = vmatmul.bf16.gmra.mxu0 %v1705
    %v2127 = vpop.f32.mrf.mxu0
    %v2128 = vadd.f32 %v1772, %v2127
    %v2129 = vpop.f32.mrf.mxu0
    %v2130 = vadd.f32 %v1772, %v2129
    %2131 = vmatmul.bf16.gmra.mxu0 %v1707
    %v2132 = vpop.f32.mrf.mxu0
    %v2133 = vadd.f32 %v1772, %v2132
    %v2134 = vpop.f32.mrf.mxu0
    %v2135 = vadd.f32 %v1772, %v2134
    %2136 = vmatmul.bf16.gmra.mxu0 %v1709
    %v2137 = vpop.f32.mrf.mxu0
    %v2138 = vadd.f32 %v1772, %v2137
    %v2139 = vpop.f32.mrf.mxu0
    %v2140 = vadd.f32 %v1772, %v2139
    %2141 = vmatmul.bf16.gmra.mxu0 %v1711
    %v2142 = vpop.f32.mrf.mxu0
    %v2143 = vadd.f32 %v1772, %v2142
    %v2144 = vpop.f32.mrf.mxu0
    %v2145 = vadd.f32 %v1772, %v2144
    %2146 = vmatmul.bf16.gmra.mxu0 %v1713
    %v2147 = vpop.f32.mrf.mxu0
    %v2148 = vadd.f32 %v1772, %v2147
    %v2149 = vpop.f32.mrf.mxu0
    %v2150 = vadd.f32 %v1772, %v2149
    %2151 = vmatmul.bf16.gmra.mxu0 %v1715
    %v2152 = vpop.f32.mrf.mxu0
    %v2153 = vadd.f32 %v1772, %v2152
    %v2154 = vpop.f32.mrf.mxu0
    %v2155 = vadd.f32 %v1772, %v2154
    %2156 = vmatmul.bf16.gmra.mxu0 %v1717
    %v2157 = vpop.f32.mrf.mxu0
    %v2158 = vadd.f32 %v1772, %v2157
    %v2159 = vpop.f32.mrf.mxu0
    %v2160 = vadd.f32 %v1772, %v2159
    %2161 = vmatmul.bf16.gmra.mxu0 %v1719
    %v2162 = vpop.f32.mrf.mxu0
    %v2163 = vadd.f32 %v1772, %v2162
    %v2164 = vpop.f32.mrf.mxu0
    %v2165 = vadd.f32 %v1772, %v2164
    %2166 = vmatmul.bf16.gmra.mxu0 %v1721
    %v2167 = vpop.f32.mrf.mxu0
    %v2168 = vadd.f32 %v1772, %v2167
    %v2169 = vpop.f32.mrf.mxu0
    %v2170 = vadd.f32 %v1772, %v2169
    %2171 = vmatmul.bf16.gmra.mxu0 %v1723
    %v2172 = vpop.f32.mrf.mxu0
    %v2173 = vadd.f32 %v1772, %v2172
    %v2174 = vpop.f32.mrf.mxu0
    %v2175 = vadd.f32 %v1772, %v2174
    %2176 = vmatmul.bf16.gmra.mxu0 %v1725
    %v2177 = vpop.f32.mrf.mxu0
    %v2178 = vadd.f32 %v1772, %v2177
    %v2179 = vpop.f32.mrf.mxu0
    %v2180 = vadd.f32 %v1772, %v2179
    %2181 = vmatmul.bf16.gmra.mxu0 %v1727
    %v2182 = vpop.f32.mrf.mxu0
    %v2183 = vadd.f32 %v1772, %v2182
    %v2184 = vpop.f32.mrf.mxu0
    %v2185 = vadd.f32 %v1772, %v2184
    %2186 = vmatmul.bf16.gmra.mxu0 %v1729
    %v2187 = vpop.f32.mrf.mxu0
    %v2188 = vadd.f32 %v1772, %v2187
    %v2189 = vpop.f32.mrf.mxu0
    %v2190 = vadd.f32 %v1772, %v2189
    %2191 = vmatmul.bf16.gmra.mxu0 %v1731
    %v2192 = vpop.f32.mrf.mxu0
    %v2193 = vadd.f32 %v1772, %v2192
    %v2194 = vpop.f32.mrf.mxu0
    %v2195 = vadd.f32 %v1772, %v2194
    %2196 = vmatmul.bf16.gmra.mxu0 %v1733
    %v2197 = vpop.f32.mrf.mxu0
    %v2198 = vadd.f32 %v1772, %v2197
    %v2199 = vpop.f32.mrf.mxu0
    %v2200 = vadd.f32 %v1772, %v2199
    %2201 = vdwg.mxu0
    %2202 = vmatpush.bf16.msra.mxu0 %v1902
    %2203 = vmatpush.bf16.msra.mxu0 %v1900
    %2204 = vmatpush.bf16.msra.mxu0 %v1898
    %2205 = vmatpush.bf16.msra.mxu0 %v1896
    %2206 = vmatpush.bf16.msra.mxu0 %v1894
    %2207 = vmatpush.bf16.msra.mxu0 %v1892
    %2208 = vmatpush.bf16.msra.mxu0 %v1890
    %2209 = vmatpush.bf16.msra.mxu0 %v1888
    %2210 = vmatmul.bf16.gmra.mxu0 %v1704
    %v2211 = vpop.f32.mrf.mxu0
    %v2212 = vadd.f32 %v2123, %v2211
    %v2213 = vpop.f32.mrf.mxu0
    %v2214 = vadd.f32 %v2125, %v2213
    %2215 = vmatmul.bf16.gmra.mxu0 %v1706
    %v2216 = vpop.f32.mrf.mxu0
    %v2217 = vadd.f32 %v2128, %v2216
    %v2218 = vpop.f32.mrf.mxu0
    %v2219 = vadd.f32 %v2130, %v2218
    %2220 = vmatmul.bf16.gmra.mxu0 %v1708
    %v2221 = vpop.f32.mrf.mxu0
    %v2222 = vadd.f32 %v2133, %v2221
    %v2223 = vpop.f32.mrf.mxu0
    %v2224 = vadd.f32 %v2135, %v2223
    %2225 = vmatmul.bf16.gmra.mxu0 %v1710
    %v2226 = vpop.f32.mrf.mxu0
    %v2227 = vadd.f32 %v2138, %v2226
    %v2228 = vpop.f32.mrf.mxu0
    %v2229 = vadd.f32 %v2140, %v2228
    %2230 = vmatmul.bf16.gmra.mxu0 %v1712
    %v2231 = vpop.f32.mrf.mxu0
    %v2232 = vadd.f32 %v2143, %v2231
    %v2233 = vpop.f32.mrf.mxu0
    %v2234 = vadd.f32 %v2145, %v2233
    %2235 = vmatmul.bf16.gmra.mxu0 %v1714
    %v2236 = vpop.f32.mrf.mxu0
    %v2237 = vadd.f32 %v2148, %v2236
    %v2238 = vpop.f32.mrf.mxu0
    %v2239 = vadd.f32 %v2150, %v2238
    %2240 = vmatmul.bf16.gmra.mxu0 %v1716
    %v2241 = vpop.f32.mrf.mxu0
    %v2242 = vadd.f32 %v2153, %v2241
    %v2243 = vpop.f32.mrf.mxu0
    %v2244 = vadd.f32 %v2155, %v2243
    %2245 = vmatmul.bf16.gmra.mxu0 %v1718
    %v2246 = vpop.f32.mrf.mxu0
    %v2247 = vadd.f32 %v2158, %v2246
    %v2248 = vpop.f32.mrf.mxu0
    %v2249 = vadd.f32 %v2160, %v2248
    %2250 = vmatmul.bf16.gmra.mxu0 %v1720
    %v2251 = vpop.f32.mrf.mxu0
    %v2252 = vadd.f32 %v2163, %v2251
    %v2253 = vpop.f32.mrf.mxu0
    %v2254 = vadd.f32 %v2165, %v2253
    %2255 = vmatmul.bf16.gmra.mxu0 %v1722
    %v2256 = vpop.f32.mrf.mxu0
    %v2257 = vadd.f32 %v2168, %v2256
    %v2258 = vpop.f32.mrf.mxu0
    %v2259 = vadd.f32 %v2170, %v2258
    %2260 = vmatmul.bf16.gmra.mxu0 %v1724
    %v2261 = vpop.f32.mrf.mxu0
    %v2262 = vadd.f32 %v2173, %v2261
    %v2263 = vpop.f32.mrf.mxu0
    %v2264 = vadd.f32 %v2175, %v2263
    %2265 = vmatmul.bf16.gmra.mxu0 %v1726
    %v2266 = vpop.f32.mrf.mxu0
    %v2267 = vadd.f32 %v2178, %v2266
    %v2268 = vpop.f32.mrf.mxu0
    %v2269 = vadd.f32 %v2180, %v2268
    %2270 = vmatmul.bf16.gmra.mxu0 %v1728
    %v2271 = vpop.f32.mrf.mxu0
    %v2272 = vadd.f32 %v2183, %v2271
    %v2273 = vpop.f32.mrf.mxu0
    %v2274 = vadd.f32 %v2185, %v2273
    %2275 = vmatmul.bf16.gmra.mxu0 %v1730
    %v2276 = vpop.f32.mrf.mxu0
    %v2277 = vadd.f32 %v2188, %v2276
    %v2278 = vpop.f32.mrf.mxu0
    %v2279 = vadd.f32 %v2190, %v2278
    %2280 = vmatmul.bf16.gmra.mxu0 %v1732
    %v2281 = vpop.f32.mrf.mxu0
    %v2282 = vadd.f32 %v2193, %v2281
    %v2283 = vpop.f32.mrf.mxu0
    %v2284 = vadd.f32 %v2195, %v2283
    %2285 = vmatmul.bf16.gmra.mxu0 %v1734
    %v2286 = vpop.f32.mrf.mxu0
    %v2287 = vadd.f32 %v2198, %v2286
    %v2288 = vpop.f32.mrf.mxu0
    %v2289 = vadd.f32 %v2200, %v2288
    %2290 = vdwg.mxu0
    %v2291 = vmax.f32 %v2034, 0.0
    %v2292 = vmax.f32 %v2212, 0.0
    %v2293 = vmax.f32 %v2036, 0.0
    %v2294 = vmax.f32 %v2214, 0.0
    %v2295 = vmax.f32 %v2039, 0.0
    %v2296 = vmax.f32 %v2217, 0.0
    %v2297 = vmax.f32 %v2041, 0.0
    %v2298 = vmax.f32 %v2219, 0.0
    %v2299 = vmax.f32 %v2044, 0.0
    %v2300 = vmax.f32 %v2222, 0.0
    %v2301 = vmax.f32 %v2046, 0.0
    %v2302 = vmax.f32 %v2224, 0.0
    %v2303 = vmax.f32 %v2049, 0.0
    %v2304 = vmax.f32 %v2227, 0.0
    %v2305 = vmax.f32 %v2051, 0.0
    %v2306 = vmax.f32 %v2229, 0.0
    %v2307 = vmax.f32 %v2054, 0.0
    %v2308 = vmax.f32 %v2232, 0.0
    %v2309 = vmax.f32 %v2056, 0.0
    %v2310 = vmax.f32 %v2234, 0.0
    %v2311 = vmax.f32 %v2059, 0.0
    %v2312 = vmax.f32 %v2237, 0.0
    %v2313 = vmax.f32 %v2061, 0.0
    %v2314 = vmax.f32 %v2239, 0.0
    %v2315 = vmax.f32 %v2064, 0.0
    %v2316 = vmax.f32 %v2242, 0.0
    %v2317 = vmax.f32 %v2066, 0.0
    %v2318 = vmax.f32 %v2244, 0.0
    %v2319 = vmax.f32 %v2069, 0.0
    %v2320 = vmax.f32 %v2247, 0.0
    %v2321 = vmax.f32 %v2071, 0.0
    %v2322 = vmax.f32 %v2249, 0.0
    %v2323 = vmax.f32 %v2074, 0.0
    %v2324 = vmax.f32 %v2252, 0.0
    %v2325 = vmax.f32 %v2076, 0.0
    %v2326 = vmax.f32 %v2254, 0.0
    %v2327 = vmax.f32 %v2079, 0.0
    %v2328 = vmax.f32 %v2257, 0.0
    %v2329 = vmax.f32 %v2081, 0.0
    %v2330 = vmax.f32 %v2259, 0.0
    %v2331 = vmax.f32 %v2084, 0.0
    %v2332 = vmax.f32 %v2262, 0.0
    %v2333 = vmax.f32 %v2086, 0.0
    %v2334 = vmax.f32 %v2264, 0.0
    %v2335 = vmax.f32 %v2089, 0.0
    %v2336 = vmax.f32 %v2267, 0.0
    %v2337 = vmax.f32 %v2091, 0.0
    %v2338 = vmax.f32 %v2269, 0.0
    %v2339 = vmax.f32 %v2094, 0.0
    %v2340 = vmax.f32 %v2272, 0.0
    %v2341 = vmax.f32 %v2096, 0.0
    %v2342 = vmax.f32 %v2274, 0.0
    %v2343 = vmax.f32 %v2099, 0.0
    %v2344 = vmax.f32 %v2277, 0.0
    %v2345 = vmax.f32 %v2101, 0.0
    %v2346 = vmax.f32 %v2279, 0.0
    %v2347 = vmax.f32 %v2104, 0.0
    %v2348 = vmax.f32 %v2282, 0.0
    %v2349 = vmax.f32 %v2106, 0.0
    %v2350 = vmax.f32 %v2284, 0.0
    %v2351 = vmax.f32 %v2109, 0.0
    %v2352 = vmax.f32 %v2287, 0.0
    %v2353 = vmax.f32 %v2111, 0.0
    %v2354 = vmax.f32 %v2289, 0.0
    %v2355 = vpack.c.bf16 %v2293, %v2291
    %v2356 = vpack.c.bf16 %v2294, %v2292
    %v2357 = vpack.c.bf16 %v2297, %v2295
    %v2358 = vpack.c.bf16 %v2298, %v2296
    %v2359 = vpack.c.bf16 %v2301, %v2299
    %v2360 = vpack.c.bf16 %v2302, %v2300
    %v2361 = vpack.c.bf16 %v2305, %v2303
    %v2362 = vpack.c.bf16 %v2306, %v2304
    %v2363 = vpack.c.bf16 %v2309, %v2307
    %v2364 = vpack.c.bf16 %v2310, %v2308
    %v2365 = vpack.c.bf16 %v2313, %v2311
    %v2366 = vpack.c.bf16 %v2314, %v2312
    %v2367 = vpack.c.bf16 %v2317, %v2315
    %v2368 = vpack.c.bf16 %v2318, %v2316
    %v2369 = vpack.c.bf16 %v2321, %v2319
    %v2370 = vpack.c.bf16 %v2322, %v2320
    %v2371 = vpack.c.bf16 %v2325, %v2323
    %v2372 = vpack.c.bf16 %v2326, %v2324
    %v2373 = vpack.c.bf16 %v2329, %v2327
    %v2374 = vpack.c.bf16 %v2330, %v2328
    %v2375 = vpack.c.bf16 %v2333, %v2331
    %v2376 = vpack.c.bf16 %v2334, %v2332
    %v2377 = vpack.c.bf16 %v2337, %v2335
    %v2378 = vpack.c.bf16 %v2338, %v2336
    %v2379 = vpack.c.bf16 %v2341, %v2339
    %v2380 = vpack.c.bf16 %v2342, %v2340
    %v2381 = vpack.c.bf16 %v2345, %v2343
    %v2382 = vpack.c.bf16 %v2346, %v2344
    %v2383 = vpack.c.bf16 %v2349, %v2347
    %v2384 = vpack.c.bf16 %v2350, %v2348
    %v2385 = vpack.c.bf16 %v2353, %v2351
    %v2386 = vpack.c.bf16 %v2354, %v2352
    %s2387 = scalar_lea.vmem [#allocation2], 768
    %v2388 = vld [vmem:[%s2387] sm:$0xff]
    %v2389 = vld [vmem:[%s2387 + $0x8] sm:$0xff]
    %v2390 = vld [vmem:[%s2387 + $0x10] sm:$0xff]
    %v2391 = vld [vmem:[%s2387 + $0x18] sm:$0xff]
    %v2392 = vld [vmem:[%s2387 + $0x20] sm:$0xff]
    %v2393 = vld [vmem:[%s2387 + $0x28] sm:$0xff]
    %v2394 = vld [vmem:[%s2387 + $0x30] sm:$0xff]
    %v2395 = vld [vmem:[%s2387 + $0x38] sm:$0xff]
    %v2396 = vld [vmem:[%s2387 + $0x40] sm:$0xff]
    %v2397 = vld [vmem:[%s2387 + $0x48] sm:$0xff]
    %v2398 = vld [vmem:[%s2387 + $0x50] sm:$0xff]
    %v2399 = vld [vmem:[%s2387 + $0x58] sm:$0xff]
    %v2400 = vld [vmem:[%s2387 + $0x60] sm:$0xff]
    %v2401 = vld [vmem:[%s2387 + $0x68] sm:$0xff]
    %v2402 = vld [vmem:[%s2387 + $0x70] sm:$0xff]
    %v2403 = vld [vmem:[%s2387 + $0x78] sm:$0xff]
    %v2404 = vld [vmem:[%s2387 + $0x80] sm:$0xff]
    %v2405 = vld [vmem:[%s2387 + $0x88] sm:$0xff]
    %v2406 = vld [vmem:[%s2387 + $0x90] sm:$0xff]
    %v2407 = vld [vmem:[%s2387 + $0x98] sm:$0xff]
    %v2408 = vld [vmem:[%s2387 + $0xa0] sm:$0xff]
    %v2409 = vld [vmem:[%s2387 + $0xa8] sm:$0xff]
    %v2410 = vld [vmem:[%s2387 + $0xb0] sm:$0xff]
    %v2411 = vld [vmem:[%s2387 + $0xb8] sm:$0xff]
    %v2412 = vld [vmem:[%s2387 + $0xc0] sm:$0xff]
    %v2413 = vld [vmem:[%s2387 + $0xc8] sm:$0xff]
    %v2414 = vld [vmem:[%s2387 + $0xd0] sm:$0xff]
    %v2415 = vld [vmem:[%s2387 + $0xd8] sm:$0xff]
    %v2416 = vld [vmem:[%s2387 + $0xe0] sm:$0xff]
    %v2417 = vld [vmem:[%s2387 + $0xe8] sm:$0xff]
    %v2418 = vld [vmem:[%s2387 + $0xf0] sm:$0xff]
    %v2419 = vld [vmem:[%s2387 + $0xf8] sm:$0xff]
    %s2420 = scalar_lea.vmem %s4, 6
    %v2421 = vld [vmem:[%s2420] sm:$0x3]
    %v2423 = vperm.slane %v2421, 0
    %v2424 = vperm.slane %v2421, 1
    %v2459 = vunpack.c.l.b16 %v2388
    %v2460 = vunpack.c.h.b16 %v2388
    %v2461 = vunpack.c.l.b16 %v2389
    %v2462 = vunpack.c.h.b16 %v2389
    %v2463 = vunpack.c.l.b16 %v2390
    %v2464 = vunpack.c.h.b16 %v2390
    %v2465 = vunpack.c.l.b16 %v2391
    %v2466 = vunpack.c.h.b16 %v2391
    %v2467 = vunpack.c.l.b16 %v2392
    %v2468 = vunpack.c.h.b16 %v2392
    %v2469 = vunpack.c.l.b16 %v2393
    %v2470 = vunpack.c.h.b16 %v2393
    %v2471 = vunpack.c.l.b16 %v2394
    %v2472 = vunpack.c.h.b16 %v2394
    %v2473 = vunpack.c.l.b16 %v2395
    %v2474 = vunpack.c.h.b16 %v2395
    %v2475 = vunpack.c.l.b16 %v2396
    %v2476 = vunpack.c.h.b16 %v2396
    %v2477 = vunpack.c.l.b16 %v2397
    %v2478 = vunpack.c.h.b16 %v2397
    %v2479 = vunpack.c.l.b16 %v2398
    %v2480 = vunpack.c.h.b16 %v2398
    %v2481 = vunpack.c.l.b16 %v2399
    %v2482 = vunpack.c.h.b16 %v2399
    %v2483 = vunpack.c.l.b16 %v2400
    %v2484 = vunpack.c.h.b16 %v2400
    %v2485 = vunpack.c.l.b16 %v2401
    %v2486 = vunpack.c.h.b16 %v2401
    %v2487 = vunpack.c.l.b16 %v2402
    %v2488 = vunpack.c.h.b16 %v2402
    %v2489 = vunpack.c.l.b16 %v2403
    %v2490 = vunpack.c.h.b16 %v2403
    %v2491 = vunpack.c.l.b16 %v2404
    %v2492 = vunpack.c.h.b16 %v2404
    %v2493 = vunpack.c.l.b16 %v2405
    %v2494 = vunpack.c.h.b16 %v2405
    %v2495 = vunpack.c.l.b16 %v2406
    %v2496 = vunpack.c.h.b16 %v2406
    %v2497 = vunpack.c.l.b16 %v2407
    %v2498 = vunpack.c.h.b16 %v2407
    %v2499 = vunpack.c.l.b16 %v2408
    %v2500 = vunpack.c.h.b16 %v2408
    %v2501 = vunpack.c.l.b16 %v2409
    %v2502 = vunpack.c.h.b16 %v2409
    %v2503 = vunpack.c.l.b16 %v2410
    %v2504 = vunpack.c.h.b16 %v2410
    %v2505 = vunpack.c.l.b16 %v2411
    %v2506 = vunpack.c.h.b16 %v2411
    %v2507 = vunpack.c.l.b16 %v2412
    %v2508 = vunpack.c.h.b16 %v2412
    %v2509 = vunpack.c.l.b16 %v2413
    %v2510 = vunpack.c.h.b16 %v2413
    %v2511 = vunpack.c.l.b16 %v2414
    %v2512 = vunpack.c.h.b16 %v2414
    %v2513 = vunpack.c.l.b16 %v2415
    %v2514 = vunpack.c.h.b16 %v2415
    %v2515 = vunpack.c.l.b16 %v2416
    %v2516 = vunpack.c.h.b16 %v2416
    %v2517 = vunpack.c.l.b16 %v2417
    %v2518 = vunpack.c.h.b16 %v2417
    %v2519 = vunpack.c.l.b16 %v2418
    %v2520 = vunpack.c.h.b16 %v2418
    %v2521 = vunpack.c.l.b16 %v2419
    %v2522 = vunpack.c.h.b16 %v2419
    %v2523 = vpack.c.b16 %v2461, %v2459
    %v2524 = vpack.c.b16 %v2462, %v2460
    %v2525 = vpack.c.b16 %v2465, %v2463
    %v2526 = vpack.c.b16 %v2466, %v2464
    %v2527 = vpack.c.b16 %v2469, %v2467
    %v2528 = vpack.c.b16 %v2470, %v2468
    %v2529 = vpack.c.b16 %v2473, %v2471
    %v2530 = vpack.c.b16 %v2474, %v2472
    %v2531 = vpack.c.b16 %v2477, %v2475
    %v2532 = vpack.c.b16 %v2478, %v2476
    %v2533 = vpack.c.b16 %v2481, %v2479
    %v2534 = vpack.c.b16 %v2482, %v2480
    %v2535 = vpack.c.b16 %v2485, %v2483
    %v2536 = vpack.c.b16 %v2486, %v2484
    %v2537 = vpack.c.b16 %v2489, %v2487
    %v2538 = vpack.c.b16 %v2490, %v2488
    %v2539 = vpack.c.b16 %v2493, %v2491
    %v2540 = vpack.c.b16 %v2494, %v2492
    %v2541 = vpack.c.b16 %v2497, %v2495
    %v2542 = vpack.c.b16 %v2498, %v2496
    %v2543 = vpack.c.b16 %v2501, %v2499
    %v2544 = vpack.c.b16 %v2502, %v2500
    %v2545 = vpack.c.b16 %v2505, %v2503
    %v2546 = vpack.c.b16 %v2506, %v2504
    %v2547 = vpack.c.b16 %v2509, %v2507
    %v2548 = vpack.c.b16 %v2510, %v2508
    %v2549 = vpack.c.b16 %v2513, %v2511
    %v2550 = vpack.c.b16 %v2514, %v2512
    %v2551 = vpack.c.b16 %v2517, %v2515
    %v2552 = vpack.c.b16 %v2518, %v2516
    %v2553 = vpack.c.b16 %v2521, %v2519
    %v2554 = vpack.c.b16 %v2522, %v2520
    %2587 = vmatpush.bf16.msra.mxu0 %v2537
    %2588 = vmatpush.bf16.msra.mxu0 %v2535
    %2589 = vmatpush.bf16.msra.mxu0 %v2533
    %2590 = vmatpush.bf16.msra.mxu0 %v2531
    %2591 = vmatpush.bf16.msra.mxu0 %v2529
    %2592 = vmatpush.bf16.msra.mxu0 %v2527
    %2593 = vmatpush.bf16.msra.mxu0 %v2525
    %2594 = vmatpush.bf16.msra.mxu0 %v2523
    %2595 = vmatmul.bf16.gmra.mxu0 %v2355
    %v2596 = vpop.f32.mrf.mxu0
    %v2597 = vadd.f32 %v2423, %v2596
    %v2598 = vpop.f32.mrf.mxu0
    %v2599 = vadd.f32 %v2423, %v2598
    %2600 = vmatmul.bf16.gmra.mxu0 %v2357
    %v2601 = vpop.f32.mrf.mxu0
    %v2602 = vadd.f32 %v2423, %v2601
    %v2603 = vpop.f32.mrf.mxu0
    %v2604 = vadd.f32 %v2423, %v2603
    %2605 = vmatmul.bf16.gmra.mxu0 %v2359
    %v2606 = vpop.f32.mrf.mxu0
    %v2607 = vadd.f32 %v2423, %v2606
    %v2608 = vpop.f32.mrf.mxu0
    %v2609 = vadd.f32 %v2423, %v2608
    %2610 = vmatmul.bf16.gmra.mxu0 %v2361
    %v2611 = vpop.f32.mrf.mxu0
    %v2612 = vadd.f32 %v2423, %v2611
    %v2613 = vpop.f32.mrf.mxu0
    %v2614 = vadd.f32 %v2423, %v2613
    %2615 = vmatmul.bf16.gmra.mxu0 %v2363
    %v2616 = vpop.f32.mrf.mxu0
    %v2617 = vadd.f32 %v2423, %v2616
    %v2618 = vpop.f32.mrf.mxu0
    %v2619 = vadd.f32 %v2423, %v2618
    %2620 = vmatmul.bf16.gmra.mxu0 %v2365
    %v2621 = vpop.f32.mrf.mxu0
    %v2622 = vadd.f32 %v2423, %v2621
    %v2623 = vpop.f32.mrf.mxu0
    %v2624 = vadd.f32 %v2423, %v2623
    %2625 = vmatmul.bf16.gmra.mxu0 %v2367
    %v2626 = vpop.f32.mrf.mxu0
    %v2627 = vadd.f32 %v2423, %v2626
    %v2628 = vpop.f32.mrf.mxu0
    %v2629 = vadd.f32 %v2423, %v2628
    %2630 = vmatmul.bf16.gmra.mxu0 %v2369
    %v2631 = vpop.f32.mrf.mxu0
    %v2632 = vadd.f32 %v2423, %v2631
    %v2633 = vpop.f32.mrf.mxu0
    %v2634 = vadd.f32 %v2423, %v2633
    %2635 = vmatmul.bf16.gmra.mxu0 %v2371
    %v2636 = vpop.f32.mrf.mxu0
    %v2637 = vadd.f32 %v2423, %v2636
    %v2638 = vpop.f32.mrf.mxu0
    %v2639 = vadd.f32 %v2423, %v2638
    %2640 = vmatmul.bf16.gmra.mxu0 %v2373
    %v2641 = vpop.f32.mrf.mxu0
    %v2642 = vadd.f32 %v2423, %v2641
    %v2643 = vpop.f32.mrf.mxu0
    %v2644 = vadd.f32 %v2423, %v2643
    %2645 = vmatmul.bf16.gmra.mxu0 %v2375
    %v2646 = vpop.f32.mrf.mxu0
    %v2647 = vadd.f32 %v2423, %v2646
    %v2648 = vpop.f32.mrf.mxu0
    %v2649 = vadd.f32 %v2423, %v2648
    %2650 = vmatmul.bf16.gmra.mxu0 %v2377
    %v2651 = vpop.f32.mrf.mxu0
    %v2652 = vadd.f32 %v2423, %v2651
    %v2653 = vpop.f32.mrf.mxu0
    %v2654 = vadd.f32 %v2423, %v2653
    %2655 = vmatmul.bf16.gmra.mxu0 %v2379
    %v2656 = vpop.f32.mrf.mxu0
    %v2657 = vadd.f32 %v2423, %v2656
    %v2658 = vpop.f32.mrf.mxu0
    %v2659 = vadd.f32 %v2423, %v2658
    %2660 = vmatmul.bf16.gmra.mxu0 %v2381
    %v2661 = vpop.f32.mrf.mxu0
    %v2662 = vadd.f32 %v2423, %v2661
    %v2663 = vpop.f32.mrf.mxu0
    %v2664 = vadd.f32 %v2423, %v2663
    %2665 = vmatmul.bf16.gmra.mxu0 %v2383
    %v2666 = vpop.f32.mrf.mxu0
    %v2667 = vadd.f32 %v2423, %v2666
    %v2668 = vpop.f32.mrf.mxu0
    %v2669 = vadd.f32 %v2423, %v2668
    %2670 = vmatmul.bf16.gmra.mxu0 %v2385
    %v2671 = vpop.f32.mrf.mxu0
    %v2672 = vadd.f32 %v2423, %v2671
    %v2673 = vpop.f32.mrf.mxu0
    %v2674 = vadd.f32 %v2423, %v2673
    %2675 = vdwg.mxu0
    %2676 = vmatpush.bf16.msra.mxu0 %v2553
    %2677 = vmatpush.bf16.msra.mxu0 %v2551
    %2678 = vmatpush.bf16.msra.mxu0 %v2549
    %2679 = vmatpush.bf16.msra.mxu0 %v2547
    %2680 = vmatpush.bf16.msra.mxu0 %v2545
    %2681 = vmatpush.bf16.msra.mxu0 %v2543
    %2682 = vmatpush.bf16.msra.mxu0 %v2541
    %2683 = vmatpush.bf16.msra.mxu0 %v2539
    %2684 = vmatmul.bf16.gmra.mxu0 %v2356
    %v2685 = vpop.f32.mrf.mxu0
    %v2686 = vadd.f32 %v2597, %v2685
    %v2687 = vpop.f32.mrf.mxu0
    %v2688 = vadd.f32 %v2599, %v2687
    %2689 = vmatmul.bf16.gmra.mxu0 %v2358
    %v2690 = vpop.f32.mrf.mxu0
    %v2691 = vadd.f32 %v2602, %v2690
    %v2692 = vpop.f32.mrf.mxu0
    %v2693 = vadd.f32 %v2604, %v2692
    %2694 = vmatmul.bf16.gmra.mxu0 %v2360
    %v2695 = vpop.f32.mrf.mxu0
    %v2696 = vadd.f32 %v2607, %v2695
    %v2697 = vpop.f32.mrf.mxu0
    %v2698 = vadd.f32 %v2609, %v2697
    %2699 = vmatmul.bf16.gmra.mxu0 %v2362
    %v2700 = vpop.f32.mrf.mxu0
    %v2701 = vadd.f32 %v2612, %v2700
    %v2702 = vpop.f32.mrf.mxu0
    %v2703 = vadd.f32 %v2614, %v2702
    %2704 = vmatmul.bf16.gmra.mxu0 %v2364
    %v2705 = vpop.f32.mrf.mxu0
    %v2706 = vadd.f32 %v2617, %v2705
    %v2707 = vpop.f32.mrf.mxu0
    %v2708 = vadd.f32 %v2619, %v2707
    %2709 = vmatmul.bf16.gmra.mxu0 %v2366
    %v2710 = vpop.f32.mrf.mxu0
    %v2711 = vadd.f32 %v2622, %v2710
    %v2712 = vpop.f32.mrf.mxu0
    %v2713 = vadd.f32 %v2624, %v2712
    %2714 = vmatmul.bf16.gmra.mxu0 %v2368
    %v2715 = vpop.f32.mrf.mxu0
    %v2716 = vadd.f32 %v2627, %v2715
    %v2717 = vpop.f32.mrf.mxu0
    %v2718 = vadd.f32 %v2629, %v2717
    %2719 = vmatmul.bf16.gmra.mxu0 %v2370
    %v2720 = vpop.f32.mrf.mxu0
    %v2721 = vadd.f32 %v2632, %v2720
    %v2722 = vpop.f32.mrf.mxu0
    %v2723 = vadd.f32 %v2634, %v2722
    %2724 = vmatmul.bf16.gmra.mxu0 %v2372
    %v2725 = vpop.f32.mrf.mxu0
    %v2726 = vadd.f32 %v2637, %v2725
    %v2727 = vpop.f32.mrf.mxu0
    %v2728 = vadd.f32 %v2639, %v2727
    %2729 = vmatmul.bf16.gmra.mxu0 %v2374
    %v2730 = vpop.f32.mrf.mxu0
    %v2731 = vadd.f32 %v2642, %v2730
    %v2732 = vpop.f32.mrf.mxu0
    %v2733 = vadd.f32 %v2644, %v2732
    %2734 = vmatmul.bf16.gmra.mxu0 %v2376
    %v2735 = vpop.f32.mrf.mxu0
    %v2736 = vadd.f32 %v2647, %v2735
    %v2737 = vpop.f32.mrf.mxu0
    %v2738 = vadd.f32 %v2649, %v2737
    %2739 = vmatmul.bf16.gmra.mxu0 %v2378
    %v2740 = vpop.f32.mrf.mxu0
    %v2741 = vadd.f32 %v2652, %v2740
    %v2742 = vpop.f32.mrf.mxu0
    %v2743 = vadd.f32 %v2654, %v2742
    %2744 = vmatmul.bf16.gmra.mxu0 %v2380
    %v2745 = vpop.f32.mrf.mxu0
    %v2746 = vadd.f32 %v2657, %v2745
    %v2747 = vpop.f32.mrf.mxu0
    %v2748 = vadd.f32 %v2659, %v2747
    %2749 = vmatmul.bf16.gmra.mxu0 %v2382
    %v2750 = vpop.f32.mrf.mxu0
    %v2751 = vadd.f32 %v2662, %v2750
    %v2752 = vpop.f32.mrf.mxu0
    %v2753 = vadd.f32 %v2664, %v2752
    %2754 = vmatmul.bf16.gmra.mxu0 %v2384
    %v2755 = vpop.f32.mrf.mxu0
    %v2756 = vadd.f32 %v2667, %v2755
    %v2757 = vpop.f32.mrf.mxu0
    %v2758 = vadd.f32 %v2669, %v2757
    %2759 = vmatmul.bf16.gmra.mxu0 %v2386
    %v2760 = vpop.f32.mrf.mxu0
    %v2761 = vadd.f32 %v2672, %v2760
    %v2762 = vpop.f32.mrf.mxu0
    %v2763 = vadd.f32 %v2674, %v2762
    %2764 = vdwg.mxu0
    %2765 = vmatpush.bf16.msra.mxu0 %v2538
    %2766 = vmatpush.bf16.msra.mxu0 %v2536
    %2767 = vmatpush.bf16.msra.mxu0 %v2534
    %2768 = vmatpush.bf16.msra.mxu0 %v2532
    %2769 = vmatpush.bf16.msra.mxu0 %v2530
    %2770 = vmatpush.bf16.msra.mxu0 %v2528
    %2771 = vmatpush.bf16.msra.mxu0 %v2526
    %2772 = vmatpush.bf16.msra.mxu0 %v2524
    %2773 = vmatmul.bf16.gmra.mxu0 %v2355
    %v2774 = vpop.f32.mrf.mxu0
    %v2775 = vadd.f32 %v2424, %v2774
    %v2776 = vpop.f32.mrf.mxu0
    %v2777 = vadd.f32 %v2424, %v2776
    %2778 = vmatmul.bf16.gmra.mxu0 %v2357
    %v2779 = vpop.f32.mrf.mxu0
    %v2780 = vadd.f32 %v2424, %v2779
    %v2781 = vpop.f32.mrf.mxu0
    %v2782 = vadd.f32 %v2424, %v2781
    %2783 = vmatmul.bf16.gmra.mxu0 %v2359
    %v2784 = vpop.f32.mrf.mxu0
    %v2785 = vadd.f32 %v2424, %v2784
    %v2786 = vpop.f32.mrf.mxu0
    %v2787 = vadd.f32 %v2424, %v2786
    %2788 = vmatmul.bf16.gmra.mxu0 %v2361
    %v2789 = vpop.f32.mrf.mxu0
    %v2790 = vadd.f32 %v2424, %v2789
    %v2791 = vpop.f32.mrf.mxu0
    %v2792 = vadd.f32 %v2424, %v2791
    %2793 = vmatmul.bf16.gmra.mxu0 %v2363
    %v2794 = vpop.f32.mrf.mxu0
    %v2795 = vadd.f32 %v2424, %v2794
    %v2796 = vpop.f32.mrf.mxu0
    %v2797 = vadd.f32 %v2424, %v2796
    %2798 = vmatmul.bf16.gmra.mxu0 %v2365
    %v2799 = vpop.f32.mrf.mxu0
    %v2800 = vadd.f32 %v2424, %v2799
    %v2801 = vpop.f32.mrf.mxu0
    %v2802 = vadd.f32 %v2424, %v2801
    %2803 = vmatmul.bf16.gmra.mxu0 %v2367
    %v2804 = vpop.f32.mrf.mxu0
    %v2805 = vadd.f32 %v2424, %v2804
    %v2806 = vpop.f32.mrf.mxu0
    %v2807 = vadd.f32 %v2424, %v2806
    %2808 = vmatmul.bf16.gmra.mxu0 %v2369
    %v2809 = vpop.f32.mrf.mxu0
    %v2810 = vadd.f32 %v2424, %v2809
    %v2811 = vpop.f32.mrf.mxu0
    %v2812 = vadd.f32 %v2424, %v2811
    %2813 = vmatmul.bf16.gmra.mxu0 %v2371
    %v2814 = vpop.f32.mrf.mxu0
    %v2815 = vadd.f32 %v2424, %v2814
    %v2816 = vpop.f32.mrf.mxu0
    %v2817 = vadd.f32 %v2424, %v2816
    %2818 = vmatmul.bf16.gmra.mxu0 %v2373
    %v2819 = vpop.f32.mrf.mxu0
    %v2820 = vadd.f32 %v2424, %v2819
    %v2821 = vpop.f32.mrf.mxu0
    %v2822 = vadd.f32 %v2424, %v2821
    %2823 = vmatmul.bf16.gmra.mxu0 %v2375
    %v2824 = vpop.f32.mrf.mxu0
    %v2825 = vadd.f32 %v2424, %v2824
    %v2826 = vpop.f32.mrf.mxu0
    %v2827 = vadd.f32 %v2424, %v2826
    %2828 = vmatmul.bf16.gmra.mxu0 %v2377
    %v2829 = vpop.f32.mrf.mxu0
    %v2830 = vadd.f32 %v2424, %v2829
    %v2831 = vpop.f32.mrf.mxu0
    %v2832 = vadd.f32 %v2424, %v2831
    %2833 = vmatmul.bf16.gmra.mxu0 %v2379
    %v2834 = vpop.f32.mrf.mxu0
    %v2835 = vadd.f32 %v2424, %v2834
    %v2836 = vpop.f32.mrf.mxu0
    %v2837 = vadd.f32 %v2424, %v2836
    %2838 = vmatmul.bf16.gmra.mxu0 %v2381
    %v2839 = vpop.f32.mrf.mxu0
    %v2840 = vadd.f32 %v2424, %v2839
    %v2841 = vpop.f32.mrf.mxu0
    %v2842 = vadd.f32 %v2424, %v2841
    %2843 = vmatmul.bf16.gmra.mxu0 %v2383
    %v2844 = vpop.f32.mrf.mxu0
    %v2845 = vadd.f32 %v2424, %v2844
    %v2846 = vpop.f32.mrf.mxu0
    %v2847 = vadd.f32 %v2424, %v2846
    %2848 = vmatmul.bf16.gmra.mxu0 %v2385
    %v2849 = vpop.f32.mrf.mxu0
    %v2850 = vadd.f32 %v2424, %v2849
    %v2851 = vpop.f32.mrf.mxu0
    %v2852 = vadd.f32 %v2424, %v2851
    %2853 = vdwg.mxu0
    %2854 = vmatpush.bf16.msra.mxu0 %v2554
    %2855 = vmatpush.bf16.msra.mxu0 %v2552
    %2856 = vmatpush.bf16.msra.mxu0 %v2550
    %2857 = vmatpush.bf16.msra.mxu0 %v2548
    %2858 = vmatpush.bf16.msra.mxu0 %v2546
    %2859 = vmatpush.bf16.msra.mxu0 %v2544
    %2860 = vmatpush.bf16.msra.mxu0 %v2542
    %2861 = vmatpush.bf16.msra.mxu0 %v2540
    %2862 = vmatmul.bf16.gmra.mxu0 %v2356
    %v2863 = vpop.f32.mrf.mxu0
    %v2864 = vadd.f32 %v2775, %v2863
    %v2865 = vpop.f32.mrf.mxu0
    %v2866 = vadd.f32 %v2777, %v2865
    %2867 = vmatmul.bf16.gmra.mxu0 %v2358
    %v2868 = vpop.f32.mrf.mxu0
    %v2869 = vadd.f32 %v2780, %v2868
    %v2870 = vpop.f32.mrf.mxu0
    %v2871 = vadd.f32 %v2782, %v2870
    %2872 = vmatmul.bf16.gmra.mxu0 %v2360
    %v2873 = vpop.f32.mrf.mxu0
    %v2874 = vadd.f32 %v2785, %v2873
    %v2875 = vpop.f32.mrf.mxu0
    %v2876 = vadd.f32 %v2787, %v2875
    %2877 = vmatmul.bf16.gmra.mxu0 %v2362
    %v2878 = vpop.f32.mrf.mxu0
    %v2879 = vadd.f32 %v2790, %v2878
    %v2880 = vpop.f32.mrf.mxu0
    %v2881 = vadd.f32 %v2792, %v2880
    %2882 = vmatmul.bf16.gmra.mxu0 %v2364
    %v2883 = vpop.f32.mrf.mxu0
    %v2884 = vadd.f32 %v2795, %v2883
    %v2885 = vpop.f32.mrf.mxu0
    %v2886 = vadd.f32 %v2797, %v2885
    %2887 = vmatmul.bf16.gmra.mxu0 %v2366
    %v2888 = vpop.f32.mrf.mxu0
    %v2889 = vadd.f32 %v2800, %v2888
    %v2890 = vpop.f32.mrf.mxu0
    %v2891 = vadd.f32 %v2802, %v2890
    %2892 = vmatmul.bf16.gmra.mxu0 %v2368
    %v2893 = vpop.f32.mrf.mxu0
    %v2894 = vadd.f32 %v2805, %v2893
    %v2895 = vpop.f32.mrf.mxu0
    %v2896 = vadd.f32 %v2807, %v2895
    %2897 = vmatmul.bf16.gmra.mxu0 %v2370
    %v2898 = vpop.f32.mrf.mxu0
    %v2899 = vadd.f32 %v2810, %v2898
    %v2900 = vpop.f32.mrf.mxu0
    %v2901 = vadd.f32 %v2812, %v2900
    %2902 = vmatmul.bf16.gmra.mxu0 %v2372
    %v2903 = vpop.f32.mrf.mxu0
    %v2904 = vadd.f32 %v2815, %v2903
    %v2905 = vpop.f32.mrf.mxu0
    %v2906 = vadd.f32 %v2817, %v2905
    %2907 = vmatmul.bf16.gmra.mxu0 %v2374
    %v2908 = vpop.f32.mrf.mxu0
    %v2909 = vadd.f32 %v2820, %v2908
    %v2910 = vpop.f32.mrf.mxu0
    %v2911 = vadd.f32 %v2822, %v2910
    %2912 = vmatmul.bf16.gmra.mxu0 %v2376
    %v2913 = vpop.f32.mrf.mxu0
    %v2914 = vadd.f32 %v2825, %v2913
    %v2915 = vpop.f32.mrf.mxu0
    %v2916 = vadd.f32 %v2827, %v2915
    %2917 = vmatmul.bf16.gmra.mxu0 %v2378
    %v2918 = vpop.f32.mrf.mxu0
    %v2919 = vadd.f32 %v2830, %v2918
    %v2920 = vpop.f32.mrf.mxu0
    %v2921 = vadd.f32 %v2832, %v2920
    %2922 = vmatmul.bf16.gmra.mxu0 %v2380
    %v2923 = vpop.f32.mrf.mxu0
    %v2924 = vadd.f32 %v2835, %v2923
    %v2925 = vpop.f32.mrf.mxu0
    %v2926 = vadd.f32 %v2837, %v2925
    %2927 = vmatmul.bf16.gmra.mxu0 %v2382
    %v2928 = vpop.f32.mrf.mxu0
    %v2929 = vadd.f32 %v2840, %v2928
    %v2930 = vpop.f32.mrf.mxu0
    %v2931 = vadd.f32 %v2842, %v2930
    %2932 = vmatmul.bf16.gmra.mxu0 %v2384
    %v2933 = vpop.f32.mrf.mxu0
    %v2934 = vadd.f32 %v2845, %v2933
    %v2935 = vpop.f32.mrf.mxu0
    %v2936 = vadd.f32 %v2847, %v2935
    %2937 = vmatmul.bf16.gmra.mxu0 %v2386
    %v2938 = vpop.f32.mrf.mxu0
    %v2939 = vadd.f32 %v2850, %v2938
    %v2940 = vpop.f32.mrf.mxu0
    %v2941 = vadd.f32 %v2852, %v2940
    %2942 = vdwg.mxu0
    %v2943 = vmax.f32 %v2686, 0.0
    %v2944 = vmax.f32 %v2864, 0.0
    %v2945 = vmax.f32 %v2688, 0.0
    %v2946 = vmax.f32 %v2866, 0.0
    %v2947 = vmax.f32 %v2691, 0.0
    %v2948 = vmax.f32 %v2869, 0.0
    %v2949 = vmax.f32 %v2693, 0.0
    %v2950 = vmax.f32 %v2871, 0.0
    %v2951 = vmax.f32 %v2696, 0.0
    %v2952 = vmax.f32 %v2874, 0.0
    %v2953 = vmax.f32 %v2698, 0.0
    %v2954 = vmax.f32 %v2876, 0.0
    %v2955 = vmax.f32 %v2701, 0.0
    %v2956 = vmax.f32 %v2879, 0.0
    %v2957 = vmax.f32 %v2703, 0.0
    %v2958 = vmax.f32 %v2881, 0.0
    %v2959 = vmax.f32 %v2706, 0.0
    %v2960 = vmax.f32 %v2884, 0.0
    %v2961 = vmax.f32 %v2708, 0.0
    %v2962 = vmax.f32 %v2886, 0.0
    %v2963 = vmax.f32 %v2711, 0.0
    %v2964 = vmax.f32 %v2889, 0.0
    %v2965 = vmax.f32 %v2713, 0.0
    %v2966 = vmax.f32 %v2891, 0.0
    %v2967 = vmax.f32 %v2716, 0.0
    %v2968 = vmax.f32 %v2894, 0.0
    %v2969 = vmax.f32 %v2718, 0.0
    %v2970 = vmax.f32 %v2896, 0.0
    %v2971 = vmax.f32 %v2721, 0.0
    %v2972 = vmax.f32 %v2899, 0.0
    %v2973 = vmax.f32 %v2723, 0.0
    %v2974 = vmax.f32 %v2901, 0.0
    %v2975 = vmax.f32 %v2726, 0.0
    %v2976 = vmax.f32 %v2904, 0.0
    %v2977 = vmax.f32 %v2728, 0.0
    %v2978 = vmax.f32 %v2906, 0.0
    %v2979 = vmax.f32 %v2731, 0.0
    %v2980 = vmax.f32 %v2909, 0.0
    %v2981 = vmax.f32 %v2733, 0.0
    %v2982 = vmax.f32 %v2911, 0.0
    %v2983 = vmax.f32 %v2736, 0.0
    %v2984 = vmax.f32 %v2914, 0.0
    %v2985 = vmax.f32 %v2738, 0.0
    %v2986 = vmax.f32 %v2916, 0.0
    %v2987 = vmax.f32 %v2741, 0.0
    %v2988 = vmax.f32 %v2919, 0.0
    %v2989 = vmax.f32 %v2743, 0.0
    %v2990 = vmax.f32 %v2921, 0.0
    %v2991 = vmax.f32 %v2746, 0.0
    %v2992 = vmax.f32 %v2924, 0.0
    %v2993 = vmax.f32 %v2748, 0.0
    %v2994 = vmax.f32 %v2926, 0.0
    %v2995 = vmax.f32 %v2751, 0.0
    %v2996 = vmax.f32 %v2929, 0.0
    %v2997 = vmax.f32 %v2753, 0.0
    %v2998 = vmax.f32 %v2931, 0.0
    %v2999 = vmax.f32 %v2756, 0.0
    %v3000 = vmax.f32 %v2934, 0.0
    %v3001 = vmax.f32 %v2758, 0.0
    %v3002 = vmax.f32 %v2936, 0.0
    %v3003 = vmax.f32 %v2761, 0.0
    %v3004 = vmax.f32 %v2939, 0.0
    %v3005 = vmax.f32 %v2763, 0.0
    %v3006 = vmax.f32 %v2941, 0.0
    %v3007 = vpack.c.bf16 %v2945, %v2943
    %v3008 = vpack.c.bf16 %v2946, %v2944
    %v3009 = vpack.c.bf16 %v2949, %v2947
    %v3010 = vpack.c.bf16 %v2950, %v2948
    %v3011 = vpack.c.bf16 %v2953, %v2951
    %v3012 = vpack.c.bf16 %v2954, %v2952
    %v3013 = vpack.c.bf16 %v2957, %v2955
    %v3014 = vpack.c.bf16 %v2958, %v2956
    %v3015 = vpack.c.bf16 %v2961, %v2959
    %v3016 = vpack.c.bf16 %v2962, %v2960
    %v3017 = vpack.c.bf16 %v2965, %v2963
    %v3018 = vpack.c.bf16 %v2966, %v2964
    %v3019 = vpack.c.bf16 %v2969, %v2967
    %v3020 = vpack.c.bf16 %v2970, %v2968
    %v3021 = vpack.c.bf16 %v2973, %v2971
    %v3022 = vpack.c.bf16 %v2974, %v2972
    %v3023 = vpack.c.bf16 %v2977, %v2975
    %v3024 = vpack.c.bf16 %v2978, %v2976
    %v3025 = vpack.c.bf16 %v2981, %v2979
    %v3026 = vpack.c.bf16 %v2982, %v2980
    %v3027 = vpack.c.bf16 %v2985, %v2983
    %v3028 = vpack.c.bf16 %v2986, %v2984
    %v3029 = vpack.c.bf16 %v2989, %v2987
    %v3030 = vpack.c.bf16 %v2990, %v2988
    %v3031 = vpack.c.bf16 %v2993, %v2991
    %v3032 = vpack.c.bf16 %v2994, %v2992
    %v3033 = vpack.c.bf16 %v2997, %v2995
    %v3034 = vpack.c.bf16 %v2998, %v2996
    %v3035 = vpack.c.bf16 %v3001, %v2999
    %v3036 = vpack.c.bf16 %v3002, %v3000
    %v3037 = vpack.c.bf16 %v3005, %v3003
    %v3038 = vpack.c.bf16 %v3006, %v3004
    %v3039 = vld [vmem:[%s5] sm:$0xf]
    %v3040 = vld [vmem:[%s5 + $0x4] sm:$0xf]
    %v3041 = vld [vmem:[%s5 + $0x8] sm:$0xf]
    %v3042 = vld [vmem:[%s5 + $0xc] sm:$0xf]
    %v3043 = vld [vmem:[%s5 + $0x10] sm:$0xf]
    %v3044 = vld [vmem:[%s5 + $0x14] sm:$0xf]
    %v3045 = vld [vmem:[%s5 + $0x18] sm:$0xf]
    %v3046 = vld [vmem:[%s5 + $0x1c] sm:$0xf]
    %v3047 = vld [vmem:[%s5 + $0x20] sm:$0xf]
    %v3048 = vld [vmem:[%s5 + $0x24] sm:$0xf]
    %v3049 = vld [vmem:[%s5 + $0x28] sm:$0xf]
    %v3050 = vld [vmem:[%s5 + $0x2c] sm:$0xf]
    %v3051 = vld [vmem:[%s5 + $0x30] sm:$0xf]
    %v3052 = vld [vmem:[%s5 + $0x34] sm:$0xf]
    %v3053 = vld [vmem:[%s5 + $0x38] sm:$0xf]
    %v3054 = vld [vmem:[%s5 + $0x3c] sm:$0xf]
    %v3055 = vld [vmem:[%s5 + $0x40] sm:$0xf]
    %v3056 = vld [vmem:[%s5 + $0x44] sm:$0xf]
    %v3057 = vld [vmem:[%s5 + $0x48] sm:$0xf]
    %v3058 = vld [vmem:[%s5 + $0x4c] sm:$0xf]
    %v3059 = vld [vmem:[%s5 + $0x50] sm:$0xf]
    %v3060 = vld [vmem:[%s5 + $0x54] sm:$0xf]
    %v3061 = vld [vmem:[%s5 + $0x58] sm:$0xf]
    %v3062 = vld [vmem:[%s5 + $0x5c] sm:$0xf]
    %v3063 = vld [vmem:[%s5 + $0x60] sm:$0xf]
    %v3064 = vld [vmem:[%s5 + $0x64] sm:$0xf]
    %v3065 = vld [vmem:[%s5 + $0x68] sm:$0xf]
    %v3066 = vld [vmem:[%s5 + $0x6c] sm:$0xf]
    %v3067 = vld [vmem:[%s5 + $0x70] sm:$0xf]
    %v3068 = vld [vmem:[%s5 + $0x74] sm:$0xf]
    %v3069 = vld [vmem:[%s5 + $0x78] sm:$0xf]
    %v3070 = vld [vmem:[%s5 + $0x7c] sm:$0xf]
    %v3071 = vld [vmem:[%s6] sm:$0x1]
    %v3073 = vperm.slane %v3071, 0
    %v3107 = vunpack.c.l.b16 %v3039
    %v3108 = vunpack.c.l.b16 %v3040
    %v3109 = vunpack.c.l.b16 %v3041
    %v3110 = vunpack.c.l.b16 %v3042
    %v3111 = vunpack.c.l.b16 %v3043
    %v3112 = vunpack.c.l.b16 %v3044
    %v3113 = vunpack.c.l.b16 %v3045
    %v3114 = vunpack.c.l.b16 %v3046
    %v3115 = vunpack.c.l.b16 %v3047
    %v3116 = vunpack.c.l.b16 %v3048
    %v3117 = vunpack.c.l.b16 %v3049
    %v3118 = vunpack.c.l.b16 %v3050
    %v3119 = vunpack.c.l.b16 %v3051
    %v3120 = vunpack.c.l.b16 %v3052
    %v3121 = vunpack.c.l.b16 %v3053
    %v3122 = vunpack.c.l.b16 %v3054
    %v3123 = vunpack.c.l.b16 %v3055
    %v3124 = vunpack.c.l.b16 %v3056
    %v3125 = vunpack.c.l.b16 %v3057
    %v3126 = vunpack.c.l.b16 %v3058
    %v3127 = vunpack.c.l.b16 %v3059
    %v3128 = vunpack.c.l.b16 %v3060
    %v3129 = vunpack.c.l.b16 %v3061
    %v3130 = vunpack.c.l.b16 %v3062
    %v3131 = vunpack.c.l.b16 %v3063
    %v3132 = vunpack.c.l.b16 %v3064
    %v3133 = vunpack.c.l.b16 %v3065
    %v3134 = vunpack.c.l.b16 %v3066
    %v3135 = vunpack.c.l.b16 %v3067
    %v3136 = vunpack.c.l.b16 %v3068
    %v3137 = vunpack.c.l.b16 %v3069
    %v3138 = vunpack.c.l.b16 %v3070
    %v3139 = vpack.c.b16 %v3108, %v3107
    %v3140 = vpack.c.b16 %v3110, %v3109
    %v3141 = vpack.c.b16 %v3112, %v3111
    %v3142 = vpack.c.b16 %v3114, %v3113
    %v3143 = vpack.c.b16 %v3116, %v3115
    %v3144 = vpack.c.b16 %v3118, %v3117
    %v3145 = vpack.c.b16 %v3120, %v3119
    %v3146 = vpack.c.b16 %v3122, %v3121
    %v3147 = vpack.c.b16 %v3124, %v3123
    %v3148 = vpack.c.b16 %v3126, %v3125
    %v3149 = vpack.c.b16 %v3128, %v3127
    %v3150 = vpack.c.b16 %v3130, %v3129
    %v3151 = vpack.c.b16 %v3132, %v3131
    %v3152 = vpack.c.b16 %v3134, %v3133
    %v3153 = vpack.c.b16 %v3136, %v3135
    %v3154 = vpack.c.b16 %v3138, %v3137
    %3171 = vmatpush.bf16.msra.mxu0 %v3146
    %3172 = vmatpush.bf16.msra.mxu0 %v3145
    %3173 = vmatpush.bf16.msra.mxu0 %v3144
    %3174 = vmatpush.bf16.msra.mxu0 %v3143
    %3175 = vmatpush.bf16.msra.mxu0 %v3142
    %3176 = vmatpush.bf16.msra.mxu0 %v3141
    %3177 = vmatpush.bf16.msra.mxu0 %v3140
    %3178 = vmatpush.bf16.msra.mxu0 %v3139
    %3179 = vmatmul.bf16.gmra.mxu0 %v3007
    %v3180 = vpop.f32.mrf.mxu0
    %v3181 = vadd.f32 %v3073, %v3180
    %v3182 = vpop.f32.mrf.mxu0
    %v3183 = vadd.f32 %v3073, %v3182
    %3184 = vmatmul.bf16.gmra.mxu0 %v3009
    %v3185 = vpop.f32.mrf.mxu0
    %v3186 = vadd.f32 %v3073, %v3185
    %v3187 = vpop.f32.mrf.mxu0
    %v3188 = vadd.f32 %v3073, %v3187
    %3189 = vmatmul.bf16.gmra.mxu0 %v3011
    %v3190 = vpop.f32.mrf.mxu0
    %v3191 = vadd.f32 %v3073, %v3190
    %v3192 = vpop.f32.mrf.mxu0
    %v3193 = vadd.f32 %v3073, %v3192
    %3194 = vmatmul.bf16.gmra.mxu0 %v3013
    %v3195 = vpop.f32.mrf.mxu0
    %v3196 = vadd.f32 %v3073, %v3195
    %v3197 = vpop.f32.mrf.mxu0
    %v3198 = vadd.f32 %v3073, %v3197
    %3199 = vmatmul.bf16.gmra.mxu0 %v3015
    %v3200 = vpop.f32.mrf.mxu0
    %v3201 = vadd.f32 %v3073, %v3200
    %v3202 = vpop.f32.mrf.mxu0
    %v3203 = vadd.f32 %v3073, %v3202
    %3204 = vmatmul.bf16.gmra.mxu0 %v3017
    %v3205 = vpop.f32.mrf.mxu0
    %v3206 = vadd.f32 %v3073, %v3205
    %v3207 = vpop.f32.mrf.mxu0
    %v3208 = vadd.f32 %v3073, %v3207
    %3209 = vmatmul.bf16.gmra.mxu0 %v3019
    %v3210 = vpop.f32.mrf.mxu0
    %v3211 = vadd.f32 %v3073, %v3210
    %v3212 = vpop.f32.mrf.mxu0
    %v3213 = vadd.f32 %v3073, %v3212
    %3214 = vmatmul.bf16.gmra.mxu0 %v3021
    %v3215 = vpop.f32.mrf.mxu0
    %v3216 = vadd.f32 %v3073, %v3215
    %v3217 = vpop.f32.mrf.mxu0
    %v3218 = vadd.f32 %v3073, %v3217
    %3219 = vmatmul.bf16.gmra.mxu0 %v3023
    %v3220 = vpop.f32.mrf.mxu0
    %v3221 = vadd.f32 %v3073, %v3220
    %v3222 = vpop.f32.mrf.mxu0
    %v3223 = vadd.f32 %v3073, %v3222
    %3224 = vmatmul.bf16.gmra.mxu0 %v3025
    %v3225 = vpop.f32.mrf.mxu0
    %v3226 = vadd.f32 %v3073, %v3225
    %v3227 = vpop.f32.mrf.mxu0
    %v3228 = vadd.f32 %v3073, %v3227
    %3229 = vmatmul.bf16.gmra.mxu0 %v3027
    %v3230 = vpop.f32.mrf.mxu0
    %v3231 = vadd.f32 %v3073, %v3230
    %v3232 = vpop.f32.mrf.mxu0
    %v3233 = vadd.f32 %v3073, %v3232
    %3234 = vmatmul.bf16.gmra.mxu0 %v3029
    %v3235 = vpop.f32.mrf.mxu0
    %v3236 = vadd.f32 %v3073, %v3235
    %v3237 = vpop.f32.mrf.mxu0
    %v3238 = vadd.f32 %v3073, %v3237
    %3239 = vmatmul.bf16.gmra.mxu0 %v3031
    %v3240 = vpop.f32.mrf.mxu0
    %v3241 = vadd.f32 %v3073, %v3240
    %v3242 = vpop.f32.mrf.mxu0
    %v3243 = vadd.f32 %v3073, %v3242
    %3244 = vmatmul.bf16.gmra.mxu0 %v3033
    %v3245 = vpop.f32.mrf.mxu0
    %v3246 = vadd.f32 %v3073, %v3245
    %v3247 = vpop.f32.mrf.mxu0
    %v3248 = vadd.f32 %v3073, %v3247
    %3249 = vmatmul.bf16.gmra.mxu0 %v3035
    %v3250 = vpop.f32.mrf.mxu0
    %v3251 = vadd.f32 %v3073, %v3250
    %v3252 = vpop.f32.mrf.mxu0
    %v3253 = vadd.f32 %v3073, %v3252
    %3254 = vmatmul.bf16.gmra.mxu0 %v3037
    %v3255 = vpop.f32.mrf.mxu0
    %v3256 = vadd.f32 %v3073, %v3255
    %v3257 = vpop.f32.mrf.mxu0
    %v3258 = vadd.f32 %v3073, %v3257
    %3259 = vdwg.mxu0
    %3260 = vmatpush.bf16.msra.mxu0 %v3154
    %3261 = vmatpush.bf16.msra.mxu0 %v3153
    %3262 = vmatpush.bf16.msra.mxu0 %v3152
    %3263 = vmatpush.bf16.msra.mxu0 %v3151
    %3264 = vmatpush.bf16.msra.mxu0 %v3150
    %3265 = vmatpush.bf16.msra.mxu0 %v3149
    %3266 = vmatpush.bf16.msra.mxu0 %v3148
    %3267 = vmatpush.bf16.msra.mxu0 %v3147
    %3268 = vmatmul.bf16.gmra.mxu0 %v3008
    %v3269 = vpop.f32.mrf.mxu0
    %v3270 = vadd.f32 %v3181, %v3269
    %v3271 = vpop.f32.mrf.mxu0
    %v3272 = vadd.f32 %v3183, %v3271
    %3273 = vmatmul.bf16.gmra.mxu0 %v3010
    %v3274 = vpop.f32.mrf.mxu0
    %v3275 = vadd.f32 %v3186, %v3274
    %v3276 = vpop.f32.mrf.mxu0
    %v3277 = vadd.f32 %v3188, %v3276
    %3278 = vmatmul.bf16.gmra.mxu0 %v3012
    %v3279 = vpop.f32.mrf.mxu0
    %v3280 = vadd.f32 %v3191, %v3279
    %v3281 = vpop.f32.mrf.mxu0
    %v3282 = vadd.f32 %v3193, %v3281
    %3283 = vmatmul.bf16.gmra.mxu0 %v3014
    %v3284 = vpop.f32.mrf.mxu0
    %v3285 = vadd.f32 %v3196, %v3284
    %v3286 = vpop.f32.mrf.mxu0
    %v3287 = vadd.f32 %v3198, %v3286
    %3288 = vmatmul.bf16.gmra.mxu0 %v3016
    %v3289 = vpop.f32.mrf.mxu0
    %v3290 = vadd.f32 %v3201, %v3289
    %v3291 = vpop.f32.mrf.mxu0
    %v3292 = vadd.f32 %v3203, %v3291
    %3293 = vmatmul.bf16.gmra.mxu0 %v3018
    %v3294 = vpop.f32.mrf.mxu0
    %v3295 = vadd.f32 %v3206, %v3294
    %v3296 = vpop.f32.mrf.mxu0
    %v3297 = vadd.f32 %v3208, %v3296
    %3298 = vmatmul.bf16.gmra.mxu0 %v3020
    %v3299 = vpop.f32.mrf.mxu0
    %v3300 = vadd.f32 %v3211, %v3299
    %v3301 = vpop.f32.mrf.mxu0
    %v3302 = vadd.f32 %v3213, %v3301
    %3303 = vmatmul.bf16.gmra.mxu0 %v3022
    %v3304 = vpop.f32.mrf.mxu0
    %v3305 = vadd.f32 %v3216, %v3304
    %v3306 = vpop.f32.mrf.mxu0
    %v3307 = vadd.f32 %v3218, %v3306
    %3308 = vmatmul.bf16.gmra.mxu0 %v3024
    %v3309 = vpop.f32.mrf.mxu0
    %v3310 = vadd.f32 %v3221, %v3309
    %v3311 = vpop.f32.mrf.mxu0
    %v3312 = vadd.f32 %v3223, %v3311
    %3313 = vmatmul.bf16.gmra.mxu0 %v3026
    %v3314 = vpop.f32.mrf.mxu0
    %v3315 = vadd.f32 %v3226, %v3314
    %v3316 = vpop.f32.mrf.mxu0
    %v3317 = vadd.f32 %v3228, %v3316
    %3318 = vmatmul.bf16.gmra.mxu0 %v3028
    %v3319 = vpop.f32.mrf.mxu0
    %v3320 = vadd.f32 %v3231, %v3319
    %v3321 = vpop.f32.mrf.mxu0
    %v3322 = vadd.f32 %v3233, %v3321
    %3323 = vmatmul.bf16.gmra.mxu0 %v3030
    %v3324 = vpop.f32.mrf.mxu0
    %v3325 = vadd.f32 %v3236, %v3324
    %v3326 = vpop.f32.mrf.mxu0
    %v3327 = vadd.f32 %v3238, %v3326
    %3328 = vmatmul.bf16.gmra.mxu0 %v3032
    %v3329 = vpop.f32.mrf.mxu0
    %v3330 = vadd.f32 %v3241, %v3329
    %v3331 = vpop.f32.mrf.mxu0
    %v3332 = vadd.f32 %v3243, %v3331
    %3333 = vmatmul.bf16.gmra.mxu0 %v3034
    %v3334 = vpop.f32.mrf.mxu0
    %v3335 = vadd.f32 %v3246, %v3334
    %v3336 = vpop.f32.mrf.mxu0
    %v3337 = vadd.f32 %v3248, %v3336
    %3338 = vmatmul.bf16.gmra.mxu0 %v3036
    %v3339 = vpop.f32.mrf.mxu0
    %v3340 = vadd.f32 %v3251, %v3339
    %v3341 = vpop.f32.mrf.mxu0
    %v3342 = vadd.f32 %v3253, %v3341
    %3343 = vmatmul.bf16.gmra.mxu0 %v3038
    %v3344 = vpop.f32.mrf.mxu0
    %v3345 = vadd.f32 %v3256, %v3344
    %v3346 = vpop.f32.mrf.mxu0
    %v3347 = vadd.f32 %v3258, %v3346
    %3348 = vdwg.mxu0
    %3349 = vst [vmem:[#allocation5] sm:$0xff] %v3270
    %3350 = vst [vmem:[#allocation5 + $0x8] sm:$0xff] %v3272
    %3351 = vst [vmem:[#allocation5 + $0x10] sm:$0xff] %v3275
    %3352 = vst [vmem:[#allocation5 + $0x18] sm:$0xff] %v3277
    %3353 = vst [vmem:[#allocation5 + $0x20] sm:$0xff] %v3280
    %3354 = vst [vmem:[#allocation5 + $0x28] sm:$0xff] %v3282
    %3355 = vst [vmem:[#allocation5 + $0x30] sm:$0xff] %v3285
    %3356 = vst [vmem:[#allocation5 + $0x38] sm:$0xff] %v3287
    %3357 = vst [vmem:[#allocation5 + $0x40] sm:$0xff] %v3290
    %3358 = vst [vmem:[#allocation5 + $0x48] sm:$0xff] %v3292
    %3359 = vst [vmem:[#allocation5 + $0x50] sm:$0xff] %v3295
    %3360 = vst [vmem:[#allocation5 + $0x58] sm:$0xff] %v3297
    %3361 = vst [vmem:[#allocation5 + $0x60] sm:$0xff] %v3300
    %3362 = vst [vmem:[#allocation5 + $0x68] sm:$0xff] %v3302
    %3363 = vst [vmem:[#allocation5 + $0x70] sm:$0xff] %v3305
    %3364 = vst [vmem:[#allocation5 + $0x78] sm:$0xff] %v3307
    %3365 = vst [vmem:[#allocation5 + $0x80] sm:$0xff] %v3310
    %3366 = vst [vmem:[#allocation5 + $0x88] sm:$0xff] %v3312
    %3367 = vst [vmem:[#allocation5 + $0x90] sm:$0xff] %v3315
    %3368 = vst [vmem:[#allocation5 + $0x98] sm:$0xff] %v3317
    %3369 = vst [vmem:[#allocation5 + $0xa0] sm:$0xff] %v3320
    %3370 = vst [vmem:[#allocation5 + $0xa8] sm:$0xff] %v3322
    %3371 = vst [vmem:[#allocation5 + $0xb0] sm:$0xff] %v3325
    %3372 = vst [vmem:[#allocation5 + $0xb8] sm:$0xff] %v3327
    %3373 = vst [vmem:[#allocation5 + $0xc0] sm:$0xff] %v3330
    %3374 = vst [vmem:[#allocation5 + $0xc8] sm:$0xff] %v3332
    %3375 = vst [vmem:[#allocation5 + $0xd0] sm:$0xff] %v3335
    %3376 = vst [vmem:[#allocation5 + $0xd8] sm:$0xff] %v3337
    %3377 = vst [vmem:[#allocation5 + $0xe0] sm:$0xff] %v3340
    %3378 = vst [vmem:[#allocation5 + $0xe8] sm:$0xff] %v3342
    %3379 = vst [vmem:[#allocation5 + $0xf0] sm:$0xff] %v3345
    %3380 = vst [vmem:[#allocation5 + $0xf8] sm:$0xff] %v3347
    // Predicated region
    $region34: #{tpu_custom_call.1} parent=1 // pred_check
      _
    $region35: #{tpu_custom_call.1} parent=1 // pred_check_branch
      %3382 = sbr.rel (0) target = $region37
    $region36: #{tpu_custom_call.1} parent=1 // pred_region
      %3384 = vsyncadd [#allocation4], 0
      %s3385 = sshll.u32 [#allocation5], 4
      %s3386 = int_to_ptr.vmem [resolvable:$true] %s3385
      %s3387 = sshll.u32 %s7, 4
      %s3388 = int_to_ptr.hbm [resolvable:$true] %s3387
      %3393 = dma.vmem_to_hbm [thread:$0]  %s3386, 4096, %s3388, [#allocation4], 128, 128, 8
    $region37: #{tpu_custom_call.1} parent=1 // pred_fallthru
      _
    // Predicated region
    $region38: #{tpu_custom_call.1} parent=1 // pred_check
      _
    $region39: #{tpu_custom_call.1} parent=1 // pred_check_branch
      %3395 = sbr.rel (0) target = $region41
    $region40: #{tpu_custom_call.1} parent=1 // pred_region
      %3397 = dma.done [#allocation4], 4096
    $region41: #{tpu_custom_call.1} parent=1 // pred_fallthru
      _
    %3398 = vsyncpa [#allocation3], 1
    %3399 = vsyncpa [#allocation4], 1

// kernel: tpu_custom_call.1
$region0: #{tpu_custom_call.1}
  #allocation0 [shape = 'u32[]', space=smem, size = 0x4, offset = 0x4, fixed_abs, tag = 'smem constant byte address 0x4 - core index']
  #allocation1 [shape = 'u32[72,128]{1,0:T(1,128)}', space=vmem, size = 0x9000, scoped, tag = 'internal scratch']
  %s0 = inlined_call_operand.vmem [shape: f32[256,16], index: 0, kind: input, shape index: {}]
  %s1 = inlined_call_operand.vmem [shape: bf16[16,256], index: 1, kind: input, shape index: {}]
  %s2 = inlined_call_operand.vmem [shape: f32[1,256], index: 2, kind: input, shape index: {}]
  %s3 = inlined_call_operand.hbm [shape: bf16[4,256,256], index: 3, kind: input, shape index: {}]
  %s4 = inlined_call_operand.vmem [shape: f32[4,1,256], index: 4, kind: input, shape index: {}]
  %s5 = inlined_call_operand.vmem [shape: bf16[256,128], index: 5, kind: input, shape index: {}]
  %s6 = inlined_call_operand.vmem [shape: f32[1,128], index: 6, kind: input, shape index: {}]
  %s7 = inlined_call_operand.hbm [shape: f32[256,128], index: 7, kind: output, shape index: {}]
  %s8 = sld [smem:[#allocation0]]
  $region42: #{tpu_custom_call.1} parent=0
    _
  %s10 = ssub.s32 1, %s8
  %s11 = scalar_select 0, %s10, %s8
  $region1: #{tpu_custom_call.1} parent=0
    #allocation2 [shape = 'u8[524288]{0}', space=vmem, size = 0x80000, scoped, tag = 'input window, operand 3, single buffered']
    #allocation3 [shape = 's32[1]{0}', space=sflag, size = 0x4, scoped, tag = 'scoped memory for tpu_custom_call.1']
    #allocation4 [shape = 's32[1]{0}', space=sflag, size = 0x4, scoped, tag = 'scoped memory for tpu_custom_call.1']
    #allocation5 [shape = 'u8[131072]{0}', space=vmem, size = 0x20000, scoped, tag = 'output window, operand 0, single buffered']
    %12 = vsyncpa [#allocation3], 0
    %13 = vsyncpa [#allocation4], 0
    // Predicated region
    $region2: #{tpu_custom_call.1} parent=1 // pred_check
      _
    $region3: #{tpu_custom_call.1} parent=1 // pred_check_branch
      %15 = sbr.rel (0) target = $region5
    $region4: #{tpu_custom_call.1} parent=1 // pred_region
      _
    $region5: #{tpu_custom_call.1} parent=1 // pred_fallthru
      _
    // Predicated region
    $region6: #{tpu_custom_call.1} parent=1 // pred_check
      _
    $region7: #{tpu_custom_call.1} parent=1 // pred_check_branch
      %17 = sbr.rel (0) target = $region9
    $region8: #{tpu_custom_call.1} parent=1 // pred_region
      _
    $region9: #{tpu_custom_call.1} parent=1 // pred_fallthru
      _
    // Predicated region
    $region10: #{tpu_custom_call.1} parent=1 // pred_check
      _
    $region11: #{tpu_custom_call.1} parent=1 // pred_check_branch
      %19 = sbr.rel (0) target = $region13
    $region12: #{tpu_custom_call.1} parent=1 // pred_region
      _
    $region13: #{tpu_custom_call.1} parent=1 // pred_fallthru
      _
    // Predicated region
    $region14: #{tpu_custom_call.1} parent=1 // pred_check
      _
    $region15: #{tpu_custom_call.1} parent=1 // pred_check_branch
      %21 = sbr.rel (0) target = $region17
    $region16: #{tpu_custom_call.1} parent=1 // pred_region
      %23 = vsyncadd [#allocation3], 0
      %s24 = sshll.u32 %s3, 4
      %s25 = int_to_ptr.hbm [resolvable:$true] %s24
      %s26 = sshll.u32 [#allocation2], 4
      %s27 = int_to_ptr.vmem [resolvable:$true] %s26
      %32 = dma.hbm_to_vmem [thread:$0]  %s25, 16384, %s27, [#allocation3], 128, 128, 8
    $region17: #{tpu_custom_call.1} parent=1 // pred_fallthru
      _
    // Predicated region
    $region18: #{tpu_custom_call.1} parent=1 // pred_check
      _
    $region19: #{tpu_custom_call.1} parent=1 // pred_check_branch
      %34 = sbr.rel (0) target = $region21
    $region20: #{tpu_custom_call.1} parent=1 // pred_region
      _
    $region21: #{tpu_custom_call.1} parent=1 // pred_fallthru
      _
    // Predicated region
    $region22: #{tpu_custom_call.1} parent=1 // pred_check
      _
    $region23: #{tpu_custom_call.1} parent=1 // pred_check_branch
      %36 = sbr.rel (0) target = $region25
    $region24: #{tpu_custom_call.1} parent=1 // pred_region
      _
    $region25: #{tpu_custom_call.1} parent=1 // pred_fallthru
      _
    // Predicated region
    $region26: #{tpu_custom_call.1} parent=1 // pred_check
      _
    $region27: #{tpu_custom_call.1} parent=1 // pred_check_branch
      %38 = sbr.rel (0) target = $region29
    $region28: #{tpu_custom_call.1} parent=1 // pred_region
      _
    $region29: #{tpu_custom_call.1} parent=1 // pred_fallthru
      _
    // Predicated region
    $region30: #{tpu_custom_call.1} parent=1 // pred_check
      _
    $region31: #{tpu_custom_call.1} parent=1 // pred_check_branch
      %40 = sbr.rel (0) target = $region33
    $region32: #{tpu_custom_call.1} parent=1 // pred_region
      %42 = dma.done [#allocation3], 16384
    $region33: #{tpu_custom_call.1} parent=1 // pred_fallthru
      _
    %v44 = vld [vmem:[%s0] sm:$0xff]
    %v45 = vld [vmem:[%s0 + $0x8] sm:$0xff]
    %v46 = vld [vmem:[%s0 + $0x10] sm:$0xff]
    %v47 = vld [vmem:[%s0 + $0x18] sm:$0xff]
    %v48 = vld [vmem:[%s0 + $0x20] sm:$0xff]
    %v49 = vld [vmem:[%s0 + $0x28] sm:$0xff]
    %v50 = vld [vmem:[%s0 + $0x30] sm:$0xff]
    %v51 = vld [vmem:[%s0 + $0x38] sm:$0xff]
    %v52 = vld [vmem:[%s0 + $0x40] sm:$0xff]
    %v53 = vld [vmem:[%s0 + $0x48] sm:$0xff]
    %v54 = vld [vmem:[%s0 + $0x50] sm:$0xff]
    %v55 = vld [vmem:[%s0 + $0x58] sm:$0xff]
    %v56 = vld [vmem:[%s0 + $0x60] sm:$0xff]
    %v57 = vld [vmem:[%s0 + $0x68] sm:$0xff]
    %v58 = vld [vmem:[%s0 + $0x70] sm:$0xff]
    %v59 = vld [vmem:[%s0 + $0x78] sm:$0xff]
    %v60 = vld [vmem:[%s0 + $0x80] sm:$0xff]
    %v61 = vld [vmem:[%s0 + $0x88] sm:$0xff]
    %v62 = vld [vmem:[%s0 + $0x90] sm:$0xff]
    %v63 = vld [vmem:[%s0 + $0x98] sm:$0xff]
    %v64 = vld [vmem:[%s0 + $0xa0] sm:$0xff]
    %v65 = vld [vmem:[%s0 + $0xa8] sm:$0xff]
    %v66 = vld [vmem:[%s0 + $0xb0] sm:$0xff]
    %v67 = vld [vmem:[%s0 + $0xb8] sm:$0xff]
    %v68 = vld [vmem:[%s0 + $0xc0] sm:$0xff]
    %v69 = vld [vmem:[%s0 + $0xc8] sm:$0xff]
    %v70 = vld [vmem:[%s0 + $0xd0] sm:$0xff]
    %v71 = vld [vmem:[%s0 + $0xd8] sm:$0xff]
    %v72 = vld [vmem:[%s0 + $0xe0] sm:$0xff]
    %v73 = vld [vmem:[%s0 + $0xe8] sm:$0xff]
    %v74 = vld [vmem:[%s0 + $0xf0] sm:$0xff]
    %v75 = vld [vmem:[%s0 + $0xf8] sm:$0xff]
    %v76 = vpack.c.bf16 %v45, %v44
    %v77 = vpack.c.bf16 %v47, %v46
    %v78 = vpack.c.bf16 %v49, %v48
    %v79 = vpack.c.bf16 %v51, %v50
    %v80 = vpack.c.bf16 %v53, %v52
    %v81 = vpack.c.bf16 %v55, %v54
    %v82 = vpack.c.bf16 %v57, %v56
    %v83 = vpack.c.bf16 %v59, %v58
    %v84 = vpack.c.bf16 %v61, %v60
    %v85 = vpack.c.bf16 %v63, %v62
    %v86 = vpack.c.bf16 %v65, %v64
    %v87 = vpack.c.bf16 %v67, %v66
    %v88 = vpack.c.bf16 %v69, %v68
    %v89 = vpack.c.bf16 %v71, %v70
    %v90 = vpack.c.bf16 %v73, %v72
    %v91 = vpack.c.bf16 %v75, %v74
    %v92 = vld [vmem:[%s1] sm:$0xff]
    %v93 = vld [vmem:[%s1 + $0x8] sm:$0xff]
    %v94 = vld [vmem:[%s2] sm:$0x3]
    %v96 = vperm.slane %v94, 0
    %v97 = vperm.slane %v94, 1
    %v102 = vunpack.c.l.b16 %v92
    %v103 = vunpack.c.h.b16 %v92
    %v104 = vunpack.c.l.b16 %v93
    %v105 = vunpack.c.h.b16 %v93
    %v106 = vpack.c.b16 %v104, %v102
    %v107 = vpack.c.b16 %v105, %v103
    %vm110 = vcmask 130048
    %v112 = vsel %vm110, %v76, 0
    %v115 = vsel %vm110, %v77, 0
    %v118 = vsel %vm110, %v78, 0
    %v121 = vsel %vm110, %v79, 0
    %v124 = vsel %vm110, %v80, 0
    %v127 = vsel %vm110, %v81, 0
    %v130 = vsel %vm110, %v82, 0
    %v133 = vsel %vm110, %v83, 0
    %v136 = vsel %vm110, %v84, 0
    %v139 = vsel %vm110, %v85, 0
    %v142 = vsel %vm110, %v86, 0
    %v145 = vsel %vm110, %v87, 0
    %v148 = vsel %vm110, %v88, 0
    %v151 = vsel %vm110, %v89, 0
    %v154 = vsel %vm110, %v90, 0
    %v157 = vsel %vm110, %v91, 0
    %159 = vmatpush.bf16.msra.mxu0 0
    %160 = vmatpush.bf16.msra.mxu0 0
    %161 = vmatpush.bf16.msra.mxu0 0
    %162 = vmatpush.bf16.msra.mxu0 0
    %163 = vmatpush.bf16.msra.mxu0 0
    %164 = vmatpush.bf16.msra.mxu0 0
    %165 = vmatpush.bf16.msra.mxu0 0
    %166 = vmatpush.bf16.msra.mxu0 %v106
    %167 = vmatmul.bf16.gmra.mxu0 %v112
    %v168 = vpop.f32.mrf.mxu0
    %v169 = vadd.f32 %v96, %v168
    %v170 = vpop.f32.mrf.mxu0
    %v171 = vadd.f32 %v96, %v170
    %172 = vmatmul.bf16.gmra.mxu0 %v115
    %v173 = vpop.f32.mrf.mxu0
    %v174 = vadd.f32 %v96, %v173
    %v175 = vpop.f32.mrf.mxu0
    %v176 = vadd.f32 %v96, %v175
    %177 = vmatmul.bf16.gmra.mxu0 %v118
    %v178 = vpop.f32.mrf.mxu0
    %v179 = vadd.f32 %v96, %v178
    %v180 = vpop.f32.mrf.mxu0
    %v181 = vadd.f32 %v96, %v180
    %182 = vmatmul.bf16.gmra.mxu0 %v121
    %v183 = vpop.f32.mrf.mxu0
    %v184 = vadd.f32 %v96, %v183
    %v185 = vpop.f32.mrf.mxu0
    %v186 = vadd.f32 %v96, %v185
    %187 = vmatmul.bf16.gmra.mxu0 %v124
    %v188 = vpop.f32.mrf.mxu0
    %v189 = vadd.f32 %v96, %v188
    %v190 = vpop.f32.mrf.mxu0
    %v191 = vadd.f32 %v96, %v190
    %192 = vmatmul.bf16.gmra.mxu0 %v127
    %v193 = vpop.f32.mrf.mxu0
    %v194 = vadd.f32 %v96, %v193
    %v195 = vpop.f32.mrf.mxu0
    %v196 = vadd.f32 %v96, %v195
    %197 = vmatmul.bf16.gmra.mxu0 %v130
    %v198 = vpop.f32.mrf.mxu0
    %v199 = vadd.f32 %v96, %v198
    %v200 = vpop.f32.mrf.mxu0
    %v201 = vadd.f32 %v96, %v200
    %202 = vmatmul.bf16.gmra.mxu0 %v133
    %v203 = vpop.f32.mrf.mxu0
    %v204 = vadd.f32 %v96, %v203
    %v205 = vpop.f32.mrf.mxu0
    %v206 = vadd.f32 %v96, %v205
    %207 = vmatmul.bf16.gmra.mxu0 %v136
    %v208 = vpop.f32.mrf.mxu0
    %v209 = vadd.f32 %v96, %v208
    %v210 = vpop.f32.mrf.mxu0
    %v211 = vadd.f32 %v96, %v210
    %212 = vmatmul.bf16.gmra.mxu0 %v139
    %v213 = vpop.f32.mrf.mxu0
    %v214 = vadd.f32 %v96, %v213
    %v215 = vpop.f32.mrf.mxu0
    %v216 = vadd.f32 %v96, %v215
    %217 = vmatmul.bf16.gmra.mxu0 %v142
    %v218 = vpop.f32.mrf.mxu0
    %v219 = vadd.f32 %v96, %v218
    %v220 = vpop.f32.mrf.mxu0
    %v221 = vadd.f32 %v96, %v220
    %222 = vmatmul.bf16.gmra.mxu0 %v145
    %v223 = vpop.f32.mrf.mxu0
    %v224 = vadd.f32 %v96, %v223
    %v225 = vpop.f32.mrf.mxu0
    %v226 = vadd.f32 %v96, %v225
    %227 = vmatmul.bf16.gmra.mxu0 %v148
    %v228 = vpop.f32.mrf.mxu0
    %v229 = vadd.f32 %v96, %v228
    %v230 = vpop.f32.mrf.mxu0
    %v231 = vadd.f32 %v96, %v230
    %232 = vmatmul.bf16.gmra.mxu0 %v151
    %v233 = vpop.f32.mrf.mxu0
    %v234 = vadd.f32 %v96, %v233
    %v235 = vpop.f32.mrf.mxu0
    %v236 = vadd.f32 %v96, %v235
    %237 = vmatmul.bf16.gmra.mxu0 %v154
    %v238 = vpop.f32.mrf.mxu0
    %v239 = vadd.f32 %v96, %v238
    %v240 = vpop.f32.mrf.mxu0
    %v241 = vadd.f32 %v96, %v240
    %242 = vmatmul.bf16.gmra.mxu0 %v157
    %v243 = vpop.f32.mrf.mxu0
    %v244 = vadd.f32 %v96, %v243
    %v245 = vpop.f32.mrf.mxu0
    %v246 = vadd.f32 %v96, %v245
    %247 = vdwg.mxu0
    %248 = vmatpush.bf16.msra.mxu0 0
    %249 = vmatpush.bf16.msra.mxu0 0
    %250 = vmatpush.bf16.msra.mxu0 0
    %251 = vmatpush.bf16.msra.mxu0 0
    %252 = vmatpush.bf16.msra.mxu0 0
    %253 = vmatpush.bf16.msra.mxu0 0
    %254 = vmatpush.bf16.msra.mxu0 0
    %255 = vmatpush.bf16.msra.mxu0 %v107
    %256 = vmatmul.bf16.gmra.mxu0 %v112
    %v257 = vpop.f32.mrf.mxu0
    %v258 = vadd.f32 %v97, %v257
    %v259 = vpop.f32.mrf.mxu0
    %v260 = vadd.f32 %v97, %v259
    %261 = vmatmul.bf16.gmra.mxu0 %v115
    %v262 = vpop.f32.mrf.mxu0
    %v263 = vadd.f32 %v97, %v262
    %v264 = vpop.f32.mrf.mxu0
    %v265 = vadd.f32 %v97, %v264
    %266 = vmatmul.bf16.gmra.mxu0 %v118
    %v267 = vpop.f32.mrf.mxu0
    %v268 = vadd.f32 %v97, %v267
    %v269 = vpop.f32.mrf.mxu0
    %v270 = vadd.f32 %v97, %v269
    %271 = vmatmul.bf16.gmra.mxu0 %v121
    %v272 = vpop.f32.mrf.mxu0
    %v273 = vadd.f32 %v97, %v272
    %v274 = vpop.f32.mrf.mxu0
    %v275 = vadd.f32 %v97, %v274
    %276 = vmatmul.bf16.gmra.mxu0 %v124
    %v277 = vpop.f32.mrf.mxu0
    %v278 = vadd.f32 %v97, %v277
    %v279 = vpop.f32.mrf.mxu0
    %v280 = vadd.f32 %v97, %v279
    %281 = vmatmul.bf16.gmra.mxu0 %v127
    %v282 = vpop.f32.mrf.mxu0
    %v283 = vadd.f32 %v97, %v282
    %v284 = vpop.f32.mrf.mxu0
    %v285 = vadd.f32 %v97, %v284
    %286 = vmatmul.bf16.gmra.mxu0 %v130
    %v287 = vpop.f32.mrf.mxu0
    %v288 = vadd.f32 %v97, %v287
    %v289 = vpop.f32.mrf.mxu0
    %v290 = vadd.f32 %v97, %v289
    %291 = vmatmul.bf16.gmra.mxu0 %v133
    %v292 = vpop.f32.mrf.mxu0
    %v293 = vadd.f32 %v97, %v292
    %v294 = vpop.f32.mrf.mxu0
    %v295 = vadd.f32 %v97, %v294
    %296 = vmatmul.bf16.gmra.mxu0 %v136
    %v297 = vpop.f32.mrf.mxu0
    %v298 = vadd.f32 %v97, %v297
    %v299 = vpop.f32.mrf.mxu0
    %v300 = vadd.f32 %v97, %v299
    %301 = vmatmul.bf16.gmra.mxu0 %v139
    %v302 = vpop.f32.mrf.mxu0
    %v303 = vadd.f32 %v97, %v302
    %v304 = vpop.f32.mrf.mxu0
    %v305 = vadd.f32 %v97, %v304
    %306 = vmatmul.bf16.gmra.mxu0 %v142
    %v307 = vpop.f32.mrf.mxu0
    %v308 = vadd.f32 %v97, %v307
    %v309 = vpop.f32.mrf.mxu0
    %v310 = vadd.f32 %v97, %v309
    %311 = vmatmul.bf16.gmra.mxu0 %v145
    %v312 = vpop.f32.mrf.mxu0
    %v313 = vadd.f32 %v97, %v312
    %v314 = vpop.f32.mrf.mxu0
    %v315 = vadd.f32 %v97, %v314
    %316 = vmatmul.bf16.gmra.mxu0 %v148
    %v317 = vpop.f32.mrf.mxu0
    %v318 = vadd.f32 %v97, %v317
    %v319 = vpop.f32.mrf.mxu0
    %v320 = vadd.f32 %v97, %v319
    %321 = vmatmul.bf16.gmra.mxu0 %v151
    %v322 = vpop.f32.mrf.mxu0
    %v323 = vadd.f32 %v97, %v322
    %v324 = vpop.f32.mrf.mxu0
    %v325 = vadd.f32 %v97, %v324
    %326 = vmatmul.bf16.gmra.mxu0 %v154
    %v327 = vpop.f32.mrf.mxu0
    %v328 = vadd.f32 %v97, %v327
    %v329 = vpop.f32.mrf.mxu0
    %v330 = vadd.f32 %v97, %v329
    %331 = vmatmul.bf16.gmra.mxu0 %v157
    %v332 = vpop.f32.mrf.mxu0
    %v333 = vadd.f32 %v97, %v332
    %v334 = vpop.f32.mrf.mxu0
    %v335 = vadd.f32 %v97, %v334
    %336 = vdwg.mxu0
    %v337 = vmax.f32 %v169, 0.0
    %v338 = vmax.f32 %v258, 0.0
    %v339 = vmax.f32 %v171, 0.0
    %v340 = vmax.f32 %v260, 0.0
    %v341 = vmax.f32 %v174, 0.0
    %v342 = vmax.f32 %v263, 0.0
    %v343 = vmax.f32 %v176, 0.0
    %v344 = vmax.f32 %v265, 0.0
    %v345 = vmax.f32 %v179, 0.0
    %v346 = vmax.f32 %v268, 0.0
    %v347 = vmax.f32 %v181, 0.0
    %v348 = vmax.f32 %v270, 0.0
    %v349 = vmax.f32 %v184, 0.0
    %v350 = vmax.f32 %v273, 0.0
    %v351 = vmax.f32 %v186, 0.0
    %v352 = vmax.f32 %v275, 0.0
    %v353 = vmax.f32 %v189, 0.0
    %v354 = vmax.f32 %v278, 0.0
    %v355 = vmax.f32 %v191, 0.0
    %v356 = vmax.f32 %v280, 0.0
    %v357 = vmax.f32 %v194, 0.0
    %v358 = vmax.f32 %v283, 0.0
    %v359 = vmax.f32 %v196, 0.0
    %v360 = vmax.f32 %v285, 0.0
    %v361 = vmax.f32 %v199, 0.0
    %v362 = vmax.f32 %v288, 0.0
    %v363 = vmax.f32 %v201, 0.0
    %v364 = vmax.f32 %v290, 0.0
    %v365 = vmax.f32 %v204, 0.0
    %v366 = vmax.f32 %v293, 0.0
    %v367 = vmax.f32 %v206, 0.0
    %v368 = vmax.f32 %v295, 0.0
    %v369 = vmax.f32 %v209, 0.0
    %v370 = vmax.f32 %v298, 0.0
    %v371 = vmax.f32 %v211, 0.0
    %v372 = vmax.f32 %v300, 0.0
    %v373 = vmax.f32 %v214, 0.0
    %v374 = vmax.f32 %v303, 0.0
    %v375 = vmax.f32 %v216, 0.0
    %v376 = vmax.f32 %v305, 0.0
    %v377 = vmax.f32 %v219, 0.0
    %v378 = vmax.f32 %v308, 0.0
    %v379 = vmax.f32 %v221, 0.0
    %v380 = vmax.f32 %v310, 0.0
    %v381 = vmax.f32 %v224, 0.0
    %v382 = vmax.f32 %v313, 0.0
    %v383 = vmax.f32 %v226, 0.0
    %v384 = vmax.f32 %v315, 0.0
    %v385 = vmax.f32 %v229, 0.0
    %v386 = vmax.f32 %v318, 0.0
    %v387 = vmax.f32 %v231, 0.0
    %v388 = vmax.f32 %v320, 0.0
    %v389 = vmax.f32 %v234, 0.0
    %v390 = vmax.f32 %v323, 0.0
    %v391 = vmax.f32 %v236, 0.0
    %v392 = vmax.f32 %v325, 0.0
    %v393 = vmax.f32 %v239, 0.0
    %v394 = vmax.f32 %v328, 0.0
    %v395 = vmax.f32 %v241, 0.0
    %v396 = vmax.f32 %v330, 0.0
    %v397 = vmax.f32 %v244, 0.0
    %v398 = vmax.f32 %v333, 0.0
    %v399 = vmax.f32 %v246, 0.0
    %v400 = vmax.f32 %v335, 0.0
    %v401 = vpack.c.bf16 %v339, %v337
    %v402 = vpack.c.bf16 %v340, %v338
    %v403 = vpack.c.bf16 %v343, %v341
    %v404 = vpack.c.bf16 %v344, %v342
    %v405 = vpack.c.bf16 %v347, %v345
    %v406 = vpack.c.bf16 %v348, %v346
    %v407 = vpack.c.bf16 %v351, %v349
    %v408 = vpack.c.bf16 %v352, %v350
    %v409 = vpack.c.bf16 %v355, %v353
    %v410 = vpack.c.bf16 %v356, %v354
    %v411 = vpack.c.bf16 %v359, %v357
    %v412 = vpack.c.bf16 %v360, %v358
    %v413 = vpack.c.bf16 %v363, %v361
    %v414 = vpack.c.bf16 %v364, %v362
    %v415 = vpack.c.bf16 %v367, %v365
    %v416 = vpack.c.bf16 %v368, %v366
    %v417 = vpack.c.bf16 %v371, %v369
    %v418 = vpack.c.bf16 %v372, %v370
    %v419 = vpack.c.bf16 %v375, %v373
    %v420 = vpack.c.bf16 %v376, %v374
    %v421 = vpack.c.bf16 %v379, %v377
    %v422 = vpack.c.bf16 %v380, %v378
    %v423 = vpack.c.bf16 %v383, %v381
    %v424 = vpack.c.bf16 %v384, %v382
    %v425 = vpack.c.bf16 %v387, %v385
    %v426 = vpack.c.bf16 %v388, %v386
    %v427 = vpack.c.bf16 %v391, %v389
    %v428 = vpack.c.bf16 %v392, %v390
    %v429 = vpack.c.bf16 %v395, %v393
    %v430 = vpack.c.bf16 %v396, %v394
    %v431 = vpack.c.bf16 %v399, %v397
    %v432 = vpack.c.bf16 %v400, %v398
    %v433 = vld [vmem:[#allocation2] sm:$0xff]
    %v434 = vld [vmem:[#allocation2 + $0x8] sm:$0xff]
    %v435 = vld [vmem:[#allocation2 + $0x10] sm:$0xff]
    %v436 = vld [vmem:[#allocation2 + $0x18] sm:$0xff]
    %v437 = vld [vmem:[#allocation2 + $0x20] sm:$0xff]
    %v438 = vld [vmem:[#allocation2 + $0x28] sm:$0xff]
    %v439 = vld [vmem:[#allocation2 + $0x30] sm:$0xff]
    %v440 = vld [vmem:[#allocation2 + $0x38] sm:$0xff]
    %v441 = vld [vmem:[#allocation2 + $0x40] sm:$0xff]
    %v442 = vld [vmem:[#allocation2 + $0x48] sm:$0xff]
    %v443 = vld [vmem:[#allocation2 + $0x50] sm:$0xff]
    %v444 = vld [vmem:[#allocation2 + $0x58] sm:$0xff]
    %v445 = vld [vmem:[#allocation2 + $0x60] sm:$0xff]
    %v446 = vld [vmem:[#allocation2 + $0x68] sm:$0xff]
    %v447 = vld [vmem:[#allocation2 + $0x70] sm:$0xff]
    %v448 = vld [vmem:[#allocation2 + $0x78] sm:$0xff]
    %v449 = vld [vmem:[#allocation2 + $0x80] sm:$0xff]
    %v450 = vld [vmem:[#allocation2 + $0x88] sm:$0xff]
    %v451 = vld [vmem:[#allocation2 + $0x90] sm:$0xff]
    %v452 = vld [vmem:[#allocation2 + $0x98] sm:$0xff]
    %v453 = vld [vmem:[#allocation2 + $0xa0] sm:$0xff]
    %v454 = vld [vmem:[#allocation2 + $0xa8] sm:$0xff]
    %v455 = vld [vmem:[#allocation2 + $0xb0] sm:$0xff]
    %v456 = vld [vmem:[#allocation2 + $0xb8] sm:$0xff]
    %v457 = vld [vmem:[#allocation2 + $0xc0] sm:$0xff]
    %v458 = vld [vmem:[#allocation2 + $0xc8] sm:$0xff]
    %v459 = vld [vmem:[#allocation2 + $0xd0] sm:$0xff]
    %v460 = vld [vmem:[#allocation2 + $0xd8] sm:$0xff]
    %v461 = vld [vmem:[#allocation2 + $0xe0] sm:$0xff]
    %v462 = vld [vmem:[#allocation2 + $0xe8] sm:$0xff]
    %v463 = vld [vmem:[#allocation2 + $0xf0] sm:$0xff]
    %v464 = vld [vmem:[#allocation2 + $0xf8] sm:$0xff]
    %v465 = vld [vmem:[%s4] sm:$0x3]
    %v467 = vperm.slane %v465, 0
    %v468 = vperm.slane %v465, 1
    %v503 = vunpack.c.l.b16 %v433
    %v504 = vunpack.c.h.b16 %v433
    %v505 = vunpack.c.l.b16 %v434
    %v506 = vunpack.c.h.b16 %v434
    %v507 = vunpack.c.l.b16 %v435
    %v508 = vunpack.c.h.b16 %v435
    %v509 = vunpack.c.l.b16 %v436
    %v510 = vunpack.c.h.b16 %v436
    %v511 = vunpack.c.l.b16 %v437
    %v512 = vunpack.c.h.b16 %v437
    %v513 = vunpack.c.l.b16 %v438
    %v514 = vunpack.c.h.b16 %v438
    %v515 = vunpack.c.l.b16 %v439
    %v516 = vunpack.c.h.b16 %v439
    %v517 = vunpack.c.l.b16 %v440
    %v518 = vunpack.c.h.b16 %v440
    %v519 = vunpack.c.l.b16 %v441
    %v520 = vunpack.c.h.b16 %v441
    %v521 = vunpack.c.l.b16 %v442
    %v522 = vunpack.c.h.b16 %v442
    %v523 = vunpack.c.l.b16 %v443
    %v524 = vunpack.c.h.b16 %v443
    %v525 = vunpack.c.l.b16 %v444
    %v526 = vunpack.c.h.b16 %v444
    %v527 = vunpack.c.l.b16 %v445
    %v528 = vunpack.c.h.b16 %v445
    %v529 = vunpack.c.l.b16 %v446
    %v530 = vunpack.c.h.b16 %v446
    %v531 = vunpack.c.l.b16 %v447
    %v532 = vunpack.c.h.b16 %v447
    %v533 = vunpack.c.l.b16 %v448
    %v534 = vunpack.c.h.b16 %v448
    %v535 = vunpack.c.l.b16 %v449
    %v536 = vunpack.c.h.b16 %v449
    %v537 = vunpack.c.l.b16 %v450
    %v538 = vunpack.c.h.b16 %v450
    %v539 = vunpack.c.l.b16 %v451
    %v540 = vunpack.c.h.b16 %v451
    %v541 = vunpack.c.l.b16 %v452
    %v542 = vunpack.c.h.b16 %v452
    %v543 = vunpack.c.l.b16 %v453
    %v544 = vunpack.c.h.b16 %v453
    %v545 = vunpack.c.l.b16 %v454
    %v546 = vunpack.c.h.b16 %v454
    %v547 = vunpack.c.l.b16 %v455
    %v548 = vunpack.c.h.b16 %v455
    %v549 = vunpack.c.l.b16 %v456
    %v550 = vunpack.c.h.b16 %v456
    %v551 = vunpack.c.l.b16 %v457
    %v552 = vunpack.c.h.b16 %v457
    %v553 = vunpack.c.l.b16 %v458
    %v554 = vunpack.c.h.b16 %v458
    %v555 = vunpack.c.l.b16 %v459
    %v556 = vunpack.c.h.b16 %v459
    %v557 = vunpack.c.l.b16 %v460
    %v558 = vunpack.c.h.b16 %v460
    %v559 = vunpack.c.l.b16 %v461
    %v560 = vunpack.c.h.b16 %v461
    %v561 = vunpack.c.l.b16 %v462
    %v562 = vunpack.c.h.b16 %v462
    %v563 = vunpack.c.l.b16 %v463
    %v564 = vunpack.c.h.b16 %v463
    %v565 = vunpack.c.l.b16 %v464
    %v566 = vunpack.c.h.b16 %v464
    %v567 = vpack.c.b16 %v505, %v503
    %v568 = vpack.c.b16 %v506, %v504
    %v569 = vpack.c.b16 %v509, %v507
    %v570 = vpack.c.b16 %v510, %v508
    %v571 = vpack.c.b16 %v513, %v511
    %v572 = vpack.c.b16 %v514, %v512
    %v573 = vpack.c.b16 %v517, %v515
    %v574 = vpack.c.b16 %v518, %v516
    %v575 = vpack.c.b16 %v521, %v519
    %v576 = vpack.c.b16 %v522, %v520
    %v577 = vpack.c.b16 %v525, %v523
    %v578 = vpack.c.b16 %v526, %v524
    %v579 = vpack.c.b16 %v529, %v527
    %v580 = vpack.c.b16 %v530, %v528
    %v581 = vpack.c.b16 %v533, %v531
    %v582 = vpack.c.b16 %v534, %v532
    %v583 = vpack.c.b16 %v537, %v535
    %v584 = vpack.c.b16 %v538, %v536
    %v585 = vpack.c.b16 %v541, %v539
    %v586 = vpack.c.b16 %v542, %v540
    %v587 = vpack.c.b16 %v545, %v543
    %v588 = vpack.c.b16 %v546, %v544
    %v589 = vpack.c.b16 %v549, %v547
    %v590 = vpack.c.b16 %v550, %v548
    %v591 = vpack.c.b16 %v553, %v551
    %v592 = vpack.c.b16 %v554, %v552
    %v593 = vpack.c.b16 %v557, %v555
    %v594 = vpack.c.b16 %v558, %v556
    %v595 = vpack.c.b16 %v561, %v559
    %v596 = vpack.c.b16 %v562, %v560
    %v597 = vpack.c.b16 %v565, %v563
    %v598 = vpack.c.b16 %v566, %v564
    %631 = vmatpush.bf16.msra.mxu0 %v581
    %632 = vmatpush.bf16.msra.mxu0 %v579
    %633 = vmatpush.bf16.msra.mxu0 %v577
    %634 = vmatpush.bf16.msra.mxu0 %v575
    %635 = vmatpush.bf16.msra.mxu0 %v573
    %636 = vmatpush.bf16.msra.mxu0 %v571
    %637 = vmatpush.bf16.msra.mxu0 %v569
    %638 = vmatpush.bf16.msra.mxu0 %v567
    %639 = vmatmul.bf16.gmra.mxu0 %v401
    %v640 = vpop.f32.mrf.mxu0
    %v641 = vadd.f32 %v467, %v640
    %v642 = vpop.f32.mrf.mxu0
    %v643 = vadd.f32 %v467, %v642
    %644 = vmatmul.bf16.gmra.mxu0 %v403
    %v645 = vpop.f32.mrf.mxu0
    %v646 = vadd.f32 %v467, %v645
    %v647 = vpop.f32.mrf.mxu0
    %v648 = vadd.f32 %v467, %v647
    %649 = vmatmul.bf16.gmra.mxu0 %v405
    %v650 = vpop.f32.mrf.mxu0
    %v651 = vadd.f32 %v467, %v650
    %v652 = vpop.f32.mrf.mxu0
    %v653 = vadd.f32 %v467, %v652
    %654 = vmatmul.bf16.gmra.mxu0 %v407
    %v655 = vpop.f32.mrf.mxu0
    %v656 = vadd.f32 %v467, %v655
    %v657 = vpop.f32.mrf.mxu0
    %v658 = vadd.f32 %v467, %v657
    %659 = vmatmul.bf16.gmra.mxu0 %v409
    %v660 = vpop.f32.mrf.mxu0
    %v661 = vadd.f32 %v467, %v660
    %v662 = vpop.f32.mrf.mxu0
    %v663 = vadd.f32 %v467, %v662
    %664 = vmatmul.bf16.gmra.mxu0 %v411
    %v665 = vpop.f32.mrf.mxu0
    %v666 = vadd.f32 %v467, %v665
    %v667 = vpop.f32.mrf.mxu0
    %v668 = vadd.f32 %v467, %v667
    %669 = vmatmul.bf16.gmra.mxu0 %v413
    %v670 = vpop.f32.mrf.mxu0
    %v671 = vadd.f32 %v467, %v670
    %v672 = vpop.f32.mrf.mxu0
    %v673 = vadd.f32 %v467, %v672
    %674 = vmatmul.bf16.gmra.mxu0 %v415
    %v675 = vpop.f32.mrf.mxu0
    %v676 = vadd.f32 %v467, %v675
    %v677 = vpop.f32.mrf.mxu0
    %v678 = vadd.f32 %v467, %v677
    %679 = vmatmul.bf16.gmra.mxu0 %v417
    %v680 = vpop.f32.mrf.mxu0
    %v681 = vadd.f32 %v467, %v680
    %v682 = vpop.f32.mrf.mxu0
    %v683 = vadd.f32 %v467, %v682
    %684 = vmatmul.bf16.gmra.mxu0 %v419
    %v685 = vpop.f32.mrf.mxu0
    %v686 = vadd.f32 %v467, %v685
    %v687 = vpop.f32.mrf.mxu0
    %v688 = vadd.f32 %v467, %v687
    %689 = vmatmul.bf16.gmra.mxu0 %v421
    %v690 = vpop.f32.mrf.mxu0
    %v691 = vadd.f32 %v467, %v690
    %v692 = vpop.f32.mrf.mxu0
    %v693 = vadd.f32 %v467, %v692
    %694 = vmatmul.bf16.gmra.mxu0 %v423
    %v695 = vpop.f32.mrf.mxu0
    %v696 = vadd.f32 %v467, %v695
    %v697 = vpop.f32.mrf.mxu0
    %v698 = vadd.f32 %v467, %v697
    %699 = vmatmul.bf16.gmra.mxu0 %v425
    %v700 = vpop.f32.mrf.mxu0
    %v701 = vadd.f32 %v467, %v700
    %v702 = vpop.f32.mrf.mxu0
    %v703 = vadd.f32 %v467, %v702
    %704 = vmatmul.bf16.gmra.mxu0 %v427
    %v705 = vpop.f32.mrf.mxu0
    %v706 = vadd.f32 %v467, %v705
    %v707 = vpop.f32.mrf.mxu0
    %v708 = vadd.f32 %v467, %v707
    %709 = vmatmul.bf16.gmra.mxu0 %v429
    %v710 = vpop.f32.mrf.mxu0
    %v711 = vadd.f32 %v467, %v710
    %v712 = vpop.f32.mrf.mxu0
    %v713 = vadd.f32 %v467, %v712
    %714 = vmatmul.bf16.gmra.mxu0 %v431
    %v715 = vpop.f32.mrf.mxu0
    %v716 = vadd.f32 %v467, %v715
    %v717 = vpop.f32.mrf.mxu0
    %v718 = vadd.f32 %v467, %v717
    %719 = vdwg.mxu0
    %720 = vmatpush.bf16.msra.mxu0 %v597
    %721 = vmatpush.bf16.msra.mxu0 %v595
    %722 = vmatpush.bf16.msra.mxu0 %v593
    %723 = vmatpush.bf16.msra.mxu0 %v591
    %724 = vmatpush.bf16.msra.mxu0 %v589
    %725 = vmatpush.bf16.msra.mxu0 %v587
    %726 = vmatpush.bf16.msra.mxu0 %v585
    %727 = vmatpush.bf16.msra.mxu0 %v583
    %728 = vmatmul.bf16.gmra.mxu0 %v402
    %v729 = vpop.f32.mrf.mxu0
    %v730 = vadd.f32 %v641, %v729
    %v731 = vpop.f32.mrf.mxu0
    %v732 = vadd.f32 %v643, %v731
    %733 = vmatmul.bf16.gmra.mxu0 %v404
    %v734 = vpop.f32.mrf.mxu0
    %v735 = vadd.f32 %v646, %v734
    %v736 = vpop.f32.mrf.mxu0
    %v737 = vadd.f32 %v648, %v736
    %738 = vmatmul.bf16.gmra.mxu0 %v406
    %v739 = vpop.f32.mrf.mxu0
    %v740 = vadd.f32 %v651, %v739
    %v741 = vpop.f32.mrf.mxu0
    %v742 = vadd.f32 %v653, %v741
    %743 = vmatmul.bf16.gmra.mxu0 %v408
    %v744 = vpop.f32.mrf.mxu0
    %v745 = vadd.f32 %v656, %v744
    %v746 = vpop.f32.mrf.mxu0
    %v747 = vadd.f32 %v658, %v746
    %748 = vmatmul.bf16.gmra.mxu0 %v410
    %v749 = vpop.f32.mrf.mxu0
    %v750 = vadd.f32 %v661, %v749
    %v751 = vpop.f32.mrf.mxu0
    %v752 = vadd.f32 %v663, %v751
    %753 = vmatmul.bf16.gmra.mxu0 %v412
    %v754 = vpop.f32.mrf.mxu0
    %v755 = vadd.f32 %v666, %v754
    %v756 = vpop.f32.mrf.mxu0
    %v757 = vadd.f32 %v668, %v756
    %758 = vmatmul.bf16.gmra.mxu0 %v414
    %v759 = vpop.f32.mrf.mxu0
    %v760 = vadd.f32 %v671, %v759
    %v761 = vpop.f32.mrf.mxu0
    %v762 = vadd.f32 %v673, %v761
    %763 = vmatmul.bf16.gmra.mxu0 %v416
    %v764 = vpop.f32.mrf.mxu0
    %v765 = vadd.f32 %v676, %v764
    %v766 = vpop.f32.mrf.mxu0
    %v767 = vadd.f32 %v678, %v766
    %768 = vmatmul.bf16.gmra.mxu0 %v418
    %v769 = vpop.f32.mrf.mxu0
    %v770 = vadd.f32 %v681, %v769
    %v771 = vpop.f32.mrf.mxu0
    %v772 = vadd.f32 %v683, %v771
    %773 = vmatmul.bf16.gmra.mxu0 %v420
    %v774 = vpop.f32.mrf.mxu0
    %v775 = vadd.f32 %v686, %v774
    %v776 = vpop.f32.mrf.mxu0
    %v777 = vadd.f32 %v688, %v776
    %778 = vmatmul.bf16.gmra.mxu0 %v422
    %v779 = vpop.f32.mrf.mxu0
    %v780 = vadd.f32 %v691, %v779
    %v781 = vpop.f32.mrf.mxu0
    %v782 = vadd.f32 %v693, %v781
    %783 = vmatmul.bf16.gmra.mxu0 %v424
    %v784 = vpop.f32.mrf.mxu0
    %v785 = vadd.f32 %v696, %v784
    %v786 = vpop.f32.mrf.mxu0
    %v787 = vadd.f32 %v698, %v786
    %788 = vmatmul.bf16.gmra.mxu0 %v426
    %v789 = vpop.f32.mrf.mxu0
    %v790 = vadd.f32 %v701, %v789
    %v791 = vpop.f32.mrf.mxu0
    %v792 = vadd.f32 %v703, %v791
    %793 = vmatmul.bf16.gmra.mxu0 %v428
    %v794 = vpop.f32.mrf.mxu0
    %v795 = vadd.f32 %v706, %v794
    %v796 = vpop.f32.mrf.mxu0
    %v797 = vadd.f32 %v708, %v796
    %798 = vmatmul.bf16.gmra.mxu0 %v430
    %v799 = vpop.f32.mrf.mxu0
    %v800 = vadd.f32 %v711, %v799
    %v801 = vpop.f32.mrf.mxu0
    %v802 = vadd.f32 %v713, %v801
    %803 = vmatmul.bf16.gmra.mxu0 %v432
    %v804 = vpop.f32.mrf.mxu0
    %v805 = vadd.f32 %v716, %v804
    %v806 = vpop.f32.mrf.mxu0
    %v807 = vadd.f32 %v718, %v806
    %808 = vdwg.mxu0
    %809 = vmatpush.bf16.msra.mxu0 %v582
    %810 = vmatpush.bf16.msra.mxu0 %v580
    %811 = vmatpush.bf16.msra.mxu0 %v578
    %812 = vmatpush.bf16.msra.mxu0 %v576
    %813 = vmatpush.bf16.msra.mxu0 %v574
    %814 = vmatpush.bf16.msra.mxu0 %v572
    %815 = vmatpush.bf16.msra.mxu0 %v570
    %816 = vmatpush.bf16.msra.mxu0 %v568
    %817 = vmatmul.bf16.gmra.mxu0 %v401
    %v818 = vpop.f32.mrf.mxu0
    %v819 = vadd.f32 %v468, %v818
    %v820 = vpop.f32.mrf.mxu0
    %v821 = vadd.f32 %v468, %v820
    %822 = vmatmul.bf16.gmra.mxu0 %v403
    %v823 = vpop.f32.mrf.mxu0
    %v824 = vadd.f32 %v468, %v823
    %v825 = vpop.f32.mrf.mxu0
    %v826 = vadd.f32 %v468, %v825
    %827 = vmatmul.bf16.gmra.mxu0 %v405
    %v828 = vpop.f32.mrf.mxu0
    %v829 = vadd.f32 %v468, %v828
    %v830 = vpop.f32.mrf.mxu0
    %v831 = vadd.f32 %v468, %v830
    %832 = vmatmul.bf16.gmra.mxu0 %v407
    %v833 = vpop.f32.mrf.mxu0
    %v834 = vadd.f32 %v468, %v833
    %v835 = vpop.f32.mrf.mxu0
    %v836 = vadd.f32 %v468, %v835
    %837 = vmatmul.bf16.gmra.mxu0 %v409
    %v838 = vpop.f32.mrf.mxu0
    %v839 = vadd.f32 %v468, %v838
    %v840 = vpop.f32.mrf.mxu0
    %v841 = vadd.f32 %v468, %v840
    %842 = vmatmul.bf16.gmra.mxu0 %v411
    %v843 = vpop.f32.mrf.mxu0
    %v844 = vadd.f32 %v468, %v843
    %v845 = vpop.f32.mrf.mxu0
    %v846 = vadd.f32 %v468, %v845
    %847 = vmatmul.bf16.gmra.mxu0 %v413
    %v848 = vpop.f32.mrf.mxu0
    %v849 = vadd.f32 %v468, %v848
    %v850 = vpop.f32.mrf.mxu0
    %v851 = vadd.f32 %v468, %v850
    %852 = vmatmul.bf16.gmra.mxu0 %v415
    %v853 = vpop.f32.mrf.mxu0
    %v854 = vadd.f32 %v468, %v853
    %v855 = vpop.f32.mrf.mxu0
    %v856 = vadd.f32 %v468, %v855
    %857 = vmatmul.bf16.gmra.mxu0 %v417
    %v858 = vpop.f32.mrf.mxu0
    %v859 = vadd.f32 %v468, %v858
    %v860 = vpop.f32.mrf.mxu0
    %v861 = vadd.f32 %v468, %v860
    %862 = vmatmul.bf16.gmra.mxu0 %v419
    %v863 = vpop.f32.mrf.mxu0
    %v864 = vadd.f32 %v468, %v863
    %v865 = vpop.f32.mrf.mxu0
    %v866 = vadd.f32 %v468, %v865
    %867 = vmatmul.bf16.gmra.mxu0 %v421
    %v868 = vpop.f32.mrf.mxu0
    %v869 = vadd.f32 %v468, %v868
    %v870 = vpop.f32.mrf.mxu0
    %v871 = vadd.f32 %v468, %v870
    %872 = vmatmul.bf16.gmra.mxu0 %v423
    %v873 = vpop.f32.mrf.mxu0
    %v874 = vadd.f32 %v468, %v873
    %v875 = vpop.f32.mrf.mxu0
    %v876 = vadd.f32 %v468, %v875
    %877 = vmatmul.bf16.gmra.mxu0 %v425
    %v878 = vpop.f32.mrf.mxu0
    %v879 = vadd.f32 %v468, %v878
    %v880 = vpop.f32.mrf.mxu0
    %v881 = vadd.f32 %v468, %v880
    %882 = vmatmul.bf16.gmra.mxu0 %v427
    %v883 = vpop.f32.mrf.mxu0
    %v884 = vadd.f32 %v468, %v883
    %v885 = vpop.f32.mrf.mxu0
    %v886 = vadd.f32 %v468, %v885
    %887 = vmatmul.bf16.gmra.mxu0 %v429
    %v888 = vpop.f32.mrf.mxu0
    %v889 = vadd.f32 %v468, %v888
    %v890 = vpop.f32.mrf.mxu0
    %v891 = vadd.f32 %v468, %v890
    %892 = vmatmul.bf16.gmra.mxu0 %v431
    %v893 = vpop.f32.mrf.mxu0
    %v894 = vadd.f32 %v468, %v893
    %v895 = vpop.f32.mrf.mxu0
    %v896 = vadd.f32 %v468, %v895
    %897 = vdwg.mxu0
    %898 = vmatpush.bf16.msra.mxu0 %v598
    %899 = vmatpush.bf16.msra.mxu0 %v596
    %900 = vmatpush.bf16.msra.mxu0 %v594
    %901 = vmatpush.bf16.msra.mxu0 %v592
    %902 = vmatpush.bf16.msra.mxu0 %v590
    %903 = vmatpush.bf16.msra.mxu0 %v588
    %904 = vmatpush.bf16.msra.mxu0 %v586
    %905 = vmatpush.bf16.msra.mxu0 %v584
    %906 = vmatmul.bf16.gmra.mxu0 %v402
    %v907 = vpop.f32.mrf.mxu0
    %v908 = vadd.f32 %v819, %v907
    %v909 = vpop.f32.mrf.mxu0
    %v910 = vadd.f32 %v821, %v909
    %911 = vmatmul.bf16.gmra.mxu0 %v404
    %v912 = vpop.f32.mrf.mxu0
    %v913 = vadd.f32 %v824, %v912
    %v914 = vpop.f32.mrf.mxu0
    %v915 = vadd.f32 %v826, %v914
    %916 = vmatmul.bf16.gmra.mxu0 %v406
    %v917 = vpop.f32.mrf.mxu0
    %v918 = vadd.f32 %v829, %v917
    %v919 = vpop.f32.mrf.mxu0
    %v920 = vadd.f32 %v831, %v919
    %921 = vmatmul.bf16.gmra.mxu0 %v408
    %v922 = vpop.f32.mrf.mxu0
    %v923 = vadd.f32 %v834, %v922
    %v924 = vpop.f32.mrf.mxu0
    %v925 = vadd.f32 %v836, %v924
    %926 = vmatmul.bf16.gmra.mxu0 %v410
    %v927 = vpop.f32.mrf.mxu0
    %v928 = vadd.f32 %v839, %v927
    %v929 = vpop.f32.mrf.mxu0
    %v930 = vadd.f32 %v841, %v929
    %931 = vmatmul.bf16.gmra.mxu0 %v412
    %v932 = vpop.f32.mrf.mxu0
    %v933 = vadd.f32 %v844, %v932
    %v934 = vpop.f32.mrf.mxu0
    %v935 = vadd.f32 %v846, %v934
    %936 = vmatmul.bf16.gmra.mxu0 %v414
    %v937 = vpop.f32.mrf.mxu0
    %v938 = vadd.f32 %v849, %v937
    %v939 = vpop.f32.mrf.mxu0
    %v940 = vadd.f32 %v851, %v939
    %941 = vmatmul.bf16.gmra.mxu0 %v416
    %v942 = vpop.f32.mrf.mxu0
    %v943 = vadd.f32 %v854, %v942
    %v944 = vpop.f32.mrf.mxu0
    %v945 = vadd.f32 %v856, %v944
    %946 = vmatmul.bf16.gmra.mxu0 %v418
    %v947 = vpop.f32.mrf.mxu0
    %v948 = vadd.f32 %v859, %v947
    %v949 = vpop.f32.mrf.mxu0
    %v950 = vadd.f32 %v861, %v949
    %951 = vmatmul.bf16.gmra.mxu0 %v420
    %v952 = vpop.f32.mrf.mxu0
    %v953 = vadd.f32 %v864, %v952
    %v954 = vpop.f32.mrf.mxu0
    %v955 = vadd.f32 %v866, %v954
    %956 = vmatmul.bf16.gmra.mxu0 %v422
    %v957 = vpop.f32.mrf.mxu0
    %v958 = vadd.f32 %v869, %v957
    %v959 = vpop.f32.mrf.mxu0
    %v960 = vadd.f32 %v871, %v959
    %961 = vmatmul.bf16.gmra.mxu0 %v424
    %v962 = vpop.f32.mrf.mxu0
    %v963 = vadd.f32 %v874, %v962
    %v964 = vpop.f32.mrf.mxu0
    %v965 = vadd.f32 %v876, %v964
    %966 = vmatmul.bf16.gmra.mxu0 %v426
    %v967 = vpop.f32.mrf.mxu0
    %v968 = vadd.f32 %v879, %v967
    %v969 = vpop.f32.mrf.mxu0
    %v970 = vadd.f32 %v881, %v969
    %971 = vmatmul.bf16.gmra.mxu0 %v428
    %v972 = vpop.f32.mrf.mxu0
    %v973 = vadd.f32 %v884, %v972
    %v974 = vpop.f32.mrf.mxu0
    %v975 = vadd.f32 %v886, %v974
    %976 = vmatmul.bf16.gmra.mxu0 %v430
    %v977 = vpop.f32.mrf.mxu0
    %v978 = vadd.f32 %v889, %v977
    %v979 = vpop.f32.mrf.mxu0
    %v980 = vadd.f32 %v891, %v979
    %981 = vmatmul.bf16.gmra.mxu0 %v432
    %v982 = vpop.f32.mrf.mxu0
    %v983 = vadd.f32 %v894, %v982
    %v984 = vpop.f32.mrf.mxu0
    %v985 = vadd.f32 %v896, %v984
    %986 = vdwg.mxu0
    %v987 = vmax.f32 %v730, 0.0
    %v988 = vmax.f32 %v908, 0.0
    %v989 = vmax.f32 %v732, 0.0
    %v990 = vmax.f32 %v910, 0.0
    %v991 = vmax.f32 %v735, 0.0
    %v992 = vmax.f32 %v913, 0.0
    %v993 = vmax.f32 %v737, 0.0
    %v994 = vmax.f32 %v915, 0.0
    %v995 = vmax.f32 %v740, 0.0
    %v996 = vmax.f32 %v918, 0.0
    %v997 = vmax.f32 %v742, 0.0
    %v998 = vmax.f32 %v920, 0.0
    %v999 = vmax.f32 %v745, 0.0
    %v1000 = vmax.f32 %v923, 0.0
    %v1001 = vmax.f32 %v747, 0.0
    %v1002 = vmax.f32 %v925, 0.0
    %v1003 = vmax.f32 %v750, 0.0
    %v1004 = vmax.f32 %v928, 0.0
    %v1005 = vmax.f32 %v752, 0.0
    %v1006 = vmax.f32 %v930, 0.0
    %v1007 = vmax.f32 %v755, 0.0
    %v1008 = vmax.f32 %v933, 0.0
    %v1009 = vmax.f32 %v757, 0.0
    %v1010 = vmax.f32 %v935, 0.0
    %v1011 = vmax.f32 %v760, 0.0
    %v1012 = vmax.f32 %v938, 0.0
    %v1013 = vmax.f32 %v762, 0.0
    %v1014 = vmax.f32 %v940, 0.0
    %v1015 = vmax.f32 %v765, 0.0
    %v1016 = vmax.f32 %v943, 0.0
    %v1017 = vmax.f32 %v767, 0.0
    %v1018 = vmax.f32 %v945, 0.0
    %v1019 = vmax.f32 %v770, 0.0
    %v1020 = vmax.f32 %v948, 0.0
    %v1021 = vmax.f32 %v772, 0.0
    %v1022 = vmax.f32 %v950, 0.0
    %v1023 = vmax.f32 %v775, 0.0
    %v1024 = vmax.f32 %v953, 0.0
    %v1025 = vmax.f32 %v777, 0.0
    %v1026 = vmax.f32 %v955, 0.0
    %v1027 = vmax.f32 %v780, 0.0
    %v1028 = vmax.f32 %v958, 0.0
    %v1029 = vmax.f32 %v782, 0.0
    %v1030 = vmax.f32 %v960, 0.0
    %v1031 = vmax.f32 %v785, 0.0
    %v1032 = vmax.f32 %v963, 0.0
    %v1033 = vmax.f32 %v787, 0.0
    %v1034 = vmax.f32 %v965, 0.0
    %v1035 = vmax.f32 %v790, 0.0
    %v1036 = vmax.f32 %v968, 0.0
    %v1037 = vmax.f32 %v792, 0.0
    %v1038 = vmax.f32 %v970, 0.0
    %v1039 = vmax.f32 %v795, 0.0
    %v1040 = vmax.f32 %v973, 0.0
    %v1041 = vmax.f32 %v797, 0.0
    %v1042 = vmax.f32 %v975, 0.0
    %v1043 = vmax.f32 %v800, 0.0
    %v1044 = vmax.f32 %v978, 0.0
    %v1045 = vmax.f32 %v802, 0.0
    %v1046 = vmax.f32 %v980, 0.0
    %v1047 = vmax.f32 %v805, 0.0
    %v1048 = vmax.f32 %v983, 0.0
    %v1049 = vmax.f32 %v807, 0.0
    %v1050 = vmax.f32 %v985, 0.0
    %v1051 = vpack.c.bf16 %v989, %v987
    %v1052 = vpack.c.bf16 %v990, %v988
    %v1053 = vpack.c.bf16 %v993, %v991
    %v1054 = vpack.c.bf16 %v994, %v992
    %v1055 = vpack.c.bf16 %v997, %v995
    %v1056 = vpack.c.bf16 %v998, %v996
    %v1057 = vpack.c.bf16 %v1001, %v999
    %v1058 = vpack.c.bf16 %v1002, %v1000
    %v1059 = vpack.c.bf16 %v1005, %v1003
    %v1060 = vpack.c.bf16 %v1006, %v1004
    %v1061 = vpack.c.bf16 %v1009, %v1007
    %v1062 = vpack.c.bf16 %v1010, %v1008
    %v1063 = vpack.c.bf16 %v1013, %v1011
    %v1064 = vpack.c.bf16 %v1014, %v1012
    %v1065 = vpack.c.bf16 %v1017, %v1015
    %v1066 = vpack.c.bf16 %v1018, %v1016
    %v1067 = vpack.c.bf16 %v1021, %v1019
    %v1068 = vpack.c.bf16 %v1022, %v1020
    %v1069 = vpack.c.bf16 %v1025, %v1023
    %v1070 = vpack.c.bf16 %v1026, %v1024
    %v1071 = vpack.c.bf16 %v1029, %v1027
    %v1072 = vpack.c.bf16 %v1030, %v1028
    %v1073 = vpack.c.bf16 %v1033, %v1031
    %v1074 = vpack.c.bf16 %v1034, %v1032
    %v1075 = vpack.c.bf16 %v1037, %v1035
    %v1076 = vpack.c.bf16 %v1038, %v1036
    %v1077 = vpack.c.bf16 %v1041, %v1039
    %v1078 = vpack.c.bf16 %v1042, %v1040
    %v1079 = vpack.c.bf16 %v1045, %v1043
    %v1080 = vpack.c.bf16 %v1046, %v1044
    %v1081 = vpack.c.bf16 %v1049, %v1047
    %v1082 = vpack.c.bf16 %v1050, %v1048
    %s1083 = scalar_lea.vmem [#allocation2], 256
    %v1084 = vld [vmem:[%s1083] sm:$0xff]
    %v1085 = vld [vmem:[%s1083 + $0x8] sm:$0xff]
    %v1086 = vld [vmem:[%s1083 + $0x10] sm:$0xff]
    %v1087 = vld [vmem:[%s1083 + $0x18] sm:$0xff]
    %v1088 = vld [vmem:[%s1083 + $0x20] sm:$0xff]
    %v1089 = vld [vmem:[%s1083 + $0x28] sm:$0xff]
    %v1090 = vld [vmem:[%s1083 + $0x30] sm:$0xff]
    %v1091 = vld [vmem:[%s1083 + $0x38] sm:$0xff]
    %v1092 = vld [vmem:[%s1083 + $0x40] sm:$0xff]
    %v1093 = vld [vmem:[%s1083 + $0x48] sm:$0xff]
    %v1094 = vld [vmem:[%s1083 + $0x50] sm:$0xff]
    %v1095 = vld [vmem:[%s1083 + $0x58] sm:$0xff]
    %v1096 = vld [vmem:[%s1083 + $0x60] sm:$0xff]
    %v1097 = vld [vmem:[%s1083 + $0x68] sm:$0xff]
    %v1098 = vld [vmem:[%s1083 + $0x70] sm:$0xff]
    %v1099 = vld [vmem:[%s1083 + $0x78] sm:$0xff]
    %v1100 = vld [vmem:[%s1083 + $0x80] sm:$0xff]
    %v1101 = vld [vmem:[%s1083 + $0x88] sm:$0xff]
    %v1102 = vld [vmem:[%s1083 + $0x90] sm:$0xff]
    %v1103 = vld [vmem:[%s1083 + $0x98] sm:$0xff]
    %v1104 = vld [vmem:[%s1083 + $0xa0] sm:$0xff]
    %v1105 = vld [vmem:[%s1083 + $0xa8] sm:$0xff]
    %v1106 = vld [vmem:[%s1083 + $0xb0] sm:$0xff]
    %v1107 = vld [vmem:[%s1083 + $0xb8] sm:$0xff]
    %v1108 = vld [vmem:[%s1083 + $0xc0] sm:$0xff]
    %v1109 = vld [vmem:[%s1083 + $0xc8] sm:$0xff]
    %v1110 = vld [vmem:[%s1083 + $0xd0] sm:$0xff]
    %v1111 = vld [vmem:[%s1083 + $0xd8] sm:$0xff]
    %v1112 = vld [vmem:[%s1083 + $0xe0] sm:$0xff]
    %v1113 = vld [vmem:[%s1083 + $0xe8] sm:$0xff]
    %v1114 = vld [vmem:[%s1083 + $0xf0] sm:$0xff]
    %v1115 = vld [vmem:[%s1083 + $0xf8] sm:$0xff]
    %s1116 = scalar_lea.vmem %s4, 2
    %v1117 = vld [vmem:[%s1116] sm:$0x3]
    %v1119 = vperm.slane %v1117, 0
    %v1120 = vperm.slane %v1117, 1
    %v1155 = vunpack.c.l.b16 %v1084
    %v1156 = vunpack.c.h.b16 %v1084
    %v1157 = vunpack.c.l.b16 %v1085
    %v1158 = vunpack.c.h.b16 %v1085
    %v1159 = vunpack.c.l.b16 %v1086
    %v1160 = vunpack.c.h.b16 %v1086
    %v1161 = vunpack.c.l.b16 %v1087
    %v1162 = vunpack.c.h.b16 %v1087
    %v1163 = vunpack.c.l.b16 %v1088
    %v1164 = vunpack.c.h.b16 %v1088
    %v1165 = vunpack.c.l.b16 %v1089
    %v1166 = vunpack.c.h.b16 %v1089
    %v1167 = vunpack.c.l.b16 %v1090
    %v1168 = vunpack.c.h.b16 %v1090
    %v1169 = vunpack.c.l.b16 %v1091
    %v1170 = vunpack.c.h.b16 %v1091
    %v1171 = vunpack.c.l.b16 %v1092
    %v1172 = vunpack.c.h.b16 %v1092
    %v1173 = vunpack.c.l.b16 %v1093
    %v1174 = vunpack.c.h.b16 %v1093
    %v1175 = vunpack.c.l.b16 %v1094
    %v1176 = vunpack.c.h.b16 %v1094
    %v1177 = vunpack.c.l.b16 %v1095
    %v1178 = vunpack.c.h.b16 %v1095
    %v1179 = vunpack.c.l.b16 %v1096
    %v1180 = vunpack.c.h.b16 %v1096
    %v1181 = vunpack.c.l.b16 %v1097
    %v1182 = vunpack.c.h.b16 %v1097
    %v1183 = vunpack.c.l.b16 %v1098
    %v1184 = vunpack.c.h.b16 %v1098
    %v1185 = vunpack.c.l.b16 %v1099
    %v1186 = vunpack.c.h.b16 %v1099
    %v1187 = vunpack.c.l.b16 %v1100
    %v1188 = vunpack.c.h.b16 %v1100
    %v1189 = vunpack.c.l.b16 %v1101
    %v1190 = vunpack.c.h.b16 %v1101
    %v1191 = vunpack.c.l.b16 %v1102
    %v1192 = vunpack.c.h.b16 %v1102
    %v1193 = vunpack.c.l.b16 %v1103
    %v1194 = vunpack.c.h.b16 %v1103
    %v1195 = vunpack.c.l.b16 %v1104
    %v1196 = vunpack.c.h.b16 %v1104
    %v1197 = vunpack.c.l.b16 %v1105
    %v1198 = vunpack.c.h.b16 %v1105
    %v1199 = vunpack.c.l.b16 %v1106
    %v1200 = vunpack.c.h.b16 %v1106
    %v1201 = vunpack.c.l.b16 %v1107
    %v1202 = vunpack.c.h.b16 %v1107
    %v1203 = vunpack.c.l.b16 %v1108
    %v1204 = vunpack.c.h.b16 %v1108
    %v1205 = vunpack.c.l.b16 %v1109
    %v1206 = vunpack.c.h.b16 %v1109
    %v1207 = vunpack.c.l.b16 %v1110
    %v1208 = vunpack.c.h.b16 %v1110
    %v1209 = vunpack.c.l.b16 %v1111
    %v1210 = vunpack.c.h.b16 %v1111
    %v1211 = vunpack.c.l.b16 %v1112
    %v1212 = vunpack.c.h.b16 %v1112
    %v1213 = vunpack.c.l.b16 %v1113
    %v1214 = vunpack.c.h.b16 %v1113
    %v1215 = vunpack.c.l.b16 %v1114
    %v1216 = vunpack.c.h.b16 %v1114
    %v1217 = vunpack.c.l.b16 %v1115
    %v1218 = vunpack.c.h.b16 %v1115
    %v1219 = vpack.c.b16 %v1157, %v1155
    %v1220 = vpack.c.b16 %v1158, %v1156
    %v1221 = vpack.c.b16 %v1161, %v1159
    %v1222 = vpack.c.b16 %v1162, %v1160
    %v1223 = vpack.c.b16 %v1165, %v1163
    %v1224 = vpack.c.b16 %v1166, %v1164
    %v1225 = vpack.c.b16 %v1169, %v1167
    %v1226 = vpack.c.b16 %v1170, %v1168
    %v1227 = vpack.c.b16 %v1173, %v1171
    %v1228 = vpack.c.b16 %v1174, %v1172
    %v1229 = vpack.c.b16 %v1177, %v1175
    %v1230 = vpack.c.b16 %v1178, %v1176
    %v1231 = vpack.c.b16 %v1181, %v1179
    %v1232 = vpack.c.b16 %v1182, %v1180
    %v1233 = vpack.c.b16 %v1185, %v1183
    %v1234 = vpack.c.b16 %v1186, %v1184
    %v1235 = vpack.c.b16 %v1189, %v1187
    %v1236 = vpack.c.b16 %v1190, %v1188
    %v1237 = vpack.c.b16 %v1193, %v1191
    %v1238 = vpack.c.b16 %v1194, %v1192
    %v1239 = vpack.c.b16 %v1197, %v1195
    %v1240 = vpack.c.b16 %v1198, %v1196
    %v1241 = vpack.c.b16 %v1201, %v1199
    %v1242 = vpack.c.b16 %v1202, %v1200
    %v1243 = vpack.c.b16 %v1205, %v1203
    %v1244 = vpack.c.b16 %v1206, %v1204
    %v1245 = vpack.c.b16 %v1209, %v1207
    %v1246 = vpack.c.b16 %v1210, %v1208
    %v1247 = vpack.c.b16 %v1213, %v1211
    %v1248 = vpack.c.b16 %v1214, %v1212
    %v1249 = vpack.c.b16 %v1217, %v1215
    %v1250 = vpack.c.b16 %v1218, %v1216
    %1283 = vmatpush.bf16.msra.mxu0 %v1233
    %1284 = vmatpush.bf16.msra.mxu0 %v1231
    %1285 = vmatpush.bf16.msra.mxu0 %v1229
    %1286 = vmatpush.bf16.msra.mxu0 %v1227
    %1287 = vmatpush.bf16.msra.mxu0 %v1225
    %1288 = vmatpush.bf16.msra.mxu0 %v1223
    %1289 = vmatpush.bf16.msra.mxu0 %v1221
    %1290 = vmatpush.bf16.msra.mxu0 %v1219
    %1291 = vmatmul.bf16.gmra.mxu0 %v1051
    %v1292 = vpop.f32.mrf.mxu0
    %v1293 = vadd.f32 %v1119, %v1292
    %v1294 = vpop.f32.mrf.mxu0
    %v1295 = vadd.f32 %v1119, %v1294
    %1296 = vmatmul.bf16.gmra.mxu0 %v1053
    %v1297 = vpop.f32.mrf.mxu0
    %v1298 = vadd.f32 %v1119, %v1297
    %v1299 = vpop.f32.mrf.mxu0
    %v1300 = vadd.f32 %v1119, %v1299
    %1301 = vmatmul.bf16.gmra.mxu0 %v1055
    %v1302 = vpop.f32.mrf.mxu0
    %v1303 = vadd.f32 %v1119, %v1302
    %v1304 = vpop.f32.mrf.mxu0
    %v1305 = vadd.f32 %v1119, %v1304
    %1306 = vmatmul.bf16.gmra.mxu0 %v1057
    %v1307 = vpop.f32.mrf.mxu0
    %v1308 = vadd.f32 %v1119, %v1307
    %v1309 = vpop.f32.mrf.mxu0
    %v1310 = vadd.f32 %v1119, %v1309
    %1311 = vmatmul.bf16.gmra.mxu0 %v1059
    %v1312 = vpop.f32.mrf.mxu0
    %v1313 = vadd.f32 %v1119, %v1312
    %v1314 = vpop.f32.mrf.mxu0
    %v1315 = vadd.f32 %v1119, %v1314
    %1316 = vmatmul.bf16.gmra.mxu0 %v1061
    %v1317 = vpop.f32.mrf.mxu0
    %v1318 = vadd.f32 %v1119, %v1317
    %v1319 = vpop.f32.mrf.mxu0
    %v1320 = vadd.f32 %v1119, %v1319
    %1321 = vmatmul.bf16.gmra.mxu0 %v1063
    %v1322 = vpop.f32.mrf.mxu0
    %v1323 = vadd.f32 %v1119, %v1322
    %v1324 = vpop.f32.mrf.mxu0
    %v1325 = vadd.f32 %v1119, %v1324
    %1326 = vmatmul.bf16.gmra.mxu0 %v1065
    %v1327 = vpop.f32.mrf.mxu0
    %v1328 = vadd.f32 %v1119, %v1327
    %v1329 = vpop.f32.mrf.mxu0
    %v1330 = vadd.f32 %v1119, %v1329
    %1331 = vmatmul.bf16.gmra.mxu0 %v1067
    %v1332 = vpop.f32.mrf.mxu0
    %v1333 = vadd.f32 %v1119, %v1332
    %v1334 = vpop.f32.mrf.mxu0
    %v1335 = vadd.f32 %v1119, %v1334
    %1336 = vmatmul.bf16.gmra.mxu0 %v1069
    %v1337 = vpop.f32.mrf.mxu0
    %v1338 = vadd.f32 %v1119, %v1337
    %v1339 = vpop.f32.mrf.mxu0
    %v1340 = vadd.f32 %v1119, %v1339
    %1341 = vmatmul.bf16.gmra.mxu0 %v1071
    %v1342 = vpop.f32.mrf.mxu0
    %v1343 = vadd.f32 %v1119, %v1342
    %v1344 = vpop.f32.mrf.mxu0
    %v1345 = vadd.f32 %v1119, %v1344
    %1346 = vmatmul.bf16.gmra.mxu0 %v1073
    %v1347 = vpop.f32.mrf.mxu0
    %v1348 = vadd.f32 %v1119, %v1347
    %v1349 = vpop.f32.mrf.mxu0
    %v1350 = vadd.f32 %v1119, %v1349
    %1351 = vmatmul.bf16.gmra.mxu0 %v1075
    %v1352 = vpop.f32.mrf.mxu0
    %v1353 = vadd.f32 %v1119, %v1352
    %v1354 = vpop.f32.mrf.mxu0
    %v1355 = vadd.f32 %v1119, %v1354
    %1356 = vmatmul.bf16.gmra.mxu0 %v1077
    %v1357 = vpop.f32.mrf.mxu0
    %v1358 = vadd.f32 %v1119, %v1357
    %v1359 = vpop.f32.mrf.mxu0
    %v1360 = vadd.f32 %v1119, %v1359
    %1361 = vmatmul.bf16.gmra.mxu0 %v1079
    %v1362 = vpop.f32.mrf.mxu0
    %v1363 = vadd.f32 %v1119, %v1362
    %v1364 = vpop.f32.mrf.mxu0
    %v1365 = vadd.f32 %v1119, %v1364
    %1366 = vmatmul.bf16.gmra.mxu0 %v1081
    %v1367 = vpop.f32.mrf.mxu0
    %v1368 = vadd.f32 %v1119, %v1367
    %v1369 = vpop.f32.mrf.mxu0
    %v1370 = vadd.f32 %v1119, %v1369
    %1371 = vdwg.mxu0
    %1372 = vmatpush.bf16.msra.mxu0 %v1249
    %1373 = vmatpush.bf16.msra.mxu0 %v1247
    %1374 = vmatpush.bf16.msra.mxu0 %v1245
    %1375 = vmatpush.bf16.msra.mxu0 %v1243
    %1376 = vmatpush.bf16.msra.mxu0 %v1241
    %1377 = vmatpush.bf16.msra.mxu0 %v1239
    %1378 = vmatpush.bf16.msra.mxu0 %v1237
    %1379 = vmatpush.bf16.msra.mxu0 %v1235
    %1380 = vmatmul.bf16.gmra.mxu0 %v1052
    %v1381 = vpop.f32.mrf.mxu0
    %v1382 = vadd.f32 %v1293, %v1381
    %v1383 = vpop.f32.mrf.mxu0
    %v1384 = vadd.f32 %v1295, %v1383
    %1385 = vmatmul.bf16.gmra.mxu0 %v1054
    %v1386 = vpop.f32.mrf.mxu0
    %v1387 = vadd.f32 %v1298, %v1386
    %v1388 = vpop.f32.mrf.mxu0
    %v1389 = vadd.f32 %v1300, %v1388
    %1390 = vmatmul.bf16.gmra.mxu0 %v1056
    %v1391 = vpop.f32.mrf.mxu0
    %v1392 = vadd.f32 %v1303, %v1391
    %v1393 = vpop.f32.mrf.mxu0
    %v1394 = vadd.f32 %v1305, %v1393
    %1395 = vmatmul.bf16.gmra.mxu0 %v1058
    %v1396 = vpop.f32.mrf.mxu0
    %v1397 = vadd.f32 %v1308, %v1396
    %v1398 = vpop.f32.mrf.mxu0
    %v1399 = vadd.f32 %v1310, %v1398
    %1400 = vmatmul.bf16.gmra.mxu0 %v1060
    %v1401 = vpop.f32.mrf.mxu0
    %v1402 = vadd.f32 %v1313, %v1401
    %v1403 = vpop.f32.mrf.mxu0
    %v1404 = vadd.f32 %v1315, %v1403
    %1405 = vmatmul.bf16.gmra.mxu0 %v1062
    %v1406 = vpop.f32.mrf.mxu0
    %v1407 = vadd.f32 %v1318, %v1406
    %v1408 = vpop.f32.mrf.mxu0
    %v1409 = vadd.f32 %v1320, %v1408
    %1410 = vmatmul.bf16.gmra.mxu0 %v1064
    %v1411 = vpop.f32.mrf.mxu0
    %v1412 = vadd.f32 %v1323, %v1411
    %v1413 = vpop.f32.mrf.mxu0
    %v1414 = vadd.f32 %v1325, %v1413
    %1415 = vmatmul.bf16.gmra.mxu0 %v1066
    %v1416 = vpop.f32.mrf.mxu0
    %v1417 = vadd.f32 %v1328, %v1416
    %v1418 = vpop.f32.mrf.mxu0
    %v1419 = vadd.f32 %v1330, %v1418
    %1420 = vmatmul.bf16.gmra.mxu0 %v1068
    %v1421 = vpop.f32.mrf.mxu0
    %v1422 = vadd.f32 %v1333, %v1421
    %v1423 = vpop.f32.mrf.mxu0
    %v1424 = vadd.f32 %v1335, %v1423
    %1425 = vmatmul.bf16.gmra.mxu0 %v1070
    %v1426 = vpop.f32.mrf.mxu0
    %v1427 = vadd.f32 %v1338, %v1426
    %v1428 = vpop.f32.mrf.mxu0
    %v1429 = vadd.f32 %v1340, %v1428
    %1430 = vmatmul.bf16.gmra.mxu0 %v1072
    %v1431 = vpop.f32.mrf.mxu0
    %v1432 = vadd.f32 %v1343, %v1431
    %v1433 = vpop.f32.mrf.mxu0
    %v1434 = vadd.f32 %v1345, %v1433
    %1435 = vmatmul.bf16.gmra.mxu0 %v1074
    %v1436 = vpop.f32.mrf.mxu0
    %v1437 = vadd.f32 %v1348, %v1436
    %v1438 = vpop.f32.mrf.mxu0
    %v1439 = vadd.f32 %v1350, %v1438
    %1440 = vmatmul.bf16.gmra.mxu0 %v1076
    %v1441 = vpop.f32.mrf.mxu0
    %v1442 = vadd.f32 %v1353, %v1441
    %v1443 = vpop.f32.mrf.mxu0
    %v1444 = vadd.f32 %v1355, %v1443
    %1445 = vmatmul.bf16.gmra.mxu0 %v1078
    %v1446 = vpop.f32.mrf.mxu0
    %v1447 = vadd.f32 %v1358, %v1446
    %v1448 = vpop.f32.mrf.mxu0
    %v1449 = vadd.f32 %v1360, %v1448
    %1450 = vmatmul.bf16.gmra.mxu0 %v1080
    %v1451 = vpop.f32.mrf.mxu0
    %v1452 = vadd.f32 %v1363, %v1451
    %v1453 = vpop.f32.mrf.mxu0
    %v1454 = vadd.f32 %v1365, %v1453
    %1455 = vmatmul.bf16.gmra.mxu0 %v1082
    %v1456 = vpop.f32.mrf.mxu0
    %v1457 = vadd.f32 %v1368, %v1456
    %v1458 = vpop.f32.mrf.mxu0
    %v1459 = vadd.f32 %v1370, %v1458
    %1460 = vdwg.mxu0
    %1461 = vmatpush.bf16.msra.mxu0 %v1234
    %1462 = vmatpush.bf16.msra.mxu0 %v1232
    %1463 = vmatpush.bf16.msra.mxu0 %v1230
    %1464 = vmatpush.bf16.msra.mxu0 %v1228
    %1465 = vmatpush.bf16.msra.mxu0 %v1226
    %1466 = vmatpush.bf16.msra.mxu0 %v1224
    %1467 = vmatpush.bf16.msra.mxu0 %v1222
    %1468 = vmatpush.bf16.msra.mxu0 %v1220
    %1469 = vmatmul.bf16.gmra.mxu0 %v1051
    %v1470 = vpop.f32.mrf.mxu0
    %v1471 = vadd.f32 %v1120, %v1470
    %v1472 = vpop.f32.mrf.mxu0
    %v1473 = vadd.f32 %v1120, %v1472
    %1474 = vmatmul.bf16.gmra.mxu0 %v1053
    %v1475 = vpop.f32.mrf.mxu0
    %v1476 = vadd.f32 %v1120, %v1475
    %v1477 = vpop.f32.mrf.mxu0
    %v1478 = vadd.f32 %v1120, %v1477
    %1479 = vmatmul.bf16.gmra.mxu0 %v1055
    %v1480 = vpop.f32.mrf.mxu0
    %v1481 = vadd.f32 %v1120, %v1480
    %v1482 = vpop.f32.mrf.mxu0
    %v1483 = vadd.f32 %v1120, %v1482
    %1484 = vmatmul.bf16.gmra.mxu0 %v1057
    %v1485 = vpop.f32.mrf.mxu0
    %v1486 = vadd.f32 %v1120, %v1485
    %v1487 = vpop.f32.mrf.mxu0
    %v1488 = vadd.f32 %v1120, %v1487
    %1489 = vmatmul.bf16.gmra.mxu0 %v1059
    %v1490 = vpop.f32.mrf.mxu0
    %v1491 = vadd.f32 %v1120, %v1490
    %v1492 = vpop.f32.mrf.mxu0
    %v1493 = vadd.f32 %v1120, %v1492
    %1494 = vmatmul.bf16.gmra.mxu0 %v1061
    %v1495 = vpop.f32.mrf.mxu0
    %v1496 = vadd.f32 %v1120, %v1495
    %v1497 = vpop.f32.mrf.mxu0
    %v1498 = vadd.f32 %v1120, %v1497
    %1499 = vmatmul.bf16.gmra.mxu0 %v1063
    %v1500 = vpop.f32.mrf.mxu0
    %v1501 = vadd.f32 %v1120, %v1500
    %v1502 = vpop.f32.mrf.mxu0
    %v1503 = vadd.f32 %v1120, %v1502
    %1504 = vmatmul.bf16.gmra.mxu0 %v1065
    %v1505 = vpop.f32.mrf.mxu0
    %v1506 = vadd.f32 %v1120, %v1505
    %v1507 = vpop.f32.mrf.mxu0
    %v1508 = vadd.f32 %v1120, %v1507
    %1509 = vmatmul.bf16.gmra.mxu0 %v1067
    %v1510 = vpop.f32.mrf.mxu0
    %v1511 = vadd.f32 %v1120, %v1510
    %v1512 = vpop.f32.mrf.mxu0
    %v1513 = vadd.f32 %v1120, %v1512
    %1514 = vmatmul.bf16.gmra.mxu0 %v1069
    %v1515 = vpop.f32.mrf.mxu0
    %v1516 = vadd.f32 %v1120, %v1515
    %v1517 = vpop.f32.mrf.mxu0
    %v1518 = vadd.f32 %v1120, %v1517
    %1519 = vmatmul.bf16.gmra.mxu0 %v1071
    %v1520 = vpop.f32.mrf.mxu0
    %v1521 = vadd.f32 %v1120, %v1520
    %v1522 = vpop.f32.mrf.mxu0
    %v1523 = vadd.f32 %v1120, %v1522
    %1524 = vmatmul.bf16.gmra.mxu0 %v1073
    %v1525 = vpop.f32.mrf.mxu0
    %v1526 = vadd.f32 %v1120, %v1525
    %v1527 = vpop.f32.mrf.mxu0
    %v1528 = vadd.f32 %v1120, %v1527
    %1529 = vmatmul.bf16.gmra.mxu0 %v1075
    %v1530 = vpop.f32.mrf.mxu0
    %v1531 = vadd.f32 %v1120, %v1530
    %v1532 = vpop.f32.mrf.mxu0
    %v1533 = vadd.f32 %v1120, %v1532
    %1534 = vmatmul.bf16.gmra.mxu0 %v1077
    %v1535 = vpop.f32.mrf.mxu0
    %v1536 = vadd.f32 %v1120, %v1535
    %v1537 = vpop.f32.mrf.mxu0
    %v1538 = vadd.f32 %v1120, %v1537
    %1539 = vmatmul.bf16.gmra.mxu0 %v1079
    %v1540 = vpop.f32.mrf.mxu0
    %v1541 = vadd.f32 %v1120, %v1540
    %v1542 = vpop.f32.mrf.mxu0
    %v1543 = vadd.f32 %v1120, %v1542
    %1544 = vmatmul.bf16.gmra.mxu0 %v1081
    %v1545 = vpop.f32.mrf.mxu0
    %v1546 = vadd.f32 %v1120, %v1545
    %v1547 = vpop.f32.mrf.mxu0
    %v1548 = vadd.f32 %v1120, %v1547
    %1549 = vdwg.mxu0
    %1550 = vmatpush.bf16.msra.mxu0 %v1250
    %1551 = vmatpush.bf16.msra.mxu0 %v1248
    %1552 = vmatpush.bf16.msra.mxu0 %v1246
    %1553 = vmatpush.bf16.msra.mxu0 %v1244
    %1554 = vmatpush.bf16.msra.mxu0 %v1242
    %1555 = vmatpush.bf16.msra.mxu0 %v1240
    %1556 = vmatpush.bf16.msra.mxu0 %v1238
    %1557 = vmatpush.bf16.msra.mxu0 %v1236
    %1558 = vmatmul.bf16.gmra.mxu0 %v1052
    %v1559 = vpop.f32.mrf.mxu0
    %v1560 = vadd.f32 %v1471, %v1559
    %v1561 = vpop.f32.mrf.mxu0
    %v1562 = vadd.f32 %v1473, %v1561
    %1563 = vmatmul.bf16.gmra.mxu0 %v1054
    %v1564 = vpop.f32.mrf.mxu0
    %v1565 = vadd.f32 %v1476, %v1564
    %v1566 = vpop.f32.mrf.mxu0
    %v1567 = vadd.f32 %v1478, %v1566
    %1568 = vmatmul.bf16.gmra.mxu0 %v1056
    %v1569 = vpop.f32.mrf.mxu0
    %v1570 = vadd.f32 %v1481, %v1569
    %v1571 = vpop.f32.mrf.mxu0
    %v1572 = vadd.f32 %v1483, %v1571
    %1573 = vmatmul.bf16.gmra.mxu0 %v1058
    %v1574 = vpop.f32.mrf.mxu0
    %v1575 = vadd.f32 %v1486, %v1574
    %v1576 = vpop.f32.mrf.mxu0
    %v1577 = vadd.f32 %v1488, %v1576
    %1578 = vmatmul.bf16.gmra.mxu0 %v1060
    %v1579 = vpop.f32.mrf.mxu0
    %v1580 = vadd.f32 %v1491, %v1579
    %v1581 = vpop.f32.mrf.mxu0
    %v1582 = vadd.f32 %v1493, %v1581
    %1583 = vmatmul.bf16.gmra.mxu0 %v1062
    %v1584 = vpop.f32.mrf.mxu0
    %v1585 = vadd.f32 %v1496, %v1584
    %v1586 = vpop.f32.mrf.mxu0
    %v1587 = vadd.f32 %v1498, %v1586
    %1588 = vmatmul.bf16.gmra.mxu0 %v1064
    %v1589 = vpop.f32.mrf.mxu0
    %v1590 = vadd.f32 %v1501, %v1589
    %v1591 = vpop.f32.mrf.mxu0
    %v1592 = vadd.f32 %v1503, %v1591
    %1593 = vmatmul.bf16.gmra.mxu0 %v1066
    %v1594 = vpop.f32.mrf.mxu0
    %v1595 = vadd.f32 %v1506, %v1594
    %v1596 = vpop.f32.mrf.mxu0
    %v1597 = vadd.f32 %v1508, %v1596
    %1598 = vmatmul.bf16.gmra.mxu0 %v1068
    %v1599 = vpop.f32.mrf.mxu0
    %v1600 = vadd.f32 %v1511, %v1599
    %v1601 = vpop.f32.mrf.mxu0
    %v1602 = vadd.f32 %v1513, %v1601
    %1603 = vmatmul.bf16.gmra.mxu0 %v1070
    %v1604 = vpop.f32.mrf.mxu0
    %v1605 = vadd.f32 %v1516, %v1604
    %v1606 = vpop.f32.mrf.mxu0
    %v1607 = vadd.f32 %v1518, %v1606
    %1608 = vmatmul.bf16.gmra.mxu0 %v1072
    %v1609 = vpop.f32.mrf.mxu0
    %v1610 = vadd.f32 %v1521, %v1609
    %v1611 = vpop.f32.mrf.mxu0
    %v1612 = vadd.f32 %v1523, %v1611
    %1613 = vmatmul.bf16.gmra.mxu0 %v1074
    %v1614 = vpop.f32.mrf.mxu0
    %v1615 = vadd.f32 %v1526, %v1614
    %v1616 = vpop.f32.mrf.mxu0
    %v1617 = vadd.f32 %v1528, %v1616
    %1618 = vmatmul.bf16.gmra.mxu0 %v1076
    %v1619 = vpop.f32.mrf.mxu0
    %v1620 = vadd.f32 %v1531, %v1619
    %v1621 = vpop.f32.mrf.mxu0
    %v1622 = vadd.f32 %v1533, %v1621
    %1623 = vmatmul.bf16.gmra.mxu0 %v1078
    %v1624 = vpop.f32.mrf.mxu0
    %v1625 = vadd.f32 %v1536, %v1624
    %v1626 = vpop.f32.mrf.mxu0
    %v1627 = vadd.f32 %v1538, %v1626
    %1628 = vmatmul.bf16.gmra.mxu0 %v1080
    %v1629 = vpop.f32.mrf.mxu0
    %v1630 = vadd.f32 %v1541, %v1629
    %v1631 = vpop.f32.mrf.mxu0
    %v1632 = vadd.f32 %v1543, %v1631
    %1633 = vmatmul.bf16.gmra.mxu0 %v1082
    %v1634 = vpop.f32.mrf.mxu0
    %v1635 = vadd.f32 %v1546, %v1634
    %v1636 = vpop.f32.mrf.mxu0
    %v1637 = vadd.f32 %v1548, %v1636
    %1638 = vdwg.mxu0
    %v1639 = vmax.f32 %v1382, 0.0
    %v1640 = vmax.f32 %v1560, 0.0
    %v1641 = vmax.f32 %v1384, 0.0
    %v1642 = vmax.f32 %v1562, 0.0
    %v1643 = vmax.f32 %v1387, 0.0
    %v1644 = vmax.f32 %v1565, 0.0
    %v1645 = vmax.f32 %v1389, 0.0
    %v1646 = vmax.f32 %v1567, 0.0
    %v1647 = vmax.f32 %v1392, 0.0
    %v1648 = vmax.f32 %v1570, 0.0
    %v1649 = vmax.f32 %v1394, 0.0
    %v1650 = vmax.f32 %v1572, 0.0
    %v1651 = vmax.f32 %v1397, 0.0
    %v1652 = vmax.f32 %v1575, 0.0
    %v1653 = vmax.f32 %v1399, 0.0
    %v1654 = vmax.f32 %v1577, 0.0
    %v1655 = vmax.f32 %v1402, 0.0
    %v1656 = vmax.f32 %v1580, 0.0
    %v1657 = vmax.f32 %v1404, 0.0
    %v1658 = vmax.f32 %v1582, 0.0
    %v1659 = vmax.f32 %v1407, 0.0
    %v1660 = vmax.f32 %v1585, 0.0
    %v1661 = vmax.f32 %v1409, 0.0
    %v1662 = vmax.f32 %v1587, 0.0
    %v1663 = vmax.f32 %v1412, 0.0
    %v1664 = vmax.f32 %v1590, 0.0
    %v1665 = vmax.f32 %v1414, 0.0
    %v1666 = vmax.f32 %v1592, 0.0
    %v1667 = vmax.f32 %v1417, 0.0
    %v1668 = vmax.f32 %v1595, 0.0
    %v1669 = vmax.f32 %v1419, 0.0
    %v1670 = vmax.f32 %v1597, 0.0
    %v1671 = vmax.f32 %v1422, 0.0
    %v1672 = vmax.f32 %v1600, 0.0
    %v1673 = vmax.f32 %v1424, 0.0
    %v1674 = vmax.f32 %v1602, 0.0
    %v1675 = vmax.f32 %v1427, 0.0
    %v1676 = vmax.f32 %v1605, 0.0
    %v1677 = vmax.f32 %v1429, 0.0
    %v1678 = vmax.f32 %v1607, 0.0
    %v1679 = vmax.f32 %v1432, 0.0
    %v1680 = vmax.f32 %v1610, 0.0
    %v1681 = vmax.f32 %v1434, 0.0
    %v1682 = vmax.f32 %v1612, 0.0
    %v1683 = vmax.f32 %v1437, 0.0
    %v1684 = vmax.f32 %v1615, 0.0
    %v1685 = vmax.f32 %v1439, 0.0
    %v1686 = vmax.f32 %v1617, 0.0
    %v1687 = vmax.f32 %v1442, 0.0
    %v1688 = vmax.f32 %v1620, 0.0
    %v1689 = vmax.f32 %v1444, 0.0
    %v1690 = vmax.f32 %v1622, 0.0
    %v1691 = vmax.f32 %v1447, 0.0
    %v1692 = vmax.f32 %v1625, 0.0
    %v1693 = vmax.f32 %v1449, 0.0
    %v1694 = vmax.f32 %v1627, 0.0
    %v1695 = vmax.f32 %v1452, 0.0
    %v1696 = vmax.f32 %v1630, 0.0
    %v1697 = vmax.f32 %v1454, 0.0
    %v1698 = vmax.f32 %v1632, 0.0
    %v1699 = vmax.f32 %v1457, 0.0
    %v1700 = vmax.f32 %v1635, 0.0
    %v1701 = vmax.f32 %v1459, 0.0
    %v1702 = vmax.f32 %v1637, 0.0
    %v1703 = vpack.c.bf16 %v1641, %v1639
    %v1704 = vpack.c.bf16 %v1642, %v1640
    %v1705 = vpack.c.bf16 %v1645, %v1643
    %v1706 = vpack.c.bf16 %v1646, %v1644
    %v1707 = vpack.c.bf16 %v1649, %v1647
    %v1708 = vpack.c.bf16 %v1650, %v1648
    %v1709 = vpack.c.bf16 %v1653, %v1651
    %v1710 = vpack.c.bf16 %v1654, %v1652
    %v1711 = vpack.c.bf16 %v1657, %v1655
    %v1712 = vpack.c.bf16 %v1658, %v1656
    %v1713 = vpack.c.bf16 %v1661, %v1659
    %v1714 = vpack.c.bf16 %v1662, %v1660
    %v1715 = vpack.c.bf16 %v1665, %v1663
    %v1716 = vpack.c.bf16 %v1666, %v1664
    %v1717 = vpack.c.bf16 %v1669, %v1667
    %v1718 = vpack.c.bf16 %v1670, %v1668
    %v1719 = vpack.c.bf16 %v1673, %v1671
    %v1720 = vpack.c.bf16 %v1674, %v1672
    %v1721 = vpack.c.bf16 %v1677, %v1675
    %v1722 = vpack.c.bf16 %v1678, %v1676
    %v1723 = vpack.c.bf16 %v1681, %v1679
    %v1724 = vpack.c.bf16 %v1682, %v1680
    %v1725 = vpack.c.bf16 %v1685, %v1683
    %v1726 = vpack.c.bf16 %v1686, %v1684
    %v1727 = vpack.c.bf16 %v1689, %v1687
    %v1728 = vpack.c.bf16 %v1690, %v1688
    %v1729 = vpack.c.bf16 %v1693, %v1691
    %v1730 = vpack.c.bf16 %v1694, %v1692
    %v1731 = vpack.c.bf16 %v1697, %v1695
    %v1732 = vpack.c.bf16 %v1698, %v1696
    %v1733 = vpack.c.bf16 %v1701, %v1699
    %v1734 = vpack.c.bf16 %v1702, %v1700
    %s1735 = scalar_lea.vmem [#allocation2], 512
    %v1736 = vld [vmem:[%s1735] sm:$0xff]
    %v1737 = vld [vmem:[%s1735 + $0x8] sm:$0xff]
    %v1738 = vld [vmem:[%s1735 + $0x10] sm:$0xff]
    %v1739 = vld [vmem:[%s1735 + $0x18] sm:$0xff]
    %v1740 = vld [vmem:[%s1735 + $0x20] sm:$0xff]
    %v1741 = vld [vmem:[%s1735 + $0x28] sm:$0xff]
    %v1742 = vld [vmem:[%s1735 + $0x30] sm:$0xff]
    %v1743 = vld [vmem:[%s1735 + $0x38] sm:$0xff]
    %v1744 = vld [vmem:[%s1735 + $0x40] sm:$0xff]
    %v1745 = vld [vmem:[%s1735 + $0x48] sm:$0xff]
    %v1746 = vld [vmem:[%s1735 + $0x50] sm:$0xff]
    %v1747 = vld [vmem:[%s1735 + $0x58] sm:$0xff]
    %v1748 = vld [vmem:[%s1735 + $0x60] sm:$0xff]
    %v1749 = vld [vmem:[%s1735 + $0x68] sm:$0xff]
    %v1750 = vld [vmem:[%s1735 + $0x70] sm:$0xff]
    %v1751 = vld [vmem:[%s1735 + $0x78] sm:$0xff]
    %v1752 = vld [vmem:[%s1735 + $0x80] sm:$0xff]
    %v1753 = vld [vmem:[%s1735 + $0x88] sm:$0xff]
    %v1754 = vld [vmem:[%s1735 + $0x90] sm:$0xff]
    %v1755 = vld [vmem:[%s1735 + $0x98] sm:$0xff]
    %v1756 = vld [vmem:[%s1735 + $0xa0] sm:$0xff]
    %v1757 = vld [vmem:[%s1735 + $0xa8] sm:$0xff]
    %v1758 = vld [vmem:[%s1735 + $0xb0] sm:$0xff]
    %v1759 = vld [vmem:[%s1735 + $0xb8] sm:$0xff]
    %v1760 = vld [vmem:[%s1735 + $0xc0] sm:$0xff]
    %v1761 = vld [vmem:[%s1735 + $0xc8] sm:$0xff]
    %v1762 = vld [vmem:[%s1735 + $0xd0] sm:$0xff]
    %v1763 = vld [vmem:[%s1735 + $0xd8] sm:$0xff]
    %v1764 = vld [vmem:[%s1735 + $0xe0] sm:$0xff]
    %v1765 = vld [vmem:[%s1735 + $0xe8] sm:$0xff]
    %v1766 = vld [vmem:[%s1735 + $0xf0] sm:$0xff]
    %v1767 = vld [vmem:[%s1735 + $0xf8] sm:$0xff]
    %s1768 = scalar_lea.vmem %s4, 4
    %v1769 = vld [vmem:[%s1768] sm:$0x3]
    %v1771 = vperm.slane %v1769, 0
    %v1772 = vperm.slane %v1769, 1
    %v1807 = vunpack.c.l.b16 %v1736
    %v1808 = vunpack.c.h.b16 %v1736
    %v1809 = vunpack.c.l.b16 %v1737
    %v1810 = vunpack.c.h.b16 %v1737
    %v1811 = vunpack.c.l.b16 %v1738
    %v1812 = vunpack.c.h.b16 %v1738
    %v1813 = vunpack.c.l.b16 %v1739
    %v1814 = vunpack.c.h.b16 %v1739
    %v1815 = vunpack.c.l.b16 %v1740
    %v1816 = vunpack.c.h.b16 %v1740
    %v1817 = vunpack.c.l.b16 %v1741
    %v1818 = vunpack.c.h.b16 %v1741
    %v1819 = vunpack.c.l.b16 %v1742
    %v1820 = vunpack.c.h.b16 %v1742
    %v1821 = vunpack.c.l.b16 %v1743
    %v1822 = vunpack.c.h.b16 %v1743
    %v1823 = vunpack.c.l.b16 %v1744
    %v1824 = vunpack.c.h.b16 %v1744
    %v1825 = vunpack.c.l.b16 %v1745
    %v1826 = vunpack.c.h.b16 %v1745
    %v1827 = vunpack.c.l.b16 %v1746
    %v1828 = vunpack.c.h.b16 %v1746
    %v1829 = vunpack.c.l.b16 %v1747
    %v1830 = vunpack.c.h.b16 %v1747
    %v1831 = vunpack.c.l.b16 %v1748
    %v1832 = vunpack.c.h.b16 %v1748
    %v1833 = vunpack.c.l.b16 %v1749
    %v1834 = vunpack.c.h.b16 %v1749
    %v1835 = vunpack.c.l.b16 %v1750
    %v1836 = vunpack.c.h.b16 %v1750
    %v1837 = vunpack.c.l.b16 %v1751
    %v1838 = vunpack.c.h.b16 %v1751
    %v1839 = vunpack.c.l.b16 %v1752
    %v1840 = vunpack.c.h.b16 %v1752
    %v1841 = vunpack.c.l.b16 %v1753
    %v1842 = vunpack.c.h.b16 %v1753
    %v1843 = vunpack.c.l.b16 %v1754
    %v1844 = vunpack.c.h.b16 %v1754
    %v1845 = vunpack.c.l.b16 %v1755
    %v1846 = vunpack.c.h.b16 %v1755
    %v1847 = vunpack.c.l.b16 %v1756
    %v1848 = vunpack.c.h.b16 %v1756
    %v1849 = vunpack.c.l.b16 %v1757
    %v1850 = vunpack.c.h.b16 %v1757
    %v1851 = vunpack.c.l.b16 %v1758
    %v1852 = vunpack.c.h.b16 %v1758
    %v1853 = vunpack.c.l.b16 %v1759
    %v1854 = vunpack.c.h.b16 %v1759
    %v1855 = vunpack.c.l.b16 %v1760
    %v1856 = vunpack.c.h.b16 %v1760
    %v1857 = vunpack.c.l.b16 %v1761
    %v1858 = vunpack.c.h.b16 %v1761
    %v1859 = vunpack.c.l.b16 %v1762
    %v1860 = vunpack.c.h.b16 %v1762
    %v1861 = vunpack.c.l.b16 %v1763
    %v1862 = vunpack.c.h.b16 %v1763
    %v1863 = vunpack.c.l.b16 %v1764
    %v1864 = vunpack.c.h.b16 %v1764
    %v1865 = vunpack.c.l.b16 %v1765
    %v1866 = vunpack.c.h.b16 %v1765
    %v1867 = vunpack.c.l.b16 %v1766
    %v1868 = vunpack.c.h.b16 %v1766
    %v1869 = vunpack.c.l.b16 %v1767
    %v1870 = vunpack.c.h.b16 %v1767
    %v1871 = vpack.c.b16 %v1809, %v1807
    %v1872 = vpack.c.b16 %v1810, %v1808
    %v1873 = vpack.c.b16 %v1813, %v1811
    %v1874 = vpack.c.b16 %v1814, %v1812
    %v1875 = vpack.c.b16 %v1817, %v1815
    %v1876 = vpack.c.b16 %v1818, %v1816
    %v1877 = vpack.c.b16 %v1821, %v1819
    %v1878 = vpack.c.b16 %v1822, %v1820
    %v1879 = vpack.c.b16 %v1825, %v1823
    %v1880 = vpack.c.b16 %v1826, %v1824
    %v1881 = vpack.c.b16 %v1829, %v1827
    %v1882 = vpack.c.b16 %v1830, %v1828
    %v1883 = vpack.c.b16 %v1833, %v1831
    %v1884 = vpack.c.b16 %v1834, %v1832
    %v1885 = vpack.c.b16 %v1837, %v1835
    %v1886 = vpack.c.b16 %v1838, %v1836
    %v1887 = vpack.c.b16 %v1841, %v1839
    %v1888 = vpack.c.b16 %v1842, %v1840
    %v1889 = vpack.c.b16 %v1845, %v1843
    %v1890 = vpack.c.b16 %v1846, %v1844
    %v1891 = vpack.c.b16 %v1849, %v1847
    %v1892 = vpack.c.b16 %v1850, %v1848
    %v1893 = vpack.c.b16 %v1853, %v1851
    %v1894 = vpack.c.b16 %v1854, %v1852
    %v1895 = vpack.c.b16 %v1857, %v1855
    %v1896 = vpack.c.b16 %v1858, %v1856
    %v1897 = vpack.c.b16 %v1861, %v1859
    %v1898 = vpack.c.b16 %v1862, %v1860
    %v1899 = vpack.c.b16 %v1865, %v1863
    %v1900 = vpack.c.b16 %v1866, %v1864
    %v1901 = vpack.c.b16 %v1869, %v1867
    %v1902 = vpack.c.b16 %v1870, %v1868
    %1935 = vmatpush.bf16.msra.mxu0 %v1885
    %1936 = vmatpush.bf16.msra.mxu0 %v1883
    %1937 = vmatpush.bf16.msra.mxu0 %v1881
    %1938 = vmatpush.bf16.msra.mxu0 %v1879
    %1939 = vmatpush.bf16.msra.mxu0 %v1877
    %1940 = vmatpush.bf16.msra.mxu0 %v1875
    %1941 = vmatpush.bf16.msra.mxu0 %v1873
    %1942 = vmatpush.bf16.msra.mxu0 %v1871
    %1943 = vmatmul.bf16.gmra.mxu0 %v1703
    %v1944 = vpop.f32.mrf.mxu0
    %v1945 = vadd.f32 %v1771, %v1944
    %v1946 = vpop.f32.mrf.mxu0
    %v1947 = vadd.f32 %v1771, %v1946
    %1948 = vmatmul.bf16.gmra.mxu0 %v1705
    %v1949 = vpop.f32.mrf.mxu0
    %v1950 = vadd.f32 %v1771, %v1949
    %v1951 = vpop.f32.mrf.mxu0
    %v1952 = vadd.f32 %v1771, %v1951
    %1953 = vmatmul.bf16.gmra.mxu0 %v1707
    %v1954 = vpop.f32.mrf.mxu0
    %v1955 = vadd.f32 %v1771, %v1954
    %v1956 = vpop.f32.mrf.mxu0
    %v1957 = vadd.f32 %v1771, %v1956
    %1958 = vmatmul.bf16.gmra.mxu0 %v1709
    %v1959 = vpop.f32.mrf.mxu0
    %v1960 = vadd.f32 %v1771, %v1959
    %v1961 = vpop.f32.mrf.mxu0
    %v1962 = vadd.f32 %v1771, %v1961
    %1963 = vmatmul.bf16.gmra.mxu0 %v1711
    %v1964 = vpop.f32.mrf.mxu0
    %v1965 = vadd.f32 %v1771, %v1964
    %v1966 = vpop.f32.mrf.mxu0
    %v1967 = vadd.f32 %v1771, %v1966
    %1968 = vmatmul.bf16.gmra.mxu0 %v1713
    %v1969 = vpop.f32.mrf.mxu0
    %v1970 = vadd.f32 %v1771, %v1969
    %v1971 = vpop.f32.mrf.mxu0
    %v1972 = vadd.f32 %v1771, %v1971
    %1973 = vmatmul.bf16.gmra.mxu0 %v1715
    %v1974 = vpop.f32.mrf.mxu0
    %v1975 = vadd.f32 %v1771, %v1974
    %v1976 = vpop.f32.mrf.mxu0
    %v1977 = vadd.f32 %v1771, %v1976
    %1978 = vmatmul.bf16.gmra.mxu0 %v1717
    %v1979 = vpop.f32.mrf.mxu0
    %v1980 = vadd.f32 %v1771, %v1979
    %v1981 = vpop.f32.mrf.mxu0
    %v1982 = vadd.f32 %v1771, %v1981
    %1983 = vmatmul.bf16.gmra.mxu0 %v1719
    %v1984 = vpop.f32.mrf.mxu0
    %v1985 = vadd.f32 %v1771, %v1984
    %v1986 = vpop.f32.mrf.mxu0
    %v1987 = vadd.f32 %v1771, %v1986
    %1988 = vmatmul.bf16.gmra.mxu0 %v1721
    %v1989 = vpop.f32.mrf.mxu0
    %v1990 = vadd.f32 %v1771, %v1989
    %v1991 = vpop.f32.mrf.mxu0
    %v1992 = vadd.f32 %v1771, %v1991
    %1993 = vmatmul.bf16.gmra.mxu0 %v1723
    %v1994 = vpop.f32.mrf.mxu0
    %v1995 = vadd.f32 %v1771, %v1994
    %v1996 = vpop.f32.mrf.mxu0
    %v1997 = vadd.f32 %v1771, %v1996
    %1998 = vmatmul.bf16.gmra.mxu0 %v1725
    %v1999 = vpop.f32.mrf.mxu0
    %v2000 = vadd.f32 %v1771, %v1999
    %v2001 = vpop.f32.mrf.mxu0
    %v2002 = vadd.f32 %v1771, %v2001
    %2003 = vmatmul.bf16.gmra.mxu0 %v1727
    %v2004 = vpop.f32.mrf.mxu0
    %v2005 = vadd.f32 %v1771, %v2004
    %v2006 = vpop.f32.mrf.mxu0
    %v2007 = vadd.f32 %v1771, %v2006
    %2008 = vmatmul.bf16.gmra.mxu0 %v1729
    %v2009 = vpop.f32.mrf.mxu0
    %v2010 = vadd.f32 %v1771, %v2009
    %v2011 = vpop.f32.mrf.mxu0
    %v2012 = vadd.f32 %v1771, %v2011
    %2013 = vmatmul.bf16.gmra.mxu0 %v1731
    %v2014 = vpop.f32.mrf.mxu0
    %v2015 = vadd.f32 %v1771, %v2014
    %v2016 = vpop.f32.mrf.mxu0
    %v2017 = vadd.f32 %v1771, %v2016
    %2018 = vmatmul.bf16.gmra.mxu0 %v1733
    %v2019 = vpop.f32.mrf.mxu0
    %v2020 = vadd.f32 %v1771, %v2019
    %v2021 = vpop.f32.mrf.mxu0
    %v2022 = vadd.f32 %v1771, %v2021
    %2023 = vdwg.mxu0
    %2024 = vmatpush.bf16.msra.mxu0 %v1901
    %2025 = vmatpush.bf16.msra.mxu0 %v1899
    %2026 = vmatpush.bf16.msra.mxu0 %v1897
    %2027 = vmatpush.bf16.msra.mxu0 %v1895
    %2028 = vmatpush.bf16.msra.mxu0 %v1893
    %2029 = vmatpush.bf16.msra.mxu0 %v1891
    %2030 = vmatpush.bf16.msra.mxu0 %v1889
    %2031 = vmatpush.bf16.msra.mxu0 %v1887
    %2032 = vmatmul.bf16.gmra.mxu0 %v1704
    %v2033 = vpop.f32.mrf.mxu0
    %v2034 = vadd.f32 %v1945, %v2033
    %v2035 = vpop.f32.mrf.mxu0
    %v2036 = vadd.f32 %v1947, %v2035
    %2037 = vmatmul.bf16.gmra.mxu0 %v1706
    %v2038 = vpop.f32.mrf.mxu0
    %v2039 = vadd.f32 %v1950, %v2038
    %v2040 = vpop.f32.mrf.mxu0
    %v2041 = vadd.f32 %v1952, %v2040
    %2042 = vmatmul.bf16.gmra.mxu0 %v1708
    %v2043 = vpop.f32.mrf.mxu0
    %v2044 = vadd.f32 %v1955, %v2043
    %v2045 = vpop.f32.mrf.mxu0
    %v2046 = vadd.f32 %v1957, %v2045
    %2047 = vmatmul.bf16.gmra.mxu0 %v1710
    %v2048 = vpop.f32.mrf.mxu0
    %v2049 = vadd.f32 %v1960, %v2048
    %v2050 = vpop.f32.mrf.mxu0
    %v2051 = vadd.f32 %v1962, %v2050
    %2052 = vmatmul.bf16.gmra.mxu0 %v1712
    %v2053 = vpop.f32.mrf.mxu0
    %v2054 = vadd.f32 %v1965, %v2053
    %v2055 = vpop.f32.mrf.mxu0
    %v2056 = vadd.f32 %v1967, %v2055
    %2057 = vmatmul.bf16.gmra.mxu0 %v1714
    %v2058 = vpop.f32.mrf.mxu0
    %v2059 = vadd.f32 %v1970, %v2058
    %v2060 = vpop.f32.mrf.mxu0
    %v2061 = vadd.f32 %v1972, %v2060
    %2062 = vmatmul.bf16.gmra.mxu0 %v1716
    %v2063 = vpop.f32.mrf.mxu0
    %v2064 = vadd.f32 %v1975, %v2063
    %v2065 = vpop.f32.mrf.mxu0
    %v2066 = vadd.f32 %v1977, %v2065
    %2067 = vmatmul.bf16.gmra.mxu0 %v1718
    %v2068 = vpop.f32.mrf.mxu0
    %v2069 = vadd.f32 %v1980, %v2068
    %v2070 = vpop.f32.mrf.mxu0
    %v2071 = vadd.f32 %v1982, %v2070
    %2072 = vmatmul.bf16.gmra.mxu0 %v1720
    %v2073 = vpop.f32.mrf.mxu0
    %v2074 = vadd.f32 %v1985, %v2073
    %v2075 = vpop.f32.mrf.mxu0
    %v2076 = vadd.f32 %v1987, %v2075
    %2077 = vmatmul.bf16.gmra.mxu0 %v1722
    %v2078 = vpop.f32.mrf.mxu0
    %v2079 = vadd.f32 %v1990, %v2078
    %v2080 = vpop.f32.mrf.mxu0
    %v2081 = vadd.f32 %v1992, %v2080
    %2082 = vmatmul.bf16.gmra.mxu0 %v1724
    %v2083 = vpop.f32.mrf.mxu0
    %v2084 = vadd.f32 %v1995, %v2083
    %v2085 = vpop.f32.mrf.mxu0
    %v2086 = vadd.f32 %v1997, %v2085
    %2087 = vmatmul.bf16.gmra.mxu0 %v1726
    %v2088 = vpop.f32.mrf.mxu0
    %v2089 = vadd.f32 %v2000, %v2088
    %v2090 = vpop.f32.mrf.mxu0
    %v2091 = vadd.f32 %v2002, %v2090
    %2092 = vmatmul.bf16.gmra.mxu0 %v1728
    %v2093 = vpop.f32.mrf.mxu0
    %v2094 = vadd.f32 %v2005, %v2093
    %v2095 = vpop.f32.mrf.mxu0
    %v2096 = vadd.f32 %v2007, %v2095
    %2097 = vmatmul.bf16.gmra.mxu0 %v1730
    %v2098 = vpop.f32.mrf.mxu0
    %v2099 = vadd.f32 %v2010, %v2098
    %v2100 = vpop.f32.mrf.mxu0
    %v2101 = vadd.f32 %v2012, %v2100
    %2102 = vmatmul.bf16.gmra.mxu0 %v1732
    %v2103 = vpop.f32.mrf.mxu0
    %v2104 = vadd.f32 %v2015, %v2103
    %v2105 = vpop.f32.mrf.mxu0
    %v2106 = vadd.f32 %v2017, %v2105
    %2107 = vmatmul.bf16.gmra.mxu0 %v1734
    %v2108 = vpop.f32.mrf.mxu0
    %v2109 = vadd.f32 %v2020, %v2108
    %v2110 = vpop.f32.mrf.mxu0
    %v2111 = vadd.f32 %v2022, %v2110
    %2112 = vdwg.mxu0
    %2113 = vmatpush.bf16.msra.mxu0 %v1886
    %2114 = vmatpush.bf16.msra.mxu0 %v1884
    %2115 = vmatpush.bf16.msra.mxu0 %v1882
    %2116 = vmatpush.bf16.msra.mxu0 %v1880
    %2117 = vmatpush.bf16.msra.mxu0 %v1878
    %2118 = vmatpush.bf16.msra.mxu0 %v1876
    %2119 = vmatpush.bf16.msra.mxu0 %v1874
    %2120 = vmatpush.bf16.msra.mxu0 %v1872
    %2121 = vmatmul.bf16.gmra.mxu0 %v1703
    %v2122 = vpop.f32.mrf.mxu0
    %v2123 = vadd.f32 %v1772, %v2122
    %v2124 = vpop.f32.mrf.mxu0
    %v2125 = vadd.f32 %v1772, %v2124
    %2126 = vmatmul.bf16.gmra.mxu0 %v1705
    %v2127 = vpop.f32.mrf.mxu0
    %v2128 = vadd.f32 %v1772, %v2127
    %v2129 = vpop.f32.mrf.mxu0
    %v2130 = vadd.f32 %v1772, %v2129
    %2131 = vmatmul.bf16.gmra.mxu0 %v1707
    %v2132 = vpop.f32.mrf.mxu0
    %v2133 = vadd.f32 %v1772, %v2132
    %v2134 = vpop.f32.mrf.mxu0
    %v2135 = vadd.f32 %v1772, %v2134
    %2136 = vmatmul.bf16.gmra.mxu0 %v1709
    %v2137 = vpop.f32.mrf.mxu0
    %v2138 = vadd.f32 %v1772, %v2137
    %v2139 = vpop.f32.mrf.mxu0
    %v2140 = vadd.f32 %v1772, %v2139
    %2141 = vmatmul.bf16.gmra.mxu0 %v1711
    %v2142 = vpop.f32.mrf.mxu0
    %v2143 = vadd.f32 %v1772, %v2142
    %v2144 = vpop.f32.mrf.mxu0
    %v2145 = vadd.f32 %v1772, %v2144
    %2146 = vmatmul.bf16.gmra.mxu0 %v1713
    %v2147 = vpop.f32.mrf.mxu0
    %v2148 = vadd.f32 %v1772, %v2147
    %v2149 = vpop.f32.mrf.mxu0
    %v2150 = vadd.f32 %v1772, %v2149
    %2151 = vmatmul.bf16.gmra.mxu0 %v1715
    %v2152 = vpop.f32.mrf.mxu0
    %v2153 = vadd.f32 %v1772, %v2152
    %v2154 = vpop.f32.mrf.mxu0
    %v2155 = vadd.f32 %v1772, %v2154
    %2156 = vmatmul.bf16.gmra.mxu0 %v1717
    %v2157 = vpop.f32.mrf.mxu0
    %v2158 = vadd.f32 %v1772, %v2157
    %v2159 = vpop.f32.mrf.mxu0
    %v2160 = vadd.f32 %v1772, %v2159
    %2161 = vmatmul.bf16.gmra.mxu0 %v1719
    %v2162 = vpop.f32.mrf.mxu0
    %v2163 = vadd.f32 %v1772, %v2162
    %v2164 = vpop.f32.mrf.mxu0
    %v2165 = vadd.f32 %v1772, %v2164
    %2166 = vmatmul.bf16.gmra.mxu0 %v1721
    %v2167 = vpop.f32.mrf.mxu0
    %v2168 = vadd.f32 %v1772, %v2167
    %v2169 = vpop.f32.mrf.mxu0
    %v2170 = vadd.f32 %v1772, %v2169
    %2171 = vmatmul.bf16.gmra.mxu0 %v1723
    %v2172 = vpop.f32.mrf.mxu0
    %v2173 = vadd.f32 %v1772, %v2172
    %v2174 = vpop.f32.mrf.mxu0
    %v2175 = vadd.f32 %v1772, %v2174
    %2176 = vmatmul.bf16.gmra.mxu0 %v1725
    %v2177 = vpop.f32.mrf.mxu0
    %v2178 = vadd.f32 %v1772, %v2177
    %v2179 = vpop.f32.mrf.mxu0
    %v2180 = vadd.f32 %v1772, %v2179
    %2181 = vmatmul.bf16.gmra.mxu0 %v1727
    %v2182 = vpop.f32.mrf.mxu0
    %v2183 = vadd.f32 %v1772, %v2182
    %v2184 = vpop.f32.mrf.mxu0
    %v2185 = vadd.f32 %v1772, %v2184
    %2186 = vmatmul.bf16.gmra.mxu0 %v1729
    %v2187 = vpop.f32.mrf.mxu0
    %v2188 = vadd.f32 %v1772, %v2187
    %v2189 = vpop.f32.mrf.mxu0
    %v2190 = vadd.f32 %v1772, %v2189
    %2191 = vmatmul.bf16.gmra.mxu0 %v1731
    %v2192 = vpop.f32.mrf.mxu0
    %v2193 = vadd.f32 %v1772, %v2192
    %v2194 = vpop.f32.mrf.mxu0
    %v2195 = vadd.f32 %v1772, %v2194
    %2196 = vmatmul.bf16.gmra.mxu0 %v1733
    %v2197 = vpop.f32.mrf.mxu0
    %v2198 = vadd.f32 %v1772, %v2197
    %v2199 = vpop.f32.mrf.mxu0
    %v2200 = vadd.f32 %v1772, %v2199
    %2201 = vdwg.mxu0
    %2202 = vmatpush.bf16.msra.mxu0 %v1902
    %2203 = vmatpush.bf16.msra.mxu0 %v1900
    %2204 = vmatpush.bf16.msra.mxu0 %v1898
    %2205 = vmatpush.bf16.msra.mxu0 %v1896
    %2206 = vmatpush.bf16.msra.mxu0 %v1894
    %2207 = vmatpush.bf16.msra.mxu0 %v1892
    %2208 = vmatpush.bf16.msra.mxu0 %v1890
    %2209 = vmatpush.bf16.msra.mxu0 %v1888
    %2210 = vmatmul.bf16.gmra.mxu0 %v1704
    %v2211 = vpop.f32.mrf.mxu0
    %v2212 = vadd.f32 %v2123, %v2211
    %v2213 = vpop.f32.mrf.mxu0
    %v2214 = vadd.f32 %v2125, %v2213
    %2215 = vmatmul.bf16.gmra.mxu0 %v1706
    %v2216 = vpop.f32.mrf.mxu0
    %v2217 = vadd.f32 %v2128, %v2216
    %v2218 = vpop.f32.mrf.mxu0
    %v2219 = vadd.f32 %v2130, %v2218
    %2220 = vmatmul.bf16.gmra.mxu0 %v1708
    %v2221 = vpop.f32.mrf.mxu0
    %v2222 = vadd.f32 %v2133, %v2221
    %v2223 = vpop.f32.mrf.mxu0
    %v2224 = vadd.f32 %v2135, %v2223
    %2225 = vmatmul.bf16.gmra.mxu0 %v1710
    %v2226 = vpop.f32.mrf.mxu0
    %v2227 = vadd.f32 %v2138, %v2226
    %v2228 = vpop.f32.mrf.mxu0
    %v2229 = vadd.f32 %v2140, %v2228
    %2230 = vmatmul.bf16.gmra.mxu0 %v1712
    %v2231 = vpop.f32.mrf.mxu0
    %v2232 = vadd.f32 %v2143, %v2231
    %v2233 = vpop.f32.mrf.mxu0
    %v2234 = vadd.f32 %v2145, %v2233
    %2235 = vmatmul.bf16.gmra.mxu0 %v1714
    %v2236 = vpop.f32.mrf.mxu0
    %v2237 = vadd.f32 %v2148, %v2236
    %v2238 = vpop.f32.mrf.mxu0
    %v2239 = vadd.f32 %v2150, %v2238
    %2240 = vmatmul.bf16.gmra.mxu0 %v1716
    %v2241 = vpop.f32.mrf.mxu0
    %v2242 = vadd.f32 %v2153, %v2241
    %v2243 = vpop.f32.mrf.mxu0
    %v2244 = vadd.f32 %v2155, %v2243
    %2245 = vmatmul.bf16.gmra.mxu0 %v1718
    %v2246 = vpop.f32.mrf.mxu0
    %v2247 = vadd.f32 %v2158, %v2246
    %v2248 = vpop.f32.mrf.mxu0
    %v2249 = vadd.f32 %v2160, %v2248
    %2250 = vmatmul.bf16.gmra.mxu0 %v1720
    %v2251 = vpop.f32.mrf.mxu0
    %v2252 = vadd.f32 %v2163, %v2251
    %v2253 = vpop.f32.mrf.mxu0
    %v2254 = vadd.f32 %v2165, %v2253
    %2255 = vmatmul.bf16.gmra.mxu0 %v1722
    %v2256 = vpop.f32.mrf.mxu0
    %v2257 = vadd.f32 %v2168, %v2256
    %v2258 = vpop.f32.mrf.mxu0
    %v2259 = vadd.f32 %v2170, %v2258
    %2260 = vmatmul.bf16.gmra.mxu0 %v1724
    %v2261 = vpop.f32.mrf.mxu0
    %v2262 = vadd.f32 %v2173, %v2261
    %v2263 = vpop.f32.mrf.mxu0
    %v2264 = vadd.f32 %v2175, %v2263
    %2265 = vmatmul.bf16.gmra.mxu0 %v1726
    %v2266 = vpop.f32.mrf.mxu0
    %v2267 = vadd.f32 %v2178, %v2266
    %v2268 = vpop.f32.mrf.mxu0
    %v2269 = vadd.f32 %v2180, %v2268
    %2270 = vmatmul.bf16.gmra.mxu0 %v1728
    %v2271 = vpop.f32.mrf.mxu0
    %v2272 = vadd.f32 %v2183, %v2271
    %v2273 = vpop.f32.mrf.mxu0
    %v2274 = vadd.f32 %v2185, %v2273
    %2275 = vmatmul.bf16.gmra.mxu0 %v1730
    %v2276 = vpop.f32.mrf.mxu0
    %v2277 = vadd.f32 %v2188, %v2276
    %v2278 = vpop.f32.mrf.mxu0
    %v2279 = vadd.f32 %v2190, %v2278
    %2280 = vmatmul.bf16.gmra.mxu0 %v1732
    %v2281 = vpop.f32.mrf.mxu0
    %v2282 = vadd.f32 %v2193, %v2281
    %v2283 = vpop.f32.mrf.mxu0
    %v2284 = vadd.f32 %v2195, %v2283
    %2285 = vmatmul.bf16.gmra.mxu0 %v1734
    %v2286 = vpop.f32.mrf.mxu0
    %v2287 = vadd.f32 %v2198, %v2286
    %v2288 = vpop.f32.mrf.mxu0
    %v2289 = vadd.f32 %v2200, %v2288
    %2290 = vdwg.mxu0
    %v2291 = vmax.f32 %v2034, 0.0
    %v2292 = vmax.f32 %v2212, 0.0
    %v2293 = vmax.f32 %v2036, 0.0
    %v2294 = vmax.f32 %v2214, 0.0
    %v2295 = vmax.f32 %v2039, 0.0
    %v2296 = vmax.f32 %v2217, 0.0
    %v2297 = vmax.f32 %v2041, 0.0
    %v2298 = vmax.f32 %v2219, 0.0
    %v2299 = vmax.f32 %v2044, 0.0
    %v2300 = vmax.f32 %v2222, 0.0
    %v2301 = vmax.f32 %v2046, 0.0
    %v2302 = vmax.f32 %v2224, 0.0
    %v2303 = vmax.f32 %v2049, 0.0
    %v2304 = vmax.f32 %v2227, 0.0
    %v2305 = vmax.f32 %v2051, 0.0
    %v2306 = vmax.f32 %v2229, 0.0
    %v2307 = vmax.f32 %v2054, 0.0
    %v2308 = vmax.f32 %v2232, 0.0
    %v2309 = vmax.f32 %v2056, 0.0
    %v2310 = vmax.f32 %v2234, 0.0
    %v2311 = vmax.f32 %v2059, 0.0
    %v2312 = vmax.f32 %v2237, 0.0
    %v2313 = vmax.f32 %v2061, 0.0
    %v2314 = vmax.f32 %v2239, 0.0
    %v2315 = vmax.f32 %v2064, 0.0
    %v2316 = vmax.f32 %v2242, 0.0
    %v2317 = vmax.f32 %v2066, 0.0
    %v2318 = vmax.f32 %v2244, 0.0
    %v2319 = vmax.f32 %v2069, 0.0
    %v2320 = vmax.f32 %v2247, 0.0
    %v2321 = vmax.f32 %v2071, 0.0
    %v2322 = vmax.f32 %v2249, 0.0
    %v2323 = vmax.f32 %v2074, 0.0
    %v2324 = vmax.f32 %v2252, 0.0
    %v2325 = vmax.f32 %v2076, 0.0
    %v2326 = vmax.f32 %v2254, 0.0
    %v2327 = vmax.f32 %v2079, 0.0
    %v2328 = vmax.f32 %v2257, 0.0
    %v2329 = vmax.f32 %v2081, 0.0
    %v2330 = vmax.f32 %v2259, 0.0
    %v2331 = vmax.f32 %v2084, 0.0
    %v2332 = vmax.f32 %v2262, 0.0
    %v2333 = vmax.f32 %v2086, 0.0
    %v2334 = vmax.f32 %v2264, 0.0
    %v2335 = vmax.f32 %v2089, 0.0
    %v2336 = vmax.f32 %v2267, 0.0
    %v2337 = vmax.f32 %v2091, 0.0
    %v2338 = vmax.f32 %v2269, 0.0
    %v2339 = vmax.f32 %v2094, 0.0
    %v2340 = vmax.f32 %v2272, 0.0
    %v2341 = vmax.f32 %v2096, 0.0
    %v2342 = vmax.f32 %v2274, 0.0
    %v2343 = vmax.f32 %v2099, 0.0
    %v2344 = vmax.f32 %v2277, 0.0
    %v2345 = vmax.f32 %v2101, 0.0
    %v2346 = vmax.f32 %v2279, 0.0
    %v2347 = vmax.f32 %v2104, 0.0
    %v2348 = vmax.f32 %v2282, 0.0
    %v2349 = vmax.f32 %v2106, 0.0
    %v2350 = vmax.f32 %v2284, 0.0
    %v2351 = vmax.f32 %v2109, 0.0
    %v2352 = vmax.f32 %v2287, 0.0
    %v2353 = vmax.f32 %v2111, 0.0
    %v2354 = vmax.f32 %v2289, 0.0
    %v2355 = vpack.c.bf16 %v2293, %v2291
    %v2356 = vpack.c.bf16 %v2294, %v2292
    %v2357 = vpack.c.bf16 %v2297, %v2295
    %v2358 = vpack.c.bf16 %v2298, %v2296
    %v2359 = vpack.c.bf16 %v2301, %v2299
    %v2360 = vpack.c.bf16 %v2302, %v2300
    %v2361 = vpack.c.bf16 %v2305, %v2303
    %v2362 = vpack.c.bf16 %v2306, %v2304
    %v2363 = vpack.c.bf16 %v2309, %v2307
    %v2364 = vpack.c.bf16 %v2310, %v2308
    %v2365 = vpack.c.bf16 %v2313, %v2311
    %v2366 = vpack.c.bf16 %v2314, %v2312
    %v2367 = vpack.c.bf16 %v2317, %v2315
    %v2368 = vpack.c.bf16 %v2318, %v2316
    %v2369 = vpack.c.bf16 %v2321, %v2319
    %v2370 = vpack.c.bf16 %v2322, %v2320
    %v2371 = vpack.c.bf16 %v2325, %v2323
    %v2372 = vpack.c.bf16 %v2326, %v2324
    %v2373 = vpack.c.bf16 %v2329, %v2327
    %v2374 = vpack.c.bf16 %v2330, %v2328
    %v2375 = vpack.c.bf16 %v2333, %v2331
    %v2376 = vpack.c.bf16 %v2334, %v2332
    %v2377 = vpack.c.bf16 %v2337, %v2335
    %v2378 = vpack.c.bf16 %v2338, %v2336
    %v2379 = vpack.c.bf16 %v2341, %v2339
    %v2380 = vpack.c.bf16 %v2342, %v2340
    %v2381 = vpack.c.bf16 %v2345, %v2343
    %v2382 = vpack.c.bf16 %v2346, %v2344
    %v2383 = vpack.c.bf16 %v2349, %v2347
    %v2384 = vpack.c.bf16 %v2350, %v2348
    %v2385 = vpack.c.bf16 %v2353, %v2351
    %v2386 = vpack.c.bf16 %v2354, %v2352
    %s2387 = scalar_lea.vmem [#allocation2], 768
    %v2388 = vld [vmem:[%s2387] sm:$0xff]
    %v2389 = vld [vmem:[%s2387 + $0x8] sm:$0xff]
    %v2390 = vld [vmem:[%s2387 + $0x10] sm:$0xff]
    %v2391 = vld [vmem:[%s2387 + $0x18] sm:$0xff]
    %v2392 = vld [vmem:[%s2387 + $0x20] sm:$0xff]
    %v2393 = vld [vmem:[%s2387 + $0x28] sm:$0xff]
    %v2394 = vld [vmem:[%s2387 + $0x30] sm:$0xff]
    %v2395 = vld [vmem:[%s2387 + $0x38] sm:$0xff]
    %v2396 = vld [vmem:[%s2387 + $0x40] sm:$0xff]
    %v2397 = vld [vmem:[%s2387 + $0x48] sm:$0xff]
    %v2398 = vld [vmem:[%s2387 + $0x50] sm:$0xff]
    %v2399 = vld [vmem:[%s2387 + $0x58] sm:$0xff]
    %v2400 = vld [vmem:[%s2387 + $0x60] sm:$0xff]
    %v2401 = vld [vmem:[%s2387 + $0x68] sm:$0xff]
    %v2402 = vld [vmem:[%s2387 + $0x70] sm:$0xff]
    %v2403 = vld [vmem:[%s2387 + $0x78] sm:$0xff]
    %v2404 = vld [vmem:[%s2387 + $0x80] sm:$0xff]
    %v2405 = vld [vmem:[%s2387 + $0x88] sm:$0xff]
    %v2406 = vld [vmem:[%s2387 + $0x90] sm:$0xff]
    %v2407 = vld [vmem:[%s2387 + $0x98] sm:$0xff]
    %v2408 = vld [vmem:[%s2387 + $0xa0] sm:$0xff]
    %v2409 = vld [vmem:[%s2387 + $0xa8] sm:$0xff]
    %v2410 = vld [vmem:[%s2387 + $0xb0] sm:$0xff]
    %v2411 = vld [vmem:[%s2387 + $0xb8] sm:$0xff]
    %v2412 = vld [vmem:[%s2387 + $0xc0] sm:$0xff]
    %v2413 = vld [vmem:[%s2387 + $0xc8] sm:$0xff]
    %v2414 = vld [vmem:[%s2387 + $0xd0] sm:$0xff]
    %v2415 = vld [vmem:[%s2387 + $0xd8] sm:$0xff]
    %v2416 = vld [vmem:[%s2387 + $0xe0] sm:$0xff]
    %v2417 = vld [vmem:[%s2387 + $0xe8] sm:$0xff]
    %v2418 = vld [vmem:[%s2387 + $0xf0] sm:$0xff]
    %v2419 = vld [vmem:[%s2387 + $0xf8] sm:$0xff]
    %s2420 = scalar_lea.vmem %s4, 6
    %v2421 = vld [vmem:[%s2420] sm:$0x3]
    %v2423 = vperm.slane %v2421, 0
    %v2424 = vperm.slane %v2421, 1
    %v2459 = vunpack.c.l.b16 %v2388
    %v2460 = vunpack.c.h.b16 %v2388
    %v2461 = vunpack.c.l.b16 %v2389
    %v2462 = vunpack.c.h.b16 %v2389
    %v2463 = vunpack.c.l.b16 %v2390
    %v2464 = vunpack.c.h.b16 %v2390
    %v2465 = vunpack.c.l.b16 %v2391
    %v2466 = vunpack.c.h.b16 %v2391
    %v2467 = vunpack.c.l.b16 %v2392
    %v2468 = vunpack.c.h.b16 %v2392
    %v2469 = vunpack.c.l.b16 %v2393
    %v2470 = vunpack.c.h.b16 %v2393
    %v2471 = vunpack.c.l.b16 %v2394
    %v2472 = vunpack.c.h.b16 %v2394
    %v2473 = vunpack.c.l.b16 %v2395
    %v2474 = vunpack.c.h.b16 %v2395
    %v2475 = vunpack.c.l.b16 %v2396
    %v2476 = vunpack.c.h.b16 %v2396
    %v2477 = vunpack.c.l.b16 %v2397
    %v2478 = vunpack.c.h.b16 %v2397
    %v2479 = vunpack.c.l.b16 %v2398
    %v2480 = vunpack.c.h.b16 %v2398
    %v2481 = vunpack.c.l.b16 %v2399
    %v2482 = vunpack.c.h.b16 %v2399
    %v2483 = vunpack.c.l.b16 %v2400
    %v2484 = vunpack.c.h.b16 %v2400
    %v2485 = vunpack.c.l.b16 %v2401
    %v2486 = vunpack.c.h.b16 %v2401
    %v2487 = vunpack.c.l.b16 %v2402
    %v2488 = vunpack.c.h.b16 %v2402
    %v2489 = vunpack.c.l.b16 %v2403
    %v2490 = vunpack.c.h.b16 %v2403
    %v2491 = vunpack.c.l.b16 %v2404
    %v2492 = vunpack.c.h.b16 %v2404
    %v2493 = vunpack.c.l.b16 %v2405
    %v2494 = vunpack.c.h.b16 %v2405
    %v2495 = vunpack.c.l.b16 %v2406
    %v2496 = vunpack.c.h.b16 %v2406
    %v2497 = vunpack.c.l.b16 %v2407
    %v2498 = vunpack.c.h.b16 %v2407
    %v2499 = vunpack.c.l.b16 %v2408
    %v2500 = vunpack.c.h.b16 %v2408
    %v2501 = vunpack.c.l.b16 %v2409
    %v2502 = vunpack.c.h.b16 %v2409
    %v2503 = vunpack.c.l.b16 %v2410
    %v2504 = vunpack.c.h.b16 %v2410
    %v2505 = vunpack.c.l.b16 %v2411
    %v2506 = vunpack.c.h.b16 %v2411
    %v2507 = vunpack.c.l.b16 %v2412
    %v2508 = vunpack.c.h.b16 %v2412
    %v2509 = vunpack.c.l.b16 %v2413
    %v2510 = vunpack.c.h.b16 %v2413
    %v2511 = vunpack.c.l.b16 %v2414
    %v2512 = vunpack.c.h.b16 %v2414
    %v2513 = vunpack.c.l.b16 %v2415
    %v2514 = vunpack.c.h.b16 %v2415
    %v2515 = vunpack.c.l.b16 %v2416
    %v2516 = vunpack.c.h.b16 %v2416
    %v2517 = vunpack.c.l.b16 %v2417
    %v2518 = vunpack.c.h.b16 %v2417
    %v2519 = vunpack.c.l.b16 %v2418
    %v2520 = vunpack.c.h.b16 %v2418
    %v2521 = vunpack.c.l.b16 %v2419
    %v2522 = vunpack.c.h.b16 %v2419
    %v2523 = vpack.c.b16 %v2461, %v2459
    %v2524 = vpack.c.b16 %v2462, %v2460
    %v2525 = vpack.c.b16 %v2465, %v2463
    %v2526 = vpack.c.b16 %v2466, %v2464
    %v2527 = vpack.c.b16 %v2469, %v2467
    %v2528 = vpack.c.b16 %v2470, %v2468
    %v2529 = vpack.c.b16 %v2473, %v2471
    %v2530 = vpack.c.b16 %v2474, %v2472
    %v2531 = vpack.c.b16 %v2477, %v2475
    %v2532 = vpack.c.b16 %v2478, %v2476
    %v2533 = vpack.c.b16 %v2481, %v2479
    %v2534 = vpack.c.b16 %v2482, %v2480
    %v2535 = vpack.c.b16 %v2485, %v2483
    %v2536 = vpack.c.b16 %v2486, %v2484
    %v2537 = vpack.c.b16 %v2489, %v2487
    %v2538 = vpack.c.b16 %v2490, %v2488
    %v2539 = vpack.c.b16 %v2493, %v2491
    %v2540 = vpack.c.b16 %v2494, %v2492
    %v2541 = vpack.c.b16 %v2497, %v2495
    %v2542 = vpack.c.b16 %v2498, %v2496
    %v2543 = vpack.c.b16 %v2501, %v2499
    %v2544 = vpack.c.b16 %v2502, %v2500
    %v2545 = vpack.c.b16 %v2505, %v2503
    %v2546 = vpack.c.b16 %v2506, %v2504
    %v2547 = vpack.c.b16 %v2509, %v2507
    %v2548 = vpack.c.b16 %v2510, %v2508
    %v2549 = vpack.c.b16 %v2513, %v2511
    %v2550 = vpack.c.b16 %v2514, %v2512
    %v2551 = vpack.c.b16 %v2517, %v2515
    %v2552 = vpack.c.b16 %v2518, %v2516
    %v2553 = vpack.c.b16 %v2521, %v2519
    %v2554 = vpack.c.b16 %v2522, %v2520
    %2587 = vmatpush.bf16.msra.mxu0 %v2537
    %2588 = vmatpush.bf16.msra.mxu0 %v2535
    %2589 = vmatpush.bf16.msra.mxu0 %v2533
    %2590 = vmatpush.bf16.msra.mxu0 %v2531
    %2591 = vmatpush.bf16.msra.mxu0 %v2529
    %2592 = vmatpush.bf16.msra.mxu0 %v2527
    %2593 = vmatpush.bf16.msra.mxu0 %v2525
    %2594 = vmatpush.bf16.msra.mxu0 %v2523
    %2595 = vmatmul.bf16.gmra.mxu0 %v2355
    %v2596 = vpop.f32.mrf.mxu0
    %v2597 = vadd.f32 %v2423, %v2596
    %v2598 = vpop.f32.mrf.mxu0
    %v2599 = vadd.f32 %v2423, %v2598
    %2600 = vmatmul.bf16.gmra.mxu0 %v2357
    %v2601 = vpop.f32.mrf.mxu0
    %v2602 = vadd.f32 %v2423, %v2601
    %v2603 = vpop.f32.mrf.mxu0
    %v2604 = vadd.f32 %v2423, %v2603
    %2605 = vmatmul.bf16.gmra.mxu0 %v2359
    %v2606 = vpop.f32.mrf.mxu0
    %v2607 = vadd.f32 %v2423, %v2606
    %v2608 = vpop.f32.mrf.mxu0
    %v2609 = vadd.f32 %v2423, %v2608
    %2610 = vmatmul.bf16.gmra.mxu0 %v2361
    %v2611 = vpop.f32.mrf.mxu0
    %v2612 = vadd.f32 %v2423, %v2611
    %v2613 = vpop.f32.mrf.mxu0
    %v2614 = vadd.f32 %v2423, %v2613
    %2615 = vmatmul.bf16.gmra.mxu0 %v2363
    %v2616 = vpop.f32.mrf.mxu0
    %v2617 = vadd.f32 %v2423, %v2616
    %v2618 = vpop.f32.mrf.mxu0
    %v2619 = vadd.f32 %v2423, %v2618
    %2620 = vmatmul.bf16.gmra.mxu0 %v2365
    %v2621 = vpop.f32.mrf.mxu0
    %v2622 = vadd.f32 %v2423, %v2621
    %v2623 = vpop.f32.mrf.mxu0
    %v2624 = vadd.f32 %v2423, %v2623
    %2625 = vmatmul.bf16.gmra.mxu0 %v2367
    %v2626 = vpop.f32.mrf.mxu0
    %v2627 = vadd.f32 %v2423, %v2626
    %v2628 = vpop.f32.mrf.mxu0
    %v2629 = vadd.f32 %v2423, %v2628
    %2630 = vmatmul.bf16.gmra.mxu0 %v2369
    %v2631 = vpop.f32.mrf.mxu0
    %v2632 = vadd.f32 %v2423, %v2631
    %v2633 = vpop.f32.mrf.mxu0
    %v2634 = vadd.f32 %v2423, %v2633
    %2635 = vmatmul.bf16.gmra.mxu0 %v2371
    %v2636 = vpop.f32.mrf.mxu0
    %v2637 = vadd.f32 %v2423, %v2636
    %v2638 = vpop.f32.mrf.mxu0
    %v2639 = vadd.f32 %v2423, %v2638
    %2640 = vmatmul.bf16.gmra.mxu0 %v2373
    %v2641 = vpop.f32.mrf.mxu0
    %v2642 = vadd.f32 %v2423, %v2641
    %v2643 = vpop.f32.mrf.mxu0
    %v2644 = vadd.f32 %v2423, %v2643
    %2645 = vmatmul.bf16.gmra.mxu0 %v2375
    %v2646 = vpop.f32.mrf.mxu0
    %v2647 = vadd.f32 %v2423, %v2646
    %v2648 = vpop.f32.mrf.mxu0
    %v2649 = vadd.f32 %v2423, %v2648
    %2650 = vmatmul.bf16.gmra.mxu0 %v2377
    %v2651 = vpop.f32.mrf.mxu0
    %v2652 = vadd.f32 %v2423, %v2651
    %v2653 = vpop.f32.mrf.mxu0
    %v2654 = vadd.f32 %v2423, %v2653
    %2655 = vmatmul.bf16.gmra.mxu0 %v2379
    %v2656 = vpop.f32.mrf.mxu0
    %v2657 = vadd.f32 %v2423, %v2656
    %v2658 = vpop.f32.mrf.mxu0
    %v2659 = vadd.f32 %v2423, %v2658
    %2660 = vmatmul.bf16.gmra.mxu0 %v2381
    %v2661 = vpop.f32.mrf.mxu0
    %v2662 = vadd.f32 %v2423, %v2661
    %v2663 = vpop.f32.mrf.mxu0
    %v2664 = vadd.f32 %v2423, %v2663
    %2665 = vmatmul.bf16.gmra.mxu0 %v2383
    %v2666 = vpop.f32.mrf.mxu0
    %v2667 = vadd.f32 %v2423, %v2666
    %v2668 = vpop.f32.mrf.mxu0
    %v2669 = vadd.f32 %v2423, %v2668
    %2670 = vmatmul.bf16.gmra.mxu0 %v2385
    %v2671 = vpop.f32.mrf.mxu0
    %v2672 = vadd.f32 %v2423, %v2671
    %v2673 = vpop.f32.mrf.mxu0
    %v2674 = vadd.f32 %v2423, %v2673
    %2675 = vdwg.mxu0
    %2676 = vmatpush.bf16.msra.mxu0 %v2553
    %2677 = vmatpush.bf16.msra.mxu0 %v2551
    %2678 = vmatpush.bf16.msra.mxu0 %v2549
    %2679 = vmatpush.bf16.msra.mxu0 %v2547
    %2680 = vmatpush.bf16.msra.mxu0 %v2545
    %2681 = vmatpush.bf16.msra.mxu0 %v2543
    %2682 = vmatpush.bf16.msra.mxu0 %v2541
    %2683 = vmatpush.bf16.msra.mxu0 %v2539
    %2684 = vmatmul.bf16.gmra.mxu0 %v2356
    %v2685 = vpop.f32.mrf.mxu0
    %v2686 = vadd.f32 %v2597, %v2685
    %v2687 = vpop.f32.mrf.mxu0
    %v2688 = vadd.f32 %v2599, %v2687
    %2689 = vmatmul.bf16.gmra.mxu0 %v2358
    %v2690 = vpop.f32.mrf.mxu0
    %v2691 = vadd.f32 %v2602, %v2690
    %v2692 = vpop.f32.mrf.mxu0
    %v2693 = vadd.f32 %v2604, %v2692
    %2694 = vmatmul.bf16.gmra.mxu0 %v2360
    %v2695 = vpop.f32.mrf.mxu0
    %v2696 = vadd.f32 %v2607, %v2695
    %v2697 = vpop.f32.mrf.mxu0
    %v2698 = vadd.f32 %v2609, %v2697
    %2699 = vmatmul.bf16.gmra.mxu0 %v2362
    %v2700 = vpop.f32.mrf.mxu0
    %v2701 = vadd.f32 %v2612, %v2700
    %v2702 = vpop.f32.mrf.mxu0
    %v2703 = vadd.f32 %v2614, %v2702
    %2704 = vmatmul.bf16.gmra.mxu0 %v2364
    %v2705 = vpop.f32.mrf.mxu0
    %v2706 = vadd.f32 %v2617, %v2705
    %v2707 = vpop.f32.mrf.mxu0
    %v2708 = vadd.f32 %v2619, %v2707
    %2709 = vmatmul.bf16.gmra.mxu0 %v2366
    %v2710 = vpop.f32.mrf.mxu0
    %v2711 = vadd.f32 %v2622, %v2710
    %v2712 = vpop.f32.mrf.mxu0
    %v2713 = vadd.f32 %v2624, %v2712
    %2714 = vmatmul.bf16.gmra.mxu0 %v2368
    %v2715 = vpop.f32.mrf.mxu0
    %v2716 = vadd.f32 %v2627, %v2715
    %v2717 = vpop.f32.mrf.mxu0
    %v2718 = vadd.f32 %v2629, %v2717
    %2719 = vmatmul.bf16.gmra.mxu0 %v2370
    %v2720 = vpop.f32.mrf.mxu0
    %v2721 = vadd.f32 %v2632, %v2720
    %v2722 = vpop.f32.mrf.mxu0
    %v2723 = vadd.f32 %v2634, %v2722
    %2724 = vmatmul.bf16.gmra.mxu0 %v2372
    %v2725 = vpop.f32.mrf.mxu0
    %v2726 = vadd.f32 %v2637, %v2725
    %v2727 = vpop.f32.mrf.mxu0
    %v2728 = vadd.f32 %v2639, %v2727
    %2729 = vmatmul.bf16.gmra.mxu0 %v2374
    %v2730 = vpop.f32.mrf.mxu0
    %v2731 = vadd.f32 %v2642, %v2730
    %v2732 = vpop.f32.mrf.mxu0
    %v2733 = vadd.f32 %v2644, %v2732
    %2734 = vmatmul.bf16.gmra.mxu0 %v2376
    %v2735 = vpop.f32.mrf.mxu0
    %v2736 = vadd.f32 %v2647, %v2735
    %v2737 = vpop.f32.mrf.mxu0
    %v2738 = vadd.f32 %v2649, %v2737
    %2739 = vmatmul.bf16.gmra.mxu0 %v2378
    %v2740 = vpop.f32.mrf.mxu0
    %v2741 = vadd.f32 %v2652, %v2740
    %v2742 = vpop.f32.mrf.mxu0
    %v2743 = vadd.f32 %v2654, %v2742
    %2744 = vmatmul.bf16.gmra.mxu0 %v2380
    %v2745 = vpop.f32.mrf.mxu0
    %v2746 = vadd.f32 %v2657, %v2745
    %v2747 = vpop.f32.mrf.mxu0
    %v2748 = vadd.f32 %v2659, %v2747
    %2749 = vmatmul.bf16.gmra.mxu0 %v2382
    %v2750 = vpop.f32.mrf.mxu0
    %v2751 = vadd.f32 %v2662, %v2750
    %v2752 = vpop.f32.mrf.mxu0
    %v2753 = vadd.f32 %v2664, %v2752
    %2754 = vmatmul.bf16.gmra.mxu0 %v2384
    %v2755 = vpop.f32.mrf.mxu0
    %v2756 = vadd.f32 %v2667, %v2755
    %v2757 = vpop.f32.mrf.mxu0
    %v2758 = vadd.f32 %v2669, %v2757
    %2759 = vmatmul.bf16.gmra.mxu0 %v2386
    %v2760 = vpop.f32.mrf.mxu0
    %v2761 = vadd.f32 %v2672, %v2760
    %v2762 = vpop.f32.mrf.mxu0
    %v2763 = vadd.f32 %v2674, %v2762
    %2764 = vdwg.mxu0
    %2765 = vmatpush.bf16.msra.mxu0 %v2538
    %2766 = vmatpush.bf16.msra.mxu0 %v2536
    %2767 = vmatpush.bf16.msra.mxu0 %v2534
    %2768 = vmatpush.bf16.msra.mxu0 %v2532
    %2769 = vmatpush.bf16.msra.mxu0 %v2530
    %2770 = vmatpush.bf16.msra.mxu0 %v2528
    %2771 = vmatpush.bf16.msra.mxu0 %v2526
    %2772 = vmatpush.bf16.msra.mxu0 %v2524
    %2773 = vmatmul.bf16.gmra.mxu0 %v2355
    %v2774 = vpop.f32.mrf.mxu0
    %v2775 = vadd.f32 %v2424, %v2774
    %v2776 = vpop.f32.mrf.mxu0
    %v2777 = vadd.f32 %v2424, %v2776
    %2778 = vmatmul.bf16.gmra.mxu0 %v2357
    %v2779 = vpop.f32.mrf.mxu0
    %v2780 = vadd.f32 %v2424, %v2779
    %v2781 = vpop.f32.mrf.mxu0
    %v2782 = vadd.f32 %v2424, %v2781
    %2783 = vmatmul.bf16.gmra.mxu0 %v2359
    %v2784 = vpop.f32.mrf.mxu0
    %v2785 = vadd.f32 %v2424, %v2784
    %v2786 = vpop.f32.mrf.mxu0
    %v2787 = vadd.f32 %v2424, %v2786
    %2788 = vmatmul.bf16.gmra.mxu0 %v2361
    %v2789 = vpop.f32.mrf.mxu0
    %v2790 = vadd.f32 %v2424, %v2789
    %v2791 = vpop.f32.mrf.mxu0
    %v2792 = vadd.f32 %v2424, %v2791
    %2793 = vmatmul.bf16.gmra.mxu0 %v2363
    %v2794 = vpop.f32.mrf.mxu0
    %v2795 = vadd.f32 %v2424, %v2794
    %v2796 = vpop.f32.mrf.mxu0
    %v2797 = vadd.f32 %v2424, %v2796
    %2798 = vmatmul.bf16.gmra.mxu0 %v2365
    %v2799 = vpop.f32.mrf.mxu0
    %v2800 = vadd.f32 %v2424, %v2799
    %v2801 = vpop.f32.mrf.mxu0
    %v2802 = vadd.f32 %v2424, %v2801
    %2803 = vmatmul.bf16.gmra.mxu0 %v2367
    %v2804 = vpop.f32.mrf.mxu0
    %v2805 = vadd.f32 %v2424, %v2804
    %v2806 = vpop.f32.mrf.mxu0
    %v2807 = vadd.f32 %v2424, %v2806
    %2808 = vmatmul.bf16.gmra.mxu0 %v2369
    %v2809 = vpop.f32.mrf.mxu0
    %v2810 = vadd.f32 %v2424, %v2809
    %v2811 = vpop.f32.mrf.mxu0
    %v2812 = vadd.f32 %v2424, %v2811
    %2813 = vmatmul.bf16.gmra.mxu0 %v2371
    %v2814 = vpop.f32.mrf.mxu0
    %v2815 = vadd.f32 %v2424, %v2814
    %v2816 = vpop.f32.mrf.mxu0
    %v2817 = vadd.f32 %v2424, %v2816
    %2818 = vmatmul.bf16.gmra.mxu0 %v2373
    %v2819 = vpop.f32.mrf.mxu0
    %v2820 = vadd.f32 %v2424, %v2819
    %v2821 = vpop.f32.mrf.mxu0
    %v2822 = vadd.f32 %v2424, %v2821
    %2823 = vmatmul.bf16.gmra.mxu0 %v2375
    %v2824 = vpop.f32.mrf.mxu0
    %v2825 = vadd.f32 %v2424, %v2824
    %v2826 = vpop.f32.mrf.mxu0
    %v2827 = vadd.f32 %v2424, %v2826
    %2828 = vmatmul.bf16.gmra.mxu0 %v2377
    %v2829 = vpop.f32.mrf.mxu0
    %v2830 = vadd.f32 %v2424, %v2829
    %v2831 = vpop.f32.mrf.mxu0
    %v2832 = vadd.f32 %v2424, %v2831
    %2833 = vmatmul.bf16.gmra.mxu0 %v2379
    %v2834 = vpop.f32.mrf.mxu0
    %v2835 = vadd.f32 %v2424, %v2834
    %v2836 = vpop.f32.mrf.mxu0
    %v2837 = vadd.f32 %v2424, %v2836
    %2838 = vmatmul.bf16.gmra.mxu0 %v2381
    %v2839 = vpop.f32.mrf.mxu0
    %v2840 = vadd.f32 %v2424, %v2839
    %v2841 = vpop.f32.mrf.mxu0
    %v2842 = vadd.f32 %v2424, %v2841
    %2843 = vmatmul.bf16.gmra.mxu0 %v2383
    %v2844 = vpop.f32.mrf.mxu0
    %v2845 = vadd.f32 %v2424, %v2844
    %v2846 = vpop.f32.mrf.mxu0
    %v2847 = vadd.f32 %v2424, %v2846
    %2848 = vmatmul.bf16.gmra.mxu0 %v2385
    %v2849 = vpop.f32.mrf.mxu0
    %v2850 = vadd.f32 %v2424, %v2849
    %v2851 = vpop.f32.mrf.mxu0
    %v2852 = vadd.f32 %v2424, %v2851
    %2853 = vdwg.mxu0
    %2854 = vmatpush.bf16.msra.mxu0 %v2554
    %2855 = vmatpush.bf16.msra.mxu0 %v2552
    %2856 = vmatpush.bf16.msra.mxu0 %v2550
    %2857 = vmatpush.bf16.msra.mxu0 %v2548
    %2858 = vmatpush.bf16.msra.mxu0 %v2546
    %2859 = vmatpush.bf16.msra.mxu0 %v2544
    %2860 = vmatpush.bf16.msra.mxu0 %v2542
    %2861 = vmatpush.bf16.msra.mxu0 %v2540
    %2862 = vmatmul.bf16.gmra.mxu0 %v2356
    %v2863 = vpop.f32.mrf.mxu0
    %v2864 = vadd.f32 %v2775, %v2863
    %v2865 = vpop.f32.mrf.mxu0
    %v2866 = vadd.f32 %v2777, %v2865
    %2867 = vmatmul.bf16.gmra.mxu0 %v2358
    %v2868 = vpop.f32.mrf.mxu0
    %v2869 = vadd.f32 %v2780, %v2868
    %v2870 = vpop.f32.mrf.mxu0
    %v2871 = vadd.f32 %v2782, %v2870
    %2872 = vmatmul.bf16.gmra.mxu0 %v2360
    %v2873 = vpop.f32.mrf.mxu0
    %v2874 = vadd.f32 %v2785, %v2873
    %v2875 = vpop.f32.mrf.mxu0
    %v2876 = vadd.f32 %v2787, %v2875
    %2877 = vmatmul.bf16.gmra.mxu0 %v2362
    %v2878 = vpop.f32.mrf.mxu0
    %v2879 = vadd.f32 %v2790, %v2878
    %v2880 = vpop.f32.mrf.mxu0
    %v2881 = vadd.f32 %v2792, %v2880
    %2882 = vmatmul.bf16.gmra.mxu0 %v2364
    %v2883 = vpop.f32.mrf.mxu0
    %v2884 = vadd.f32 %v2795, %v2883
    %v2885 = vpop.f32.mrf.mxu0
    %v2886 = vadd.f32 %v2797, %v2885
    %2887 = vmatmul.bf16.gmra.mxu0 %v2366
    %v2888 = vpop.f32.mrf.mxu0
    %v2889 = vadd.f32 %v2800, %v2888
    %v2890 = vpop.f32.mrf.mxu0
    %v2891 = vadd.f32 %v2802, %v2890
    %2892 = vmatmul.bf16.gmra.mxu0 %v2368
    %v2893 = vpop.f32.mrf.mxu0
    %v2894 = vadd.f32 %v2805, %v2893
    %v2895 = vpop.f32.mrf.mxu0
    %v2896 = vadd.f32 %v2807, %v2895
    %2897 = vmatmul.bf16.gmra.mxu0 %v2370
    %v2898 = vpop.f32.mrf.mxu0
    %v2899 = vadd.f32 %v2810, %v2898
    %v2900 = vpop.f32.mrf.mxu0
    %v2901 = vadd.f32 %v2812, %v2900
    %2902 = vmatmul.bf16.gmra.mxu0 %v2372
    %v2903 = vpop.f32.mrf.mxu0
    %v2904 = vadd.f32 %v2815, %v2903
    %v2905 = vpop.f32.mrf.mxu0
    %v2906 = vadd.f32 %v2817, %v2905
    %2907 = vmatmul.bf16.gmra.mxu0 %v2374
    %v2908 = vpop.f32.mrf.mxu0
    %v2909 = vadd.f32 %v2820, %v2908
    %v2910 = vpop.f32.mrf.mxu0
    %v2911 = vadd.f32 %v2822, %v2910
    %2912 = vmatmul.bf16.gmra.mxu0 %v2376
    %v2913 = vpop.f32.mrf.mxu0
    %v2914 = vadd.f32 %v2825, %v2913
    %v2915 = vpop.f32.mrf.mxu0
    %v2916 = vadd.f32 %v2827, %v2915
    %2917 = vmatmul.bf16.gmra.mxu0 %v2378
    %v2918 = vpop.f32.mrf.mxu0
    %v2919 = vadd.f32 %v2830, %v2918
    %v2920 = vpop.f32.mrf.mxu0
    %v2921 = vadd.f32 %v2832, %v2920
    %2922 = vmatmul.bf16.gmra.mxu0 %v2380
    %v2923 = vpop.f32.mrf.mxu0
    %v2924 = vadd.f32 %v2835, %v2923
    %v2925 = vpop.f32.mrf.mxu0
    %v2926 = vadd.f32 %v2837, %v2925
    %2927 = vmatmul.bf16.gmra.mxu0 %v2382
    %v2928 = vpop.f32.mrf.mxu0
    %v2929 = vadd.f32 %v2840, %v2928
    %v2930 = vpop.f32.mrf.mxu0
    %v2931 = vadd.f32 %v2842, %v2930
    %2932 = vmatmul.bf16.gmra.mxu0 %v2384
    %v2933 = vpop.f32.mrf.mxu0
    %v2934 = vadd.f32 %v2845, %v2933
    %v2935 = vpop.f32.mrf.mxu0
    %v2936 = vadd.f32 %v2847, %v2935
    %2937 = vmatmul.bf16.gmra.mxu0 %v2386
    %v2938 = vpop.f32.mrf.mxu0
    %v2939 = vadd.f32 %v2850, %v2938
    %v2940 = vpop.f32.mrf.mxu0
    %v2941 = vadd.f32 %v2852, %v2940
    %2942 = vdwg.mxu0
    %v2943 = vmax.f32 %v2686, 0.0
    %v2944 = vmax.f32 %v2864, 0.0
    %v2945 = vmax.f32 %v2688, 0.0
    %v2946 = vmax.f32 %v2866, 0.0
    %v2947 = vmax.f32 %v2691, 0.0
    %v2948 = vmax.f32 %v2869, 0.0
    %v2949 = vmax.f32 %v2693, 0.0
    %v2950 = vmax.f32 %v2871, 0.0
    %v2951 = vmax.f32 %v2696, 0.0
    %v2952 = vmax.f32 %v2874, 0.0
    %v2953 = vmax.f32 %v2698, 0.0
    %v2954 = vmax.f32 %v2876, 0.0
    %v2955 = vmax.f32 %v2701, 0.0
    %v2956 = vmax.f32 %v2879, 0.0
    %v2957 = vmax.f32 %v2703, 0.0
    %v2958 = vmax.f32 %v2881, 0.0
    %v2959 = vmax.f32 %v2706, 0.0
    %v2960 = vmax.f32 %v2884, 0.0
    %v2961 = vmax.f32 %v2708, 0.0
    %v2962 = vmax.f32 %v2886, 0.0
    %v2963 = vmax.f32 %v2711, 0.0
    %v2964 = vmax.f32 %v2889, 0.0
    %v2965 = vmax.f32 %v2713, 0.0
    %v2966 = vmax.f32 %v2891, 0.0
    %v2967 = vmax.f32 %v2716, 0.0
    %v2968 = vmax.f32 %v2894, 0.0
    %v2969 = vmax.f32 %v2718, 0.0
    %v2970 = vmax.f32 %v2896, 0.0
    %v2971 = vmax.f32 %v2721, 0.0
    %v2972 = vmax.f32 %v2899, 0.0
    %v2973 = vmax.f32 %v2723, 0.0
    %v2974 = vmax.f32 %v2901, 0.0
    %v2975 = vmax.f32 %v2726, 0.0
    %v2976 = vmax.f32 %v2904, 0.0
    %v2977 = vmax.f32 %v2728, 0.0
    %v2978 = vmax.f32 %v2906, 0.0
    %v2979 = vmax.f32 %v2731, 0.0
    %v2980 = vmax.f32 %v2909, 0.0
    %v2981 = vmax.f32 %v2733, 0.0
    %v2982 = vmax.f32 %v2911, 0.0
    %v2983 = vmax.f32 %v2736, 0.0
    %v2984 = vmax.f32 %v2914, 0.0
    %v2985 = vmax.f32 %v2738, 0.0
    %v2986 = vmax.f32 %v2916, 0.0
    %v2987 = vmax.f32 %v2741, 0.0
    %v2988 = vmax.f32 %v2919, 0.0
    %v2989 = vmax.f32 %v2743, 0.0
    %v2990 = vmax.f32 %v2921, 0.0
    %v2991 = vmax.f32 %v2746, 0.0
    %v2992 = vmax.f32 %v2924, 0.0
    %v2993 = vmax.f32 %v2748, 0.0
    %v2994 = vmax.f32 %v2926, 0.0
    %v2995 = vmax.f32 %v2751, 0.0
    %v2996 = vmax.f32 %v2929, 0.0
    %v2997 = vmax.f32 %v2753, 0.0
    %v2998 = vmax.f32 %v2931, 0.0
    %v2999 = vmax.f32 %v2756, 0.0
    %v3000 = vmax.f32 %v2934, 0.0
    %v3001 = vmax.f32 %v2758, 0.0
    %v3002 = vmax.f32 %v2936, 0.0
    %v3003 = vmax.f32 %v2761, 0.0
    %v3004 = vmax.f32 %v2939, 0.0
    %v3005 = vmax.f32 %v2763, 0.0
    %v3006 = vmax.f32 %v2941, 0.0
    %v3007 = vpack.c.bf16 %v2945, %v2943
    %v3008 = vpack.c.bf16 %v2946, %v2944
    %v3009 = vpack.c.bf16 %v2949, %v2947
    %v3010 = vpack.c.bf16 %v2950, %v2948
    %v3011 = vpack.c.bf16 %v2953, %v2951
    %v3012 = vpack.c.bf16 %v2954, %v2952
    %v3013 = vpack.c.bf16 %v2957, %v2955
    %v3014 = vpack.c.bf16 %v2958, %v2956
    %v3015 = vpack.c.bf16 %v2961, %v2959
    %v3016 = vpack.c.bf16 %v2962, %v2960
    %v3017 = vpack.c.bf16 %v2965, %v2963
    %v3018 = vpack.c.bf16 %v2966, %v2964
    %v3019 = vpack.c.bf16 %v2969, %v2967
    %v3020 = vpack.c.bf16 %v2970, %v2968
    %v3021 = vpack.c.bf16 %v2973, %v2971
    %v3022 = vpack.c.bf16 %v2974, %v2972
    %v3023 = vpack.c.bf16 %v2977, %v2975
    %v3024 = vpack.c.bf16 %v2978, %v2976
    %v3025 = vpack.c.bf16 %v2981, %v2979
    %v3026 = vpack.c.bf16 %v2982, %v2980
    %v3027 = vpack.c.bf16 %v2985, %v2983
    %v3028 = vpack.c.bf16 %v2986, %v2984
    %v3029 = vpack.c.bf16 %v2989, %v2987
    %v3030 = vpack.c.bf16 %v2990, %v2988
    %v3031 = vpack.c.bf16 %v2993, %v2991
    %v3032 = vpack.c.bf16 %v2994, %v2992
    %v3033 = vpack.c.bf16 %v2997, %v2995
    %v3034 = vpack.c.bf16 %v2998, %v2996
    %v3035 = vpack.c.bf16 %v3001, %v2999
    %v3036 = vpack.c.bf16 %v3002, %v3000
    %v3037 = vpack.c.bf16 %v3005, %v3003
    %v3038 = vpack.c.bf16 %v3006, %v3004
    %v3039 = vld [vmem:[%s5] sm:$0xf]
    %v3040 = vld [vmem:[%s5 + $0x4] sm:$0xf]
    %v3041 = vld [vmem:[%s5 + $0x8] sm:$0xf]
    %v3042 = vld [vmem:[%s5 + $0xc] sm:$0xf]
    %v3043 = vld [vmem:[%s5 + $0x10] sm:$0xf]
    %v3044 = vld [vmem:[%s5 + $0x14] sm:$0xf]
    %v3045 = vld [vmem:[%s5 + $0x18] sm:$0xf]
    %v3046 = vld [vmem:[%s5 + $0x1c] sm:$0xf]
    %v3047 = vld [vmem:[%s5 + $0x20] sm:$0xf]
    %v3048 = vld [vmem:[%s5 + $0x24] sm:$0xf]
    %v3049 = vld [vmem:[%s5 + $0x28] sm:$0xf]
    %v3050 = vld [vmem:[%s5 + $0x2c] sm:$0xf]
    %v3051 = vld [vmem:[%s5 + $0x30] sm:$0xf]
    %v3052 = vld [vmem:[%s5 + $0x34] sm:$0xf]
    %v3053 = vld [vmem:[%s5 + $0x38] sm:$0xf]
    %v3054 = vld [vmem:[%s5 + $0x3c] sm:$0xf]
    %v3055 = vld [vmem:[%s5 + $0x40] sm:$0xf]
    %v3056 = vld [vmem:[%s5 + $0x44] sm:$0xf]
    %v3057 = vld [vmem:[%s5 + $0x48] sm:$0xf]
    %v3058 = vld [vmem:[%s5 + $0x4c] sm:$0xf]
    %v3059 = vld [vmem:[%s5 + $0x50] sm:$0xf]
    %v3060 = vld [vmem:[%s5 + $0x54] sm:$0xf]
    %v3061 = vld [vmem:[%s5 + $0x58] sm:$0xf]
    %v3062 = vld [vmem:[%s5 + $0x5c] sm:$0xf]
    %v3063 = vld [vmem:[%s5 + $0x60] sm:$0xf]
    %v3064 = vld [vmem:[%s5 + $0x64] sm:$0xf]
    %v3065 = vld [vmem:[%s5 + $0x68] sm:$0xf]
    %v3066 = vld [vmem:[%s5 + $0x6c] sm:$0xf]
    %v3067 = vld [vmem:[%s5 + $0x70] sm:$0xf]
    %v3068 = vld [vmem:[%s5 + $0x74] sm:$0xf]
    %v3069 = vld [vmem:[%s5 + $0x78] sm:$0xf]
    %v3070 = vld [vmem:[%s5 + $0x7c] sm:$0xf]
    %v3071 = vld [vmem:[%s6] sm:$0x1]
    %v3073 = vperm.slane %v3071, 0
    %v3107 = vunpack.c.l.b16 %v3039
    %v3108 = vunpack.c.l.b16 %v3040
    %v3109 = vunpack.c.l.b16 %v3041
    %v3110 = vunpack.c.l.b16 %v3042
    %v3111 = vunpack.c.l.b16 %v3043
    %v3112 = vunpack.c.l.b16 %v3044
    %v3113 = vunpack.c.l.b16 %v3045
    %v3114 = vunpack.c.l.b16 %v3046
    %v3115 = vunpack.c.l.b16 %v3047
    %v3116 = vunpack.c.l.b16 %v3048
    %v3117 = vunpack.c.l.b16 %v3049
    %v3118 = vunpack.c.l.b16 %v3050
    %v3119 = vunpack.c.l.b16 %v3051
    %v3120 = vunpack.c.l.b16 %v3052
    %v3121 = vunpack.c.l.b16 %v3053
    %v3122 = vunpack.c.l.b16 %v3054
    %v3123 = vunpack.c.l.b16 %v3055
    %v3124 = vunpack.c.l.b16 %v3056
    %v3125 = vunpack.c.l.b16 %v3057
    %v3126 = vunpack.c.l.b16 %v3058
    %v3127 = vunpack.c.l.b16 %v3059
    %v3128 = vunpack.c.l.b16 %v3060
    %v3129 = vunpack.c.l.b16 %v3061
    %v3130 = vunpack.c.l.b16 %v3062
    %v3131 = vunpack.c.l.b16 %v3063
    %v3132 = vunpack.c.l.b16 %v3064
    %v3133 = vunpack.c.l.b16 %v3065
    %v3134 = vunpack.c.l.b16 %v3066
    %v3135 = vunpack.c.l.b16 %v3067
    %v3136 = vunpack.c.l.b16 %v3068
    %v3137 = vunpack.c.l.b16 %v3069
    %v3138 = vunpack.c.l.b16 %v3070
    %v3139 = vpack.c.b16 %v3108, %v3107
    %v3140 = vpack.c.b16 %v3110, %v3109
    %v3141 = vpack.c.b16 %v3112, %v3111
    %v3142 = vpack.c.b16 %v3114, %v3113
    %v3143 = vpack.c.b16 %v3116, %v3115
    %v3144 = vpack.c.b16 %v3118, %v3117
    %v3145 = vpack.c.b16 %v3120, %v3119
    %v3146 = vpack.c.b16 %v3122, %v3121
    %v3147 = vpack.c.b16 %v3124, %v3123
    %v3148 = vpack.c.b16 %v3126, %v3125
    %v3149 = vpack.c.b16 %v3128, %v3127
    %v3150 = vpack.c.b16 %v3130, %v3129
    %v3151 = vpack.c.b16 %v3132, %v3131
    %v3152 = vpack.c.b16 %v3134, %v3133
    %v3153 = vpack.c.b16 %v3136, %v3135
    %v3154 = vpack.c.b16 %v3138, %v3137
    %3171 = vmatpush.bf16.msra.mxu0 %v3146
    %3172 = vmatpush.bf16.msra.mxu0 %v3145
    %3173 = vmatpush.bf16.msra.mxu0 %v3144
    %3174 = vmatpush.bf16.msra.mxu0 %v3143
    %3175 = vmatpush.bf16.msra.mxu0 %v3142
    %3176 = vmatpush.bf16.msra.mxu0 %v3141
    %3177 = vmatpush.bf16.msra.mxu0 %v3140
    %3178 = vmatpush.bf16.msra.mxu0 %v3139
    %3179 = vmatmul.bf16.gmra.mxu0 %v3007
    %v3180 = vpop.f32.mrf.mxu0
    %v3181 = vadd.f32 %v3073, %v3180
    %v3182 = vpop.f32.mrf.mxu0
    %v3183 = vadd.f32 %v3073, %v3182
    %3184 = vmatmul.bf16.gmra.mxu0 %v3009
    %v3185 = vpop.f32.mrf.mxu0
    %v3186 = vadd.f32 %v3073, %v3185
    %v3187 = vpop.f32.mrf.mxu0
    %v3188 = vadd.f32 %v3073, %v3187
    %3189 = vmatmul.bf16.gmra.mxu0 %v3011
    %v3190 = vpop.f32.mrf.mxu0
    %v3191 = vadd.f32 %v3073, %v3190
    %v3192 = vpop.f32.mrf.mxu0
    %v3193 = vadd.f32 %v3073, %v3192
    %3194 = vmatmul.bf16.gmra.mxu0 %v3013
    %v3195 = vpop.f32.mrf.mxu0
    %v3196 = vadd.f32 %v3073, %v3195
    %v3197 = vpop.f32.mrf.mxu0
    %v3198 = vadd.f32 %v3073, %v3197
    %3199 = vmatmul.bf16.gmra.mxu0 %v3015
    %v3200 = vpop.f32.mrf.mxu0
    %v3201 = vadd.f32 %v3073, %v3200
    %v3202 = vpop.f32.mrf.mxu0
    %v3203 = vadd.f32 %v3073, %v3202
    %3204 = vmatmul.bf16.gmra.mxu0 %v3017
    %v3205 = vpop.f32.mrf.mxu0
    %v3206 = vadd.f32 %v3073, %v3205
    %v3207 = vpop.f32.mrf.mxu0
    %v3208 = vadd.f32 %v3073, %v3207
    %3209 = vmatmul.bf16.gmra.mxu0 %v3019
    %v3210 = vpop.f32.mrf.mxu0
    %v3211 = vadd.f32 %v3073, %v3210
    %v3212 = vpop.f32.mrf.mxu0
    %v3213 = vadd.f32 %v3073, %v3212
    %3214 = vmatmul.bf16.gmra.mxu0 %v3021
    %v3215 = vpop.f32.mrf.mxu0
    %v3216 = vadd.f32 %v3073, %v3215
    %v3217 = vpop.f32.mrf.mxu0
    %v3218 = vadd.f32 %v3073, %v3217
    %3219 = vmatmul.bf16.gmra.mxu0 %v3023
    %v3220 = vpop.f32.mrf.mxu0
    %v3221 = vadd.f32 %v3073, %v3220
    %v3222 = vpop.f32.mrf.mxu0
    %v3223 = vadd.f32 %v3073, %v3222
    %3224 = vmatmul.bf16.gmra.mxu0 %v3025
    %v3225 = vpop.f32.mrf.mxu0
    %v3226 = vadd.f32 %v3073, %v3225
    %v3227 = vpop.f32.mrf.mxu0
    %v3228 = vadd.f32 %v3073, %v3227
    %3229 = vmatmul.bf16.gmra.mxu0 %v3027
    %v3230 = vpop.f32.mrf.mxu0
    %v3231 = vadd.f32 %v3073, %v3230
    %v3232 = vpop.f32.mrf.mxu0
    %v3233 = vadd.f32 %v3073, %v3232
    %3234 = vmatmul.bf16.gmra.mxu0 %v3029
    %v3235 = vpop.f32.mrf.mxu0
    %v3236 = vadd.f32 %v3073, %v3235
    %v3237 = vpop.f32.mrf.mxu0
    %v3238 = vadd.f32 %v3073, %v3237
    %3239 = vmatmul.bf16.gmra.mxu0 %v3031
    %v3240 = vpop.f32.mrf.mxu0
    %v3241 = vadd.f32 %v3073, %v3240
    %v3242 = vpop.f32.mrf.mxu0
    %v3243 = vadd.f32 %v3073, %v3242
    %3244 = vmatmul.bf16.gmra.mxu0 %v3033
    %v3245 = vpop.f32.mrf.mxu0
    %v3246 = vadd.f32 %v3073, %v3245
    %v3247 = vpop.f32.mrf.mxu0
    %v3248 = vadd.f32 %v3073, %v3247
    %3249 = vmatmul.bf16.gmra.mxu0 %v3035
    %v3250 = vpop.f32.mrf.mxu0
    %v3251 = vadd.f32 %v3073, %v3250
    %v3252 = vpop.f32.mrf.mxu0
    %v3253 = vadd.f32 %v3073, %v3252
    %3254 = vmatmul.bf16.gmra.mxu0 %v3037
    %v3255 = vpop.f32.mrf.mxu0
    %v3256 = vadd.f32 %v3073, %v3255
    %v3257 = vpop.f32.mrf.mxu0
    %v3258 = vadd.f32 %v3073, %v3257
    %3259 = vdwg.mxu0
    %3260 = vmatpush.bf16.msra.mxu0 %v3154
    %3261 = vmatpush.bf16.msra.mxu0 %v3153
    %3262 = vmatpush.bf16.msra.mxu0 %v3152
    %3263 = vmatpush.bf16.msra.mxu0 %v3151
    %3264 = vmatpush.bf16.msra.mxu0 %v3150
    %3265 = vmatpush.bf16.msra.mxu0 %v3149
    %3266 = vmatpush.bf16.msra.mxu0 %v3148
    %3267 = vmatpush.bf16.msra.mxu0 %v3147
    %3268 = vmatmul.bf16.gmra.mxu0 %v3008
    %v3269 = vpop.f32.mrf.mxu0
    %v3270 = vadd.f32 %v3181, %v3269
    %v3271 = vpop.f32.mrf.mxu0
    %v3272 = vadd.f32 %v3183, %v3271
    %3273 = vmatmul.bf16.gmra.mxu0 %v3010
    %v3274 = vpop.f32.mrf.mxu0
    %v3275 = vadd.f32 %v3186, %v3274
    %v3276 = vpop.f32.mrf.mxu0
    %v3277 = vadd.f32 %v3188, %v3276
    %3278 = vmatmul.bf16.gmra.mxu0 %v3012
    %v3279 = vpop.f32.mrf.mxu0
    %v3280 = vadd.f32 %v3191, %v3279
    %v3281 = vpop.f32.mrf.mxu0
    %v3282 = vadd.f32 %v3193, %v3281
    %3283 = vmatmul.bf16.gmra.mxu0 %v3014
    %v3284 = vpop.f32.mrf.mxu0
    %v3285 = vadd.f32 %v3196, %v3284
    %v3286 = vpop.f32.mrf.mxu0
    %v3287 = vadd.f32 %v3198, %v3286
    %3288 = vmatmul.bf16.gmra.mxu0 %v3016
    %v3289 = vpop.f32.mrf.mxu0
    %v3290 = vadd.f32 %v3201, %v3289
    %v3291 = vpop.f32.mrf.mxu0
    %v3292 = vadd.f32 %v3203, %v3291
    %3293 = vmatmul.bf16.gmra.mxu0 %v3018
    %v3294 = vpop.f32.mrf.mxu0
    %v3295 = vadd.f32 %v3206, %v3294
    %v3296 = vpop.f32.mrf.mxu0
    %v3297 = vadd.f32 %v3208, %v3296
    %3298 = vmatmul.bf16.gmra.mxu0 %v3020
    %v3299 = vpop.f32.mrf.mxu0
    %v3300 = vadd.f32 %v3211, %v3299
    %v3301 = vpop.f32.mrf.mxu0
    %v3302 = vadd.f32 %v3213, %v3301
    %3303 = vmatmul.bf16.gmra.mxu0 %v3022
    %v3304 = vpop.f32.mrf.mxu0
    %v3305 = vadd.f32 %v3216, %v3304
    %v3306 = vpop.f32.mrf.mxu0
    %v3307 = vadd.f32 %v3218, %v3306
    %3308 = vmatmul.bf16.gmra.mxu0 %v3024
    %v3309 = vpop.f32.mrf.mxu0
    %v3310 = vadd.f32 %v3221, %v3309
    %v3311 = vpop.f32.mrf.mxu0
    %v3312 = vadd.f32 %v3223, %v3311
    %3313 = vmatmul.bf16.gmra.mxu0 %v3026
    %v3314 = vpop.f32.mrf.mxu0
    %v3315 = vadd.f32 %v3226, %v3314
    %v3316 = vpop.f32.mrf.mxu0
    %v3317 = vadd.f32 %v3228, %v3316
    %3318 = vmatmul.bf16.gmra.mxu0 %v3028
    %v3319 = vpop.f32.mrf.mxu0
    %v3320 = vadd.f32 %v3231, %v3319
    %v3321 = vpop.f32.mrf.mxu0
    %v3322 = vadd.f32 %v3233, %v3321
    %3323 = vmatmul.bf16.gmra.mxu0 %v3030
    %v3324 = vpop.f32.mrf.mxu0
    %v3325 = vadd.f32 %v3236, %v3324
    %v3326 = vpop.f32.mrf.mxu0
    %v3327 = vadd.f32 %v3238, %v3326
    %3328 = vmatmul.bf16.gmra.mxu0 %v3032
    %v3329 = vpop.f32.mrf.mxu0
    %v3330 = vadd.f32 %v3241, %v3329
    %v3331 = vpop.f32.mrf.mxu0
    %v3332 = vadd.f32 %v3243, %v3331
    %3333 = vmatmul.bf16.gmra.mxu0 %v3034
    %v3334 = vpop.f32.mrf.mxu0
    %v3335 = vadd.f32 %v3246, %v3334
    %v3336 = vpop.f32.mrf.mxu0
    %v3337 = vadd.f32 %v3248, %v3336
    %3338 = vmatmul.bf16.gmra.mxu0 %v3036
    %v3339 = vpop.f32.mrf.mxu0
    %v3340 = vadd.f32 %v3251, %v3339
    %v3341 = vpop.f32.mrf.mxu0
    %v3342 = vadd.f32 %v3253, %v3341
    %3343 = vmatmul.bf16.gmra.mxu0 %v3038
    %v3344 = vpop.f32.mrf.mxu0
    %v3345 = vadd.f32 %v3256, %v3344
    %v3346 = vpop.f32.mrf.mxu0
    %v3347 = vadd.f32 %v3258, %v3346
    %3348 = vdwg.mxu0
    %3349 = vst [vmem:[#allocation5] sm:$0xff] %v3270
    %3350 = vst [vmem:[#allocation5 + $0x8] sm:$0xff] %v3272
    %3351 = vst [vmem:[#allocation5 + $0x10] sm:$0xff] %v3275
    %3352 = vst [vmem:[#allocation5 + $0x18] sm:$0xff] %v3277
    %3353 = vst [vmem:[#allocation5 + $0x20] sm:$0xff] %v3280
    %3354 = vst [vmem:[#allocation5 + $0x28] sm:$0xff] %v3282
    %3355 = vst [vmem:[#allocation5 + $0x30] sm:$0xff] %v3285
    %3356 = vst [vmem:[#allocation5 + $0x38] sm:$0xff] %v3287
    %3357 = vst [vmem:[#allocation5 + $0x40] sm:$0xff] %v3290
    %3358 = vst [vmem:[#allocation5 + $0x48] sm:$0xff] %v3292
    %3359 = vst [vmem:[#allocation5 + $0x50] sm:$0xff] %v3295
    %3360 = vst [vmem:[#allocation5 + $0x58] sm:$0xff] %v3297
    %3361 = vst [vmem:[#allocation5 + $0x60] sm:$0xff] %v3300
    %3362 = vst [vmem:[#allocation5 + $0x68] sm:$0xff] %v3302
    %3363 = vst [vmem:[#allocation5 + $0x70] sm:$0xff] %v3305
    %3364 = vst [vmem:[#allocation5 + $0x78] sm:$0xff] %v3307
    %3365 = vst [vmem:[#allocation5 + $0x80] sm:$0xff] %v3310
    %3366 = vst [vmem:[#allocation5 + $0x88] sm:$0xff] %v3312
    %3367 = vst [vmem:[#allocation5 + $0x90] sm:$0xff] %v3315
    %3368 = vst [vmem:[#allocation5 + $0x98] sm:$0xff] %v3317
    %3369 = vst [vmem:[#allocation5 + $0xa0] sm:$0xff] %v3320
    %3370 = vst [vmem:[#allocation5 + $0xa8] sm:$0xff] %v3322
    %3371 = vst [vmem:[#allocation5 + $0xb0] sm:$0xff] %v3325
    %3372 = vst [vmem:[#allocation5 + $0xb8] sm:$0xff] %v3327
    %3373 = vst [vmem:[#allocation5 + $0xc0] sm:$0xff] %v3330
    %3374 = vst [vmem:[#allocation5 + $0xc8] sm:$0xff] %v3332
    %3375 = vst [vmem:[#allocation5 + $0xd0] sm:$0xff] %v3335
    %3376 = vst [vmem:[#allocation5 + $0xd8] sm:$0xff] %v3337
    %3377 = vst [vmem:[#allocation5 + $0xe0] sm:$0xff] %v3340
    %3378 = vst [vmem:[#allocation5 + $0xe8] sm:$0xff] %v3342
    %3379 = vst [vmem:[#allocation5 + $0xf0] sm:$0xff] %v3345
    %3380 = vst [vmem:[#allocation5 + $0xf8] sm:$0xff] %v3347
    // Predicated region
    $region34: #{tpu_custom_call.1} parent=1 // pred_check
      _
    $region35: #{tpu_custom_call.1} parent=1 // pred_check_branch
      %3382 = sbr.rel (0) target = $region37
    $region36: #{tpu_custom_call.1} parent=1 // pred_region
      %3384 = vsyncadd [#allocation4], 0
      %s3385 = sshll.u32 [#allocation5], 4
      %s3386 = int_to_ptr.vmem [resolvable:$true] %s3385
      %s3387 = sshll.u32 %s7, 4
      %s3388 = int_to_ptr.hbm [resolvable:$true] %s3387
      %3393 = dma.vmem_to_hbm [thread:$0]  %s3386, 4096, %s3388, [#allocation4], 128, 128, 8
    $region37: #{tpu_custom_call.1} parent=1 // pred_fallthru
      _
    // Predicated region
    $region38: #{tpu_custom_call.1} parent=1 // pred_check
      _
    $region39: #{tpu_custom_call.1} parent=1 // pred_check_branch
      %3395 = sbr.rel (0) target = $region41
    $region40: #{tpu_custom_call.1} parent=1 // pred_region
      %3397 = dma.done [#allocation4], 4096
    $region41: #{tpu_custom_call.1} parent=1 // pred_fallthru
      _
    %3398 = vsyncpa [#allocation3], 1
    %3399 = vsyncpa [#allocation4], 1

</llo_original>
